<compile_context>
chip_gen: v7x
topology: tpu7x:2x2x1
jax: 0.10.0
libtpu: 0.0.40
codegen_flags: <defaults>
</compile_context>

<pallas_src>
import functools

import numpy as np

import jax
import jax.numpy as jnp
from jax.experimental import pallas as pl
from jax.experimental.pallas import tpu as pltpu


# ---------------------------------------------------------------------------
# In-kernel helpers
# ---------------------------------------------------------------------------
def _kstack(pref, kt, kh, T, H):
    """K-stacked conv LHS: bf16 concat over (dt, dh) taps of shifted (T, H, L) slabs.

    pref : (Tp, Hp, L) T/H-padded, channels-last (lane = w*C + c) activation ref (f32).
    Returns (T*H, kt*kh*L) bf16 -- one MXU operand per conv layer.
    """
    L = pref.shape[-1]
    parts = []
    for dt in range(kt):
        for dh in range(kh):
            slab = pref[dt:dt + T, dh:dh + H, :].reshape(T * H, L)
            parts.append(slab.astype(jnp.bfloat16))
    return parts[0] if len(parts) == 1 else jnp.concatenate(parts, axis=1)


def _fused_forward_kernel(x_ref, face_ref, band1_ref, bandm_ref, bandh_ref,
                          vecs_ref, sel_ref, head_ref, out_ref, pB, pC, pD,
                          *, T, H, W, Cm):
    """Whole RppgAtt_v2 forward for one batch element; activations stay in VMEM."""
    La = W * Cm          # activation lane width (channels-last, W*C)
    Lh = W * 4           # heads lane width (1 att + 3 sig channels)
    Ls = W * 3           # blended-video lane width
    f32 = jnp.float32

    def vec(i, width):                     # (1, width) f32 shift/scale row vector
        return vecs_ref[i:i + 1, :width]

    def conv(pref, kt, kh, band, shift):   # one K-stacked bf16 MXU matmul per layer
        lhs = _kstack(pref, kt, kh, T, H)
        return jnp.dot(lhs, band, preferred_element_type=f32) + shift

    # T/H zero halo of the residual-trunk scratch buffers (interior rewritten below).
    pB[...] = jnp.zeros_like(pB)
    pC[...] = jnp.zeros_like(pC)

    def stash(ref, val):                   # un-padded activation -> halo'd VMEM buffer
        ref[1:1 + T, 1:1 + H, :] = val.reshape(T, H, La)

    # -- conv2d1: Conv3d(4->mc, 1x5x5, zero pad (0,2,2)) + bias -> ReLU -> BN --------
    y = conv(x_ref, 1, 5, band1_ref[...], vec(0, La))
    f0 = jnp.maximum(y, 0.0) * vec(1, La) + vec(2, La)

    # -- res1: conv3x3x3->BN->ReLU -> conv3x3x3->BN -> (+x) -> ReLU ------------------
    stash(pB, f0)
    u = jnp.maximum(conv(pB, 3, 3, bandm_ref[0], vec(3, La)), 0.0)
    stash(pC, u)
    f1 = jnp.maximum(conv(pC, 3, 3, bandm_ref[1], vec(4, La)) + f0, 0.0)

    # -- res2 ------------------------------------------------------------------------
    stash(pB, f1)
    v = jnp.maximum(conv(pB, 3, 3, bandm_ref[2], vec(5, La)), 0.0)
    stash(pC, v)
    f2 = jnp.maximum(conv(pC, 3, 3, bandm_ref[3], vec(6, La)) + f1, 0.0)

    # -- conv_final: conv3x3x3 -> BN -> ReLU ------------------------------------------
    stash(pB, f2)
    f3 = jnp.maximum(conv(pB, 3, 3, bandm_ref[4], vec(7, La)), 0.0)

    # -- attention(sigmoid) + signal(tanh) heads: 3x5x5, replicate pad (1,2,2) --------
    # W replicate-padding is folded into bandh; build the T/H replicate halo in VMEM.
    x3 = f3.reshape(T, H, La)
    pD[1:1 + T, 2:2 + H, :] = x3
    top, bot = x3[:, 0:1, :], x3[:, H - 1:H, :]
    pD[1:1 + T, 0:1, :] = top
    pD[1:1 + T, 1:2, :] = top
    pD[1:1 + T, 2 + H:3 + H, :] = bot
    pD[1:1 + T, 3 + H:4 + H, :] = bot
    pD[0:1, :, :] = pD[1:2, :, :]                  # temporal replicate (front)
    pD[T + 1:T + 2, :, :] = pD[T:T + 1, :, :]      # temporal replicate (back)

    yh = conv(pD, 3, 5, bandh_ref[...], vec(8, Lh))
    lane = jax.lax.broadcasted_iota(jnp.int32, yh.shape, 1)
    is_att = (lane % 4) == 0
    # single EUP pass: sigmoid(x) = 0.5 * (tanh(x/2) + 1) on the attention lanes
    th = jnp.tanh(jnp.where(is_att, 0.5 * yh, yh))
    head = jnp.where(is_att, 0.5 * (th + 1.0), th)
    head_ref[...] = head

    # -- blend: out = att*face + (1-att)*sig  (lane remap via one selector matmul) ----
    prod = jnp.dot(head, sel_ref[...], preferred_element_type=f32)     # (TH, 2*Ls)
    att3 = prod[:, :Ls]
    sig3 = prod[:, Ls:]
    out_ref[...] = att3 * face_ref[...] + (1.0 - att3) * sig3


# ---------------------------------------------------------------------------
# One-time host-side weight preprocessing (hoisted out of the forward)
# ---------------------------------------------------------------------------
def _band_matrix(weight, W, pw, mode="zeros", out_scale=None, dtype=jnp.bfloat16):
    """Banded (Toeplitz-in-W) weight matrix M[(p*W + w_in)*Ci + ci, w*Co + co].

    Entry = weight[co, ci, dt, dh, dw] for the dw with w_in == w + dw - pw (entries
    outside [0, W) dropped for zero padding / clamped to the border for replicate
    padding), p = dt*kh + dh.  (shifted slab) @ M performs the kw reduction, the Ci
    reduction AND the W boundary handling on the MXU.
    """
    Co, Ci, kt, kh, kw = weight.shape
    wr = jnp.transpose(weight, (2, 3, 4, 1, 0)).reshape(kt * kh, kw, Ci, Co)
    if out_scale is not None:
        wr = wr * out_scale                       # fold BatchNorm scale into the conv
    bands = jnp.zeros((kt * kh, W, Ci, W, Co), jnp.float32)
    for dw in range(kw):
        sel = np.zeros((W, W), np.float32)        # sel[w_in, w]: input col feeding w
        for w in range(W):
            w_in = w + dw - pw
            if mode == "replicate":
                w_in = min(max(w_in, 0), W - 1)
            if 0 <= w_in < W:
                sel[w_in, w] += 1.0
        bands = bands + jnp.asarray(sel)[None, :, None, :, None] \
                        * wr[:, dw][:, None, :, None, :]
    return bands.reshape(kt * kh * W * Ci, W * Co).astype(dtype)


def _lane_vec(v, W):
    """(Co,) -> (1, W*Co) tiled so lane index = w*Co + co."""
    return jnp.tile(v, W).reshape(1, W * v.shape[0]).astype(jnp.float32)


def _blend_selectors(W):
    """Selector matrices (W*4, W*3): broadcast the att lane / pick the sig lanes."""
    satt = np.zeros((W * 4, W * 3), np.float32)
    ssig = np.zeros((W * 4, W * 3), np.float32)
    for w in range(W):
        for c in range(3):
            satt[w * 4 + 0, w * 3 + c] = 1.0
            ssig[w * 4 + 1 + c, w * 3 + c] = 1.0
    return jnp.asarray(satt), jnp.asarray(ssig)


def prepare_rppg_att_v2(params, W):
    """One-time (per-checkpoint) re-arrangement of weights into MXU-ready operands."""
    p1 = params["conv2d1"]
    mids = [params["res1"]["conv1"], params["res1"]["conv2"],
            params["res2"]["conv1"], params["res2"]["conv2"],
            params["conv_final"]]
    att, sig = params["attention"], params["signal"]
    w_h = jnp.concatenate([att["weight"], sig["weight"]], axis=0)     # (4, mc, 3, 5, 5)
    sc_h = jnp.concatenate([att["bn_scale"], sig["bn_scale"]])
    sh_h = jnp.concatenate([att["bn_shift"], sig["bn_shift"]])
    b_h = jnp.concatenate([att["bias"], sig["bias"]])

    vec_list = [_lane_vec(p1["bias"], W),          # 0: conv2d1 bias (pre-ReLU)
                _lane_vec(p1["bn_scale"], W),      # 1: conv2d1 BN scale (post-ReLU)
                _lane_vec(p1["bn_shift"], W)]      # 2: conv2d1 BN shift
    vec_list += [_lane_vec(q["bias"] * q["bn_scale"] + q["bn_shift"], W)   # 3..7
                 for q in mids]
    vec_list.append(_lane_vec(b_h * sc_h + sh_h, W))                       # 8: heads
    maxw = max(v.shape[-1] for v in vec_list)
    vecs = jnp.concatenate([jnp.pad(v, ((0, 0), (0, maxw - v.shape[-1])))
                            for v in vec_list], axis=0)

    satt, ssig = _blend_selectors(W)
    return {
        # conv2d1 is Conv -> ReLU -> BN: its BN scale cannot be folded into weights.
        "band1": _band_matrix(p1["weight"], W, pw=2, mode="zeros"),
        "bandm": jnp.stack([_band_matrix(q["weight"], W, pw=1, mode="zeros",
                                         out_scale=q["bn_scale"]) for q in mids]),
        "bandh": _band_matrix(w_h, W, pw=2, mode="replicate", out_scale=sc_h),
        "vecs": vecs,                                     # (9, W*max(mc,4)) f32
        "sel": jnp.concatenate([satt, ssig], axis=1),     # (W*4, 2*W*3) f32
    }


# ---------------------------------------------------------------------------
# Forward pass (single fused pallas_call)
# ---------------------------------------------------------------------------
def rppg_att_v2_forward(prep, face, rppg, task="embedd"):
    # face: (B, 3, T, H, W) NCDHW, rppg: (B, T) for task == 'embedd'
    B, _, T, H, W = face.shape
    mc = prep["bandm"].shape[-1] // W

    if task == "embedd":
        rppg = rppg[:, None, :, None, None]                       # (B, 1, T, 1, 1)
    face_cl = jnp.transpose(face, (0, 2, 3, 4, 1))                # (B, T, H, W, 3)
    rppg_cl = jnp.broadcast_to(jnp.transpose(rppg, (0, 2, 3, 4, 1)), (B, T, H, W, 1))
    x = jnp.concatenate([face_cl, rppg_cl], axis=-1)              # (B, T, H, W, 4)

    # Only host-side pad of the whole network: conv2d1's H zero halo (its W halo is
    # folded into band1; it has no temporal padding).
    xp = jnp.pad(x, ((0, 0), (0, 0), (2, 2), (0, 0), (0, 0))).reshape(B, T, H + 4, W * 4)
    face_flat = face_cl.reshape(B, T * H, W * 3)

    TH, La, Lh, Ls = T * H, W * mc, W * 4, W * 3
    kern = functools.partial(_fused_forward_kernel, T=T, H=H, W=W, Cm=mc)

    head, blend = pl.pallas_call(
        kern,
        out_shape=(jax.ShapeDtypeStruct((B, TH, Lh), jnp.float32),
                   jax.ShapeDtypeStruct((B, TH, Ls), jnp.float32)),
        grid=(B,),
        in_specs=[
            pl.BlockSpec((None, T, H + 4, W * 4), lambda b: (b, 0, 0, 0)),   # input
            pl.BlockSpec((None, TH, Ls), lambda b: (b, 0, 0)),               # face
            pl.BlockSpec(prep["band1"].shape, lambda b: (0, 0)),
            pl.BlockSpec(prep["bandm"].shape, lambda b: (0, 0, 0)),
            pl.BlockSpec(prep["bandh"].shape, lambda b: (0, 0)),
            pl.BlockSpec(prep["vecs"].shape, lambda b: (0, 0)),
            pl.BlockSpec(prep["sel"].shape, lambda b: (0, 0)),
        ],
        out_specs=(pl.BlockSpec((None, TH, Lh), lambda b: (b, 0, 0)),
                   pl.BlockSpec((None, TH, Ls), lambda b: (b, 0, 0))),
        scratch_shapes=[
            pltpu.VMEM((T + 2, H + 2, La), jnp.float32),   # pB: zero-halo trunk act
            pltpu.VMEM((T + 2, H + 2, La), jnp.float32),   # pC
            pltpu.VMEM((T + 2, H + 4, La), jnp.float32),   # pD: replicate-halo heads in
        ],
        compiler_params=pltpu.CompilerParams(dimension_semantics=("parallel",)),
    )(xp, face_flat, prep["band1"], prep["bandm"], prep["bandh"],
      prep["vecs"], prep["sel"])

    head5 = head.reshape(B, T, H, W, 4)
    out = jnp.transpose(blend.reshape(B, T, H, W, 3), (0, 4, 1, 2, 3))
    att_map = jnp.transpose(head5[..., 0:1], (0, 4, 1, 2, 3))
    sig_video = jnp.transpose(head5[..., 1:4], (0, 4, 1, 2, 3))
    return out, att_map, sig_video


# ---------------------------------------------------------------------------
# Parameter init (random weights + inference-mode BN statistics)
# ---------------------------------------------------------------------------
def _conv_bn_params(key, c_in, c_out, ksz):
    k = jax.random.split(key, 6)
    w = jax.random.normal(k[0], (c_out, c_in) + ksz, jnp.float32) * 0.05
    b = jax.random.normal(k[1], (c_out,), jnp.float32) * 0.01
    gamma = 1.0 + 0.1 * jax.random.normal(k[2], (c_out,), jnp.float32)
    beta = 0.05 * jax.random.normal(k[3], (c_out,), jnp.float32)
    rmean = 0.02 * jax.random.normal(k[4], (c_out,), jnp.float32)
    rvar = 1.0 + 0.1 * jnp.abs(jax.random.normal(k[5], (c_out,), jnp.float32))
    eps = 1e-5
    scale = gamma / jnp.sqrt(rvar + eps)
    shift = beta - rmean * scale
    return dict(weight=w, bias=b, bn_scale=scale, bn_shift=shift)


def init_rppg_att_v2_params(key, medium_channels):
    mc = medium_channels
    ks = jax.random.split(key, 8)
    return {
        "conv2d1": _conv_bn_params(ks[0], 3 + 1, mc, (1, 5, 5)),
        "res1": {"conv1": _conv_bn_params(ks[1], mc, mc, (3, 3, 3)),
                 "conv2": _conv_bn_params(ks[2], mc, mc, (3, 3, 3))},
        "res2": {"conv1": _conv_bn_params(ks[3], mc, mc, (3, 3, 3)),
                 "conv2": _conv_bn_params(ks[4], mc, mc, (3, 3, 3))},
        "conv_final": _conv_bn_params(ks[5], mc, mc, (3, 3, 3)),
        "attention": _conv_bn_params(ks[6], mc, 1, (3, 5, 5)),
        "signal": _conv_bn_params(ks[7], mc, 3, (3, 5, 5)),
    }


# ---------------------------------------------------------------------------
if __name__ == "__main__":
    key = jax.random.PRNGKey(0)
    k_face, k_rppg, k_param = jax.random.split(key, 3)

    B, T, H, W = 2, 8, 16, 16
    medium_channels = 4

    face = jax.random.normal(k_face, (B, 3, T, H, W), jnp.float32)
    rppg = jax.random.normal(k_rppg, (B, T), jnp.float32)

    params = init_rppg_att_v2_params(k_param, medium_channels)
    prep = prepare_rppg_att_v2(params, W)     # one-time weight preprocessing (hoisted)

    fwd = jax.jit(functools.partial(rppg_att_v2_forward, task="embedd"))
    out, att_map, sig_video = fwd(prep, face, rppg)
    jax.block_until_ready((out, att_map, sig_video))

    assert out.shape == (B, 3, T, H, W), out.shape
    assert att_map.shape == (B, 1, T, H, W), att_map.shape
    assert sig_video.shape == (B, 3, T, H, W), sig_video.shape
    assert bool(jnp.all(jnp.isfinite(out)))
    assert bool(jnp.all(att_map >= 0.0)) and bool(jnp.all(att_map <= 1.0))
    print("KERNEL_OK")
</pallas_src>

<mosaic_0001>
module attributes {stable_mosaic.version = 11 : i64} {
  func.func @_fused_forward_kernel(%arg0: i32, %arg1: memref<1x8x20x64xf32, #tpu.memory_space<vmem>>, %arg2: memref<1x128x48xf32, #tpu.memory_space<vmem>>, %arg3: memref<320x64xbf16, #tpu.memory_space<vmem>>, %arg4: memref<5x576x64xbf16, #tpu.memory_space<vmem>>, %arg5: memref<960x64xbf16, #tpu.memory_space<vmem>>, %arg6: memref<9x64xf32, #tpu.memory_space<vmem>>, %arg7: memref<64x96xf32, #tpu.memory_space<vmem>>, %arg8: memref<1x128x64xf32, #tpu.memory_space<vmem>>, %arg9: memref<1x128x48xf32, #tpu.memory_space<vmem>>, %arg10: memref<10x18x64xf32, #tpu.memory_space<vmem>>, %arg11: memref<10x18x64xf32, #tpu.memory_space<vmem>>, %arg12: memref<10x20x64xf32, #tpu.memory_space<vmem>>) attributes {dimension_semantics = [#tpu.dimension_semantics<parallel>], iteration_bounds = array<i64: 2>, scalar_prefetch = 0 : i64, scratch_operands = 3 : i64, tpu.core_type = #tpu.core_type<tc>, window_params = [{transform_indices = @transform_0, window_bounds = array<i64: 1, 8, 20, 64>}, {transform_indices = @transform_1, window_bounds = array<i64: 1, 128, 48>}, {pipeline_mode = #tpu.pipeline_mode<synchronous>, transform_indices = @transform_2, window_bounds = array<i64: 320, 64>}, {pipeline_mode = #tpu.pipeline_mode<synchronous>, transform_indices = @transform_3, window_bounds = array<i64: 5, 576, 64>}, {pipeline_mode = #tpu.pipeline_mode<synchronous>, transform_indices = @transform_4, window_bounds = array<i64: 960, 64>}, {pipeline_mode = #tpu.pipeline_mode<synchronous>, transform_indices = @transform_5, window_bounds = array<i64: 9, 64>}, {pipeline_mode = #tpu.pipeline_mode<synchronous>, transform_indices = @transform_6, window_bounds = array<i64: 64, 96>}, {transform_indices = @transform_7, window_bounds = array<i64: 1, 128, 64>}, {transform_indices = @transform_8, window_bounds = array<i64: 1, 128, 48>}]} {
    %cst = arith.constant 0.000000e+00 : f32
    %0 = vector.broadcast %cst : f32 to vector<10x18x64xf32>
    %c0 = arith.constant 0 : index
    %c0_0 = arith.constant 0 : index
    %c0_1 = arith.constant 0 : index
    %1 = vector.load %arg10[%c0, %c0_0, %c0_1] : memref<10x18x64xf32, #tpu.memory_space<vmem>>, vector<10x18x64xf32>
    tpu.vector_store %arg10[%c0, %c0_0, %c0_1], %0 {strides = array<i32>} : memref<10x18x64xf32, #tpu.memory_space<vmem>>, vector<10x18x64xf32>,
    %cst_2 = arith.constant 0.000000e+00 : f32
    %2 = vector.broadcast %cst_2 : f32 to vector<10x18x64xf32>
    %c0_3 = arith.constant 0 : index
    %c0_4 = arith.constant 0 : index
    %c0_5 = arith.constant 0 : index
    %3 = vector.load %arg11[%c0_3, %c0_4, %c0_5] : memref<10x18x64xf32, #tpu.memory_space<vmem>>, vector<10x18x64xf32>
    tpu.vector_store %arg11[%c0_3, %c0_4, %c0_5], %2 {strides = array<i32>} : memref<10x18x64xf32, #tpu.memory_space<vmem>>, vector<10x18x64xf32>,
    %c0_6 = arith.constant 0 : index
    %c0_7 = arith.constant 0 : index
    %4 = vector.load %arg3[%c0_6, %c0_7] : memref<320x64xbf16, #tpu.memory_space<vmem>>, vector<320x64xbf16>
    %c0_8 = arith.constant 0 : index
    %c0_9 = arith.constant 0 : index
    %5 = vector.load %arg6[%c0_8, %c0_9] : memref<9x64xf32, #tpu.memory_space<vmem>>, vector<1x64xf32>
    %c0_10 = arith.constant 0 : index
    %c0_11 = arith.constant 0 : index
    %c0_12 = arith.constant 0 : index
    %c0_13 = arith.constant 0 : index
    %6 = vector.load %arg1[%c0_10, %c0_11, %c0_12, %c0_13] : memref<1x8x20x64xf32, #tpu.memory_space<vmem>>, vector<1x8x16x64xf32>
    %7 = vector.shape_cast %6 : vector<1x8x16x64xf32> to vector<8x16x64xf32>
    %8 = vector.shape_cast %7 : vector<8x16x64xf32> to vector<128x64xf32>
    %9 = arith.truncf %8 : vector<128x64xf32> to vector<128x64xbf16>
    %c0_14 = arith.constant 0 : index
    %c0_15 = arith.constant 0 : index
    %c1 = arith.constant 1 : index
    %c0_16 = arith.constant 0 : index
    %10 = vector.load %arg1[%c0_14, %c0_15, %c1, %c0_16] : memref<1x8x20x64xf32, #tpu.memory_space<vmem>>, vector<1x8x16x64xf32>
    %11 = vector.shape_cast %10 : vector<1x8x16x64xf32> to vector<8x16x64xf32>
    %12 = vector.shape_cast %11 : vector<8x16x64xf32> to vector<128x64xf32>
    %13 = arith.truncf %12 : vector<128x64xf32> to vector<128x64xbf16>
    %c0_17 = arith.constant 0 : index
    %c0_18 = arith.constant 0 : index
    %c2 = arith.constant 2 : index
    %c0_19 = arith.constant 0 : index
    %14 = vector.load %arg1[%c0_17, %c0_18, %c2, %c0_19] : memref<1x8x20x64xf32, #tpu.memory_space<vmem>>, vector<1x8x16x64xf32>
    %15 = vector.shape_cast %14 : vector<1x8x16x64xf32> to vector<8x16x64xf32>
    %16 = vector.shape_cast %15 : vector<8x16x64xf32> to vector<128x64xf32>
    %17 = arith.truncf %16 : vector<128x64xf32> to vector<128x64xbf16>
    %c0_20 = arith.constant 0 : index
    %c0_21 = arith.constant 0 : index
    %c3 = arith.constant 3 : index
    %c0_22 = arith.constant 0 : index
    %18 = vector.load %arg1[%c0_20, %c0_21, %c3, %c0_22] : memref<1x8x20x64xf32, #tpu.memory_space<vmem>>, vector<1x8x16x64xf32>
    %19 = vector.shape_cast %18 : vector<1x8x16x64xf32> to vector<8x16x64xf32>
    %20 = vector.shape_cast %19 : vector<8x16x64xf32> to vector<128x64xf32>
    %21 = arith.truncf %20 : vector<128x64xf32> to vector<128x64xbf16>
    %c0_23 = arith.constant 0 : index
    %c0_24 = arith.constant 0 : index
    %c4 = arith.constant 4 : index
    %c0_25 = arith.constant 0 : index
    %22 = vector.load %arg1[%c0_23, %c0_24, %c4, %c0_25] : memref<1x8x20x64xf32, #tpu.memory_space<vmem>>, vector<1x8x16x64xf32>
    %23 = vector.shape_cast %22 : vector<1x8x16x64xf32> to vector<8x16x64xf32>
    %24 = vector.shape_cast %23 : vector<8x16x64xf32> to vector<128x64xf32>
    %25 = arith.truncf %24 : vector<128x64xf32> to vector<128x64xbf16>
    %26 = tpu.concatenate %9, %13, %17, %21, %25 in 1 : vector<128x64xbf16>, vector<128x64xbf16>, vector<128x64xbf16>, vector<128x64xbf16>, vector<128x64xbf16> -> vector<128x320xbf16>
    %cst_26 = arith.constant dense<0.000000e+00> : vector<128x64xf32>
    %27 = tpu.matmul %26, %4, %cst_26 {dimension_numbers = #tpu.dot_dimension_numbers<[1], [0], [0], [1], [0, 0, 1, 1], [], []>} : vector<128x320xbf16>, vector<320x64xbf16>, vector<128x64xf32> -> vector<128x64xf32>
    %28 = vector.broadcast %5 : vector<1x64xf32> to vector<128x64xf32>
    %29 = arith.addf %27, %28 : vector<128x64xf32>
    %cst_27 = arith.constant 0.000000e+00 : f32
    %30 = vector.broadcast %cst_27 : f32 to vector<128x64xf32>
    %31 = arith.maximumf %29, %30 : vector<128x64xf32>
    %c1_28 = arith.constant 1 : index
    %c0_29 = arith.constant 0 : index
    %32 = vector.load %arg6[%c1_28, %c0_29] : memref<9x64xf32, #tpu.memory_space<vmem>>, vector<1x64xf32>
    %33 = vector.broadcast %32 : vector<1x64xf32> to vector<128x64xf32>
    %34 = arith.mulf %31, %33 : vector<128x64xf32>
    %c2_30 = arith.constant 2 : index
    %c0_31 = arith.constant 0 : index
    %35 = vector.load %arg6[%c2_30, %c0_31] : memref<9x64xf32, #tpu.memory_space<vmem>>, vector<1x64xf32>
    %36 = vector.broadcast %35 : vector<1x64xf32> to vector<128x64xf32>
    %37 = arith.addf %34, %36 : vector<128x64xf32>
    %38 = vector.shape_cast %37 : vector<128x64xf32> to vector<8x16x64xf32>
    %c1_32 = arith.constant 1 : index
    %c1_33 = arith.constant 1 : index
    %c0_34 = arith.constant 0 : index
    %39 = vector.load %arg10[%c1_32, %c1_33, %c0_34] : memref<10x18x64xf32, #tpu.memory_space<vmem>>, vector<8x16x64xf32>
    tpu.vector_store %arg10[%c1_32, %c1_33, %c0_34], %38 {strides = array<i32>} : memref<10x18x64xf32, #tpu.memory_space<vmem>>, vector<8x16x64xf32>,
    %c0_35 = arith.constant 0 : index
    %c0_36 = arith.constant 0 : index
    %c0_37 = arith.constant 0 : index
    %40 = vector.load %arg4[%c0_35, %c0_36, %c0_37] : memref<5x576x64xbf16, #tpu.memory_space<vmem>>, vector<1x576x64xbf16>
    %41 = vector.shape_cast %40 : vector<1x576x64xbf16> to vector<576x64xbf16>
    %c3_38 = arith.constant 3 : index
    %c0_39 = arith.constant 0 : index
    %42 = vector.load %arg6[%c3_38, %c0_39] : memref<9x64xf32, #tpu.memory_space<vmem>>, vector<1x64xf32>
    %c0_40 = arith.constant 0 : index
    %c0_41 = arith.constant 0 : index
    %c0_42 = arith.constant 0 : index
    %43 = vector.load %arg10[%c0_40, %c0_41, %c0_42] : memref<10x18x64xf32, #tpu.memory_space<vmem>>, vector<8x16x64xf32>
    %44 = vector.shape_cast %43 : vector<8x16x64xf32> to vector<128x64xf32>
    %45 = arith.truncf %44 : vector<128x64xf32> to vector<128x64xbf16>
    %c0_43 = arith.constant 0 : index
    %c1_44 = arith.constant 1 : index
    %c0_45 = arith.constant 0 : index
    %46 = vector.load %arg10[%c0_43, %c1_44, %c0_45] : memref<10x18x64xf32, #tpu.memory_space<vmem>>, vector<8x16x64xf32>
    %47 = vector.shape_cast %46 : vector<8x16x64xf32> to vector<128x64xf32>
    %48 = arith.truncf %47 : vector<128x64xf32> to vector<128x64xbf16>
    %c0_46 = arith.constant 0 : index
    %c2_47 = arith.constant 2 : index
    %c0_48 = arith.constant 0 : index
    %49 = vector.load %arg10[%c0_46, %c2_47, %c0_48] : memref<10x18x64xf32, #tpu.memory_space<vmem>>, vector<8x16x64xf32>
    %50 = vector.shape_cast %49 : vector<8x16x64xf32> to vector<128x64xf32>
    %51 = arith.truncf %50 : vector<128x64xf32> to vector<128x64xbf16>
    %c1_49 = arith.constant 1 : index
    %c0_50 = arith.constant 0 : index
    %c0_51 = arith.constant 0 : index
    %52 = vector.load %arg10[%c1_49, %c0_50, %c0_51] : memref<10x18x64xf32, #tpu.memory_space<vmem>>, vector<8x16x64xf32>
    %53 = vector.shape_cast %52 : vector<8x16x64xf32> to vector<128x64xf32>
    %54 = arith.truncf %53 : vector<128x64xf32> to vector<128x64xbf16>
    %c1_52 = arith.constant 1 : index
    %c1_53 = arith.constant 1 : index
    %c0_54 = arith.constant 0 : index
    %55 = vector.load %arg10[%c1_52, %c1_53, %c0_54] : memref<10x18x64xf32, #tpu.memory_space<vmem>>, vector<8x16x64xf32>
    %56 = vector.shape_cast %55 : vector<8x16x64xf32> to vector<128x64xf32>
    %57 = arith.truncf %56 : vector<128x64xf32> to vector<128x64xbf16>
    %c1_55 = arith.constant 1 : index
    %c2_56 = arith.constant 2 : index
    %c0_57 = arith.constant 0 : index
    %58 = vector.load %arg10[%c1_55, %c2_56, %c0_57] : memref<10x18x64xf32, #tpu.memory_space<vmem>>, vector<8x16x64xf32>
    %59 = vector.shape_cast %58 : vector<8x16x64xf32> to vector<128x64xf32>
    %60 = arith.truncf %59 : vector<128x64xf32> to vector<128x64xbf16>
    %c2_58 = arith.constant 2 : index
    %c0_59 = arith.constant 0 : index
    %c0_60 = arith.constant 0 : index
    %61 = vector.load %arg10[%c2_58, %c0_59, %c0_60] : memref<10x18x64xf32, #tpu.memory_space<vmem>>, vector<8x16x64xf32>
    %62 = vector.shape_cast %61 : vector<8x16x64xf32> to vector<128x64xf32>
    %63 = arith.truncf %62 : vector<128x64xf32> to vector<128x64xbf16>
    %c2_61 = arith.constant 2 : index
    %c1_62 = arith.constant 1 : index
    %c0_63 = arith.constant 0 : index
    %64 = vector.load %arg10[%c2_61, %c1_62, %c0_63] : memref<10x18x64xf32, #tpu.memory_space<vmem>>, vector<8x16x64xf32>
    %65 = vector.shape_cast %64 : vector<8x16x64xf32> to vector<128x64xf32>
    %66 = arith.truncf %65 : vector<128x64xf32> to vector<128x64xbf16>
    %c2_64 = arith.constant 2 : index
    %c2_65 = arith.constant 2 : index
    %c0_66 = arith.constant 0 : index
    %67 = vector.load %arg10[%c2_64, %c2_65, %c0_66] : memref<10x18x64xf32, #tpu.memory_space<vmem>>, vector<8x16x64xf32>
    %68 = vector.shape_cast %67 : vector<8x16x64xf32> to vector<128x64xf32>
    %69 = arith.truncf %68 : vector<128x64xf32> to vector<128x64xbf16>
    %70 = tpu.concatenate %45, %48, %51, %54, %57, %60, %63, %66, %69 in 1 : vector<128x64xbf16>, vector<128x64xbf16>, vector<128x64xbf16>, vector<128x64xbf16>, vector<128x64xbf16>, vector<128x64xbf16>, vector<128x64xbf16>, vector<128x64xbf16>, vector<128x64xbf16> -> vector<128x576xbf16>
    %cst_67 = arith.constant dense<0.000000e+00> : vector<128x64xf32>
    %71 = tpu.matmul %70, %41, %cst_67 {dimension_numbers = #tpu.dot_dimension_numbers<[1], [0], [0], [1], [0, 0, 1, 1], [], []>} : vector<128x576xbf16>, vector<576x64xbf16>, vector<128x64xf32> -> vector<128x64xf32>
    %72 = vector.broadcast %42 : vector<1x64xf32> to vector<128x64xf32>
    %73 = arith.addf %71, %72 : vector<128x64xf32>
    %cst_68 = arith.constant 0.000000e+00 : f32
    %74 = vector.broadcast %cst_68 : f32 to vector<128x64xf32>
    %75 = arith.maximumf %73, %74 : vector<128x64xf32>
    %76 = vector.shape_cast %75 : vector<128x64xf32> to vector<8x16x64xf32>
    %c1_69 = arith.constant 1 : index
    %c1_70 = arith.constant 1 : index
    %c0_71 = arith.constant 0 : index
    %77 = vector.load %arg11[%c1_69, %c1_70, %c0_71] : memref<10x18x64xf32, #tpu.memory_space<vmem>>, vector<8x16x64xf32>
    tpu.vector_store %arg11[%c1_69, %c1_70, %c0_71], %76 {strides = array<i32>} : memref<10x18x64xf32, #tpu.memory_space<vmem>>, vector<8x16x64xf32>,
    %c1_72 = arith.constant 1 : index
    %c0_73 = arith.constant 0 : index
    %c0_74 = arith.constant 0 : index
    %78 = vector.load %arg4[%c1_72, %c0_73, %c0_74] : memref<5x576x64xbf16, #tpu.memory_space<vmem>>, vector<1x576x64xbf16>
    %79 = vector.shape_cast %78 : vector<1x576x64xbf16> to vector<576x64xbf16>
    %c4_75 = arith.constant 4 : index
    %c0_76 = arith.constant 0 : index
    %80 = vector.load %arg6[%c4_75, %c0_76] : memref<9x64xf32, #tpu.memory_space<vmem>>, vector<1x64xf32>
    %c0_77 = arith.constant 0 : index
    %c0_78 = arith.constant 0 : index
    %c0_79 = arith.constant 0 : index
    %81 = vector.load %arg11[%c0_77, %c0_78, %c0_79] : memref<10x18x64xf32, #tpu.memory_space<vmem>>, vector<8x16x64xf32>
    %82 = vector.shape_cast %81 : vector<8x16x64xf32> to vector<128x64xf32>
    %83 = arith.truncf %82 : vector<128x64xf32> to vector<128x64xbf16>
    %c0_80 = arith.constant 0 : index
    %c1_81 = arith.constant 1 : index
    %c0_82 = arith.constant 0 : index
    %84 = vector.load %arg11[%c0_80, %c1_81, %c0_82] : memref<10x18x64xf32, #tpu.memory_space<vmem>>, vector<8x16x64xf32>
    %85 = vector.shape_cast %84 : vector<8x16x64xf32> to vector<128x64xf32>
    %86 = arith.truncf %85 : vector<128x64xf32> to vector<128x64xbf16>
    %c0_83 = arith.constant 0 : index
    %c2_84 = arith.constant 2 : index
    %c0_85 = arith.constant 0 : index
    %87 = vector.load %arg11[%c0_83, %c2_84, %c0_85] : memref<10x18x64xf32, #tpu.memory_space<vmem>>, vector<8x16x64xf32>
    %88 = vector.shape_cast %87 : vector<8x16x64xf32> to vector<128x64xf32>
    %89 = arith.truncf %88 : vector<128x64xf32> to vector<128x64xbf16>
    %c1_86 = arith.constant 1 : index
    %c0_87 = arith.constant 0 : index
    %c0_88 = arith.constant 0 : index
    %90 = vector.load %arg11[%c1_86, %c0_87, %c0_88] : memref<10x18x64xf32, #tpu.memory_space<vmem>>, vector<8x16x64xf32>
    %91 = vector.shape_cast %90 : vector<8x16x64xf32> to vector<128x64xf32>
    %92 = arith.truncf %91 : vector<128x64xf32> to vector<128x64xbf16>
    %c1_89 = arith.constant 1 : index
    %c1_90 = arith.constant 1 : index
    %c0_91 = arith.constant 0 : index
    %93 = vector.load %arg11[%c1_89, %c1_90, %c0_91] : memref<10x18x64xf32, #tpu.memory_space<vmem>>, vector<8x16x64xf32>
    %94 = vector.shape_cast %93 : vector<8x16x64xf32> to vector<128x64xf32>
    %95 = arith.truncf %94 : vector<128x64xf32> to vector<128x64xbf16>
    %c1_92 = arith.constant 1 : index
    %c2_93 = arith.constant 2 : index
    %c0_94 = arith.constant 0 : index
    %96 = vector.load %arg11[%c1_92, %c2_93, %c0_94] : memref<10x18x64xf32, #tpu.memory_space<vmem>>, vector<8x16x64xf32>
    %97 = vector.shape_cast %96 : vector<8x16x64xf32> to vector<128x64xf32>
    %98 = arith.truncf %97 : vector<128x64xf32> to vector<128x64xbf16>
    %c2_95 = arith.constant 2 : index
    %c0_96 = arith.constant 0 : index
    %c0_97 = arith.constant 0 : index
    %99 = vector.load %arg11[%c2_95, %c0_96, %c0_97] : memref<10x18x64xf32, #tpu.memory_space<vmem>>, vector<8x16x64xf32>
    %100 = vector.shape_cast %99 : vector<8x16x64xf32> to vector<128x64xf32>
    %101 = arith.truncf %100 : vector<128x64xf32> to vector<128x64xbf16>
    %c2_98 = arith.constant 2 : index
    %c1_99 = arith.constant 1 : index
    %c0_100 = arith.constant 0 : index
    %102 = vector.load %arg11[%c2_98, %c1_99, %c0_100] : memref<10x18x64xf32, #tpu.memory_space<vmem>>, vector<8x16x64xf32>
    %103 = vector.shape_cast %102 : vector<8x16x64xf32> to vector<128x64xf32>
    %104 = arith.truncf %103 : vector<128x64xf32> to vector<128x64xbf16>
    %c2_101 = arith.constant 2 : index
    %c2_102 = arith.constant 2 : index
    %c0_103 = arith.constant 0 : index
    %105 = vector.load %arg11[%c2_101, %c2_102, %c0_103] : memref<10x18x64xf32, #tpu.memory_space<vmem>>, vector<8x16x64xf32>
    %106 = vector.shape_cast %105 : vector<8x16x64xf32> to vector<128x64xf32>
    %107 = arith.truncf %106 : vector<128x64xf32> to vector<128x64xbf16>
    %108 = tpu.concatenate %83, %86, %89, %92, %95, %98, %101, %104, %107 in 1 : vector<128x64xbf16>, vector<128x64xbf16>, vector<128x64xbf16>, vector<128x64xbf16>, vector<128x64xbf16>, vector<128x64xbf16>, vector<128x64xbf16>, vector<128x64xbf16>, vector<128x64xbf16> -> vector<128x576xbf16>
    %cst_104 = arith.constant dense<0.000000e+00> : vector<128x64xf32>
    %109 = tpu.matmul %108, %79, %cst_104 {dimension_numbers = #tpu.dot_dimension_numbers<[1], [0], [0], [1], [0, 0, 1, 1], [], []>} : vector<128x576xbf16>, vector<576x64xbf16>, vector<128x64xf32> -> vector<128x64xf32>
    %110 = vector.broadcast %80 : vector<1x64xf32> to vector<128x64xf32>
    %111 = arith.addf %109, %110 : vector<128x64xf32>
    %112 = arith.addf %111, %37 : vector<128x64xf32>
    %cst_105 = arith.constant 0.000000e+00 : f32
    %113 = vector.broadcast %cst_105 : f32 to vector<128x64xf32>
    %114 = arith.maximumf %112, %113 : vector<128x64xf32>
    %115 = vector.shape_cast %114 : vector<128x64xf32> to vector<8x16x64xf32>
    %c1_106 = arith.constant 1 : index
    %c1_107 = arith.constant 1 : index
    %c0_108 = arith.constant 0 : index
    %116 = vector.load %arg10[%c1_106, %c1_107, %c0_108] : memref<10x18x64xf32, #tpu.memory_space<vmem>>, vector<8x16x64xf32>
    tpu.vector_store %arg10[%c1_106, %c1_107, %c0_108], %115 {strides = array<i32>} : memref<10x18x64xf32, #tpu.memory_space<vmem>>, vector<8x16x64xf32>,
    %c2_109 = arith.constant 2 : index
    %c0_110 = arith.constant 0 : index
    %c0_111 = arith.constant 0 : index
    %117 = vector.load %arg4[%c2_109, %c0_110, %c0_111] : memref<5x576x64xbf16, #tpu.memory_space<vmem>>, vector<1x576x64xbf16>
    %118 = vector.shape_cast %117 : vector<1x576x64xbf16> to vector<576x64xbf16>
    %c5 = arith.constant 5 : index
    %c0_112 = arith.constant 0 : index
    %119 = vector.load %arg6[%c5, %c0_112] : memref<9x64xf32, #tpu.memory_space<vmem>>, vector<1x64xf32>
    %c0_113 = arith.constant 0 : index
    %c0_114 = arith.constant 0 : index
    %c0_115 = arith.constant 0 : index
    %120 = vector.load %arg10[%c0_113, %c0_114, %c0_115] : memref<10x18x64xf32, #tpu.memory_space<vmem>>, vector<8x16x64xf32>
    %121 = vector.shape_cast %120 : vector<8x16x64xf32> to vector<128x64xf32>
    %122 = arith.truncf %121 : vector<128x64xf32> to vector<128x64xbf16>
    %c0_116 = arith.constant 0 : index
    %c1_117 = arith.constant 1 : index
    %c0_118 = arith.constant 0 : index
    %123 = vector.load %arg10[%c0_116, %c1_117, %c0_118] : memref<10x18x64xf32, #tpu.memory_space<vmem>>, vector<8x16x64xf32>
    %124 = vector.shape_cast %123 : vector<8x16x64xf32> to vector<128x64xf32>
    %125 = arith.truncf %124 : vector<128x64xf32> to vector<128x64xbf16>
    %c0_119 = arith.constant 0 : index
    %c2_120 = arith.constant 2 : index
    %c0_121 = arith.constant 0 : index
    %126 = vector.load %arg10[%c0_119, %c2_120, %c0_121] : memref<10x18x64xf32, #tpu.memory_space<vmem>>, vector<8x16x64xf32>
    %127 = vector.shape_cast %126 : vector<8x16x64xf32> to vector<128x64xf32>
    %128 = arith.truncf %127 : vector<128x64xf32> to vector<128x64xbf16>
    %c1_122 = arith.constant 1 : index
    %c0_123 = arith.constant 0 : index
    %c0_124 = arith.constant 0 : index
    %129 = vector.load %arg10[%c1_122, %c0_123, %c0_124] : memref<10x18x64xf32, #tpu.memory_space<vmem>>, vector<8x16x64xf32>
    %130 = vector.shape_cast %129 : vector<8x16x64xf32> to vector<128x64xf32>
    %131 = arith.truncf %130 : vector<128x64xf32> to vector<128x64xbf16>
    %c1_125 = arith.constant 1 : index
    %c1_126 = arith.constant 1 : index
    %c0_127 = arith.constant 0 : index
    %132 = vector.load %arg10[%c1_125, %c1_126, %c0_127] : memref<10x18x64xf32, #tpu.memory_space<vmem>>, vector<8x16x64xf32>
    %133 = vector.shape_cast %132 : vector<8x16x64xf32> to vector<128x64xf32>
    %134 = arith.truncf %133 : vector<128x64xf32> to vector<128x64xbf16>
    %c1_128 = arith.constant 1 : index
    %c2_129 = arith.constant 2 : index
    %c0_130 = arith.constant 0 : index
    %135 = vector.load %arg10[%c1_128, %c2_129, %c0_130] : memref<10x18x64xf32, #tpu.memory_space<vmem>>, vector<8x16x64xf32>
    %136 = vector.shape_cast %135 : vector<8x16x64xf32> to vector<128x64xf32>
    %137 = arith.truncf %136 : vector<128x64xf32> to vector<128x64xbf16>
    %c2_131 = arith.constant 2 : index
    %c0_132 = arith.constant 0 : index
    %c0_133 = arith.constant 0 : index
    %138 = vector.load %arg10[%c2_131, %c0_132, %c0_133] : memref<10x18x64xf32, #tpu.memory_space<vmem>>, vector<8x16x64xf32>
    %139 = vector.shape_cast %138 : vector<8x16x64xf32> to vector<128x64xf32>
    %140 = arith.truncf %139 : vector<128x64xf32> to vector<128x64xbf16>
    %c2_134 = arith.constant 2 : index
    %c1_135 = arith.constant 1 : index
    %c0_136 = arith.constant 0 : index
    %141 = vector.load %arg10[%c2_134, %c1_135, %c0_136] : memref<10x18x64xf32, #tpu.memory_space<vmem>>, vector<8x16x64xf32>
    %142 = vector.shape_cast %141 : vector<8x16x64xf32> to vector<128x64xf32>
    %143 = arith.truncf %142 : vector<128x64xf32> to vector<128x64xbf16>
    %c2_137 = arith.constant 2 : index
    %c2_138 = arith.constant 2 : index
    %c0_139 = arith.constant 0 : index
    %144 = vector.load %arg10[%c2_137, %c2_138, %c0_139] : memref<10x18x64xf32, #tpu.memory_space<vmem>>, vector<8x16x64xf32>
    %145 = vector.shape_cast %144 : vector<8x16x64xf32> to vector<128x64xf32>
    %146 = arith.truncf %145 : vector<128x64xf32> to vector<128x64xbf16>
    %147 = tpu.concatenate %122, %125, %128, %131, %134, %137, %140, %143, %146 in 1 : vector<128x64xbf16>, vector<128x64xbf16>, vector<128x64xbf16>, vector<128x64xbf16>, vector<128x64xbf16>, vector<128x64xbf16>, vector<128x64xbf16>, vector<128x64xbf16>, vector<128x64xbf16> -> vector<128x576xbf16>
    %cst_140 = arith.constant dense<0.000000e+00> : vector<128x64xf32>
    %148 = tpu.matmul %147, %118, %cst_140 {dimension_numbers = #tpu.dot_dimension_numbers<[1], [0], [0], [1], [0, 0, 1, 1], [], []>} : vector<128x576xbf16>, vector<576x64xbf16>, vector<128x64xf32> -> vector<128x64xf32>
    %149 = vector.broadcast %119 : vector<1x64xf32> to vector<128x64xf32>
    %150 = arith.addf %148, %149 : vector<128x64xf32>
    %cst_141 = arith.constant 0.000000e+00 : f32
    %151 = vector.broadcast %cst_141 : f32 to vector<128x64xf32>
    %152 = arith.maximumf %150, %151 : vector<128x64xf32>
    %153 = vector.shape_cast %152 : vector<128x64xf32> to vector<8x16x64xf32>
    %c1_142 = arith.constant 1 : index
    %c1_143 = arith.constant 1 : index
    %c0_144 = arith.constant 0 : index
    %154 = vector.load %arg11[%c1_142, %c1_143, %c0_144] : memref<10x18x64xf32, #tpu.memory_space<vmem>>, vector<8x16x64xf32>
    tpu.vector_store %arg11[%c1_142, %c1_143, %c0_144], %153 {strides = array<i32>} : memref<10x18x64xf32, #tpu.memory_space<vmem>>, vector<8x16x64xf32>,
    %c3_145 = arith.constant 3 : index
    %c0_146 = arith.constant 0 : index
    %c0_147 = arith.constant 0 : index
    %155 = vector.load %arg4[%c3_145, %c0_146, %c0_147] : memref<5x576x64xbf16, #tpu.memory_space<vmem>>, vector<1x576x64xbf16>
    %156 = vector.shape_cast %155 : vector<1x576x64xbf16> to vector<576x64xbf16>
    %c6 = arith.constant 6 : index
    %c0_148 = arith.constant 0 : index
    %157 = vector.load %arg6[%c6, %c0_148] : memref<9x64xf32, #tpu.memory_space<vmem>>, vector<1x64xf32>
    %c0_149 = arith.constant 0 : index
    %c0_150 = arith.constant 0 : index
    %c0_151 = arith.constant 0 : index
    %158 = vector.load %arg11[%c0_149, %c0_150, %c0_151] : memref<10x18x64xf32, #tpu.memory_space<vmem>>, vector<8x16x64xf32>
    %159 = vector.shape_cast %158 : vector<8x16x64xf32> to vector<128x64xf32>
    %160 = arith.truncf %159 : vector<128x64xf32> to vector<128x64xbf16>
    %c0_152 = arith.constant 0 : index
    %c1_153 = arith.constant 1 : index
    %c0_154 = arith.constant 0 : index
    %161 = vector.load %arg11[%c0_152, %c1_153, %c0_154] : memref<10x18x64xf32, #tpu.memory_space<vmem>>, vector<8x16x64xf32>
    %162 = vector.shape_cast %161 : vector<8x16x64xf32> to vector<128x64xf32>
    %163 = arith.truncf %162 : vector<128x64xf32> to vector<128x64xbf16>
    %c0_155 = arith.constant 0 : index
    %c2_156 = arith.constant 2 : index
    %c0_157 = arith.constant 0 : index
    %164 = vector.load %arg11[%c0_155, %c2_156, %c0_157] : memref<10x18x64xf32, #tpu.memory_space<vmem>>, vector<8x16x64xf32>
    %165 = vector.shape_cast %164 : vector<8x16x64xf32> to vector<128x64xf32>
    %166 = arith.truncf %165 : vector<128x64xf32> to vector<128x64xbf16>
    %c1_158 = arith.constant 1 : index
    %c0_159 = arith.constant 0 : index
    %c0_160 = arith.constant 0 : index
    %167 = vector.load %arg11[%c1_158, %c0_159, %c0_160] : memref<10x18x64xf32, #tpu.memory_space<vmem>>, vector<8x16x64xf32>
    %168 = vector.shape_cast %167 : vector<8x16x64xf32> to vector<128x64xf32>
    %169 = arith.truncf %168 : vector<128x64xf32> to vector<128x64xbf16>
    %c1_161 = arith.constant 1 : index
    %c1_162 = arith.constant 1 : index
    %c0_163 = arith.constant 0 : index
    %170 = vector.load %arg11[%c1_161, %c1_162, %c0_163] : memref<10x18x64xf32, #tpu.memory_space<vmem>>, vector<8x16x64xf32>
    %171 = vector.shape_cast %170 : vector<8x16x64xf32> to vector<128x64xf32>
    %172 = arith.truncf %171 : vector<128x64xf32> to vector<128x64xbf16>
    %c1_164 = arith.constant 1 : index
    %c2_165 = arith.constant 2 : index
    %c0_166 = arith.constant 0 : index
    %173 = vector.load %arg11[%c1_164, %c2_165, %c0_166] : memref<10x18x64xf32, #tpu.memory_space<vmem>>, vector<8x16x64xf32>
    %174 = vector.shape_cast %173 : vector<8x16x64xf32> to vector<128x64xf32>
    %175 = arith.truncf %174 : vector<128x64xf32> to vector<128x64xbf16>
    %c2_167 = arith.constant 2 : index
    %c0_168 = arith.constant 0 : index
    %c0_169 = arith.constant 0 : index
    %176 = vector.load %arg11[%c2_167, %c0_168, %c0_169] : memref<10x18x64xf32, #tpu.memory_space<vmem>>, vector<8x16x64xf32>
    %177 = vector.shape_cast %176 : vector<8x16x64xf32> to vector<128x64xf32>
    %178 = arith.truncf %177 : vector<128x64xf32> to vector<128x64xbf16>
    %c2_170 = arith.constant 2 : index
    %c1_171 = arith.constant 1 : index
    %c0_172 = arith.constant 0 : index
    %179 = vector.load %arg11[%c2_170, %c1_171, %c0_172] : memref<10x18x64xf32, #tpu.memory_space<vmem>>, vector<8x16x64xf32>
    %180 = vector.shape_cast %179 : vector<8x16x64xf32> to vector<128x64xf32>
    %181 = arith.truncf %180 : vector<128x64xf32> to vector<128x64xbf16>
    %c2_173 = arith.constant 2 : index
    %c2_174 = arith.constant 2 : index
    %c0_175 = arith.constant 0 : index
    %182 = vector.load %arg11[%c2_173, %c2_174, %c0_175] : memref<10x18x64xf32, #tpu.memory_space<vmem>>, vector<8x16x64xf32>
    %183 = vector.shape_cast %182 : vector<8x16x64xf32> to vector<128x64xf32>
    %184 = arith.truncf %183 : vector<128x64xf32> to vector<128x64xbf16>
    %185 = tpu.concatenate %160, %163, %166, %169, %172, %175, %178, %181, %184 in 1 : vector<128x64xbf16>, vector<128x64xbf16>, vector<128x64xbf16>, vector<128x64xbf16>, vector<128x64xbf16>, vector<128x64xbf16>, vector<128x64xbf16>, vector<128x64xbf16>, vector<128x64xbf16> -> vector<128x576xbf16>
    %cst_176 = arith.constant dense<0.000000e+00> : vector<128x64xf32>
    %186 = tpu.matmul %185, %156, %cst_176 {dimension_numbers = #tpu.dot_dimension_numbers<[1], [0], [0], [1], [0, 0, 1, 1], [], []>} : vector<128x576xbf16>, vector<576x64xbf16>, vector<128x64xf32> -> vector<128x64xf32>
    %187 = vector.broadcast %157 : vector<1x64xf32> to vector<128x64xf32>
    %188 = arith.addf %186, %187 : vector<128x64xf32>
    %189 = arith.addf %188, %114 : vector<128x64xf32>
    %cst_177 = arith.constant 0.000000e+00 : f32
    %190 = vector.broadcast %cst_177 : f32 to vector<128x64xf32>
    %191 = arith.maximumf %189, %190 : vector<128x64xf32>
    %192 = vector.shape_cast %191 : vector<128x64xf32> to vector<8x16x64xf32>
    %c1_178 = arith.constant 1 : index
    %c1_179 = arith.constant 1 : index
    %c0_180 = arith.constant 0 : index
    %193 = vector.load %arg10[%c1_178, %c1_179, %c0_180] : memref<10x18x64xf32, #tpu.memory_space<vmem>>, vector<8x16x64xf32>
    tpu.vector_store %arg10[%c1_178, %c1_179, %c0_180], %192 {strides = array<i32>} : memref<10x18x64xf32, #tpu.memory_space<vmem>>, vector<8x16x64xf32>,
    %c4_181 = arith.constant 4 : index
    %c0_182 = arith.constant 0 : index
    %c0_183 = arith.constant 0 : index
    %194 = vector.load %arg4[%c4_181, %c0_182, %c0_183] : memref<5x576x64xbf16, #tpu.memory_space<vmem>>, vector<1x576x64xbf16>
    %195 = vector.shape_cast %194 : vector<1x576x64xbf16> to vector<576x64xbf16>
    %c7 = arith.constant 7 : index
    %c0_184 = arith.constant 0 : index
    %196 = vector.load %arg6[%c7, %c0_184] : memref<9x64xf32, #tpu.memory_space<vmem>>, vector<1x64xf32>
    %c0_185 = arith.constant 0 : index
    %c0_186 = arith.constant 0 : index
    %c0_187 = arith.constant 0 : index
    %197 = vector.load %arg10[%c0_185, %c0_186, %c0_187] : memref<10x18x64xf32, #tpu.memory_space<vmem>>, vector<8x16x64xf32>
    %198 = vector.shape_cast %197 : vector<8x16x64xf32> to vector<128x64xf32>
    %199 = arith.truncf %198 : vector<128x64xf32> to vector<128x64xbf16>
    %c0_188 = arith.constant 0 : index
    %c1_189 = arith.constant 1 : index
    %c0_190 = arith.constant 0 : index
    %200 = vector.load %arg10[%c0_188, %c1_189, %c0_190] : memref<10x18x64xf32, #tpu.memory_space<vmem>>, vector<8x16x64xf32>
    %201 = vector.shape_cast %200 : vector<8x16x64xf32> to vector<128x64xf32>
    %202 = arith.truncf %201 : vector<128x64xf32> to vector<128x64xbf16>
    %c0_191 = arith.constant 0 : index
    %c2_192 = arith.constant 2 : index
    %c0_193 = arith.constant 0 : index
    %203 = vector.load %arg10[%c0_191, %c2_192, %c0_193] : memref<10x18x64xf32, #tpu.memory_space<vmem>>, vector<8x16x64xf32>
    %204 = vector.shape_cast %203 : vector<8x16x64xf32> to vector<128x64xf32>
    %205 = arith.truncf %204 : vector<128x64xf32> to vector<128x64xbf16>
    %c1_194 = arith.constant 1 : index
    %c0_195 = arith.constant 0 : index
    %c0_196 = arith.constant 0 : index
    %206 = vector.load %arg10[%c1_194, %c0_195, %c0_196] : memref<10x18x64xf32, #tpu.memory_space<vmem>>, vector<8x16x64xf32>
    %207 = vector.shape_cast %206 : vector<8x16x64xf32> to vector<128x64xf32>
    %208 = arith.truncf %207 : vector<128x64xf32> to vector<128x64xbf16>
    %c1_197 = arith.constant 1 : index
    %c1_198 = arith.constant 1 : index
    %c0_199 = arith.constant 0 : index
    %209 = vector.load %arg10[%c1_197, %c1_198, %c0_199] : memref<10x18x64xf32, #tpu.memory_space<vmem>>, vector<8x16x64xf32>
    %210 = vector.shape_cast %209 : vector<8x16x64xf32> to vector<128x64xf32>
    %211 = arith.truncf %210 : vector<128x64xf32> to vector<128x64xbf16>
    %c1_200 = arith.constant 1 : index
    %c2_201 = arith.constant 2 : index
    %c0_202 = arith.constant 0 : index
    %212 = vector.load %arg10[%c1_200, %c2_201, %c0_202] : memref<10x18x64xf32, #tpu.memory_space<vmem>>, vector<8x16x64xf32>
    %213 = vector.shape_cast %212 : vector<8x16x64xf32> to vector<128x64xf32>
    %214 = arith.truncf %213 : vector<128x64xf32> to vector<128x64xbf16>
    %c2_203 = arith.constant 2 : index
    %c0_204 = arith.constant 0 : index
    %c0_205 = arith.constant 0 : index
    %215 = vector.load %arg10[%c2_203, %c0_204, %c0_205] : memref<10x18x64xf32, #tpu.memory_space<vmem>>, vector<8x16x64xf32>
    %216 = vector.shape_cast %215 : vector<8x16x64xf32> to vector<128x64xf32>
    %217 = arith.truncf %216 : vector<128x64xf32> to vector<128x64xbf16>
    %c2_206 = arith.constant 2 : index
    %c1_207 = arith.constant 1 : index
    %c0_208 = arith.constant 0 : index
    %218 = vector.load %arg10[%c2_206, %c1_207, %c0_208] : memref<10x18x64xf32, #tpu.memory_space<vmem>>, vector<8x16x64xf32>
    %219 = vector.shape_cast %218 : vector<8x16x64xf32> to vector<128x64xf32>
    %220 = arith.truncf %219 : vector<128x64xf32> to vector<128x64xbf16>
    %c2_209 = arith.constant 2 : index
    %c2_210 = arith.constant 2 : index
    %c0_211 = arith.constant 0 : index
    %221 = vector.load %arg10[%c2_209, %c2_210, %c0_211] : memref<10x18x64xf32, #tpu.memory_space<vmem>>, vector<8x16x64xf32>
    %222 = vector.shape_cast %221 : vector<8x16x64xf32> to vector<128x64xf32>
    %223 = arith.truncf %222 : vector<128x64xf32> to vector<128x64xbf16>
    %224 = tpu.concatenate %199, %202, %205, %208, %211, %214, %217, %220, %223 in 1 : vector<128x64xbf16>, vector<128x64xbf16>, vector<128x64xbf16>, vector<128x64xbf16>, vector<128x64xbf16>, vector<128x64xbf16>, vector<128x64xbf16>, vector<128x64xbf16>, vector<128x64xbf16> -> vector<128x576xbf16>
    %cst_212 = arith.constant dense<0.000000e+00> : vector<128x64xf32>
    %225 = tpu.matmul %224, %195, %cst_212 {dimension_numbers = #tpu.dot_dimension_numbers<[1], [0], [0], [1], [0, 0, 1, 1], [], []>} : vector<128x576xbf16>, vector<576x64xbf16>, vector<128x64xf32> -> vector<128x64xf32>
    %226 = vector.broadcast %196 : vector<1x64xf32> to vector<128x64xf32>
    %227 = arith.addf %225, %226 : vector<128x64xf32>
    %cst_213 = arith.constant 0.000000e+00 : f32
    %228 = vector.broadcast %cst_213 : f32 to vector<128x64xf32>
    %229 = arith.maximumf %227, %228 : vector<128x64xf32>
    %230 = vector.shape_cast %229 : vector<128x64xf32> to vector<8x16x64xf32>
    %c1_214 = arith.constant 1 : index
    %c2_215 = arith.constant 2 : index
    %c0_216 = arith.constant 0 : index
    %231 = vector.load %arg12[%c1_214, %c2_215, %c0_216] : memref<10x20x64xf32, #tpu.memory_space<vmem>>, vector<8x16x64xf32>
    tpu.vector_store %arg12[%c1_214, %c2_215, %c0_216], %230 {strides = array<i32>} : memref<10x20x64xf32, #tpu.memory_space<vmem>>, vector<8x16x64xf32>,
    %232 = vector.extract_strided_slice %230 {offsets = [0, 0, 0], sizes = [8, 1, 64], strides = [1, 1, 1]} : vector<8x16x64xf32> to vector<8x1x64xf32>
    %233 = vector.extract_strided_slice %230 {offsets = [0, 15, 0], sizes = [8, 1, 64], strides = [1, 1, 1]} : vector<8x16x64xf32> to vector<8x1x64xf32>
    %c1_217 = arith.constant 1 : index
    %c0_218 = arith.constant 0 : index
    %c0_219 = arith.constant 0 : index
    %234 = vector.load %arg12[%c1_217, %c0_218, %c0_219] : memref<10x20x64xf32, #tpu.memory_space<vmem>>, vector<8x1x64xf32>
    tpu.vector_store %arg12[%c1_217, %c0_218, %c0_219], %232 {strides = array<i32>} : memref<10x20x64xf32, #tpu.memory_space<vmem>>, vector<8x1x64xf32>,
    %c1_220 = arith.constant 1 : index
    %c1_221 = arith.constant 1 : index
    %c0_222 = arith.constant 0 : index
    %235 = vector.load %arg12[%c1_220, %c1_221, %c0_222] : memref<10x20x64xf32, #tpu.memory_space<vmem>>, vector<8x1x64xf32>
    tpu.vector_store %arg12[%c1_220, %c1_221, %c0_222], %232 {strides = array<i32>} : memref<10x20x64xf32, #tpu.memory_space<vmem>>, vector<8x1x64xf32>,
    %c1_223 = arith.constant 1 : index
    %c18 = arith.constant 18 : index
    %c0_224 = arith.constant 0 : index
    %236 = vector.load %arg12[%c1_223, %c18, %c0_224] : memref<10x20x64xf32, #tpu.memory_space<vmem>>, vector<8x1x64xf32>
    tpu.vector_store %arg12[%c1_223, %c18, %c0_224], %233 {strides = array<i32>} : memref<10x20x64xf32, #tpu.memory_space<vmem>>, vector<8x1x64xf32>,
    %c1_225 = arith.constant 1 : index
    %c19 = arith.constant 19 : index
    %c0_226 = arith.constant 0 : index
    %237 = vector.load %arg12[%c1_225, %c19, %c0_226] : memref<10x20x64xf32, #tpu.memory_space<vmem>>, vector<8x1x64xf32>
    tpu.vector_store %arg12[%c1_225, %c19, %c0_226], %233 {strides = array<i32>} : memref<10x20x64xf32, #tpu.memory_space<vmem>>, vector<8x1x64xf32>,
    %c1_227 = arith.constant 1 : index
    %c0_228 = arith.constant 0 : index
    %c0_229 = arith.constant 0 : index
    %238 = vector.load %arg12[%c1_227, %c0_228, %c0_229] : memref<10x20x64xf32, #tpu.memory_space<vmem>>, vector<1x20x64xf32>
    %c0_230 = arith.constant 0 : index
    %c0_231 = arith.constant 0 : index
    %c0_232 = arith.constant 0 : index
    %239 = vector.load %arg12[%c0_230, %c0_231, %c0_232] : memref<10x20x64xf32, #tpu.memory_space<vmem>>, vector<1x20x64xf32>
    tpu.vector_store %arg12[%c0_230, %c0_231, %c0_232], %238 {strides = array<i32>} : memref<10x20x64xf32, #tpu.memory_space<vmem>>, vector<1x20x64xf32>,
    %c8 = arith.constant 8 : index
    %c0_233 = arith.constant 0 : index
    %c0_234 = arith.constant 0 : index
    %240 = vector.load %arg12[%c8, %c0_233, %c0_234] : memref<10x20x64xf32, #tpu.memory_space<vmem>>, vector<1x20x64xf32>
    %c9 = arith.constant 9 : index
    %c0_235 = arith.constant 0 : index
    %c0_236 = arith.constant 0 : index
    %241 = vector.load %arg12[%c9, %c0_235, %c0_236] : memref<10x20x64xf32, #tpu.memory_space<vmem>>, vector<1x20x64xf32>
    tpu.vector_store %arg12[%c9, %c0_235, %c0_236], %240 {strides = array<i32>} : memref<10x20x64xf32, #tpu.memory_space<vmem>>, vector<1x20x64xf32>,
    %c0_237 = arith.constant 0 : index
    %c0_238 = arith.constant 0 : index
    %242 = vector.load %arg5[%c0_237, %c0_238] : memref<960x64xbf16, #tpu.memory_space<vmem>>, vector<960x64xbf16>
    %c8_239 = arith.constant 8 : index
    %c0_240 = arith.constant 0 : index
    %243 = vector.load %arg6[%c8_239, %c0_240] : memref<9x64xf32, #tpu.memory_space<vmem>>, vector<1x64xf32>
    %c0_241 = arith.constant 0 : index
    %c0_242 = arith.constant 0 : index
    %c0_243 = arith.constant 0 : index
    %244 = vector.load %arg12[%c0_241, %c0_242, %c0_243] : memref<10x20x64xf32, #tpu.memory_space<vmem>>, vector<8x16x64xf32>
    %245 = vector.shape_cast %244 : vector<8x16x64xf32> to vector<128x64xf32>
    %246 = arith.truncf %245 : vector<128x64xf32> to vector<128x64xbf16>
    %c0_244 = arith.constant 0 : index
    %c1_245 = arith.constant 1 : index
    %c0_246 = arith.constant 0 : index
    %247 = vector.load %arg12[%c0_244, %c1_245, %c0_246] : memref<10x20x64xf32, #tpu.memory_space<vmem>>, vector<8x16x64xf32>
    %248 = vector.shape_cast %247 : vector<8x16x64xf32> to vector<128x64xf32>
    %249 = arith.truncf %248 : vector<128x64xf32> to vector<128x64xbf16>
    %c0_247 = arith.constant 0 : index
    %c2_248 = arith.constant 2 : index
    %c0_249 = arith.constant 0 : index
    %250 = vector.load %arg12[%c0_247, %c2_248, %c0_249] : memref<10x20x64xf32, #tpu.memory_space<vmem>>, vector<8x16x64xf32>
    %251 = vector.shape_cast %250 : vector<8x16x64xf32> to vector<128x64xf32>
    %252 = arith.truncf %251 : vector<128x64xf32> to vector<128x64xbf16>
    %c0_250 = arith.constant 0 : index
    %c3_251 = arith.constant 3 : index
    %c0_252 = arith.constant 0 : index
    %253 = vector.load %arg12[%c0_250, %c3_251, %c0_252] : memref<10x20x64xf32, #tpu.memory_space<vmem>>, vector<8x16x64xf32>
    %254 = vector.shape_cast %253 : vector<8x16x64xf32> to vector<128x64xf32>
    %255 = arith.truncf %254 : vector<128x64xf32> to vector<128x64xbf16>
    %c0_253 = arith.constant 0 : index
    %c4_254 = arith.constant 4 : index
    %c0_255 = arith.constant 0 : index
    %256 = vector.load %arg12[%c0_253, %c4_254, %c0_255] : memref<10x20x64xf32, #tpu.memory_space<vmem>>, vector<8x16x64xf32>
    %257 = vector.shape_cast %256 : vector<8x16x64xf32> to vector<128x64xf32>
    %258 = arith.truncf %257 : vector<128x64xf32> to vector<128x64xbf16>
    %c1_256 = arith.constant 1 : index
    %c0_257 = arith.constant 0 : index
    %c0_258 = arith.constant 0 : index
    %259 = vector.load %arg12[%c1_256, %c0_257, %c0_258] : memref<10x20x64xf32, #tpu.memory_space<vmem>>, vector<8x16x64xf32>
    %260 = vector.shape_cast %259 : vector<8x16x64xf32> to vector<128x64xf32>
    %261 = arith.truncf %260 : vector<128x64xf32> to vector<128x64xbf16>
    %c1_259 = arith.constant 1 : index
    %c1_260 = arith.constant 1 : index
    %c0_261 = arith.constant 0 : index
    %262 = vector.load %arg12[%c1_259, %c1_260, %c0_261] : memref<10x20x64xf32, #tpu.memory_space<vmem>>, vector<8x16x64xf32>
    %263 = vector.shape_cast %262 : vector<8x16x64xf32> to vector<128x64xf32>
    %264 = arith.truncf %263 : vector<128x64xf32> to vector<128x64xbf16>
    %c1_262 = arith.constant 1 : index
    %c2_263 = arith.constant 2 : index
    %c0_264 = arith.constant 0 : index
    %265 = vector.load %arg12[%c1_262, %c2_263, %c0_264] : memref<10x20x64xf32, #tpu.memory_space<vmem>>, vector<8x16x64xf32>
    %266 = vector.shape_cast %265 : vector<8x16x64xf32> to vector<128x64xf32>
    %267 = arith.truncf %266 : vector<128x64xf32> to vector<128x64xbf16>
    %c1_265 = arith.constant 1 : index
    %c3_266 = arith.constant 3 : index
    %c0_267 = arith.constant 0 : index
    %268 = vector.load %arg12[%c1_265, %c3_266, %c0_267] : memref<10x20x64xf32, #tpu.memory_space<vmem>>, vector<8x16x64xf32>
    %269 = vector.shape_cast %268 : vector<8x16x64xf32> to vector<128x64xf32>
    %270 = arith.truncf %269 : vector<128x64xf32> to vector<128x64xbf16>
    %c1_268 = arith.constant 1 : index
    %c4_269 = arith.constant 4 : index
    %c0_270 = arith.constant 0 : index
    %271 = vector.load %arg12[%c1_268, %c4_269, %c0_270] : memref<10x20x64xf32, #tpu.memory_space<vmem>>, vector<8x16x64xf32>
    %272 = vector.shape_cast %271 : vector<8x16x64xf32> to vector<128x64xf32>
    %273 = arith.truncf %272 : vector<128x64xf32> to vector<128x64xbf16>
    %c2_271 = arith.constant 2 : index
    %c0_272 = arith.constant 0 : index
    %c0_273 = arith.constant 0 : index
    %274 = vector.load %arg12[%c2_271, %c0_272, %c0_273] : memref<10x20x64xf32, #tpu.memory_space<vmem>>, vector<8x16x64xf32>
    %275 = vector.shape_cast %274 : vector<8x16x64xf32> to vector<128x64xf32>
    %276 = arith.truncf %275 : vector<128x64xf32> to vector<128x64xbf16>
    %c2_274 = arith.constant 2 : index
    %c1_275 = arith.constant 1 : index
    %c0_276 = arith.constant 0 : index
    %277 = vector.load %arg12[%c2_274, %c1_275, %c0_276] : memref<10x20x64xf32, #tpu.memory_space<vmem>>, vector<8x16x64xf32>
    %278 = vector.shape_cast %277 : vector<8x16x64xf32> to vector<128x64xf32>
    %279 = arith.truncf %278 : vector<128x64xf32> to vector<128x64xbf16>
    %c2_277 = arith.constant 2 : index
    %c2_278 = arith.constant 2 : index
    %c0_279 = arith.constant 0 : index
    %280 = vector.load %arg12[%c2_277, %c2_278, %c0_279] : memref<10x20x64xf32, #tpu.memory_space<vmem>>, vector<8x16x64xf32>
    %281 = vector.shape_cast %280 : vector<8x16x64xf32> to vector<128x64xf32>
    %282 = arith.truncf %281 : vector<128x64xf32> to vector<128x64xbf16>
    %c2_280 = arith.constant 2 : index
    %c3_281 = arith.constant 3 : index
    %c0_282 = arith.constant 0 : index
    %283 = vector.load %arg12[%c2_280, %c3_281, %c0_282] : memref<10x20x64xf32, #tpu.memory_space<vmem>>, vector<8x16x64xf32>
    %284 = vector.shape_cast %283 : vector<8x16x64xf32> to vector<128x64xf32>
    %285 = arith.truncf %284 : vector<128x64xf32> to vector<128x64xbf16>
    %c2_283 = arith.constant 2 : index
    %c4_284 = arith.constant 4 : index
    %c0_285 = arith.constant 0 : index
    %286 = vector.load %arg12[%c2_283, %c4_284, %c0_285] : memref<10x20x64xf32, #tpu.memory_space<vmem>>, vector<8x16x64xf32>
    %287 = vector.shape_cast %286 : vector<8x16x64xf32> to vector<128x64xf32>
    %288 = arith.truncf %287 : vector<128x64xf32> to vector<128x64xbf16>
    %289 = tpu.concatenate %246, %249, %252, %255, %258, %261, %264, %267, %270, %273, %276, %279, %282, %285, %288 in 1 : vector<128x64xbf16>, vector<128x64xbf16>, vector<128x64xbf16>, vector<128x64xbf16>, vector<128x64xbf16>, vector<128x64xbf16>, vector<128x64xbf16>, vector<128x64xbf16>, vector<128x64xbf16>, vector<128x64xbf16>, vector<128x64xbf16>, vector<128x64xbf16>, vector<128x64xbf16>, vector<128x64xbf16>, vector<128x64xbf16> -> vector<128x960xbf16>
    %cst_286 = arith.constant dense<0.000000e+00> : vector<128x64xf32>
    %290 = tpu.matmul %289, %242, %cst_286 {dimension_numbers = #tpu.dot_dimension_numbers<[1], [0], [0], [1], [0, 0, 1, 1], [], []>} : vector<128x960xbf16>, vector<960x64xbf16>, vector<128x64xf32> -> vector<128x64xf32>
    %291 = vector.broadcast %243 : vector<1x64xf32> to vector<128x64xf32>
    %292 = arith.addf %290, %291 : vector<128x64xf32>
    %293 = tpu.iota {dimensions = array<i32: 1>} : vector<128x64xi32>
    %c4_i32 = arith.constant 4 : i32
    %c0_i32 = arith.constant 0 : i32
    %294 = arith.cmpi eq, %c4_i32, %c0_i32 : i32
    %c1_i32 = arith.constant 1 : i32
    %295 = arith.select %294, %c1_i32, %c4_i32 : i32
    %296 = vector.broadcast %295 : i32 to vector<128x64xi32>
    %297 = arith.remsi %293, %296 : vector<128x64xi32>
    %c0_i32_287 = arith.constant 0 : i32
    %298 = vector.broadcast %c0_i32_287 : i32 to vector<128x64xi32>
    %299 = arith.cmpi ne, %297, %298 : vector<128x64xi32>
    %c0_i32_288 = arith.constant 0 : i32
    %300 = vector.broadcast %c0_i32_288 : i32 to vector<128x64xi32>
    %301 = arith.cmpi slt, %297, %300 : vector<128x64xi32>
    %c0_i32_289 = arith.constant 0 : i32
    %302 = arith.cmpi slt, %295, %c0_i32_289 : i32
    %303 = vector.broadcast %302 : i1 to vector<128x64xi1>
    %304 = vector.broadcast %303 : vector<128x64xi1> to vector<128x64xi1>
    %305 = arith.xori %301, %304 : vector<128x64xi1>
    %306 = arith.andi %305, %299 : vector<128x64xi1>
    %307 = vector.broadcast %295 : i32 to vector<128x64xi32>
    %308 = arith.addi %297, %307 : vector<128x64xi32>
    %309 = arith.select %306, %308, %297 : vector<128x64xi1>, vector<128x64xi32>
    %c0_i32_290 = arith.constant 0 : i32
    %310 = vector.broadcast %c0_i32_290 : i32 to vector<128x64xi32>
    %311 = arith.cmpi eq, %309, %310 : vector<128x64xi32>
    %cst_291 = arith.constant 5.000000e-01 : f32
    %312 = vector.broadcast %cst_291 : f32 to vector<128x64xf32>
    %313 = arith.mulf %312, %292 : vector<128x64xf32>
    %314 = arith.select %311, %313, %292 : vector<128x64xi1>, vector<128x64xf32>
    %315 = math.tanh %314 : vector<128x64xf32>
    %cst_292 = arith.constant 1.000000e+00 : f32
    %316 = vector.broadcast %cst_292 : f32 to vector<128x64xf32>
    %317 = arith.addf %315, %316 : vector<128x64xf32>
    %cst_293 = arith.constant 5.000000e-01 : f32
    %318 = vector.broadcast %cst_293 : f32 to vector<128x64xf32>
    %319 = arith.mulf %318, %317 : vector<128x64xf32>
    %320 = arith.select %311, %319, %315 : vector<128x64xi1>, vector<128x64xf32>
    %c0_294 = arith.constant 0 : index
    %c0_295 = arith.constant 0 : index
    %c0_296 = arith.constant 0 : index
    %321 = vector.load %arg8[%c0_294, %c0_295, %c0_296] : memref<1x128x64xf32, #tpu.memory_space<vmem>>, vector<1x128x64xf32>
    %322 = vector.shape_cast %321 : vector<1x128x64xf32> to vector<128x64xf32>
    %323 = vector.shape_cast %320 : vector<128x64xf32> to vector<1x128x64xf32>
    tpu.vector_store %arg8[%c0_294, %c0_295, %c0_296], %323 {strides = array<i32>} : memref<1x128x64xf32, #tpu.memory_space<vmem>>, vector<1x128x64xf32>,
    %c0_297 = arith.constant 0 : index
    %c0_298 = arith.constant 0 : index
    %324 = vector.load %arg7[%c0_297, %c0_298] : memref<64x96xf32, #tpu.memory_space<vmem>>, vector<64x96xf32>
    %cst_299 = arith.constant dense<0.000000e+00> : vector<128x96xf32>
    %325 = tpu.matmul %320, %324, %cst_299 {dimension_numbers = #tpu.dot_dimension_numbers<[1], [0], [0], [1], [0, 0, 1, 1], [], []>} : vector<128x64xf32>, vector<64x96xf32>, vector<128x96xf32> -> vector<128x96xf32>
    %326 = vector.extract_strided_slice %325 {offsets = [0, 0], sizes = [128, 48], strides = [1, 1]} : vector<128x96xf32> to vector<128x48xf32>
    %327 = vector.extract_strided_slice %325 {offsets = [0, 48], sizes = [128, 48], strides = [1, 1]} : vector<128x96xf32> to vector<128x48xf32>
    %c0_300 = arith.constant 0 : index
    %c0_301 = arith.constant 0 : index
    %c0_302 = arith.constant 0 : index
    %328 = vector.load %arg2[%c0_300, %c0_301, %c0_302] : memref<1x128x48xf32, #tpu.memory_space<vmem>>, vector<1x128x48xf32>
    %329 = vector.shape_cast %328 : vector<1x128x48xf32> to vector<128x48xf32>
    %330 = arith.mulf %326, %329 : vector<128x48xf32>
    %cst_303 = arith.constant 1.000000e+00 : f32
    %331 = vector.broadcast %cst_303 : f32 to vector<128x48xf32>
    %332 = arith.subf %331, %326 : vector<128x48xf32>
    %333 = arith.mulf %332, %327 : vector<128x48xf32>
    %334 = arith.addf %330, %333 : vector<128x48xf32>
    %c0_304 = arith.constant 0 : index
    %c0_305 = arith.constant 0 : index
    %c0_306 = arith.constant 0 : index
    %335 = vector.load %arg9[%c0_304, %c0_305, %c0_306] : memref<1x128x48xf32, #tpu.memory_space<vmem>>, vector<1x128x48xf32>
    %336 = vector.shape_cast %335 : vector<1x128x48xf32> to vector<128x48xf32>
    %337 = vector.shape_cast %334 : vector<128x48xf32> to vector<1x128x48xf32>
    tpu.vector_store %arg9[%c0_304, %c0_305, %c0_306], %337 {strides = array<i32>} : memref<1x128x48xf32, #tpu.memory_space<vmem>>, vector<1x128x48xf32>,
    return
  }
  func.func @transform_0(%arg0: i32) -> (i32, i32, i32, i32) {
    %c0_i32 = arith.constant 0 : i32
    %c0_i32_0 = arith.constant 0 : i32
    %c0_i32_1 = arith.constant 0 : i32
    %c0_i32_2 = arith.constant 0 : i32
    return %arg0, %c0_i32, %c0_i32_0, %c0_i32_1 : i32, i32, i32, i32
  }
  func.func @transform_1(%arg0: i32) -> (i32, i32, i32) {
    %c0_i32 = arith.constant 0 : i32
    %c0_i32_0 = arith.constant 0 : i32
    %c0_i32_1 = arith.constant 0 : i32
    return %arg0, %c0_i32, %c0_i32_0 : i32, i32, i32
  }
  func.func @transform_2(%arg0: i32) -> (i32, i32) {
    %c0_i32 = arith.constant 0 : i32
    %c0_i32_0 = arith.constant 0 : i32
    %c0_i32_1 = arith.constant 0 : i32
    return %c0_i32, %c0_i32_0 : i32, i32
  }
  func.func @transform_3(%arg0: i32) -> (i32, i32, i32) {
    %c0_i32 = arith.constant 0 : i32
    %c0_i32_0 = arith.constant 0 : i32
    %c0_i32_1 = arith.constant 0 : i32
    %c0_i32_2 = arith.constant 0 : i32
    return %c0_i32, %c0_i32_0, %c0_i32_1 : i32, i32, i32
  }
  func.func @transform_4(%arg0: i32) -> (i32, i32) {
    %c0_i32 = arith.constant 0 : i32
    %c0_i32_0 = arith.constant 0 : i32
    %c0_i32_1 = arith.constant 0 : i32
    return %c0_i32, %c0_i32_0 : i32, i32
  }
  func.func @transform_5(%arg0: i32) -> (i32, i32) {
    %c0_i32 = arith.constant 0 : i32
    %c0_i32_0 = arith.constant 0 : i32
    %c0_i32_1 = arith.constant 0 : i32
    return %c0_i32, %c0_i32_0 : i32, i32
  }
  func.func @transform_6(%arg0: i32) -> (i32, i32) {
    %c0_i32 = arith.constant 0 : i32
    %c0_i32_0 = arith.constant 0 : i32
    %c0_i32_1 = arith.constant 0 : i32
    return %c0_i32, %c0_i32_0 : i32, i32
  }
  func.func @transform_7(%arg0: i32) -> (i32, i32, i32) {
    %c0_i32 = arith.constant 0 : i32
    %c0_i32_0 = arith.constant 0 : i32
    %c0_i32_1 = arith.constant 0 : i32
    return %arg0, %c0_i32, %c0_i32_0 : i32, i32, i32
  }
  func.func @transform_8(%arg0: i32) -> (i32, i32, i32) {
    %c0_i32 = arith.constant 0 : i32
    %c0_i32_0 = arith.constant 0 : i32
    %c0_i32_1 = arith.constant 0 : i32
    return %arg0, %c0_i32, %c0_i32_0 : i32, i32, i32
  }
}

</mosaic_0001>

<llo_original>
// kernel: rppg_att_v2_forward.1
$region0: #{rppg_att_v2_forward.1}
  #allocation0 [shape = 'u32[]', space=smem, size = 0x4, offset = 0x4, fixed_abs, tag = 'smem constant byte address 0x4 - core index']
  #allocation1 [shape = 'u32[144,128]{1,0:T(1,128)}', space=vmem, size = 0x12000, scoped, tag = 'internal scratch']
  #allocation2 [shape = 'f32[10,18,64]{2,1,0:T(8,128)}', space=vmem, size = 0x1e000, scoped, tag = 'scratch operand']
  #allocation3 [shape = 'f32[10,18,64]{2,1,0:T(8,128)}', space=vmem, size = 0x1e000, scoped, tag = 'scratch operand']
  #allocation4 [shape = 'f32[10,20,64]{2,1,0:T(8,128)}', space=vmem, size = 0x1e000, scoped, tag = 'scratch operand']
  %s0 = inlined_call_operand.vmem [shape: f32[2,8,20,64], index: 0, kind: input, shape index: {}]
  %s1 = inlined_call_operand.vmem [shape: f32[2,128,48], index: 1, kind: input, shape index: {}]
  %s2 = inlined_call_operand.vmem [shape: bf16[320,64], index: 2, kind: input, shape index: {}]
  %s3 = inlined_call_operand.vmem [shape: bf16[5,576,64], index: 3, kind: input, shape index: {}]
  %s4 = inlined_call_operand.vmem [shape: bf16[960,64], index: 4, kind: input, shape index: {}]
  %s5 = inlined_call_operand.vmem [shape: f32[9,64], index: 5, kind: input, shape index: {}]
  %s6 = inlined_call_operand.vmem [shape: f32[64,96], index: 6, kind: input, shape index: {}]
  %s7 = inlined_call_operand.vmem [shape: f32[2,128,64], index: 7, kind: output, shape index: {0}]
  %s8 = inlined_call_operand.vmem [shape: f32[2,128,48], index: 8, kind: output, shape index: {1}]
  %9 = xla_tuple %s7, %s8
  %s10 = sld [smem:[#allocation0]]
  $region69: #{rppg_att_v2_forward.1} parent=0
    _
  %s12 = ssub.s32 1, %s10
  %s13 = scalar_select 0, %s12, %s10
  loop: start=0, step=1, limit=4
  $region2: #{rppg_att_v2_forward.1} parent=0 // loop_pre_header
    _
  $region3: #{rppg_att_v2_forward.1} parent=0 // loop_header
    %s15 = sphi 0, %s19
    %p16 = scmp.ge.s32.totalorder %s15, 4
    %s25 = sphi 0, %s27
    %s28 = sphi 0, %s25
    %s29 = sphi 0, %s28
    %s45 = sphi 0, %s29
    %s51 = sphi 0, %s53
    %s54 = sphi 0, %s51
    %s55 = sphi 0, %s54
    %s71 = sphi 0, %s55
    %s75 = sphi 0, %s75
    %s77 = sphi 0, %s75
    %s78 = sphi 0, %s77
    %s92 = sphi 0, %s78
    %s96 = sphi 0, %s96
    %s98 = sphi 0, %s96
    %s99 = sphi 0, %s98
    %s113 = sphi 0, %s99
    %s117 = sphi 0, %s117
    %s119 = sphi 0, %s117
    %s120 = sphi 0, %s119
    %s134 = sphi 0, %s120
    %s138 = sphi 0, %s138
    %s140 = sphi 0, %s138
    %s141 = sphi 0, %s140
    %s155 = sphi 0, %s141
    %s159 = sphi 0, %s159
    %s161 = sphi 0, %s159
    %s162 = sphi 0, %s161
    %s176 = sphi 0, %s162
    %s182 = sphi 0, %s184
    %s185 = sphi 0, %s182
    %s186 = sphi 0, %s185
    %s202 = sphi 0, %s186
    %s208 = sphi 0, %s210
    %s211 = sphi 0, %s208
    %s212 = sphi 0, %s211
    %s228 = sphi 0, %s212
  $region4: #{rppg_att_v2_forward.1} parent=0 // loop_header_branch
    %18 = sbr.rel (%p16) target = $region8
  $region5: #{rppg_att_v2_forward.1} parent=0 // loop_body
    %s20 = ssub.s32 %s15, 1
    %s21 = ssub.s32 %s15, 2
    %s22 = sadd.s32 %s15, 1
    %s23 = ssub.s32 %s15, %s22
    %p24 = scmp.eq.s32.totalorder %s23, 0
    %s26 = sadd.s32 %s25, 1
    %s27 = scalar_select %p24, %s25, %s26
    %p30 = pneg %p24
    %p31 = scmp.eq.s32.totalorder %s15, 1
    %p32 = por %p30, %p31
    %p33 = scmp.ne.s32.totalorder %s25, %s28
    %p34 = scmp.eq.s32.totalorder %s15, 0
    %p35 = por %p33, %p34
    %p36 = scmp.ne.s32.totalorder %s25, %s28
    %p37 = scmp.eq.s32.totalorder %s20, 1
    %p38 = por %p36, %p37
    %p39 = scmp.ne.s32.totalorder %s28, %s29
    %p40 = scmp.eq.s32.totalorder %s20, 0
    %p41 = por %p39, %p40
    %p42 = scmp.ne.s32.totalorder %s28, %s29
    %p43 = scmp.eq.s32.totalorder %s21, 1
    %p44 = por %p42, %p43
    %p46 = scmp.ne.s32.totalorder %s29, %s45
    %p47 = scmp.eq.s32.totalorder %s21, 0
    %p48 = por %p46, %p47
    %s49 = ssub.s32 %s15, %s22
    %p50 = scmp.eq.s32.totalorder %s49, 0
    %s52 = sadd.s32 %s51, 1
    %s53 = scalar_select %p50, %s51, %s52
    %p56 = pneg %p50
    %p57 = scmp.eq.s32.totalorder %s15, 1
    %p58 = por %p56, %p57
    %p59 = scmp.ne.s32.totalorder %s51, %s54
    %p60 = scmp.eq.s32.totalorder %s15, 0
    %p61 = por %p59, %p60
    %p62 = scmp.ne.s32.totalorder %s51, %s54
    %p63 = scmp.eq.s32.totalorder %s20, 1
    %p64 = por %p62, %p63
    %p65 = scmp.ne.s32.totalorder %s54, %s55
    %p66 = scmp.eq.s32.totalorder %s20, 0
    %p67 = por %p65, %p66
    %p68 = scmp.ne.s32.totalorder %s54, %s55
    %p69 = scmp.eq.s32.totalorder %s21, 1
    %p70 = por %p68, %p69
    %p72 = scmp.ne.s32.totalorder %s55, %s71
    %p73 = scmp.eq.s32.totalorder %s21, 0
    %p74 = por %p72, %p73
    %s76 = sadd.s32 %s75, 1
    %p79 = scmp.eq.s32.totalorder %s15, 1
    %p80 = scmp.ne.s32.totalorder %s75, %s77
    %p81 = scmp.eq.s32.totalorder %s15, 0
    %p82 = por %p80, %p81
    %p83 = scmp.ne.s32.totalorder %s75, %s77
    %p84 = scmp.eq.s32.totalorder %s20, 1
    %p85 = por %p83, %p84
    %p86 = scmp.ne.s32.totalorder %s77, %s78
    %p87 = scmp.eq.s32.totalorder %s20, 0
    %p88 = por %p86, %p87
    %p89 = scmp.ne.s32.totalorder %s77, %s78
    %p90 = scmp.eq.s32.totalorder %s21, 1
    %p91 = por %p89, %p90
    %p93 = scmp.ne.s32.totalorder %s78, %s92
    %p94 = scmp.eq.s32.totalorder %s21, 0
    %p95 = por %p93, %p94
    %s97 = sadd.s32 %s96, 1
    %p100 = scmp.eq.s32.totalorder %s15, 1
    %p101 = scmp.ne.s32.totalorder %s96, %s98
    %p102 = scmp.eq.s32.totalorder %s15, 0
    %p103 = por %p101, %p102
    %p104 = scmp.ne.s32.totalorder %s96, %s98
    %p105 = scmp.eq.s32.totalorder %s20, 1
    %p106 = por %p104, %p105
    %p107 = scmp.ne.s32.totalorder %s98, %s99
    %p108 = scmp.eq.s32.totalorder %s20, 0
    %p109 = por %p107, %p108
    %p110 = scmp.ne.s32.totalorder %s98, %s99
    %p111 = scmp.eq.s32.totalorder %s21, 1
    %p112 = por %p110, %p111
    %p114 = scmp.ne.s32.totalorder %s99, %s113
    %p115 = scmp.eq.s32.totalorder %s21, 0
    %p116 = por %p114, %p115
    %s118 = sadd.s32 %s117, 1
    %p121 = scmp.eq.s32.totalorder %s15, 1
    %p122 = scmp.ne.s32.totalorder %s117, %s119
    %p123 = scmp.eq.s32.totalorder %s15, 0
    %p124 = por %p122, %p123
    %p125 = scmp.ne.s32.totalorder %s117, %s119
    %p126 = scmp.eq.s32.totalorder %s20, 1
    %p127 = por %p125, %p126
    %p128 = scmp.ne.s32.totalorder %s119, %s120
    %p129 = scmp.eq.s32.totalorder %s20, 0
    %p130 = por %p128, %p129
    %p131 = scmp.ne.s32.totalorder %s119, %s120
    %p132 = scmp.eq.s32.totalorder %s21, 1
    %p133 = por %p131, %p132
    %p135 = scmp.ne.s32.totalorder %s120, %s134
    %p136 = scmp.eq.s32.totalorder %s21, 0
    %p137 = por %p135, %p136
    %s139 = sadd.s32 %s138, 1
    %p142 = scmp.eq.s32.totalorder %s15, 1
    %p143 = scmp.ne.s32.totalorder %s138, %s140
    %p144 = scmp.eq.s32.totalorder %s15, 0
    %p145 = por %p143, %p144
    %p146 = scmp.ne.s32.totalorder %s138, %s140
    %p147 = scmp.eq.s32.totalorder %s20, 1
    %p148 = por %p146, %p147
    %p149 = scmp.ne.s32.totalorder %s140, %s141
    %p150 = scmp.eq.s32.totalorder %s20, 0
    %p151 = por %p149, %p150
    %p152 = scmp.ne.s32.totalorder %s140, %s141
    %p153 = scmp.eq.s32.totalorder %s21, 1
    %p154 = por %p152, %p153
    %p156 = scmp.ne.s32.totalorder %s141, %s155
    %p157 = scmp.eq.s32.totalorder %s21, 0
    %p158 = por %p156, %p157
    %s160 = sadd.s32 %s159, 1
    %p163 = scmp.eq.s32.totalorder %s15, 1
    %p164 = scmp.ne.s32.totalorder %s159, %s161
    %p165 = scmp.eq.s32.totalorder %s15, 0
    %p166 = por %p164, %p165
    %p167 = scmp.ne.s32.totalorder %s159, %s161
    %p168 = scmp.eq.s32.totalorder %s20, 1
    %p169 = por %p167, %p168
    %p170 = scmp.ne.s32.totalorder %s161, %s162
    %p171 = scmp.eq.s32.totalorder %s20, 0
    %p172 = por %p170, %p171
    %p173 = scmp.ne.s32.totalorder %s161, %s162
    %p174 = scmp.eq.s32.totalorder %s21, 1
    %p175 = por %p173, %p174
    %p177 = scmp.ne.s32.totalorder %s162, %s176
    %p178 = scmp.eq.s32.totalorder %s21, 0
    %p179 = por %p177, %p178
    %s180 = ssub.s32 %s15, %s22
    %p181 = scmp.eq.s32.totalorder %s180, 0
    %s183 = sadd.s32 %s182, 1
    %s184 = scalar_select %p181, %s182, %s183
    %p187 = pneg %p181
    %p188 = scmp.eq.s32.totalorder %s15, 1
    %p189 = por %p187, %p188
    %p190 = scmp.ne.s32.totalorder %s182, %s185
    %p191 = scmp.eq.s32.totalorder %s15, 0
    %p192 = por %p190, %p191
    %p193 = scmp.ne.s32.totalorder %s182, %s185
    %p194 = scmp.eq.s32.totalorder %s20, 1
    %p195 = por %p193, %p194
    %p196 = scmp.ne.s32.totalorder %s185, %s186
    %p197 = scmp.eq.s32.totalorder %s20, 0
    %p198 = por %p196, %p197
    %p199 = scmp.ne.s32.totalorder %s185, %s186
    %p200 = scmp.eq.s32.totalorder %s21, 1
    %p201 = por %p199, %p200
    %p203 = scmp.ne.s32.totalorder %s186, %s202
    %p204 = scmp.eq.s32.totalorder %s21, 0
    %p205 = por %p203, %p204
    %s206 = ssub.s32 %s15, %s22
    %p207 = scmp.eq.s32.totalorder %s206, 0
    %s209 = sadd.s32 %s208, 1
    %s210 = scalar_select %p207, %s208, %s209
    %p213 = pneg %p207
    %p214 = scmp.eq.s32.totalorder %s15, 1
    %p215 = por %p213, %p214
    %p216 = scmp.ne.s32.totalorder %s208, %s211
    %p217 = scmp.eq.s32.totalorder %s15, 0
    %p218 = por %p216, %p217
    %p219 = scmp.ne.s32.totalorder %s208, %s211
    %p220 = scmp.eq.s32.totalorder %s20, 1
    %p221 = por %p219, %p220
    %p222 = scmp.ne.s32.totalorder %s211, %s212
    %p223 = scmp.eq.s32.totalorder %s20, 0
    %p224 = por %p222, %p223
    %p225 = scmp.ne.s32.totalorder %s211, %s212
    %p226 = scmp.eq.s32.totalorder %s21, 1
    %p227 = por %p225, %p226
    %p229 = scmp.ne.s32.totalorder %s212, %s228
    %p230 = scmp.eq.s32.totalorder %s21, 0
    %p231 = por %p229, %p230
    %p232 = scmp.le.s32.totalorder 1, %s15
    %p233 = scmp.lt.s32.totalorder %s15, 3
    %p234 = pnand %p232, %p233
    %p235 = pneg %p234
    // Predicated region
    $region9: #{rppg_att_v2_forward.1} parent=5 // pred_check
      _
    $region10: #{rppg_att_v2_forward.1} parent=5 // pred_check_branch
      %237 = sbr.rel (%p234) target = $region12
    $region11: #{rppg_att_v2_forward.1} parent=5 // pred_region
      %s238 = ssub.s32 %s15, 1
      // Predicated region
      $region13: #{rppg_att_v2_forward.1} parent=11 // pred_check
        %p239 = pneg %p88
      $region14: #{rppg_att_v2_forward.1} parent=11 // pred_check_branch
        %241 = sbr.rel (%p239) target = $region16
      $region15: #{rppg_att_v2_forward.1} parent=11 // pred_region
        _
      $region16: #{rppg_att_v2_forward.1} parent=11 // pred_fallthru
        _
      // Predicated region
      $region17: #{rppg_att_v2_forward.1} parent=11 // pred_check
        %p242 = pneg %p109
      $region18: #{rppg_att_v2_forward.1} parent=11 // pred_check_branch
        %244 = sbr.rel (%p242) target = $region20
      $region19: #{rppg_att_v2_forward.1} parent=11 // pred_region
        _
      $region20: #{rppg_att_v2_forward.1} parent=11 // pred_fallthru
        _
      // Predicated region
      $region21: #{rppg_att_v2_forward.1} parent=11 // pred_check
        %p245 = pneg %p130
      $region22: #{rppg_att_v2_forward.1} parent=11 // pred_check_branch
        %247 = sbr.rel (%p245) target = $region24
      $region23: #{rppg_att_v2_forward.1} parent=11 // pred_region
        _
      $region24: #{rppg_att_v2_forward.1} parent=11 // pred_fallthru
        _
      // Predicated region
      $region25: #{rppg_att_v2_forward.1} parent=11 // pred_check
        %p248 = pneg %p151
      $region26: #{rppg_att_v2_forward.1} parent=11 // pred_check_branch
        %250 = sbr.rel (%p248) target = $region28
      $region27: #{rppg_att_v2_forward.1} parent=11 // pred_region
        _
      $region28: #{rppg_att_v2_forward.1} parent=11 // pred_fallthru
        _
      // Predicated region
      $region29: #{rppg_att_v2_forward.1} parent=11 // pred_check
        %p251 = pneg %p172
      $region30: #{rppg_att_v2_forward.1} parent=11 // pred_check_branch
        %253 = sbr.rel (%p251) target = $region32
      $region31: #{rppg_att_v2_forward.1} parent=11 // pred_region
        _
      $region32: #{rppg_att_v2_forward.1} parent=11 // pred_fallthru
        _
    $region12: #{rppg_att_v2_forward.1} parent=5 // pred_fallthru
      _
    %p254 = scmp.lt.s32.totalorder %s15, 2
    // Predicated region
    $region33: #{rppg_att_v2_forward.1} parent=5 // pred_check
      %p255 = pneg %p254
    $region34: #{rppg_att_v2_forward.1} parent=5 // pred_check_branch
      %257 = sbr.rel (%p255) target = $region36
    $region35: #{rppg_att_v2_forward.1} parent=5 // pred_region
      // Predicated region
      $region37: #{rppg_att_v2_forward.1} parent=35 // pred_check
        %p258 = pneg %p35
      $region38: #{rppg_att_v2_forward.1} parent=35 // pred_check_branch
        %260 = sbr.rel (%p258) target = $region40
      $region39: #{rppg_att_v2_forward.1} parent=35 // pred_region
        %p261 = scmp.lt.s32.totalorder %s15, 1
        %s262 = scalar_select %p261, %s15, 1
        %s263 = smul.addr %s262, 24
        %s264 = smul.addr %s263, 8
        %s265 = scalar_lea.vmem %s0, %s264
      $region40: #{rppg_att_v2_forward.1} parent=35 // pred_fallthru
        _
      // Predicated region
      $region41: #{rppg_att_v2_forward.1} parent=35 // pred_check
        %p266 = pneg %p61
      $region42: #{rppg_att_v2_forward.1} parent=35 // pred_check_branch
        %268 = sbr.rel (%p266) target = $region44
      $region43: #{rppg_att_v2_forward.1} parent=35 // pred_region
        %p269 = scmp.lt.s32.totalorder %s15, 1
        %s270 = scalar_select %p269, %s15, 1
        %s271 = smul.addr %s270, 16
        %s272 = smul.addr %s271, 8
        %s273 = scalar_lea.vmem %s1, %s272
      $region44: #{rppg_att_v2_forward.1} parent=35 // pred_fallthru
        _
    $region36: #{rppg_att_v2_forward.1} parent=5 // pred_fallthru
      _
    %p274 = scmp.le.s32.totalorder 1, %s15
    %p275 = scmp.lt.s32.totalorder %s15, 3
    %p276 = pnand %p274, %p275
    %p277 = pneg %p276
    // Predicated region
    $region45: #{rppg_att_v2_forward.1} parent=5 // pred_check
      _
    $region46: #{rppg_att_v2_forward.1} parent=5 // pred_check_branch
      %279 = sbr.rel (%p276) target = $region48
    $region47: #{rppg_att_v2_forward.1} parent=5 // pred_region
      %s280 = ssub.s32 %s15, 1
      %p281 = scmp.lt.s32.totalorder %s20, 1
      %s282 = scalar_select %p281, %s20, 1
      %s283 = smul.addr %s282, 24
      %s284 = smul.addr %s283, 8
      %s285 = scalar_lea.vmem %s0, %s284
      %p286 = pneg %p41
      %p287 = pneg %p38
      %p288 = scmp.lt.s32.totalorder %s20, 1
      %s289 = scalar_select %p288, %s20, 1
      %s290 = smul.addr %s289, 16
      %s291 = smul.addr %s290, 8
      %s292 = scalar_lea.vmem %s1, %s291
      %p293 = pneg %p67
      %p294 = pneg %p64
      %p295 = pneg %p88
      %p296 = pneg %p85
      %p297 = pneg %p109
      %p298 = pneg %p106
      %p299 = pneg %p130
      %p300 = pneg %p127
      %p301 = pneg %p151
      %p302 = pneg %p148
      %p303 = pneg %p172
      %p304 = pneg %p169
      %p305 = pneg %p198
      %p306 = pneg %p195
      %p307 = scmp.lt.s32.totalorder %s20, 1
      %s308 = scalar_select %p307, %s20, 1
      %s309 = smul.addr %s308, 16
      %s310 = smul.addr %s309, 8
      %s311 = scalar_lea.vmem %s7, %s310
      %p312 = pneg %p224
      %p313 = pneg %p221
      %p314 = scmp.lt.s32.totalorder %s20, 1
      %s315 = scalar_select %p314, %s20, 1
      %s316 = smul.addr %s315, 16
      %s317 = smul.addr %s316, 8
      %s318 = scalar_lea.vmem %s8, %s317
      %p319 = scmp.lt.s32.totalorder %s20, 1
      %s320 = scalar_select %p319, %s20, 1
      %s321 = smul.addr %s320, 24
      %s322 = smul.addr %s321, 8
      %s323 = scalar_lea.vmem %s0, %s322
      %p324 = scmp.lt.s32.totalorder %s20, 1
      %s325 = scalar_select %p324, %s20, 1
      %s326 = smul.addr %s325, 16
      %s327 = smul.addr %s326, 8
      %s328 = scalar_lea.vmem %s1, %s327
      %p329 = scmp.lt.s32.totalorder %s20, 1
      %s330 = scalar_select %p329, %s20, 1
      %s331 = smul.addr %s330, 16
      %s332 = smul.addr %s331, 8
      %s333 = scalar_lea.vmem %s7, %s332
      %p334 = scmp.lt.s32.totalorder %s20, 1
      %s335 = scalar_select %p334, %s20, 1
      %s336 = smul.addr %s335, 16
      %s337 = smul.addr %s336, 8
      %s338 = scalar_lea.vmem %s8, %s337
      %vm340 = vcmask 523264
      %341 = vst.msk [vmem:[#allocation2] sm:$0xff] %vm340, 0.0
      %342 = vst.msk [vmem:[#allocation2 + $0x8] sm:$0xff] %vm340, 0.0
      %vm343 = vcmask 517120
      %344 = vst.msk [vmem:[#allocation2 + $0x10] sm:$0x3] %vm343, 0.0
      %345 = vst.msk [vmem:[#allocation2 + $0x18] sm:$0xff] %vm340, 0.0
      %346 = vst.msk [vmem:[#allocation2 + $0x20] sm:$0xff] %vm340, 0.0
      %347 = vst.msk [vmem:[#allocation2 + $0x28] sm:$0x3] %vm343, 0.0
      %348 = vst.msk [vmem:[#allocation2 + $0x30] sm:$0xff] %vm340, 0.0
      %349 = vst.msk [vmem:[#allocation2 + $0x38] sm:$0xff] %vm340, 0.0
      %350 = vst.msk [vmem:[#allocation2 + $0x40] sm:$0x3] %vm343, 0.0
      %351 = vst.msk [vmem:[#allocation2 + $0x48] sm:$0xff] %vm340, 0.0
      %352 = vst.msk [vmem:[#allocation2 + $0x50] sm:$0xff] %vm340, 0.0
      %353 = vst.msk [vmem:[#allocation2 + $0x58] sm:$0x3] %vm343, 0.0
      %354 = vst.msk [vmem:[#allocation2 + $0x60] sm:$0xff] %vm340, 0.0
      %355 = vst.msk [vmem:[#allocation2 + $0x68] sm:$0xff] %vm340, 0.0
      %356 = vst.msk [vmem:[#allocation2 + $0x70] sm:$0x3] %vm343, 0.0
      %357 = vst.msk [vmem:[#allocation2 + $0x78] sm:$0xff] %vm340, 0.0
      %358 = vst.msk [vmem:[#allocation2 + $0x80] sm:$0xff] %vm340, 0.0
      %359 = vst.msk [vmem:[#allocation2 + $0x88] sm:$0x3] %vm343, 0.0
      %360 = vst.msk [vmem:[#allocation2 + $0x90] sm:$0xff] %vm340, 0.0
      %361 = vst.msk [vmem:[#allocation2 + $0x98] sm:$0xff] %vm340, 0.0
      %362 = vst.msk [vmem:[#allocation2 + $0xa0] sm:$0x3] %vm343, 0.0
      %363 = vst.msk [vmem:[#allocation2 + $0xa8] sm:$0xff] %vm340, 0.0
      %364 = vst.msk [vmem:[#allocation2 + $0xb0] sm:$0xff] %vm340, 0.0
      %365 = vst.msk [vmem:[#allocation2 + $0xb8] sm:$0x3] %vm343, 0.0
      %366 = vst.msk [vmem:[#allocation2 + $0xc0] sm:$0xff] %vm340, 0.0
      %367 = vst.msk [vmem:[#allocation2 + $0xc8] sm:$0xff] %vm340, 0.0
      %368 = vst.msk [vmem:[#allocation2 + $0xd0] sm:$0x3] %vm343, 0.0
      %369 = vst.msk [vmem:[#allocation2 + $0xd8] sm:$0xff] %vm340, 0.0
      %370 = vst.msk [vmem:[#allocation2 + $0xe0] sm:$0xff] %vm340, 0.0
      %371 = vst.msk [vmem:[#allocation2 + $0xe8] sm:$0x3] %vm343, 0.0
      %372 = vst.msk [vmem:[#allocation3] sm:$0xff] %vm340, 0.0
      %373 = vst.msk [vmem:[#allocation3 + $0x8] sm:$0xff] %vm340, 0.0
      %374 = vst.msk [vmem:[#allocation3 + $0x10] sm:$0x3] %vm343, 0.0
      %375 = vst.msk [vmem:[#allocation3 + $0x18] sm:$0xff] %vm340, 0.0
      %376 = vst.msk [vmem:[#allocation3 + $0x20] sm:$0xff] %vm340, 0.0
      %377 = vst.msk [vmem:[#allocation3 + $0x28] sm:$0x3] %vm343, 0.0
      %378 = vst.msk [vmem:[#allocation3 + $0x30] sm:$0xff] %vm340, 0.0
      %379 = vst.msk [vmem:[#allocation3 + $0x38] sm:$0xff] %vm340, 0.0
      %380 = vst.msk [vmem:[#allocation3 + $0x40] sm:$0x3] %vm343, 0.0
      %381 = vst.msk [vmem:[#allocation3 + $0x48] sm:$0xff] %vm340, 0.0
      %382 = vst.msk [vmem:[#allocation3 + $0x50] sm:$0xff] %vm340, 0.0
      %383 = vst.msk [vmem:[#allocation3 + $0x58] sm:$0x3] %vm343, 0.0
      %384 = vst.msk [vmem:[#allocation3 + $0x60] sm:$0xff] %vm340, 0.0
      %385 = vst.msk [vmem:[#allocation3 + $0x68] sm:$0xff] %vm340, 0.0
      %386 = vst.msk [vmem:[#allocation3 + $0x70] sm:$0x3] %vm343, 0.0
      %387 = vst.msk [vmem:[#allocation3 + $0x78] sm:$0xff] %vm340, 0.0
      %388 = vst.msk [vmem:[#allocation3 + $0x80] sm:$0xff] %vm340, 0.0
      %389 = vst.msk [vmem:[#allocation3 + $0x88] sm:$0x3] %vm343, 0.0
      %390 = vst.msk [vmem:[#allocation3 + $0x90] sm:$0xff] %vm340, 0.0
      %391 = vst.msk [vmem:[#allocation3 + $0x98] sm:$0xff] %vm340, 0.0
      %392 = vst.msk [vmem:[#allocation3 + $0xa0] sm:$0x3] %vm343, 0.0
      %393 = vst.msk [vmem:[#allocation3 + $0xa8] sm:$0xff] %vm340, 0.0
      %394 = vst.msk [vmem:[#allocation3 + $0xb0] sm:$0xff] %vm340, 0.0
      %395 = vst.msk [vmem:[#allocation3 + $0xb8] sm:$0x3] %vm343, 0.0
      %396 = vst.msk [vmem:[#allocation3 + $0xc0] sm:$0xff] %vm340, 0.0
      %397 = vst.msk [vmem:[#allocation3 + $0xc8] sm:$0xff] %vm340, 0.0
      %398 = vst.msk [vmem:[#allocation3 + $0xd0] sm:$0x3] %vm343, 0.0
      %399 = vst.msk [vmem:[#allocation3 + $0xd8] sm:$0xff] %vm340, 0.0
      %400 = vst.msk [vmem:[#allocation3 + $0xe0] sm:$0xff] %vm340, 0.0
      %401 = vst.msk [vmem:[#allocation3 + $0xe8] sm:$0x3] %vm343, 0.0
      %v402 = vld [vmem:[%s2] sm:$0xf]
      %v403 = vld [vmem:[%s2 + $0x4] sm:$0xf]
      %v404 = vld [vmem:[%s2 + $0x8] sm:$0xf]
      %v405 = vld [vmem:[%s2 + $0xc] sm:$0xf]
      %v406 = vld [vmem:[%s2 + $0x10] sm:$0xf]
      %v407 = vld [vmem:[%s2 + $0x14] sm:$0xf]
      %v408 = vld [vmem:[%s2 + $0x18] sm:$0xf]
      %v409 = vld [vmem:[%s2 + $0x1c] sm:$0xf]
      %v410 = vld [vmem:[%s2 + $0x20] sm:$0xf]
      %v411 = vld [vmem:[%s2 + $0x24] sm:$0xf]
      %v412 = vld [vmem:[%s2 + $0x28] sm:$0xf]
      %v413 = vld [vmem:[%s2 + $0x2c] sm:$0xf]
      %v414 = vld [vmem:[%s2 + $0x30] sm:$0xf]
      %v415 = vld [vmem:[%s2 + $0x34] sm:$0xf]
      %v416 = vld [vmem:[%s2 + $0x38] sm:$0xf]
      %v417 = vld [vmem:[%s2 + $0x3c] sm:$0xf]
      %v418 = vld [vmem:[%s2 + $0x40] sm:$0xf]
      %v419 = vld [vmem:[%s2 + $0x44] sm:$0xf]
      %v420 = vld [vmem:[%s2 + $0x48] sm:$0xf]
      %v421 = vld [vmem:[%s2 + $0x4c] sm:$0xf]
      %v422 = vld [vmem:[%s2 + $0x50] sm:$0xf]
      %v423 = vld [vmem:[%s2 + $0x54] sm:$0xf]
      %v424 = vld [vmem:[%s2 + $0x58] sm:$0xf]
      %v425 = vld [vmem:[%s2 + $0x5c] sm:$0xf]
      %v426 = vld [vmem:[%s2 + $0x60] sm:$0xf]
      %v427 = vld [vmem:[%s2 + $0x64] sm:$0xf]
      %v428 = vld [vmem:[%s2 + $0x68] sm:$0xf]
      %v429 = vld [vmem:[%s2 + $0x6c] sm:$0xf]
      %v430 = vld [vmem:[%s2 + $0x70] sm:$0xf]
      %v431 = vld [vmem:[%s2 + $0x74] sm:$0xf]
      %v432 = vld [vmem:[%s2 + $0x78] sm:$0xf]
      %v433 = vld [vmem:[%s2 + $0x7c] sm:$0xf]
      %v434 = vld [vmem:[%s2 + $0x80] sm:$0xf]
      %v435 = vld [vmem:[%s2 + $0x84] sm:$0xf]
      %v436 = vld [vmem:[%s2 + $0x88] sm:$0xf]
      %v437 = vld [vmem:[%s2 + $0x8c] sm:$0xf]
      %v438 = vld [vmem:[%s2 + $0x90] sm:$0xf]
      %v439 = vld [vmem:[%s2 + $0x94] sm:$0xf]
      %v440 = vld [vmem:[%s2 + $0x98] sm:$0xf]
      %v441 = vld [vmem:[%s2 + $0x9c] sm:$0xf]
      %v442 = vld [vmem:[%s5] sm:$0x1]
      %v443 = vld [vmem:[%s323] sm:$0xff]
      %v444 = vld [vmem:[%s323 + $0x8] sm:$0xff]
      %v445 = vld [vmem:[%s323 + $0x18] sm:$0xff]
      %v446 = vld [vmem:[%s323 + $0x20] sm:$0xff]
      %v447 = vld [vmem:[%s323 + $0x30] sm:$0xff]
      %v448 = vld [vmem:[%s323 + $0x38] sm:$0xff]
      %v449 = vld [vmem:[%s323 + $0x48] sm:$0xff]
      %v450 = vld [vmem:[%s323 + $0x50] sm:$0xff]
      %v451 = vld [vmem:[%s323 + $0x60] sm:$0xff]
      %v452 = vld [vmem:[%s323 + $0x68] sm:$0xff]
      %v453 = vld [vmem:[%s323 + $0x78] sm:$0xff]
      %v454 = vld [vmem:[%s323 + $0x80] sm:$0xff]
      %v455 = vld [vmem:[%s323 + $0x90] sm:$0xff]
      %v456 = vld [vmem:[%s323 + $0x98] sm:$0xff]
      %v457 = vld [vmem:[%s323 + $0xa8] sm:$0xff]
      %v458 = vld [vmem:[%s323 + $0xb0] sm:$0xff]
      %v459 = vpack.c.bf16 %v444, %v443
      %v460 = vpack.c.bf16 %v446, %v445
      %v461 = vpack.c.bf16 %v448, %v447
      %v462 = vpack.c.bf16 %v450, %v449
      %v463 = vpack.c.bf16 %v452, %v451
      %v464 = vpack.c.bf16 %v454, %v453
      %v465 = vpack.c.bf16 %v456, %v455
      %v466 = vpack.c.bf16 %v458, %v457
      %v467 = vld [vmem:[%s323 + $0x1] sm:$0xff]
      %v468 = vld [vmem:[%s323 + $0x9] sm:$0xff]
      %v469 = vld [vmem:[%s323 + $0x19] sm:$0xff]
      %v470 = vld [vmem:[%s323 + $0x21] sm:$0xff]
      %v471 = vld [vmem:[%s323 + $0x31] sm:$0xff]
      %v472 = vld [vmem:[%s323 + $0x39] sm:$0xff]
      %v473 = vld [vmem:[%s323 + $0x49] sm:$0xff]
      %v474 = vld [vmem:[%s323 + $0x51] sm:$0xff]
      %v475 = vld [vmem:[%s323 + $0x61] sm:$0xff]
      %v476 = vld [vmem:[%s323 + $0x69] sm:$0xff]
      %v477 = vld [vmem:[%s323 + $0x79] sm:$0xff]
      %v478 = vld [vmem:[%s323 + $0x81] sm:$0xff]
      %v479 = vld [vmem:[%s323 + $0x91] sm:$0xff]
      %v480 = vld [vmem:[%s323 + $0x99] sm:$0xff]
      %v481 = vld [vmem:[%s323 + $0xa9] sm:$0xff]
      %v482 = vld [vmem:[%s323 + $0xb1] sm:$0xff]
      %v483 = vpack.c.bf16 %v468, %v467
      %v484 = vpack.c.bf16 %v470, %v469
      %v485 = vpack.c.bf16 %v472, %v471
      %v486 = vpack.c.bf16 %v474, %v473
      %v487 = vpack.c.bf16 %v476, %v475
      %v488 = vpack.c.bf16 %v478, %v477
      %v489 = vpack.c.bf16 %v480, %v479
      %v490 = vpack.c.bf16 %v482, %v481
      %v491 = vld [vmem:[%s323 + $0x2] sm:$0xff]
      %v492 = vld [vmem:[%s323 + $0xa] sm:$0xff]
      %v493 = vld [vmem:[%s323 + $0x1a] sm:$0xff]
      %v494 = vld [vmem:[%s323 + $0x22] sm:$0xff]
      %v495 = vld [vmem:[%s323 + $0x32] sm:$0xff]
      %v496 = vld [vmem:[%s323 + $0x3a] sm:$0xff]
      %v497 = vld [vmem:[%s323 + $0x4a] sm:$0xff]
      %v498 = vld [vmem:[%s323 + $0x52] sm:$0xff]
      %v499 = vld [vmem:[%s323 + $0x62] sm:$0xff]
      %v500 = vld [vmem:[%s323 + $0x6a] sm:$0xff]
      %v501 = vld [vmem:[%s323 + $0x7a] sm:$0xff]
      %v502 = vld [vmem:[%s323 + $0x82] sm:$0xff]
      %v503 = vld [vmem:[%s323 + $0x92] sm:$0xff]
      %v504 = vld [vmem:[%s323 + $0x9a] sm:$0xff]
      %v505 = vld [vmem:[%s323 + $0xaa] sm:$0xff]
      %v506 = vld [vmem:[%s323 + $0xb2] sm:$0xff]
      %v507 = vpack.c.bf16 %v492, %v491
      %v508 = vpack.c.bf16 %v494, %v493
      %v509 = vpack.c.bf16 %v496, %v495
      %v510 = vpack.c.bf16 %v498, %v497
      %v511 = vpack.c.bf16 %v500, %v499
      %v512 = vpack.c.bf16 %v502, %v501
      %v513 = vpack.c.bf16 %v504, %v503
      %v514 = vpack.c.bf16 %v506, %v505
      %v515 = vld [vmem:[%s323 + $0x3] sm:$0xff]
      %v516 = vld [vmem:[%s323 + $0xb] sm:$0xff]
      %v517 = vld [vmem:[%s323 + $0x1b] sm:$0xff]
      %v518 = vld [vmem:[%s323 + $0x23] sm:$0xff]
      %v519 = vld [vmem:[%s323 + $0x33] sm:$0xff]
      %v520 = vld [vmem:[%s323 + $0x3b] sm:$0xff]
      %v521 = vld [vmem:[%s323 + $0x4b] sm:$0xff]
      %v522 = vld [vmem:[%s323 + $0x53] sm:$0xff]
      %v523 = vld [vmem:[%s323 + $0x63] sm:$0xff]
      %v524 = vld [vmem:[%s323 + $0x6b] sm:$0xff]
      %v525 = vld [vmem:[%s323 + $0x7b] sm:$0xff]
      %v526 = vld [vmem:[%s323 + $0x83] sm:$0xff]
      %v527 = vld [vmem:[%s323 + $0x93] sm:$0xff]
      %v528 = vld [vmem:[%s323 + $0x9b] sm:$0xff]
      %v529 = vld [vmem:[%s323 + $0xab] sm:$0xff]
      %v530 = vld [vmem:[%s323 + $0xb3] sm:$0xff]
      %v531 = vpack.c.bf16 %v516, %v515
      %v532 = vpack.c.bf16 %v518, %v517
      %v533 = vpack.c.bf16 %v520, %v519
      %v534 = vpack.c.bf16 %v522, %v521
      %v535 = vpack.c.bf16 %v524, %v523
      %v536 = vpack.c.bf16 %v526, %v525
      %v537 = vpack.c.bf16 %v528, %v527
      %v538 = vpack.c.bf16 %v530, %v529
      %v539 = vld [vmem:[%s323 + $0x4] sm:$0xff]
      %v540 = vld [vmem:[%s323 + $0xc] sm:$0xff]
      %v541 = vld [vmem:[%s323 + $0x1c] sm:$0xff]
      %v542 = vld [vmem:[%s323 + $0x24] sm:$0xff]
      %v543 = vld [vmem:[%s323 + $0x34] sm:$0xff]
      %v544 = vld [vmem:[%s323 + $0x3c] sm:$0xff]
      %v545 = vld [vmem:[%s323 + $0x4c] sm:$0xff]
      %v546 = vld [vmem:[%s323 + $0x54] sm:$0xff]
      %v547 = vld [vmem:[%s323 + $0x64] sm:$0xff]
      %v548 = vld [vmem:[%s323 + $0x6c] sm:$0xff]
      %v549 = vld [vmem:[%s323 + $0x7c] sm:$0xff]
      %v550 = vld [vmem:[%s323 + $0x84] sm:$0xff]
      %v551 = vld [vmem:[%s323 + $0x94] sm:$0xff]
      %v552 = vld [vmem:[%s323 + $0x9c] sm:$0xff]
      %v553 = vld [vmem:[%s323 + $0xac] sm:$0xff]
      %v554 = vld [vmem:[%s323 + $0xb4] sm:$0xff]
      %v555 = vpack.c.bf16 %v540, %v539
      %v556 = vpack.c.bf16 %v542, %v541
      %v557 = vpack.c.bf16 %v544, %v543
      %v558 = vpack.c.bf16 %v546, %v545
      %v559 = vpack.c.bf16 %v548, %v547
      %v560 = vpack.c.bf16 %v550, %v549
      %v561 = vpack.c.bf16 %v552, %v551
      %v562 = vpack.c.bf16 %v554, %v553
      %571 = vrot.lane.b32.xlu0 %v483, 64
      %v572 = vpop.permute.xlu0 %571
      %573 = vrot.lane.b32.xlu0 %v484, 64
      %v574 = vpop.permute.xlu0 %573
      %575 = vrot.lane.b32.xlu0 %v485, 64
      %v576 = vpop.permute.xlu0 %575
      %577 = vrot.lane.b32.xlu0 %v486, 64
      %v578 = vpop.permute.xlu0 %577
      %579 = vrot.lane.b32.xlu0 %v487, 64
      %v580 = vpop.permute.xlu0 %579
      %581 = vrot.lane.b32.xlu0 %v488, 64
      %v582 = vpop.permute.xlu0 %581
      %583 = vrot.lane.b32.xlu0 %v489, 64
      %v584 = vpop.permute.xlu0 %583
      %585 = vrot.lane.b32.xlu0 %v490, 64
      %v586 = vpop.permute.xlu0 %585
      %595 = vrot.lane.b32.xlu0 %v531, 64
      %v596 = vpop.permute.xlu0 %595
      %597 = vrot.lane.b32.xlu0 %v532, 64
      %v598 = vpop.permute.xlu0 %597
      %599 = vrot.lane.b32.xlu0 %v533, 64
      %v600 = vpop.permute.xlu0 %599
      %601 = vrot.lane.b32.xlu0 %v534, 64
      %v602 = vpop.permute.xlu0 %601
      %603 = vrot.lane.b32.xlu0 %v535, 64
      %v604 = vpop.permute.xlu0 %603
      %605 = vrot.lane.b32.xlu0 %v536, 64
      %v606 = vpop.permute.xlu0 %605
      %607 = vrot.lane.b32.xlu0 %v537, 64
      %v608 = vpop.permute.xlu0 %607
      %609 = vrot.lane.b32.xlu0 %v538, 64
      %v610 = vpop.permute.xlu0 %609
      %v613 = vsel %vm340, %v459, %v572
      %v617 = vsel %vm340, %v460, %v574
      %v621 = vsel %vm340, %v461, %v576
      %v625 = vsel %vm340, %v462, %v578
      %v629 = vsel %vm340, %v463, %v580
      %v633 = vsel %vm340, %v464, %v582
      %v637 = vsel %vm340, %v465, %v584
      %v641 = vsel %vm340, %v466, %v586
      %v645 = vsel %vm340, %v507, %v596
      %v649 = vsel %vm340, %v508, %v598
      %v653 = vsel %vm340, %v509, %v600
      %v657 = vsel %vm340, %v510, %v602
      %v661 = vsel %vm340, %v511, %v604
      %v665 = vsel %vm340, %v512, %v606
      %v669 = vsel %vm340, %v513, %v608
      %v673 = vsel %vm340, %v514, %v610
      %v675 = vlaneseq
      %v676 = vshrl.u32 %v675, 7
      %v677 = vsub.s32 0, %v676
      %v678 = vrot.slane %v442, %v677
      %v719 = vunpack.c.l.b16 %v402
      %v720 = vunpack.c.l.b16 %v403
      %v721 = vunpack.c.l.b16 %v404
      %v722 = vunpack.c.l.b16 %v405
      %v723 = vunpack.c.l.b16 %v406
      %v724 = vunpack.c.l.b16 %v407
      %v725 = vunpack.c.l.b16 %v408
      %v726 = vunpack.c.l.b16 %v409
      %v727 = vunpack.c.l.b16 %v410
      %v728 = vunpack.c.l.b16 %v411
      %v729 = vunpack.c.l.b16 %v412
      %v730 = vunpack.c.l.b16 %v413
      %v731 = vunpack.c.l.b16 %v414
      %v732 = vunpack.c.l.b16 %v415
      %v733 = vunpack.c.l.b16 %v416
      %v734 = vunpack.c.l.b16 %v417
      %v735 = vunpack.c.l.b16 %v418
      %v736 = vunpack.c.l.b16 %v419
      %v737 = vunpack.c.l.b16 %v420
      %v738 = vunpack.c.l.b16 %v421
      %v739 = vunpack.c.l.b16 %v422
      %v740 = vunpack.c.l.b16 %v423
      %v741 = vunpack.c.l.b16 %v424
      %v742 = vunpack.c.l.b16 %v425
      %v743 = vunpack.c.l.b16 %v426
      %v744 = vunpack.c.l.b16 %v427
      %v745 = vunpack.c.l.b16 %v428
      %v746 = vunpack.c.l.b16 %v429
      %v747 = vunpack.c.l.b16 %v430
      %v748 = vunpack.c.l.b16 %v431
      %v749 = vunpack.c.l.b16 %v432
      %v750 = vunpack.c.l.b16 %v433
      %v751 = vunpack.c.l.b16 %v434
      %v752 = vunpack.c.l.b16 %v435
      %v753 = vunpack.c.l.b16 %v436
      %v754 = vunpack.c.l.b16 %v437
      %v755 = vunpack.c.l.b16 %v438
      %v756 = vunpack.c.l.b16 %v439
      %v757 = vunpack.c.l.b16 %v440
      %v758 = vunpack.c.l.b16 %v441
      %v759 = vpack.c.b16 %v720, %v719
      %v760 = vpack.c.b16 %v722, %v721
      %v761 = vpack.c.b16 %v724, %v723
      %v762 = vpack.c.b16 %v726, %v725
      %v763 = vpack.c.b16 %v728, %v727
      %v764 = vpack.c.b16 %v730, %v729
      %v765 = vpack.c.b16 %v732, %v731
      %v766 = vpack.c.b16 %v734, %v733
      %v767 = vpack.c.b16 %v736, %v735
      %v768 = vpack.c.b16 %v738, %v737
      %v769 = vpack.c.b16 %v740, %v739
      %v770 = vpack.c.b16 %v742, %v741
      %v771 = vpack.c.b16 %v744, %v743
      %v772 = vpack.c.b16 %v746, %v745
      %v773 = vpack.c.b16 %v748, %v747
      %v774 = vpack.c.b16 %v750, %v749
      %v775 = vpack.c.b16 %v752, %v751
      %v776 = vpack.c.b16 %v754, %v753
      %v777 = vpack.c.b16 %v756, %v755
      %v778 = vpack.c.b16 %v758, %v757
      %v800 = vsel %vm340, %v555, 0
      %v803 = vsel %vm340, %v556, 0
      %v806 = vsel %vm340, %v557, 0
      %v809 = vsel %vm340, %v558, 0
      %v812 = vsel %vm340, %v559, 0
      %v815 = vsel %vm340, %v560, 0
      %v818 = vsel %vm340, %v561, 0
      %v821 = vsel %vm340, %v562, 0
      %823 = vmatprep.subr.bf16.mxu0 0
      %824 = vmatpush1.bf16.msra.mxu0 %v759
      %825 = vmatprep.subr.bf16.mxu0 0
      %826 = vmatpush1.bf16.msra.mxu0 %v760
      %827 = vmatprep.subr.bf16.mxu0 0
      %828 = vmatpush1.bf16.msra.mxu0 %v761
      %829 = vmatprep.subr.bf16.mxu0 0
      %830 = vmatpush1.bf16.msra.mxu0 %v762
      %831 = vmatprep.subr.bf16.mxu0 0
      %832 = vmatpush1.bf16.msra.mxu0 %v763
      %833 = vmatprep.subr.bf16.mxu0 0
      %834 = vmatpush1.bf16.msra.mxu0 %v764
      %835 = vmatprep.subr.bf16.mxu0 0
      %836 = vmatpush1.bf16.msra.mxu0 %v765
      %837 = vmatprep.subr.bf16.mxu0 0
      %838 = vmatpush1.bf16.msra.mxu0 %v766
      %839 = vmatprep.subr.bf16.mxu0 0
      %840 = vmatpush1.bf16.msra.mxu0 %v767
      %841 = vmatprep.subr.bf16.mxu0 0
      %842 = vmatpush1.bf16.msra.mxu0 %v768
      %843 = vmatprep.subr.bf16.mxu0 0
      %844 = vmatpush1.bf16.msra.mxu0 %v769
      %845 = vmatprep.subr.bf16.mxu0 0
      %846 = vmatpush1.bf16.msra.mxu0 %v770
      %847 = vmatprep.subr.bf16.mxu0 0
      %848 = vmatpush1.bf16.msra.mxu0 %v771
      %849 = vmatprep.subr.bf16.mxu0 0
      %850 = vmatpush1.bf16.msra.mxu0 %v772
      %851 = vmatprep.subr.bf16.mxu0 0
      %852 = vmatpush1.bf16.msra.mxu0 %v773
      %853 = vmatprep.subr.bf16.mxu0 0
      %854 = vmatpush1.bf16.msra.mxu0 %v774
      %855 = vmatprep.mubr.bf16.mxu0 %v645
      %856 = vmatmul.mubr.bf16.gmra.mrb[0].mxu0 %v613
      %v857 = vpop.f32.mrb[0].mxu0
      %v858 = vadd.f32 %v678, %v857
      %v859 = vpop.f32.mrb[0].mxu0
      %v860 = vpop.f32.mrb[0].mxu0
      %v861 = vadd.f32 %v678, %v860
      %v862 = vpop.f32.mrb[0].mxu0
      %863 = vmatprep.mubr.bf16.mxu0 %v649
      %864 = vmatmul.mubr.bf16.gmra.mrb[0].mxu0 %v617
      %v865 = vpop.f32.mrb[0].mxu0
      %v866 = vadd.f32 %v678, %v865
      %v867 = vpop.f32.mrb[0].mxu0
      %v868 = vpop.f32.mrb[0].mxu0
      %v869 = vadd.f32 %v678, %v868
      %v870 = vpop.f32.mrb[0].mxu0
      %871 = vmatprep.mubr.bf16.mxu0 %v653
      %872 = vmatmul.mubr.bf16.gmra.mrb[0].mxu0 %v621
      %v873 = vpop.f32.mrb[0].mxu0
      %v874 = vadd.f32 %v678, %v873
      %v875 = vpop.f32.mrb[0].mxu0
      %v876 = vpop.f32.mrb[0].mxu0
      %v877 = vadd.f32 %v678, %v876
      %v878 = vpop.f32.mrb[0].mxu0
      %879 = vmatprep.mubr.bf16.mxu0 %v657
      %880 = vmatmul.mubr.bf16.gmra.mrb[0].mxu0 %v625
      %v881 = vpop.f32.mrb[0].mxu0
      %v882 = vadd.f32 %v678, %v881
      %v883 = vpop.f32.mrb[0].mxu0
      %v884 = vpop.f32.mrb[0].mxu0
      %v885 = vadd.f32 %v678, %v884
      %v886 = vpop.f32.mrb[0].mxu0
      %887 = vmatprep.mubr.bf16.mxu0 %v661
      %888 = vmatmul.mubr.bf16.gmra.mrb[0].mxu0 %v629
      %v889 = vpop.f32.mrb[0].mxu0
      %v890 = vadd.f32 %v678, %v889
      %v891 = vpop.f32.mrb[0].mxu0
      %v892 = vpop.f32.mrb[0].mxu0
      %v893 = vadd.f32 %v678, %v892
      %v894 = vpop.f32.mrb[0].mxu0
      %895 = vmatprep.mubr.bf16.mxu0 %v665
      %896 = vmatmul.mubr.bf16.gmra.mrb[0].mxu0 %v633
      %v897 = vpop.f32.mrb[0].mxu0
      %v898 = vadd.f32 %v678, %v897
      %v899 = vpop.f32.mrb[0].mxu0
      %v900 = vpop.f32.mrb[0].mxu0
      %v901 = vadd.f32 %v678, %v900
      %v902 = vpop.f32.mrb[0].mxu0
      %903 = vmatprep.mubr.bf16.mxu0 %v669
      %904 = vmatmul.mubr.bf16.gmra.mrb[0].mxu0 %v637
      %v905 = vpop.f32.mrb[0].mxu0
      %v906 = vadd.f32 %v678, %v905
      %v907 = vpop.f32.mrb[0].mxu0
      %v908 = vpop.f32.mrb[0].mxu0
      %v909 = vadd.f32 %v678, %v908
      %v910 = vpop.f32.mrb[0].mxu0
      %911 = vmatprep.mubr.bf16.mxu0 %v673
      %912 = vmatmul.mubr.bf16.gmra.mrb[0].mxu0 %v641
      %v913 = vpop.f32.mrb[0].mxu0
      %v914 = vadd.f32 %v678, %v913
      %v915 = vpop.f32.mrb[0].mxu0
      %v916 = vpop.f32.mrb[0].mxu0
      %v917 = vadd.f32 %v678, %v916
      %v918 = vpop.f32.mrb[0].mxu0
      %919 = vdwg.mxu0
      %920 = vmatprep.subr.bf16.mxu0 0
      %921 = vmatpush1.bf16.msra.mxu0 %v775
      %922 = vmatprep.subr.bf16.mxu0 0
      %923 = vmatpush1.bf16.msra.mxu0 %v776
      %924 = vmatprep.subr.bf16.mxu0 0
      %925 = vmatpush1.bf16.msra.mxu0 %v777
      %926 = vmatprep.subr.bf16.mxu0 0
      %927 = vmatpush1.bf16.msra.mxu0 %v778
      %928 = vmatprep.subr.bf16.mxu0 0
      %929 = vmatpush1.bf16.msra.mxu0 0
      %930 = vmatprep.subr.bf16.mxu0 0
      %931 = vmatpush1.bf16.msra.mxu0 0
      %932 = vmatprep.subr.bf16.mxu0 0
      %933 = vmatpush1.bf16.msra.mxu0 0
      %934 = vmatprep.subr.bf16.mxu0 0
      %935 = vmatpush1.bf16.msra.mxu0 0
      %936 = vmatprep.subr.bf16.mxu0 0
      %937 = vmatpush1.bf16.msra.mxu0 0
      %938 = vmatprep.subr.bf16.mxu0 0
      %939 = vmatpush1.bf16.msra.mxu0 0
      %940 = vmatprep.subr.bf16.mxu0 0
      %941 = vmatpush1.bf16.msra.mxu0 0
      %942 = vmatprep.subr.bf16.mxu0 0
      %943 = vmatpush1.bf16.msra.mxu0 0
      %944 = vmatprep.subr.bf16.mxu0 0
      %945 = vmatpush1.bf16.msra.mxu0 0
      %946 = vmatprep.subr.bf16.mxu0 0
      %947 = vmatpush1.bf16.msra.mxu0 0
      %948 = vmatprep.subr.bf16.mxu0 0
      %949 = vmatpush1.bf16.msra.mxu0 0
      %950 = vmatprep.subr.bf16.mxu0 0
      %951 = vmatpush1.bf16.msra.mxu0 0
      %952 = vmatprep.mubr.bf16.mxu0 0
      %953 = vmatmul.mubr.bf16.gmra.mrb[0].mxu0 %v800
      %v954 = vpop.f32.mrb[0].mxu0
      %v955 = vadd.f32 %v858, %v954
      %v956 = vpop.f32.mrb[0].mxu0
      %v957 = vpop.f32.mrb[0].mxu0
      %v958 = vadd.f32 %v861, %v957
      %v959 = vpop.f32.mrb[0].mxu0
      %960 = vmatprep.mubr.bf16.mxu0 0
      %961 = vmatmul.mubr.bf16.gmra.mrb[0].mxu0 %v803
      %v962 = vpop.f32.mrb[0].mxu0
      %v963 = vadd.f32 %v866, %v962
      %v964 = vpop.f32.mrb[0].mxu0
      %v965 = vpop.f32.mrb[0].mxu0
      %v966 = vadd.f32 %v869, %v965
      %v967 = vpop.f32.mrb[0].mxu0
      %968 = vmatprep.mubr.bf16.mxu0 0
      %969 = vmatmul.mubr.bf16.gmra.mrb[0].mxu0 %v806
      %v970 = vpop.f32.mrb[0].mxu0
      %v971 = vadd.f32 %v874, %v970
      %v972 = vpop.f32.mrb[0].mxu0
      %v973 = vpop.f32.mrb[0].mxu0
      %v974 = vadd.f32 %v877, %v973
      %v975 = vpop.f32.mrb[0].mxu0
      %976 = vmatprep.mubr.bf16.mxu0 0
      %977 = vmatmul.mubr.bf16.gmra.mrb[0].mxu0 %v809
      %v978 = vpop.f32.mrb[0].mxu0
      %v979 = vadd.f32 %v882, %v978
      %v980 = vpop.f32.mrb[0].mxu0
      %v981 = vpop.f32.mrb[0].mxu0
      %v982 = vadd.f32 %v885, %v981
      %v983 = vpop.f32.mrb[0].mxu0
      %984 = vmatprep.mubr.bf16.mxu0 0
      %985 = vmatmul.mubr.bf16.gmra.mrb[0].mxu0 %v812
      %v986 = vpop.f32.mrb[0].mxu0
      %v987 = vadd.f32 %v890, %v986
      %v988 = vpop.f32.mrb[0].mxu0
      %v989 = vpop.f32.mrb[0].mxu0
      %v990 = vadd.f32 %v893, %v989
      %v991 = vpop.f32.mrb[0].mxu0
      %992 = vmatprep.mubr.bf16.mxu0 0
      %993 = vmatmul.mubr.bf16.gmra.mrb[0].mxu0 %v815
      %v994 = vpop.f32.mrb[0].mxu0
      %v995 = vadd.f32 %v898, %v994
      %v996 = vpop.f32.mrb[0].mxu0
      %v997 = vpop.f32.mrb[0].mxu0
      %v998 = vadd.f32 %v901, %v997
      %v999 = vpop.f32.mrb[0].mxu0
      %1000 = vmatprep.mubr.bf16.mxu0 0
      %1001 = vmatmul.mubr.bf16.gmra.mrb[0].mxu0 %v818
      %v1002 = vpop.f32.mrb[0].mxu0
      %v1003 = vadd.f32 %v906, %v1002
      %v1004 = vpop.f32.mrb[0].mxu0
      %v1005 = vpop.f32.mrb[0].mxu0
      %v1006 = vadd.f32 %v909, %v1005
      %v1007 = vpop.f32.mrb[0].mxu0
      %1008 = vmatprep.mubr.bf16.mxu0 0
      %1009 = vmatmul.mubr.bf16.gmra.mrb[0].mxu0 %v821
      %v1010 = vpop.f32.mrb[0].mxu0
      %v1011 = vadd.f32 %v914, %v1010
      %v1012 = vpop.f32.mrb[0].mxu0
      %v1013 = vpop.f32.mrb[0].mxu0
      %v1014 = vadd.f32 %v917, %v1013
      %v1015 = vpop.f32.mrb[0].mxu0
      %1016 = vdwg.mxu0
      %v1017 = vmax.f32 %v955, 0.0
      %v1018 = vmax.f32 %v958, 0.0
      %v1019 = vmax.f32 %v963, 0.0
      %v1020 = vmax.f32 %v966, 0.0
      %v1021 = vmax.f32 %v971, 0.0
      %v1022 = vmax.f32 %v974, 0.0
      %v1023 = vmax.f32 %v979, 0.0
      %v1024 = vmax.f32 %v982, 0.0
      %v1025 = vmax.f32 %v987, 0.0
      %v1026 = vmax.f32 %v990, 0.0
      %v1027 = vmax.f32 %v995, 0.0
      %v1028 = vmax.f32 %v998, 0.0
      %v1029 = vmax.f32 %v1003, 0.0
      %v1030 = vmax.f32 %v1006, 0.0
      %v1031 = vmax.f32 %v1011, 0.0
      %v1032 = vmax.f32 %v1014, 0.0
      %v1033 = vld [vmem:[%s5 + $0x1] sm:$0x1]
      %v1034 = vlaneseq
      %v1035 = vshrl.u32 %v1034, 7
      %v1036 = vsub.s32 0, %v1035
      %v1037 = vrot.slane %v1033, %v1036
      %v1038 = vmul.f32 %v1017, %v1037
      %v1039 = vmul.f32 %v1018, %v1037
      %v1040 = vmul.f32 %v1019, %v1037
      %v1041 = vmul.f32 %v1020, %v1037
      %v1042 = vmul.f32 %v1021, %v1037
      %v1043 = vmul.f32 %v1022, %v1037
      %v1044 = vmul.f32 %v1023, %v1037
      %v1045 = vmul.f32 %v1024, %v1037
      %v1046 = vmul.f32 %v1025, %v1037
      %v1047 = vmul.f32 %v1026, %v1037
      %v1048 = vmul.f32 %v1027, %v1037
      %v1049 = vmul.f32 %v1028, %v1037
      %v1050 = vmul.f32 %v1029, %v1037
      %v1051 = vmul.f32 %v1030, %v1037
      %v1052 = vmul.f32 %v1031, %v1037
      %v1053 = vmul.f32 %v1032, %v1037
      %v1054 = vld [vmem:[%s5 + $0x2] sm:$0x1]
      %v1055 = vlaneseq
      %v1056 = vshrl.u32 %v1055, 7
      %v1057 = vsub.s32 0, %v1056
      %v1058 = vrot.slane %v1054, %v1057
      %v1059 = vadd.f32 %v1038, %v1058
      %v1060 = vadd.f32 %v1039, %v1058
      %v1061 = vadd.f32 %v1040, %v1058
      %v1062 = vadd.f32 %v1041, %v1058
      %v1063 = vadd.f32 %v1042, %v1058
      %v1064 = vadd.f32 %v1043, %v1058
      %v1065 = vadd.f32 %v1044, %v1058
      %v1066 = vadd.f32 %v1045, %v1058
      %v1067 = vadd.f32 %v1046, %v1058
      %v1068 = vadd.f32 %v1047, %v1058
      %v1069 = vadd.f32 %v1048, %v1058
      %v1070 = vadd.f32 %v1049, %v1058
      %v1071 = vadd.f32 %v1050, %v1058
      %v1072 = vadd.f32 %v1051, %v1058
      %v1073 = vadd.f32 %v1052, %v1058
      %v1074 = vadd.f32 %v1053, %v1058
      %s1075 = scalar_lea.vmem [#allocation2], 24
      %1076 = vst.msk [vmem:[%s1075 + $0x1] sm:$0xff] %vm340, %v1059
      %1077 = vst.msk [vmem:[%s1075 + $0x9] sm:$0xff] %vm340, %v1060
      %1078 = vst.msk [vmem:[%s1075 + $0x19] sm:$0xff] %vm340, %v1061
      %1079 = vst.msk [vmem:[%s1075 + $0x21] sm:$0xff] %vm340, %v1062
      %1080 = vst.msk [vmem:[%s1075 + $0x31] sm:$0xff] %vm340, %v1063
      %1081 = vst.msk [vmem:[%s1075 + $0x39] sm:$0xff] %vm340, %v1064
      %1082 = vst.msk [vmem:[%s1075 + $0x49] sm:$0xff] %vm340, %v1065
      %1083 = vst.msk [vmem:[%s1075 + $0x51] sm:$0xff] %vm340, %v1066
      %1084 = vst.msk [vmem:[%s1075 + $0x61] sm:$0xff] %vm340, %v1067
      %1085 = vst.msk [vmem:[%s1075 + $0x69] sm:$0xff] %vm340, %v1068
      %1086 = vst.msk [vmem:[%s1075 + $0x79] sm:$0xff] %vm340, %v1069
      %1087 = vst.msk [vmem:[%s1075 + $0x81] sm:$0xff] %vm340, %v1070
      %1088 = vst.msk [vmem:[%s1075 + $0x91] sm:$0xff] %vm340, %v1071
      %1089 = vst.msk [vmem:[%s1075 + $0x99] sm:$0xff] %vm340, %v1072
      %1090 = vst.msk [vmem:[%s1075 + $0xa9] sm:$0xff] %vm340, %v1073
      %1091 = vst.msk [vmem:[%s1075 + $0xb1] sm:$0xff] %vm340, %v1074
      %v1092 = vld [vmem:[%s3] sm:$0xf]
      %v1093 = vld [vmem:[%s3 + $0x4] sm:$0xf]
      %v1094 = vld [vmem:[%s3 + $0x8] sm:$0xf]
      %v1095 = vld [vmem:[%s3 + $0xc] sm:$0xf]
      %v1096 = vld [vmem:[%s3 + $0x10] sm:$0xf]
      %v1097 = vld [vmem:[%s3 + $0x14] sm:$0xf]
      %v1098 = vld [vmem:[%s3 + $0x18] sm:$0xf]
      %v1099 = vld [vmem:[%s3 + $0x1c] sm:$0xf]
      %v1100 = vld [vmem:[%s3 + $0x20] sm:$0xf]
      %v1101 = vld [vmem:[%s3 + $0x24] sm:$0xf]
      %v1102 = vld [vmem:[%s3 + $0x28] sm:$0xf]
      %v1103 = vld [vmem:[%s3 + $0x2c] sm:$0xf]
      %v1104 = vld [vmem:[%s3 + $0x30] sm:$0xf]
      %v1105 = vld [vmem:[%s3 + $0x34] sm:$0xf]
      %v1106 = vld [vmem:[%s3 + $0x38] sm:$0xf]
      %v1107 = vld [vmem:[%s3 + $0x3c] sm:$0xf]
      %v1108 = vld [vmem:[%s3 + $0x40] sm:$0xf]
      %v1109 = vld [vmem:[%s3 + $0x44] sm:$0xf]
      %v1110 = vld [vmem:[%s3 + $0x48] sm:$0xf]
      %v1111 = vld [vmem:[%s3 + $0x4c] sm:$0xf]
      %v1112 = vld [vmem:[%s3 + $0x50] sm:$0xf]
      %v1113 = vld [vmem:[%s3 + $0x54] sm:$0xf]
      %v1114 = vld [vmem:[%s3 + $0x58] sm:$0xf]
      %v1115 = vld [vmem:[%s3 + $0x5c] sm:$0xf]
      %v1116 = vld [vmem:[%s3 + $0x60] sm:$0xf]
      %v1117 = vld [vmem:[%s3 + $0x64] sm:$0xf]
      %v1118 = vld [vmem:[%s3 + $0x68] sm:$0xf]
      %v1119 = vld [vmem:[%s3 + $0x6c] sm:$0xf]
      %v1120 = vld [vmem:[%s3 + $0x70] sm:$0xf]
      %v1121 = vld [vmem:[%s3 + $0x74] sm:$0xf]
      %v1122 = vld [vmem:[%s3 + $0x78] sm:$0xf]
      %v1123 = vld [vmem:[%s3 + $0x7c] sm:$0xf]
      %v1124 = vld [vmem:[%s3 + $0x80] sm:$0xf]
      %v1125 = vld [vmem:[%s3 + $0x84] sm:$0xf]
      %v1126 = vld [vmem:[%s3 + $0x88] sm:$0xf]
      %v1127 = vld [vmem:[%s3 + $0x8c] sm:$0xf]
      %v1128 = vld [vmem:[%s3 + $0x90] sm:$0xf]
      %v1129 = vld [vmem:[%s3 + $0x94] sm:$0xf]
      %v1130 = vld [vmem:[%s3 + $0x98] sm:$0xf]
      %v1131 = vld [vmem:[%s3 + $0x9c] sm:$0xf]
      %v1132 = vld [vmem:[%s3 + $0xa0] sm:$0xf]
      %v1133 = vld [vmem:[%s3 + $0xa4] sm:$0xf]
      %v1134 = vld [vmem:[%s3 + $0xa8] sm:$0xf]
      %v1135 = vld [vmem:[%s3 + $0xac] sm:$0xf]
      %v1136 = vld [vmem:[%s3 + $0xb0] sm:$0xf]
      %v1137 = vld [vmem:[%s3 + $0xb4] sm:$0xf]
      %v1138 = vld [vmem:[%s3 + $0xb8] sm:$0xf]
      %v1139 = vld [vmem:[%s3 + $0xbc] sm:$0xf]
      %v1140 = vld [vmem:[%s3 + $0xc0] sm:$0xf]
      %v1141 = vld [vmem:[%s3 + $0xc4] sm:$0xf]
      %v1142 = vld [vmem:[%s3 + $0xc8] sm:$0xf]
      %v1143 = vld [vmem:[%s3 + $0xcc] sm:$0xf]
      %v1144 = vld [vmem:[%s3 + $0xd0] sm:$0xf]
      %v1145 = vld [vmem:[%s3 + $0xd4] sm:$0xf]
      %v1146 = vld [vmem:[%s3 + $0xd8] sm:$0xf]
      %v1147 = vld [vmem:[%s3 + $0xdc] sm:$0xf]
      %v1148 = vld [vmem:[%s3 + $0xe0] sm:$0xf]
      %v1149 = vld [vmem:[%s3 + $0xe4] sm:$0xf]
      %v1150 = vld [vmem:[%s3 + $0xe8] sm:$0xf]
      %v1151 = vld [vmem:[%s3 + $0xec] sm:$0xf]
      %v1152 = vld [vmem:[%s3 + $0xf0] sm:$0xf]
      %v1153 = vld [vmem:[%s3 + $0xf4] sm:$0xf]
      %v1154 = vld [vmem:[%s3 + $0xf8] sm:$0xf]
      %v1155 = vld [vmem:[%s3 + $0xfc] sm:$0xf]
      %v1156 = vld [vmem:[%s3 + $0x100] sm:$0xf]
      %v1157 = vld [vmem:[%s3 + $0x104] sm:$0xf]
      %v1158 = vld [vmem:[%s3 + $0x108] sm:$0xf]
      %v1159 = vld [vmem:[%s3 + $0x10c] sm:$0xf]
      %v1160 = vld [vmem:[%s3 + $0x110] sm:$0xf]
      %v1161 = vld [vmem:[%s3 + $0x114] sm:$0xf]
      %v1162 = vld [vmem:[%s3 + $0x118] sm:$0xf]
      %v1163 = vld [vmem:[%s3 + $0x11c] sm:$0xf]
      %v1164 = vld [vmem:[%s5 + $0x3] sm:$0x1]
      %v1165 = vld [vmem:[#allocation2] sm:$0xff]
      %v1166 = vld [vmem:[#allocation2 + $0x8] sm:$0xff]
      %v1167 = vld [vmem:[#allocation2 + $0x18] sm:$0xff]
      %v1168 = vld [vmem:[#allocation2 + $0x20] sm:$0xff]
      %v1169 = vld [vmem:[#allocation2 + $0x30] sm:$0xff]
      %v1170 = vld [vmem:[#allocation2 + $0x38] sm:$0xff]
      %v1171 = vld [vmem:[#allocation2 + $0x48] sm:$0xff]
      %v1172 = vld [vmem:[#allocation2 + $0x50] sm:$0xff]
      %v1173 = vld [vmem:[#allocation2 + $0x60] sm:$0xff]
      %v1174 = vld [vmem:[#allocation2 + $0x68] sm:$0xff]
      %v1175 = vld [vmem:[#allocation2 + $0x78] sm:$0xff]
      %v1176 = vld [vmem:[#allocation2 + $0x80] sm:$0xff]
      %v1177 = vld [vmem:[#allocation2 + $0x90] sm:$0xff]
      %v1178 = vld [vmem:[#allocation2 + $0x98] sm:$0xff]
      %v1179 = vld [vmem:[#allocation2 + $0xa8] sm:$0xff]
      %v1180 = vld [vmem:[#allocation2 + $0xb0] sm:$0xff]
      %v1181 = vpack.c.bf16 %v1166, %v1165
      %v1182 = vpack.c.bf16 %v1168, %v1167
      %v1183 = vpack.c.bf16 %v1170, %v1169
      %v1184 = vpack.c.bf16 %v1172, %v1171
      %v1185 = vpack.c.bf16 %v1174, %v1173
      %v1186 = vpack.c.bf16 %v1176, %v1175
      %v1187 = vpack.c.bf16 %v1178, %v1177
      %v1188 = vpack.c.bf16 %v1180, %v1179
      %v1189 = vld [vmem:[#allocation2 + $0x1] sm:$0xff]
      %v1190 = vld [vmem:[#allocation2 + $0x9] sm:$0xff]
      %v1191 = vld [vmem:[#allocation2 + $0x19] sm:$0xff]
      %v1192 = vld [vmem:[#allocation2 + $0x21] sm:$0xff]
      %v1193 = vld [vmem:[#allocation2 + $0x31] sm:$0xff]
      %v1194 = vld [vmem:[#allocation2 + $0x39] sm:$0xff]
      %v1195 = vld [vmem:[#allocation2 + $0x49] sm:$0xff]
      %v1196 = vld [vmem:[#allocation2 + $0x51] sm:$0xff]
      %v1197 = vld [vmem:[#allocation2 + $0x61] sm:$0xff]
      %v1198 = vld [vmem:[#allocation2 + $0x69] sm:$0xff]
      %v1199 = vld [vmem:[#allocation2 + $0x79] sm:$0xff]
      %v1200 = vld [vmem:[#allocation2 + $0x81] sm:$0xff]
      %v1201 = vld [vmem:[#allocation2 + $0x91] sm:$0xff]
      %v1202 = vld [vmem:[#allocation2 + $0x99] sm:$0xff]
      %v1203 = vld [vmem:[#allocation2 + $0xa9] sm:$0xff]
      %v1204 = vld [vmem:[#allocation2 + $0xb1] sm:$0xff]
      %v1205 = vpack.c.bf16 %v1190, %v1189
      %v1206 = vpack.c.bf16 %v1192, %v1191
      %v1207 = vpack.c.bf16 %v1194, %v1193
      %v1208 = vpack.c.bf16 %v1196, %v1195
      %v1209 = vpack.c.bf16 %v1198, %v1197
      %v1210 = vpack.c.bf16 %v1200, %v1199
      %v1211 = vpack.c.bf16 %v1202, %v1201
      %v1212 = vpack.c.bf16 %v1204, %v1203
      %v1213 = vld [vmem:[#allocation2 + $0x2] sm:$0xff]
      %v1214 = vld [vmem:[#allocation2 + $0xa] sm:$0xff]
      %v1215 = vld [vmem:[#allocation2 + $0x1a] sm:$0xff]
      %v1216 = vld [vmem:[#allocation2 + $0x22] sm:$0xff]
      %v1217 = vld [vmem:[#allocation2 + $0x32] sm:$0xff]
      %v1218 = vld [vmem:[#allocation2 + $0x3a] sm:$0xff]
      %v1219 = vld [vmem:[#allocation2 + $0x4a] sm:$0xff]
      %v1220 = vld [vmem:[#allocation2 + $0x52] sm:$0xff]
      %v1221 = vld [vmem:[#allocation2 + $0x62] sm:$0xff]
      %v1222 = vld [vmem:[#allocation2 + $0x6a] sm:$0xff]
      %v1223 = vld [vmem:[#allocation2 + $0x7a] sm:$0xff]
      %v1224 = vld [vmem:[#allocation2 + $0x82] sm:$0xff]
      %v1225 = vld [vmem:[#allocation2 + $0x92] sm:$0xff]
      %v1226 = vld [vmem:[#allocation2 + $0x9a] sm:$0xff]
      %v1227 = vld [vmem:[#allocation2 + $0xaa] sm:$0xff]
      %v1228 = vld [vmem:[#allocation2 + $0xb2] sm:$0xff]
      %v1229 = vpack.c.bf16 %v1214, %v1213
      %v1230 = vpack.c.bf16 %v1216, %v1215
      %v1231 = vpack.c.bf16 %v1218, %v1217
      %v1232 = vpack.c.bf16 %v1220, %v1219
      %v1233 = vpack.c.bf16 %v1222, %v1221
      %v1234 = vpack.c.bf16 %v1224, %v1223
      %v1235 = vpack.c.bf16 %v1226, %v1225
      %v1236 = vpack.c.bf16 %v1228, %v1227
      %v1237 = vld [vmem:[%s1075] sm:$0xff]
      %v1238 = vld [vmem:[%s1075 + $0x8] sm:$0xff]
      %v1239 = vld [vmem:[%s1075 + $0x18] sm:$0xff]
      %v1240 = vld [vmem:[%s1075 + $0x20] sm:$0xff]
      %v1241 = vld [vmem:[%s1075 + $0x30] sm:$0xff]
      %v1242 = vld [vmem:[%s1075 + $0x38] sm:$0xff]
      %v1243 = vld [vmem:[%s1075 + $0x48] sm:$0xff]
      %v1244 = vld [vmem:[%s1075 + $0x50] sm:$0xff]
      %v1245 = vld [vmem:[%s1075 + $0x60] sm:$0xff]
      %v1246 = vld [vmem:[%s1075 + $0x68] sm:$0xff]
      %v1247 = vld [vmem:[%s1075 + $0x78] sm:$0xff]
      %v1248 = vld [vmem:[%s1075 + $0x80] sm:$0xff]
      %v1249 = vld [vmem:[%s1075 + $0x90] sm:$0xff]
      %v1250 = vld [vmem:[%s1075 + $0x98] sm:$0xff]
      %v1251 = vld [vmem:[%s1075 + $0xa8] sm:$0xff]
      %v1252 = vld [vmem:[%s1075 + $0xb0] sm:$0xff]
      %v1253 = vpack.c.bf16 %v1238, %v1237
      %v1254 = vpack.c.bf16 %v1240, %v1239
      %v1255 = vpack.c.bf16 %v1242, %v1241
      %v1256 = vpack.c.bf16 %v1244, %v1243
      %v1257 = vpack.c.bf16 %v1246, %v1245
      %v1258 = vpack.c.bf16 %v1248, %v1247
      %v1259 = vpack.c.bf16 %v1250, %v1249
      %v1260 = vpack.c.bf16 %v1252, %v1251
      %v1261 = vld [vmem:[%s1075 + $0x1] sm:$0xff]
      %v1262 = vld [vmem:[%s1075 + $0x9] sm:$0xff]
      %v1263 = vld [vmem:[%s1075 + $0x19] sm:$0xff]
      %v1264 = vld [vmem:[%s1075 + $0x21] sm:$0xff]
      %v1265 = vld [vmem:[%s1075 + $0x31] sm:$0xff]
      %v1266 = vld [vmem:[%s1075 + $0x39] sm:$0xff]
      %v1267 = vld [vmem:[%s1075 + $0x49] sm:$0xff]
      %v1268 = vld [vmem:[%s1075 + $0x51] sm:$0xff]
      %v1269 = vld [vmem:[%s1075 + $0x61] sm:$0xff]
      %v1270 = vld [vmem:[%s1075 + $0x69] sm:$0xff]
      %v1271 = vld [vmem:[%s1075 + $0x79] sm:$0xff]
      %v1272 = vld [vmem:[%s1075 + $0x81] sm:$0xff]
      %v1273 = vld [vmem:[%s1075 + $0x91] sm:$0xff]
      %v1274 = vld [vmem:[%s1075 + $0x99] sm:$0xff]
      %v1275 = vld [vmem:[%s1075 + $0xa9] sm:$0xff]
      %v1276 = vld [vmem:[%s1075 + $0xb1] sm:$0xff]
      %v1277 = vpack.c.bf16 %v1262, %v1261
      %v1278 = vpack.c.bf16 %v1264, %v1263
      %v1279 = vpack.c.bf16 %v1266, %v1265
      %v1280 = vpack.c.bf16 %v1268, %v1267
      %v1281 = vpack.c.bf16 %v1270, %v1269
      %v1282 = vpack.c.bf16 %v1272, %v1271
      %v1283 = vpack.c.bf16 %v1274, %v1273
      %v1284 = vpack.c.bf16 %v1276, %v1275
      %v1285 = vld [vmem:[%s1075 + $0x2] sm:$0xff]
      %v1286 = vld [vmem:[%s1075 + $0xa] sm:$0xff]
      %v1287 = vld [vmem:[%s1075 + $0x1a] sm:$0xff]
      %v1288 = vld [vmem:[%s1075 + $0x22] sm:$0xff]
      %v1289 = vld [vmem:[%s1075 + $0x32] sm:$0xff]
      %v1290 = vld [vmem:[%s1075 + $0x3a] sm:$0xff]
      %v1291 = vld [vmem:[%s1075 + $0x4a] sm:$0xff]
      %v1292 = vld [vmem:[%s1075 + $0x52] sm:$0xff]
      %v1293 = vld [vmem:[%s1075 + $0x62] sm:$0xff]
      %v1294 = vld [vmem:[%s1075 + $0x6a] sm:$0xff]
      %v1295 = vld [vmem:[%s1075 + $0x7a] sm:$0xff]
      %v1296 = vld [vmem:[%s1075 + $0x82] sm:$0xff]
      %v1297 = vld [vmem:[%s1075 + $0x92] sm:$0xff]
      %v1298 = vld [vmem:[%s1075 + $0x9a] sm:$0xff]
      %v1299 = vld [vmem:[%s1075 + $0xaa] sm:$0xff]
      %v1300 = vld [vmem:[%s1075 + $0xb2] sm:$0xff]
      %v1301 = vpack.c.bf16 %v1286, %v1285
      %v1302 = vpack.c.bf16 %v1288, %v1287
      %v1303 = vpack.c.bf16 %v1290, %v1289
      %v1304 = vpack.c.bf16 %v1292, %v1291
      %v1305 = vpack.c.bf16 %v1294, %v1293
      %v1306 = vpack.c.bf16 %v1296, %v1295
      %v1307 = vpack.c.bf16 %v1298, %v1297
      %v1308 = vpack.c.bf16 %v1300, %v1299
      %s1309 = scalar_lea.vmem [#allocation2], 48
      %v1310 = vld [vmem:[%s1309] sm:$0xff]
      %v1311 = vld [vmem:[%s1309 + $0x8] sm:$0xff]
      %v1312 = vld [vmem:[%s1309 + $0x18] sm:$0xff]
      %v1313 = vld [vmem:[%s1309 + $0x20] sm:$0xff]
      %v1314 = vld [vmem:[%s1309 + $0x30] sm:$0xff]
      %v1315 = vld [vmem:[%s1309 + $0x38] sm:$0xff]
      %v1316 = vld [vmem:[%s1309 + $0x48] sm:$0xff]
      %v1317 = vld [vmem:[%s1309 + $0x50] sm:$0xff]
      %v1318 = vld [vmem:[%s1309 + $0x60] sm:$0xff]
      %v1319 = vld [vmem:[%s1309 + $0x68] sm:$0xff]
      %v1320 = vld [vmem:[%s1309 + $0x78] sm:$0xff]
      %v1321 = vld [vmem:[%s1309 + $0x80] sm:$0xff]
      %v1322 = vld [vmem:[%s1309 + $0x90] sm:$0xff]
      %v1323 = vld [vmem:[%s1309 + $0x98] sm:$0xff]
      %v1324 = vld [vmem:[%s1309 + $0xa8] sm:$0xff]
      %v1325 = vld [vmem:[%s1309 + $0xb0] sm:$0xff]
      %v1326 = vpack.c.bf16 %v1311, %v1310
      %v1327 = vpack.c.bf16 %v1313, %v1312
      %v1328 = vpack.c.bf16 %v1315, %v1314
      %v1329 = vpack.c.bf16 %v1317, %v1316
      %v1330 = vpack.c.bf16 %v1319, %v1318
      %v1331 = vpack.c.bf16 %v1321, %v1320
      %v1332 = vpack.c.bf16 %v1323, %v1322
      %v1333 = vpack.c.bf16 %v1325, %v1324
      %v1334 = vld [vmem:[%s1309 + $0x1] sm:$0xff]
      %v1335 = vld [vmem:[%s1309 + $0x9] sm:$0xff]
      %v1336 = vld [vmem:[%s1309 + $0x19] sm:$0xff]
      %v1337 = vld [vmem:[%s1309 + $0x21] sm:$0xff]
      %v1338 = vld [vmem:[%s1309 + $0x31] sm:$0xff]
      %v1339 = vld [vmem:[%s1309 + $0x39] sm:$0xff]
      %v1340 = vld [vmem:[%s1309 + $0x49] sm:$0xff]
      %v1341 = vld [vmem:[%s1309 + $0x51] sm:$0xff]
      %v1342 = vld [vmem:[%s1309 + $0x61] sm:$0xff]
      %v1343 = vld [vmem:[%s1309 + $0x69] sm:$0xff]
      %v1344 = vld [vmem:[%s1309 + $0x79] sm:$0xff]
      %v1345 = vld [vmem:[%s1309 + $0x81] sm:$0xff]
      %v1346 = vld [vmem:[%s1309 + $0x91] sm:$0xff]
      %v1347 = vld [vmem:[%s1309 + $0x99] sm:$0xff]
      %v1348 = vld [vmem:[%s1309 + $0xa9] sm:$0xff]
      %v1349 = vld [vmem:[%s1309 + $0xb1] sm:$0xff]
      %v1350 = vpack.c.bf16 %v1335, %v1334
      %v1351 = vpack.c.bf16 %v1337, %v1336
      %v1352 = vpack.c.bf16 %v1339, %v1338
      %v1353 = vpack.c.bf16 %v1341, %v1340
      %v1354 = vpack.c.bf16 %v1343, %v1342
      %v1355 = vpack.c.bf16 %v1345, %v1344
      %v1356 = vpack.c.bf16 %v1347, %v1346
      %v1357 = vpack.c.bf16 %v1349, %v1348
      %v1358 = vld [vmem:[%s1309 + $0x2] sm:$0xff]
      %v1359 = vld [vmem:[%s1309 + $0xa] sm:$0xff]
      %v1360 = vld [vmem:[%s1309 + $0x1a] sm:$0xff]
      %v1361 = vld [vmem:[%s1309 + $0x22] sm:$0xff]
      %v1362 = vld [vmem:[%s1309 + $0x32] sm:$0xff]
      %v1363 = vld [vmem:[%s1309 + $0x3a] sm:$0xff]
      %v1364 = vld [vmem:[%s1309 + $0x4a] sm:$0xff]
      %v1365 = vld [vmem:[%s1309 + $0x52] sm:$0xff]
      %v1366 = vld [vmem:[%s1309 + $0x62] sm:$0xff]
      %v1367 = vld [vmem:[%s1309 + $0x6a] sm:$0xff]
      %v1368 = vld [vmem:[%s1309 + $0x7a] sm:$0xff]
      %v1369 = vld [vmem:[%s1309 + $0x82] sm:$0xff]
      %v1370 = vld [vmem:[%s1309 + $0x92] sm:$0xff]
      %v1371 = vld [vmem:[%s1309 + $0x9a] sm:$0xff]
      %v1372 = vld [vmem:[%s1309 + $0xaa] sm:$0xff]
      %v1373 = vld [vmem:[%s1309 + $0xb2] sm:$0xff]
      %v1374 = vpack.c.bf16 %v1359, %v1358
      %v1375 = vpack.c.bf16 %v1361, %v1360
      %v1376 = vpack.c.bf16 %v1363, %v1362
      %v1377 = vpack.c.bf16 %v1365, %v1364
      %v1378 = vpack.c.bf16 %v1367, %v1366
      %v1379 = vpack.c.bf16 %v1369, %v1368
      %v1380 = vpack.c.bf16 %v1371, %v1370
      %v1381 = vpack.c.bf16 %v1373, %v1372
      %1390 = vrot.lane.b32.xlu0 %v1205, 64
      %v1391 = vpop.permute.xlu0 %1390
      %1392 = vrot.lane.b32.xlu0 %v1206, 64
      %v1393 = vpop.permute.xlu0 %1392
      %1394 = vrot.lane.b32.xlu0 %v1207, 64
      %v1395 = vpop.permute.xlu0 %1394
      %1396 = vrot.lane.b32.xlu0 %v1208, 64
      %v1397 = vpop.permute.xlu0 %1396
      %1398 = vrot.lane.b32.xlu0 %v1209, 64
      %v1399 = vpop.permute.xlu0 %1398
      %1400 = vrot.lane.b32.xlu0 %v1210, 64
      %v1401 = vpop.permute.xlu0 %1400
      %1402 = vrot.lane.b32.xlu0 %v1211, 64
      %v1403 = vpop.permute.xlu0 %1402
      %1404 = vrot.lane.b32.xlu0 %v1212, 64
      %v1405 = vpop.permute.xlu0 %1404
      %1414 = vrot.lane.b32.xlu0 %v1253, 64
      %v1415 = vpop.permute.xlu0 %1414
      %1416 = vrot.lane.b32.xlu0 %v1254, 64
      %v1417 = vpop.permute.xlu0 %1416
      %1418 = vrot.lane.b32.xlu0 %v1255, 64
      %v1419 = vpop.permute.xlu0 %1418
      %1420 = vrot.lane.b32.xlu0 %v1256, 64
      %v1421 = vpop.permute.xlu0 %1420
      %1422 = vrot.lane.b32.xlu0 %v1257, 64
      %v1423 = vpop.permute.xlu0 %1422
      %1424 = vrot.lane.b32.xlu0 %v1258, 64
      %v1425 = vpop.permute.xlu0 %1424
      %1426 = vrot.lane.b32.xlu0 %v1259, 64
      %v1427 = vpop.permute.xlu0 %1426
      %1428 = vrot.lane.b32.xlu0 %v1260, 64
      %v1429 = vpop.permute.xlu0 %1428
      %1438 = vrot.lane.b32.xlu0 %v1301, 64
      %v1439 = vpop.permute.xlu0 %1438
      %1440 = vrot.lane.b32.xlu0 %v1302, 64
      %v1441 = vpop.permute.xlu0 %1440
      %1442 = vrot.lane.b32.xlu0 %v1303, 64
      %v1443 = vpop.permute.xlu0 %1442
      %1444 = vrot.lane.b32.xlu0 %v1304, 64
      %v1445 = vpop.permute.xlu0 %1444
      %1446 = vrot.lane.b32.xlu0 %v1305, 64
      %v1447 = vpop.permute.xlu0 %1446
      %1448 = vrot.lane.b32.xlu0 %v1306, 64
      %v1449 = vpop.permute.xlu0 %1448
      %1450 = vrot.lane.b32.xlu0 %v1307, 64
      %v1451 = vpop.permute.xlu0 %1450
      %1452 = vrot.lane.b32.xlu0 %v1308, 64
      %v1453 = vpop.permute.xlu0 %1452
      %1462 = vrot.lane.b32.xlu0 %v1350, 64
      %v1463 = vpop.permute.xlu0 %1462
      %1464 = vrot.lane.b32.xlu0 %v1351, 64
      %v1465 = vpop.permute.xlu0 %1464
      %1466 = vrot.lane.b32.xlu0 %v1352, 64
      %v1467 = vpop.permute.xlu0 %1466
      %1468 = vrot.lane.b32.xlu0 %v1353, 64
      %v1469 = vpop.permute.xlu0 %1468
      %1470 = vrot.lane.b32.xlu0 %v1354, 64
      %v1471 = vpop.permute.xlu0 %1470
      %1472 = vrot.lane.b32.xlu0 %v1355, 64
      %v1473 = vpop.permute.xlu0 %1472
      %1474 = vrot.lane.b32.xlu0 %v1356, 64
      %v1475 = vpop.permute.xlu0 %1474
      %1476 = vrot.lane.b32.xlu0 %v1357, 64
      %v1477 = vpop.permute.xlu0 %1476
      %v1480 = vsel %vm340, %v1181, %v1391
      %v1484 = vsel %vm340, %v1182, %v1393
      %v1488 = vsel %vm340, %v1183, %v1395
      %v1492 = vsel %vm340, %v1184, %v1397
      %v1496 = vsel %vm340, %v1185, %v1399
      %v1500 = vsel %vm340, %v1186, %v1401
      %v1504 = vsel %vm340, %v1187, %v1403
      %v1508 = vsel %vm340, %v1188, %v1405
      %v1512 = vsel %vm340, %v1229, %v1415
      %v1516 = vsel %vm340, %v1230, %v1417
      %v1520 = vsel %vm340, %v1231, %v1419
      %v1524 = vsel %vm340, %v1232, %v1421
      %v1528 = vsel %vm340, %v1233, %v1423
      %v1532 = vsel %vm340, %v1234, %v1425
      %v1536 = vsel %vm340, %v1235, %v1427
      %v1540 = vsel %vm340, %v1236, %v1429
      %v1544 = vsel %vm340, %v1277, %v1439
      %v1548 = vsel %vm340, %v1278, %v1441
      %v1552 = vsel %vm340, %v1279, %v1443
      %v1556 = vsel %vm340, %v1280, %v1445
      %v1560 = vsel %vm340, %v1281, %v1447
      %v1564 = vsel %vm340, %v1282, %v1449
      %v1568 = vsel %vm340, %v1283, %v1451
      %v1572 = vsel %vm340, %v1284, %v1453
      %v1576 = vsel %vm340, %v1326, %v1463
      %v1580 = vsel %vm340, %v1327, %v1465
      %v1584 = vsel %vm340, %v1328, %v1467
      %v1588 = vsel %vm340, %v1329, %v1469
      %v1592 = vsel %vm340, %v1330, %v1471
      %v1596 = vsel %vm340, %v1331, %v1473
      %v1600 = vsel %vm340, %v1332, %v1475
      %v1604 = vsel %vm340, %v1333, %v1477
      %v1606 = vlaneseq
      %v1607 = vshrl.u32 %v1606, 7
      %v1608 = vsub.s32 0, %v1607
      %v1609 = vrot.slane %v1164, %v1608
      %v1682 = vunpack.c.l.b16 %v1092
      %v1683 = vunpack.c.l.b16 %v1093
      %v1684 = vunpack.c.l.b16 %v1094
      %v1685 = vunpack.c.l.b16 %v1095
      %v1686 = vunpack.c.l.b16 %v1096
      %v1687 = vunpack.c.l.b16 %v1097
      %v1688 = vunpack.c.l.b16 %v1098
      %v1689 = vunpack.c.l.b16 %v1099
      %v1690 = vunpack.c.l.b16 %v1100
      %v1691 = vunpack.c.l.b16 %v1101
      %v1692 = vunpack.c.l.b16 %v1102
      %v1693 = vunpack.c.l.b16 %v1103
      %v1694 = vunpack.c.l.b16 %v1104
      %v1695 = vunpack.c.l.b16 %v1105
      %v1696 = vunpack.c.l.b16 %v1106
      %v1697 = vunpack.c.l.b16 %v1107
      %v1698 = vunpack.c.l.b16 %v1108
      %v1699 = vunpack.c.l.b16 %v1109
      %v1700 = vunpack.c.l.b16 %v1110
      %v1701 = vunpack.c.l.b16 %v1111
      %v1702 = vunpack.c.l.b16 %v1112
      %v1703 = vunpack.c.l.b16 %v1113
      %v1704 = vunpack.c.l.b16 %v1114
      %v1705 = vunpack.c.l.b16 %v1115
      %v1706 = vunpack.c.l.b16 %v1116
      %v1707 = vunpack.c.l.b16 %v1117
      %v1708 = vunpack.c.l.b16 %v1118
      %v1709 = vunpack.c.l.b16 %v1119
      %v1710 = vunpack.c.l.b16 %v1120
      %v1711 = vunpack.c.l.b16 %v1121
      %v1712 = vunpack.c.l.b16 %v1122
      %v1713 = vunpack.c.l.b16 %v1123
      %v1714 = vunpack.c.l.b16 %v1124
      %v1715 = vunpack.c.l.b16 %v1125
      %v1716 = vunpack.c.l.b16 %v1126
      %v1717 = vunpack.c.l.b16 %v1127
      %v1718 = vunpack.c.l.b16 %v1128
      %v1719 = vunpack.c.l.b16 %v1129
      %v1720 = vunpack.c.l.b16 %v1130
      %v1721 = vunpack.c.l.b16 %v1131
      %v1722 = vunpack.c.l.b16 %v1132
      %v1723 = vunpack.c.l.b16 %v1133
      %v1724 = vunpack.c.l.b16 %v1134
      %v1725 = vunpack.c.l.b16 %v1135
      %v1726 = vunpack.c.l.b16 %v1136
      %v1727 = vunpack.c.l.b16 %v1137
      %v1728 = vunpack.c.l.b16 %v1138
      %v1729 = vunpack.c.l.b16 %v1139
      %v1730 = vunpack.c.l.b16 %v1140
      %v1731 = vunpack.c.l.b16 %v1141
      %v1732 = vunpack.c.l.b16 %v1142
      %v1733 = vunpack.c.l.b16 %v1143
      %v1734 = vunpack.c.l.b16 %v1144
      %v1735 = vunpack.c.l.b16 %v1145
      %v1736 = vunpack.c.l.b16 %v1146
      %v1737 = vunpack.c.l.b16 %v1147
      %v1738 = vunpack.c.l.b16 %v1148
      %v1739 = vunpack.c.l.b16 %v1149
      %v1740 = vunpack.c.l.b16 %v1150
      %v1741 = vunpack.c.l.b16 %v1151
      %v1742 = vunpack.c.l.b16 %v1152
      %v1743 = vunpack.c.l.b16 %v1153
      %v1744 = vunpack.c.l.b16 %v1154
      %v1745 = vunpack.c.l.b16 %v1155
      %v1746 = vunpack.c.l.b16 %v1156
      %v1747 = vunpack.c.l.b16 %v1157
      %v1748 = vunpack.c.l.b16 %v1158
      %v1749 = vunpack.c.l.b16 %v1159
      %v1750 = vunpack.c.l.b16 %v1160
      %v1751 = vunpack.c.l.b16 %v1161
      %v1752 = vunpack.c.l.b16 %v1162
      %v1753 = vunpack.c.l.b16 %v1163
      %v1754 = vpack.c.b16 %v1683, %v1682
      %v1755 = vpack.c.b16 %v1685, %v1684
      %v1756 = vpack.c.b16 %v1687, %v1686
      %v1757 = vpack.c.b16 %v1689, %v1688
      %v1758 = vpack.c.b16 %v1691, %v1690
      %v1759 = vpack.c.b16 %v1693, %v1692
      %v1760 = vpack.c.b16 %v1695, %v1694
      %v1761 = vpack.c.b16 %v1697, %v1696
      %v1762 = vpack.c.b16 %v1699, %v1698
      %v1763 = vpack.c.b16 %v1701, %v1700
      %v1764 = vpack.c.b16 %v1703, %v1702
      %v1765 = vpack.c.b16 %v1705, %v1704
      %v1766 = vpack.c.b16 %v1707, %v1706
      %v1767 = vpack.c.b16 %v1709, %v1708
      %v1768 = vpack.c.b16 %v1711, %v1710
      %v1769 = vpack.c.b16 %v1713, %v1712
      %v1770 = vpack.c.b16 %v1715, %v1714
      %v1771 = vpack.c.b16 %v1717, %v1716
      %v1772 = vpack.c.b16 %v1719, %v1718
      %v1773 = vpack.c.b16 %v1721, %v1720
      %v1774 = vpack.c.b16 %v1723, %v1722
      %v1775 = vpack.c.b16 %v1725, %v1724
      %v1776 = vpack.c.b16 %v1727, %v1726
      %v1777 = vpack.c.b16 %v1729, %v1728
      %v1778 = vpack.c.b16 %v1731, %v1730
      %v1779 = vpack.c.b16 %v1733, %v1732
      %v1780 = vpack.c.b16 %v1735, %v1734
      %v1781 = vpack.c.b16 %v1737, %v1736
      %v1782 = vpack.c.b16 %v1739, %v1738
      %v1783 = vpack.c.b16 %v1741, %v1740
      %v1784 = vpack.c.b16 %v1743, %v1742
      %v1785 = vpack.c.b16 %v1745, %v1744
      %v1786 = vpack.c.b16 %v1747, %v1746
      %v1787 = vpack.c.b16 %v1749, %v1748
      %v1788 = vpack.c.b16 %v1751, %v1750
      %v1789 = vpack.c.b16 %v1753, %v1752
      %v1827 = vsel %vm340, %v1374, 0
      %v1830 = vsel %vm340, %v1375, 0
      %v1833 = vsel %vm340, %v1376, 0
      %v1836 = vsel %vm340, %v1377, 0
      %v1839 = vsel %vm340, %v1378, 0
      %v1842 = vsel %vm340, %v1379, 0
      %v1845 = vsel %vm340, %v1380, 0
      %v1848 = vsel %vm340, %v1381, 0
      %1850 = vmatprep.subr.bf16.mxu0 0
      %1851 = vmatpush1.bf16.msra.mxu0 %v1754
      %1852 = vmatprep.subr.bf16.mxu0 0
      %1853 = vmatpush1.bf16.msra.mxu0 %v1755
      %1854 = vmatprep.subr.bf16.mxu0 0
      %1855 = vmatpush1.bf16.msra.mxu0 %v1756
      %1856 = vmatprep.subr.bf16.mxu0 0
      %1857 = vmatpush1.bf16.msra.mxu0 %v1757
      %1858 = vmatprep.subr.bf16.mxu0 0
      %1859 = vmatpush1.bf16.msra.mxu0 %v1758
      %1860 = vmatprep.subr.bf16.mxu0 0
      %1861 = vmatpush1.bf16.msra.mxu0 %v1759
      %1862 = vmatprep.subr.bf16.mxu0 0
      %1863 = vmatpush1.bf16.msra.mxu0 %v1760
      %1864 = vmatprep.subr.bf16.mxu0 0
      %1865 = vmatpush1.bf16.msra.mxu0 %v1761
      %1866 = vmatprep.subr.bf16.mxu0 0
      %1867 = vmatpush1.bf16.msra.mxu0 %v1762
      %1868 = vmatprep.subr.bf16.mxu0 0
      %1869 = vmatpush1.bf16.msra.mxu0 %v1763
      %1870 = vmatprep.subr.bf16.mxu0 0
      %1871 = vmatpush1.bf16.msra.mxu0 %v1764
      %1872 = vmatprep.subr.bf16.mxu0 0
      %1873 = vmatpush1.bf16.msra.mxu0 %v1765
      %1874 = vmatprep.subr.bf16.mxu0 0
      %1875 = vmatpush1.bf16.msra.mxu0 %v1766
      %1876 = vmatprep.subr.bf16.mxu0 0
      %1877 = vmatpush1.bf16.msra.mxu0 %v1767
      %1878 = vmatprep.subr.bf16.mxu0 0
      %1879 = vmatpush1.bf16.msra.mxu0 %v1768
      %1880 = vmatprep.subr.bf16.mxu0 0
      %1881 = vmatpush1.bf16.msra.mxu0 %v1769
      %1882 = vmatprep.mubr.bf16.mxu0 %v1512
      %1883 = vmatmul.mubr.bf16.gmra.mrb[0].mxu0 %v1480
      %v1884 = vpop.f32.mrb[0].mxu0
      %v1885 = vadd.f32 %v1609, %v1884
      %v1886 = vpop.f32.mrb[0].mxu0
      %v1887 = vpop.f32.mrb[0].mxu0
      %v1888 = vadd.f32 %v1609, %v1887
      %v1889 = vpop.f32.mrb[0].mxu0
      %1890 = vmatprep.mubr.bf16.mxu0 %v1516
      %1891 = vmatmul.mubr.bf16.gmra.mrb[0].mxu0 %v1484
      %v1892 = vpop.f32.mrb[0].mxu0
      %v1893 = vadd.f32 %v1609, %v1892
      %v1894 = vpop.f32.mrb[0].mxu0
      %v1895 = vpop.f32.mrb[0].mxu0
      %v1896 = vadd.f32 %v1609, %v1895
      %v1897 = vpop.f32.mrb[0].mxu0
      %1898 = vmatprep.mubr.bf16.mxu0 %v1520
      %1899 = vmatmul.mubr.bf16.gmra.mrb[0].mxu0 %v1488
      %v1900 = vpop.f32.mrb[0].mxu0
      %v1901 = vadd.f32 %v1609, %v1900
      %v1902 = vpop.f32.mrb[0].mxu0
      %v1903 = vpop.f32.mrb[0].mxu0
      %v1904 = vadd.f32 %v1609, %v1903
      %v1905 = vpop.f32.mrb[0].mxu0
      %1906 = vmatprep.mubr.bf16.mxu0 %v1524
      %1907 = vmatmul.mubr.bf16.gmra.mrb[0].mxu0 %v1492
      %v1908 = vpop.f32.mrb[0].mxu0
      %v1909 = vadd.f32 %v1609, %v1908
      %v1910 = vpop.f32.mrb[0].mxu0
      %v1911 = vpop.f32.mrb[0].mxu0
      %v1912 = vadd.f32 %v1609, %v1911
      %v1913 = vpop.f32.mrb[0].mxu0
      %1914 = vmatprep.mubr.bf16.mxu0 %v1528
      %1915 = vmatmul.mubr.bf16.gmra.mrb[0].mxu0 %v1496
      %v1916 = vpop.f32.mrb[0].mxu0
      %v1917 = vadd.f32 %v1609, %v1916
      %v1918 = vpop.f32.mrb[0].mxu0
      %v1919 = vpop.f32.mrb[0].mxu0
      %v1920 = vadd.f32 %v1609, %v1919
      %v1921 = vpop.f32.mrb[0].mxu0
      %1922 = vmatprep.mubr.bf16.mxu0 %v1532
      %1923 = vmatmul.mubr.bf16.gmra.mrb[0].mxu0 %v1500
      %v1924 = vpop.f32.mrb[0].mxu0
      %v1925 = vadd.f32 %v1609, %v1924
      %v1926 = vpop.f32.mrb[0].mxu0
      %v1927 = vpop.f32.mrb[0].mxu0
      %v1928 = vadd.f32 %v1609, %v1927
      %v1929 = vpop.f32.mrb[0].mxu0
      %1930 = vmatprep.mubr.bf16.mxu0 %v1536
      %1931 = vmatmul.mubr.bf16.gmra.mrb[0].mxu0 %v1504
      %v1932 = vpop.f32.mrb[0].mxu0
      %v1933 = vadd.f32 %v1609, %v1932
      %v1934 = vpop.f32.mrb[0].mxu0
      %v1935 = vpop.f32.mrb[0].mxu0
      %v1936 = vadd.f32 %v1609, %v1935
      %v1937 = vpop.f32.mrb[0].mxu0
      %1938 = vmatprep.mubr.bf16.mxu0 %v1540
      %1939 = vmatmul.mubr.bf16.gmra.mrb[0].mxu0 %v1508
      %v1940 = vpop.f32.mrb[0].mxu0
      %v1941 = vadd.f32 %v1609, %v1940
      %v1942 = vpop.f32.mrb[0].mxu0
      %v1943 = vpop.f32.mrb[0].mxu0
      %v1944 = vadd.f32 %v1609, %v1943
      %v1945 = vpop.f32.mrb[0].mxu0
      %1946 = vdwg.mxu0
      %1947 = vmatprep.subr.bf16.mxu0 0
      %1948 = vmatpush1.bf16.msra.mxu0 %v1770
      %1949 = vmatprep.subr.bf16.mxu0 0
      %1950 = vmatpush1.bf16.msra.mxu0 %v1771
      %1951 = vmatprep.subr.bf16.mxu0 0
      %1952 = vmatpush1.bf16.msra.mxu0 %v1772
      %1953 = vmatprep.subr.bf16.mxu0 0
      %1954 = vmatpush1.bf16.msra.mxu0 %v1773
      %1955 = vmatprep.subr.bf16.mxu0 0
      %1956 = vmatpush1.bf16.msra.mxu0 %v1774
      %1957 = vmatprep.subr.bf16.mxu0 0
      %1958 = vmatpush1.bf16.msra.mxu0 %v1775
      %1959 = vmatprep.subr.bf16.mxu0 0
      %1960 = vmatpush1.bf16.msra.mxu0 %v1776
      %1961 = vmatprep.subr.bf16.mxu0 0
      %1962 = vmatpush1.bf16.msra.mxu0 %v1777
      %1963 = vmatprep.subr.bf16.mxu0 0
      %1964 = vmatpush1.bf16.msra.mxu0 %v1778
      %1965 = vmatprep.subr.bf16.mxu0 0
      %1966 = vmatpush1.bf16.msra.mxu0 %v1779
      %1967 = vmatprep.subr.bf16.mxu0 0
      %1968 = vmatpush1.bf16.msra.mxu0 %v1780
      %1969 = vmatprep.subr.bf16.mxu0 0
      %1970 = vmatpush1.bf16.msra.mxu0 %v1781
      %1971 = vmatprep.subr.bf16.mxu0 0
      %1972 = vmatpush1.bf16.msra.mxu0 %v1782
      %1973 = vmatprep.subr.bf16.mxu0 0
      %1974 = vmatpush1.bf16.msra.mxu0 %v1783
      %1975 = vmatprep.subr.bf16.mxu0 0
      %1976 = vmatpush1.bf16.msra.mxu0 %v1784
      %1977 = vmatprep.subr.bf16.mxu0 0
      %1978 = vmatpush1.bf16.msra.mxu0 %v1785
      %1979 = vmatprep.mubr.bf16.mxu0 %v1576
      %1980 = vmatmul.mubr.bf16.gmra.mrb[0].mxu0 %v1544
      %v1981 = vpop.f32.mrb[0].mxu0
      %v1982 = vadd.f32 %v1885, %v1981
      %v1983 = vpop.f32.mrb[0].mxu0
      %v1984 = vpop.f32.mrb[0].mxu0
      %v1985 = vadd.f32 %v1888, %v1984
      %v1986 = vpop.f32.mrb[0].mxu0
      %1987 = vmatprep.mubr.bf16.mxu0 %v1580
      %1988 = vmatmul.mubr.bf16.gmra.mrb[0].mxu0 %v1548
      %v1989 = vpop.f32.mrb[0].mxu0
      %v1990 = vadd.f32 %v1893, %v1989
      %v1991 = vpop.f32.mrb[0].mxu0
      %v1992 = vpop.f32.mrb[0].mxu0
      %v1993 = vadd.f32 %v1896, %v1992
      %v1994 = vpop.f32.mrb[0].mxu0
      %1995 = vmatprep.mubr.bf16.mxu0 %v1584
      %1996 = vmatmul.mubr.bf16.gmra.mrb[0].mxu0 %v1552
      %v1997 = vpop.f32.mrb[0].mxu0
      %v1998 = vadd.f32 %v1901, %v1997
      %v1999 = vpop.f32.mrb[0].mxu0
      %v2000 = vpop.f32.mrb[0].mxu0
      %v2001 = vadd.f32 %v1904, %v2000
      %v2002 = vpop.f32.mrb[0].mxu0
      %2003 = vmatprep.mubr.bf16.mxu0 %v1588
      %2004 = vmatmul.mubr.bf16.gmra.mrb[0].mxu0 %v1556
      %v2005 = vpop.f32.mrb[0].mxu0
      %v2006 = vadd.f32 %v1909, %v2005
      %v2007 = vpop.f32.mrb[0].mxu0
      %v2008 = vpop.f32.mrb[0].mxu0
      %v2009 = vadd.f32 %v1912, %v2008
      %v2010 = vpop.f32.mrb[0].mxu0
      %2011 = vmatprep.mubr.bf16.mxu0 %v1592
      %2012 = vmatmul.mubr.bf16.gmra.mrb[0].mxu0 %v1560
      %v2013 = vpop.f32.mrb[0].mxu0
      %v2014 = vadd.f32 %v1917, %v2013
      %v2015 = vpop.f32.mrb[0].mxu0
      %v2016 = vpop.f32.mrb[0].mxu0
      %v2017 = vadd.f32 %v1920, %v2016
      %v2018 = vpop.f32.mrb[0].mxu0
      %2019 = vmatprep.mubr.bf16.mxu0 %v1596
      %2020 = vmatmul.mubr.bf16.gmra.mrb[0].mxu0 %v1564
      %v2021 = vpop.f32.mrb[0].mxu0
      %v2022 = vadd.f32 %v1925, %v2021
      %v2023 = vpop.f32.mrb[0].mxu0
      %v2024 = vpop.f32.mrb[0].mxu0
      %v2025 = vadd.f32 %v1928, %v2024
      %v2026 = vpop.f32.mrb[0].mxu0
      %2027 = vmatprep.mubr.bf16.mxu0 %v1600
      %2028 = vmatmul.mubr.bf16.gmra.mrb[0].mxu0 %v1568
      %v2029 = vpop.f32.mrb[0].mxu0
      %v2030 = vadd.f32 %v1933, %v2029
      %v2031 = vpop.f32.mrb[0].mxu0
      %v2032 = vpop.f32.mrb[0].mxu0
      %v2033 = vadd.f32 %v1936, %v2032
      %v2034 = vpop.f32.mrb[0].mxu0
      %2035 = vmatprep.mubr.bf16.mxu0 %v1604
      %2036 = vmatmul.mubr.bf16.gmra.mrb[0].mxu0 %v1572
      %v2037 = vpop.f32.mrb[0].mxu0
      %v2038 = vadd.f32 %v1941, %v2037
      %v2039 = vpop.f32.mrb[0].mxu0
      %v2040 = vpop.f32.mrb[0].mxu0
      %v2041 = vadd.f32 %v1944, %v2040
      %v2042 = vpop.f32.mrb[0].mxu0
      %2043 = vdwg.mxu0
      %2044 = vmatprep.subr.bf16.mxu0 0
      %2045 = vmatpush1.bf16.msra.mxu0 %v1786
      %2046 = vmatprep.subr.bf16.mxu0 0
      %2047 = vmatpush1.bf16.msra.mxu0 %v1787
      %2048 = vmatprep.subr.bf16.mxu0 0
      %2049 = vmatpush1.bf16.msra.mxu0 %v1788
      %2050 = vmatprep.subr.bf16.mxu0 0
      %2051 = vmatpush1.bf16.msra.mxu0 %v1789
      %2052 = vmatprep.subr.bf16.mxu0 0
      %2053 = vmatpush1.bf16.msra.mxu0 0
      %2054 = vmatprep.subr.bf16.mxu0 0
      %2055 = vmatpush1.bf16.msra.mxu0 0
      %2056 = vmatprep.subr.bf16.mxu0 0
      %2057 = vmatpush1.bf16.msra.mxu0 0
      %2058 = vmatprep.subr.bf16.mxu0 0
      %2059 = vmatpush1.bf16.msra.mxu0 0
      %2060 = vmatprep.subr.bf16.mxu0 0
      %2061 = vmatpush1.bf16.msra.mxu0 0
      %2062 = vmatprep.subr.bf16.mxu0 0
      %2063 = vmatpush1.bf16.msra.mxu0 0
      %2064 = vmatprep.subr.bf16.mxu0 0
      %2065 = vmatpush1.bf16.msra.mxu0 0
      %2066 = vmatprep.subr.bf16.mxu0 0
      %2067 = vmatpush1.bf16.msra.mxu0 0
      %2068 = vmatprep.subr.bf16.mxu0 0
      %2069 = vmatpush1.bf16.msra.mxu0 0
      %2070 = vmatprep.subr.bf16.mxu0 0
      %2071 = vmatpush1.bf16.msra.mxu0 0
      %2072 = vmatprep.subr.bf16.mxu0 0
      %2073 = vmatpush1.bf16.msra.mxu0 0
      %2074 = vmatprep.subr.bf16.mxu0 0
      %2075 = vmatpush1.bf16.msra.mxu0 0
      %2076 = vmatprep.mubr.bf16.mxu0 0
      %2077 = vmatmul.mubr.bf16.gmra.mrb[0].mxu0 %v1827
      %v2078 = vpop.f32.mrb[0].mxu0
      %v2079 = vadd.f32 %v1982, %v2078
      %v2080 = vpop.f32.mrb[0].mxu0
      %v2081 = vpop.f32.mrb[0].mxu0
      %v2082 = vadd.f32 %v1985, %v2081
      %v2083 = vpop.f32.mrb[0].mxu0
      %2084 = vmatprep.mubr.bf16.mxu0 0
      %2085 = vmatmul.mubr.bf16.gmra.mrb[0].mxu0 %v1830
      %v2086 = vpop.f32.mrb[0].mxu0
      %v2087 = vadd.f32 %v1990, %v2086
      %v2088 = vpop.f32.mrb[0].mxu0
      %v2089 = vpop.f32.mrb[0].mxu0
      %v2090 = vadd.f32 %v1993, %v2089
      %v2091 = vpop.f32.mrb[0].mxu0
      %2092 = vmatprep.mubr.bf16.mxu0 0
      %2093 = vmatmul.mubr.bf16.gmra.mrb[0].mxu0 %v1833
      %v2094 = vpop.f32.mrb[0].mxu0
      %v2095 = vadd.f32 %v1998, %v2094
      %v2096 = vpop.f32.mrb[0].mxu0
      %v2097 = vpop.f32.mrb[0].mxu0
      %v2098 = vadd.f32 %v2001, %v2097
      %v2099 = vpop.f32.mrb[0].mxu0
      %2100 = vmatprep.mubr.bf16.mxu0 0
      %2101 = vmatmul.mubr.bf16.gmra.mrb[0].mxu0 %v1836
      %v2102 = vpop.f32.mrb[0].mxu0
      %v2103 = vadd.f32 %v2006, %v2102
      %v2104 = vpop.f32.mrb[0].mxu0
      %v2105 = vpop.f32.mrb[0].mxu0
      %v2106 = vadd.f32 %v2009, %v2105
      %v2107 = vpop.f32.mrb[0].mxu0
      %2108 = vmatprep.mubr.bf16.mxu0 0
      %2109 = vmatmul.mubr.bf16.gmra.mrb[0].mxu0 %v1839
      %v2110 = vpop.f32.mrb[0].mxu0
      %v2111 = vadd.f32 %v2014, %v2110
      %v2112 = vpop.f32.mrb[0].mxu0
      %v2113 = vpop.f32.mrb[0].mxu0
      %v2114 = vadd.f32 %v2017, %v2113
      %v2115 = vpop.f32.mrb[0].mxu0
      %2116 = vmatprep.mubr.bf16.mxu0 0
      %2117 = vmatmul.mubr.bf16.gmra.mrb[0].mxu0 %v1842
      %v2118 = vpop.f32.mrb[0].mxu0
      %v2119 = vadd.f32 %v2022, %v2118
      %v2120 = vpop.f32.mrb[0].mxu0
      %v2121 = vpop.f32.mrb[0].mxu0
      %v2122 = vadd.f32 %v2025, %v2121
      %v2123 = vpop.f32.mrb[0].mxu0
      %2124 = vmatprep.mubr.bf16.mxu0 0
      %2125 = vmatmul.mubr.bf16.gmra.mrb[0].mxu0 %v1845
      %v2126 = vpop.f32.mrb[0].mxu0
      %v2127 = vadd.f32 %v2030, %v2126
      %v2128 = vpop.f32.mrb[0].mxu0
      %v2129 = vpop.f32.mrb[0].mxu0
      %v2130 = vadd.f32 %v2033, %v2129
      %v2131 = vpop.f32.mrb[0].mxu0
      %2132 = vmatprep.mubr.bf16.mxu0 0
      %2133 = vmatmul.mubr.bf16.gmra.mrb[0].mxu0 %v1848
      %v2134 = vpop.f32.mrb[0].mxu0
      %v2135 = vadd.f32 %v2038, %v2134
      %v2136 = vpop.f32.mrb[0].mxu0
      %v2137 = vpop.f32.mrb[0].mxu0
      %v2138 = vadd.f32 %v2041, %v2137
      %v2139 = vpop.f32.mrb[0].mxu0
      %2140 = vdwg.mxu0
      %v2141 = vmax.f32 %v2079, 0.0
      %v2142 = vmax.f32 %v2082, 0.0
      %v2143 = vmax.f32 %v2087, 0.0
      %v2144 = vmax.f32 %v2090, 0.0
      %v2145 = vmax.f32 %v2095, 0.0
      %v2146 = vmax.f32 %v2098, 0.0
      %v2147 = vmax.f32 %v2103, 0.0
      %v2148 = vmax.f32 %v2106, 0.0
      %v2149 = vmax.f32 %v2111, 0.0
      %v2150 = vmax.f32 %v2114, 0.0
      %v2151 = vmax.f32 %v2119, 0.0
      %v2152 = vmax.f32 %v2122, 0.0
      %v2153 = vmax.f32 %v2127, 0.0
      %v2154 = vmax.f32 %v2130, 0.0
      %v2155 = vmax.f32 %v2135, 0.0
      %v2156 = vmax.f32 %v2138, 0.0
      %s2157 = scalar_lea.vmem [#allocation3], 24
      %2158 = vst.msk [vmem:[%s2157 + $0x1] sm:$0xff] %vm340, %v2141
      %2159 = vst.msk [vmem:[%s2157 + $0x9] sm:$0xff] %vm340, %v2142
      %2160 = vst.msk [vmem:[%s2157 + $0x19] sm:$0xff] %vm340, %v2143
      %2161 = vst.msk [vmem:[%s2157 + $0x21] sm:$0xff] %vm340, %v2144
      %2162 = vst.msk [vmem:[%s2157 + $0x31] sm:$0xff] %vm340, %v2145
      %2163 = vst.msk [vmem:[%s2157 + $0x39] sm:$0xff] %vm340, %v2146
      %2164 = vst.msk [vmem:[%s2157 + $0x49] sm:$0xff] %vm340, %v2147
      %2165 = vst.msk [vmem:[%s2157 + $0x51] sm:$0xff] %vm340, %v2148
      %2166 = vst.msk [vmem:[%s2157 + $0x61] sm:$0xff] %vm340, %v2149
      %2167 = vst.msk [vmem:[%s2157 + $0x69] sm:$0xff] %vm340, %v2150
      %2168 = vst.msk [vmem:[%s2157 + $0x79] sm:$0xff] %vm340, %v2151
      %2169 = vst.msk [vmem:[%s2157 + $0x81] sm:$0xff] %vm340, %v2152
      %2170 = vst.msk [vmem:[%s2157 + $0x91] sm:$0xff] %vm340, %v2153
      %2171 = vst.msk [vmem:[%s2157 + $0x99] sm:$0xff] %vm340, %v2154
      %2172 = vst.msk [vmem:[%s2157 + $0xa9] sm:$0xff] %vm340, %v2155
      %2173 = vst.msk [vmem:[%s2157 + $0xb1] sm:$0xff] %vm340, %v2156
      %s2174 = scalar_lea.vmem %s3, 288
      %v2175 = vld [vmem:[%s2174] sm:$0xf]
      %v2176 = vld [vmem:[%s2174 + $0x4] sm:$0xf]
      %v2177 = vld [vmem:[%s2174 + $0x8] sm:$0xf]
      %v2178 = vld [vmem:[%s2174 + $0xc] sm:$0xf]
      %v2179 = vld [vmem:[%s2174 + $0x10] sm:$0xf]
      %v2180 = vld [vmem:[%s2174 + $0x14] sm:$0xf]
      %v2181 = vld [vmem:[%s2174 + $0x18] sm:$0xf]
      %v2182 = vld [vmem:[%s2174 + $0x1c] sm:$0xf]
      %v2183 = vld [vmem:[%s2174 + $0x20] sm:$0xf]
      %v2184 = vld [vmem:[%s2174 + $0x24] sm:$0xf]
      %v2185 = vld [vmem:[%s2174 + $0x28] sm:$0xf]
      %v2186 = vld [vmem:[%s2174 + $0x2c] sm:$0xf]
      %v2187 = vld [vmem:[%s2174 + $0x30] sm:$0xf]
      %v2188 = vld [vmem:[%s2174 + $0x34] sm:$0xf]
      %v2189 = vld [vmem:[%s2174 + $0x38] sm:$0xf]
      %v2190 = vld [vmem:[%s2174 + $0x3c] sm:$0xf]
      %v2191 = vld [vmem:[%s2174 + $0x40] sm:$0xf]
      %v2192 = vld [vmem:[%s2174 + $0x44] sm:$0xf]
      %v2193 = vld [vmem:[%s2174 + $0x48] sm:$0xf]
      %v2194 = vld [vmem:[%s2174 + $0x4c] sm:$0xf]
      %v2195 = vld [vmem:[%s2174 + $0x50] sm:$0xf]
      %v2196 = vld [vmem:[%s2174 + $0x54] sm:$0xf]
      %v2197 = vld [vmem:[%s2174 + $0x58] sm:$0xf]
      %v2198 = vld [vmem:[%s2174 + $0x5c] sm:$0xf]
      %v2199 = vld [vmem:[%s2174 + $0x60] sm:$0xf]
      %v2200 = vld [vmem:[%s2174 + $0x64] sm:$0xf]
      %v2201 = vld [vmem:[%s2174 + $0x68] sm:$0xf]
      %v2202 = vld [vmem:[%s2174 + $0x6c] sm:$0xf]
      %v2203 = vld [vmem:[%s2174 + $0x70] sm:$0xf]
      %v2204 = vld [vmem:[%s2174 + $0x74] sm:$0xf]
      %v2205 = vld [vmem:[%s2174 + $0x78] sm:$0xf]
      %v2206 = vld [vmem:[%s2174 + $0x7c] sm:$0xf]
      %v2207 = vld [vmem:[%s2174 + $0x80] sm:$0xf]
      %v2208 = vld [vmem:[%s2174 + $0x84] sm:$0xf]
      %v2209 = vld [vmem:[%s2174 + $0x88] sm:$0xf]
      %v2210 = vld [vmem:[%s2174 + $0x8c] sm:$0xf]
      %v2211 = vld [vmem:[%s2174 + $0x90] sm:$0xf]
      %v2212 = vld [vmem:[%s2174 + $0x94] sm:$0xf]
      %v2213 = vld [vmem:[%s2174 + $0x98] sm:$0xf]
      %v2214 = vld [vmem:[%s2174 + $0x9c] sm:$0xf]
      %v2215 = vld [vmem:[%s2174 + $0xa0] sm:$0xf]
      %v2216 = vld [vmem:[%s2174 + $0xa4] sm:$0xf]
      %v2217 = vld [vmem:[%s2174 + $0xa8] sm:$0xf]
      %v2218 = vld [vmem:[%s2174 + $0xac] sm:$0xf]
      %v2219 = vld [vmem:[%s2174 + $0xb0] sm:$0xf]
      %v2220 = vld [vmem:[%s2174 + $0xb4] sm:$0xf]
      %v2221 = vld [vmem:[%s2174 + $0xb8] sm:$0xf]
      %v2222 = vld [vmem:[%s2174 + $0xbc] sm:$0xf]
      %v2223 = vld [vmem:[%s2174 + $0xc0] sm:$0xf]
      %v2224 = vld [vmem:[%s2174 + $0xc4] sm:$0xf]
      %v2225 = vld [vmem:[%s2174 + $0xc8] sm:$0xf]
      %v2226 = vld [vmem:[%s2174 + $0xcc] sm:$0xf]
      %v2227 = vld [vmem:[%s2174 + $0xd0] sm:$0xf]
      %v2228 = vld [vmem:[%s2174 + $0xd4] sm:$0xf]
      %v2229 = vld [vmem:[%s2174 + $0xd8] sm:$0xf]
      %v2230 = vld [vmem:[%s2174 + $0xdc] sm:$0xf]
      %v2231 = vld [vmem:[%s2174 + $0xe0] sm:$0xf]
      %v2232 = vld [vmem:[%s2174 + $0xe4] sm:$0xf]
      %v2233 = vld [vmem:[%s2174 + $0xe8] sm:$0xf]
      %v2234 = vld [vmem:[%s2174 + $0xec] sm:$0xf]
      %v2235 = vld [vmem:[%s2174 + $0xf0] sm:$0xf]
      %v2236 = vld [vmem:[%s2174 + $0xf4] sm:$0xf]
      %v2237 = vld [vmem:[%s2174 + $0xf8] sm:$0xf]
      %v2238 = vld [vmem:[%s2174 + $0xfc] sm:$0xf]
      %v2239 = vld [vmem:[%s2174 + $0x100] sm:$0xf]
      %v2240 = vld [vmem:[%s2174 + $0x104] sm:$0xf]
      %v2241 = vld [vmem:[%s2174 + $0x108] sm:$0xf]
      %v2242 = vld [vmem:[%s2174 + $0x10c] sm:$0xf]
      %v2243 = vld [vmem:[%s2174 + $0x110] sm:$0xf]
      %v2244 = vld [vmem:[%s2174 + $0x114] sm:$0xf]
      %v2245 = vld [vmem:[%s2174 + $0x118] sm:$0xf]
      %v2246 = vld [vmem:[%s2174 + $0x11c] sm:$0xf]
      %v2247 = vld [vmem:[%s5 + $0x4] sm:$0x1]
      %v2248 = vld [vmem:[#allocation3] sm:$0xff]
      %v2249 = vld [vmem:[#allocation3 + $0x8] sm:$0xff]
      %v2250 = vld [vmem:[#allocation3 + $0x18] sm:$0xff]
      %v2251 = vld [vmem:[#allocation3 + $0x20] sm:$0xff]
      %v2252 = vld [vmem:[#allocation3 + $0x30] sm:$0xff]
      %v2253 = vld [vmem:[#allocation3 + $0x38] sm:$0xff]
      %v2254 = vld [vmem:[#allocation3 + $0x48] sm:$0xff]
      %v2255 = vld [vmem:[#allocation3 + $0x50] sm:$0xff]
      %v2256 = vld [vmem:[#allocation3 + $0x60] sm:$0xff]
      %v2257 = vld [vmem:[#allocation3 + $0x68] sm:$0xff]
      %v2258 = vld [vmem:[#allocation3 + $0x78] sm:$0xff]
      %v2259 = vld [vmem:[#allocation3 + $0x80] sm:$0xff]
      %v2260 = vld [vmem:[#allocation3 + $0x90] sm:$0xff]
      %v2261 = vld [vmem:[#allocation3 + $0x98] sm:$0xff]
      %v2262 = vld [vmem:[#allocation3 + $0xa8] sm:$0xff]
      %v2263 = vld [vmem:[#allocation3 + $0xb0] sm:$0xff]
      %v2264 = vpack.c.bf16 %v2249, %v2248
      %v2265 = vpack.c.bf16 %v2251, %v2250
      %v2266 = vpack.c.bf16 %v2253, %v2252
      %v2267 = vpack.c.bf16 %v2255, %v2254
      %v2268 = vpack.c.bf16 %v2257, %v2256
      %v2269 = vpack.c.bf16 %v2259, %v2258
      %v2270 = vpack.c.bf16 %v2261, %v2260
      %v2271 = vpack.c.bf16 %v2263, %v2262
      %v2272 = vld [vmem:[#allocation3 + $0x1] sm:$0xff]
      %v2273 = vld [vmem:[#allocation3 + $0x9] sm:$0xff]
      %v2274 = vld [vmem:[#allocation3 + $0x19] sm:$0xff]
      %v2275 = vld [vmem:[#allocation3 + $0x21] sm:$0xff]
      %v2276 = vld [vmem:[#allocation3 + $0x31] sm:$0xff]
      %v2277 = vld [vmem:[#allocation3 + $0x39] sm:$0xff]
      %v2278 = vld [vmem:[#allocation3 + $0x49] sm:$0xff]
      %v2279 = vld [vmem:[#allocation3 + $0x51] sm:$0xff]
      %v2280 = vld [vmem:[#allocation3 + $0x61] sm:$0xff]
      %v2281 = vld [vmem:[#allocation3 + $0x69] sm:$0xff]
      %v2282 = vld [vmem:[#allocation3 + $0x79] sm:$0xff]
      %v2283 = vld [vmem:[#allocation3 + $0x81] sm:$0xff]
      %v2284 = vld [vmem:[#allocation3 + $0x91] sm:$0xff]
      %v2285 = vld [vmem:[#allocation3 + $0x99] sm:$0xff]
      %v2286 = vld [vmem:[#allocation3 + $0xa9] sm:$0xff]
      %v2287 = vld [vmem:[#allocation3 + $0xb1] sm:$0xff]
      %v2288 = vpack.c.bf16 %v2273, %v2272
      %v2289 = vpack.c.bf16 %v2275, %v2274
      %v2290 = vpack.c.bf16 %v2277, %v2276
      %v2291 = vpack.c.bf16 %v2279, %v2278
      %v2292 = vpack.c.bf16 %v2281, %v2280
      %v2293 = vpack.c.bf16 %v2283, %v2282
      %v2294 = vpack.c.bf16 %v2285, %v2284
      %v2295 = vpack.c.bf16 %v2287, %v2286
      %v2296 = vld [vmem:[#allocation3 + $0x2] sm:$0xff]
      %v2297 = vld [vmem:[#allocation3 + $0xa] sm:$0xff]
      %v2298 = vld [vmem:[#allocation3 + $0x1a] sm:$0xff]
      %v2299 = vld [vmem:[#allocation3 + $0x22] sm:$0xff]
      %v2300 = vld [vmem:[#allocation3 + $0x32] sm:$0xff]
      %v2301 = vld [vmem:[#allocation3 + $0x3a] sm:$0xff]
      %v2302 = vld [vmem:[#allocation3 + $0x4a] sm:$0xff]
      %v2303 = vld [vmem:[#allocation3 + $0x52] sm:$0xff]
      %v2304 = vld [vmem:[#allocation3 + $0x62] sm:$0xff]
      %v2305 = vld [vmem:[#allocation3 + $0x6a] sm:$0xff]
      %v2306 = vld [vmem:[#allocation3 + $0x7a] sm:$0xff]
      %v2307 = vld [vmem:[#allocation3 + $0x82] sm:$0xff]
      %v2308 = vld [vmem:[#allocation3 + $0x92] sm:$0xff]
      %v2309 = vld [vmem:[#allocation3 + $0x9a] sm:$0xff]
      %v2310 = vld [vmem:[#allocation3 + $0xaa] sm:$0xff]
      %v2311 = vld [vmem:[#allocation3 + $0xb2] sm:$0xff]
      %v2312 = vpack.c.bf16 %v2297, %v2296
      %v2313 = vpack.c.bf16 %v2299, %v2298
      %v2314 = vpack.c.bf16 %v2301, %v2300
      %v2315 = vpack.c.bf16 %v2303, %v2302
      %v2316 = vpack.c.bf16 %v2305, %v2304
      %v2317 = vpack.c.bf16 %v2307, %v2306
      %v2318 = vpack.c.bf16 %v2309, %v2308
      %v2319 = vpack.c.bf16 %v2311, %v2310
      %v2320 = vld [vmem:[%s2157] sm:$0xff]
      %v2321 = vld [vmem:[%s2157 + $0x8] sm:$0xff]
      %v2322 = vld [vmem:[%s2157 + $0x18] sm:$0xff]
      %v2323 = vld [vmem:[%s2157 + $0x20] sm:$0xff]
      %v2324 = vld [vmem:[%s2157 + $0x30] sm:$0xff]
      %v2325 = vld [vmem:[%s2157 + $0x38] sm:$0xff]
      %v2326 = vld [vmem:[%s2157 + $0x48] sm:$0xff]
      %v2327 = vld [vmem:[%s2157 + $0x50] sm:$0xff]
      %v2328 = vld [vmem:[%s2157 + $0x60] sm:$0xff]
      %v2329 = vld [vmem:[%s2157 + $0x68] sm:$0xff]
      %v2330 = vld [vmem:[%s2157 + $0x78] sm:$0xff]
      %v2331 = vld [vmem:[%s2157 + $0x80] sm:$0xff]
      %v2332 = vld [vmem:[%s2157 + $0x90] sm:$0xff]
      %v2333 = vld [vmem:[%s2157 + $0x98] sm:$0xff]
      %v2334 = vld [vmem:[%s2157 + $0xa8] sm:$0xff]
      %v2335 = vld [vmem:[%s2157 + $0xb0] sm:$0xff]
      %v2336 = vpack.c.bf16 %v2321, %v2320
      %v2337 = vpack.c.bf16 %v2323, %v2322
      %v2338 = vpack.c.bf16 %v2325, %v2324
      %v2339 = vpack.c.bf16 %v2327, %v2326
      %v2340 = vpack.c.bf16 %v2329, %v2328
      %v2341 = vpack.c.bf16 %v2331, %v2330
      %v2342 = vpack.c.bf16 %v2333, %v2332
      %v2343 = vpack.c.bf16 %v2335, %v2334
      %v2344 = vld [vmem:[%s2157 + $0x1] sm:$0xff]
      %v2345 = vld [vmem:[%s2157 + $0x9] sm:$0xff]
      %v2346 = vld [vmem:[%s2157 + $0x19] sm:$0xff]
      %v2347 = vld [vmem:[%s2157 + $0x21] sm:$0xff]
      %v2348 = vld [vmem:[%s2157 + $0x31] sm:$0xff]
      %v2349 = vld [vmem:[%s2157 + $0x39] sm:$0xff]
      %v2350 = vld [vmem:[%s2157 + $0x49] sm:$0xff]
      %v2351 = vld [vmem:[%s2157 + $0x51] sm:$0xff]
      %v2352 = vld [vmem:[%s2157 + $0x61] sm:$0xff]
      %v2353 = vld [vmem:[%s2157 + $0x69] sm:$0xff]
      %v2354 = vld [vmem:[%s2157 + $0x79] sm:$0xff]
      %v2355 = vld [vmem:[%s2157 + $0x81] sm:$0xff]
      %v2356 = vld [vmem:[%s2157 + $0x91] sm:$0xff]
      %v2357 = vld [vmem:[%s2157 + $0x99] sm:$0xff]
      %v2358 = vld [vmem:[%s2157 + $0xa9] sm:$0xff]
      %v2359 = vld [vmem:[%s2157 + $0xb1] sm:$0xff]
      %v2360 = vpack.c.bf16 %v2345, %v2344
      %v2361 = vpack.c.bf16 %v2347, %v2346
      %v2362 = vpack.c.bf16 %v2349, %v2348
      %v2363 = vpack.c.bf16 %v2351, %v2350
      %v2364 = vpack.c.bf16 %v2353, %v2352
      %v2365 = vpack.c.bf16 %v2355, %v2354
      %v2366 = vpack.c.bf16 %v2357, %v2356
      %v2367 = vpack.c.bf16 %v2359, %v2358
      %v2368 = vld [vmem:[%s2157 + $0x2] sm:$0xff]
      %v2369 = vld [vmem:[%s2157 + $0xa] sm:$0xff]
      %v2370 = vld [vmem:[%s2157 + $0x1a] sm:$0xff]
      %v2371 = vld [vmem:[%s2157 + $0x22] sm:$0xff]
      %v2372 = vld [vmem:[%s2157 + $0x32] sm:$0xff]
      %v2373 = vld [vmem:[%s2157 + $0x3a] sm:$0xff]
      %v2374 = vld [vmem:[%s2157 + $0x4a] sm:$0xff]
      %v2375 = vld [vmem:[%s2157 + $0x52] sm:$0xff]
      %v2376 = vld [vmem:[%s2157 + $0x62] sm:$0xff]
      %v2377 = vld [vmem:[%s2157 + $0x6a] sm:$0xff]
      %v2378 = vld [vmem:[%s2157 + $0x7a] sm:$0xff]
      %v2379 = vld [vmem:[%s2157 + $0x82] sm:$0xff]
      %v2380 = vld [vmem:[%s2157 + $0x92] sm:$0xff]
      %v2381 = vld [vmem:[%s2157 + $0x9a] sm:$0xff]
      %v2382 = vld [vmem:[%s2157 + $0xaa] sm:$0xff]
      %v2383 = vld [vmem:[%s2157 + $0xb2] sm:$0xff]
      %v2384 = vpack.c.bf16 %v2369, %v2368
      %v2385 = vpack.c.bf16 %v2371, %v2370
      %v2386 = vpack.c.bf16 %v2373, %v2372
      %v2387 = vpack.c.bf16 %v2375, %v2374
      %v2388 = vpack.c.bf16 %v2377, %v2376
      %v2389 = vpack.c.bf16 %v2379, %v2378
      %v2390 = vpack.c.bf16 %v2381, %v2380
      %v2391 = vpack.c.bf16 %v2383, %v2382
      %s2392 = scalar_lea.vmem [#allocation3], 48
      %v2393 = vld [vmem:[%s2392] sm:$0xff]
      %v2394 = vld [vmem:[%s2392 + $0x8] sm:$0xff]
      %v2395 = vld [vmem:[%s2392 + $0x18] sm:$0xff]
      %v2396 = vld [vmem:[%s2392 + $0x20] sm:$0xff]
      %v2397 = vld [vmem:[%s2392 + $0x30] sm:$0xff]
      %v2398 = vld [vmem:[%s2392 + $0x38] sm:$0xff]
      %v2399 = vld [vmem:[%s2392 + $0x48] sm:$0xff]
      %v2400 = vld [vmem:[%s2392 + $0x50] sm:$0xff]
      %v2401 = vld [vmem:[%s2392 + $0x60] sm:$0xff]
      %v2402 = vld [vmem:[%s2392 + $0x68] sm:$0xff]
      %v2403 = vld [vmem:[%s2392 + $0x78] sm:$0xff]
      %v2404 = vld [vmem:[%s2392 + $0x80] sm:$0xff]
      %v2405 = vld [vmem:[%s2392 + $0x90] sm:$0xff]
      %v2406 = vld [vmem:[%s2392 + $0x98] sm:$0xff]
      %v2407 = vld [vmem:[%s2392 + $0xa8] sm:$0xff]
      %v2408 = vld [vmem:[%s2392 + $0xb0] sm:$0xff]
      %v2409 = vpack.c.bf16 %v2394, %v2393
      %v2410 = vpack.c.bf16 %v2396, %v2395
      %v2411 = vpack.c.bf16 %v2398, %v2397
      %v2412 = vpack.c.bf16 %v2400, %v2399
      %v2413 = vpack.c.bf16 %v2402, %v2401
      %v2414 = vpack.c.bf16 %v2404, %v2403
      %v2415 = vpack.c.bf16 %v2406, %v2405
      %v2416 = vpack.c.bf16 %v2408, %v2407
      %v2417 = vld [vmem:[%s2392 + $0x1] sm:$0xff]
      %v2418 = vld [vmem:[%s2392 + $0x9] sm:$0xff]
      %v2419 = vld [vmem:[%s2392 + $0x19] sm:$0xff]
      %v2420 = vld [vmem:[%s2392 + $0x21] sm:$0xff]
      %v2421 = vld [vmem:[%s2392 + $0x31] sm:$0xff]
      %v2422 = vld [vmem:[%s2392 + $0x39] sm:$0xff]
      %v2423 = vld [vmem:[%s2392 + $0x49] sm:$0xff]
      %v2424 = vld [vmem:[%s2392 + $0x51] sm:$0xff]
      %v2425 = vld [vmem:[%s2392 + $0x61] sm:$0xff]
      %v2426 = vld [vmem:[%s2392 + $0x69] sm:$0xff]
      %v2427 = vld [vmem:[%s2392 + $0x79] sm:$0xff]
      %v2428 = vld [vmem:[%s2392 + $0x81] sm:$0xff]
      %v2429 = vld [vmem:[%s2392 + $0x91] sm:$0xff]
      %v2430 = vld [vmem:[%s2392 + $0x99] sm:$0xff]
      %v2431 = vld [vmem:[%s2392 + $0xa9] sm:$0xff]
      %v2432 = vld [vmem:[%s2392 + $0xb1] sm:$0xff]
      %v2433 = vpack.c.bf16 %v2418, %v2417
      %v2434 = vpack.c.bf16 %v2420, %v2419
      %v2435 = vpack.c.bf16 %v2422, %v2421
      %v2436 = vpack.c.bf16 %v2424, %v2423
      %v2437 = vpack.c.bf16 %v2426, %v2425
      %v2438 = vpack.c.bf16 %v2428, %v2427
      %v2439 = vpack.c.bf16 %v2430, %v2429
      %v2440 = vpack.c.bf16 %v2432, %v2431
      %v2441 = vld [vmem:[%s2392 + $0x2] sm:$0xff]
      %v2442 = vld [vmem:[%s2392 + $0xa] sm:$0xff]
      %v2443 = vld [vmem:[%s2392 + $0x1a] sm:$0xff]
      %v2444 = vld [vmem:[%s2392 + $0x22] sm:$0xff]
      %v2445 = vld [vmem:[%s2392 + $0x32] sm:$0xff]
      %v2446 = vld [vmem:[%s2392 + $0x3a] sm:$0xff]
      %v2447 = vld [vmem:[%s2392 + $0x4a] sm:$0xff]
      %v2448 = vld [vmem:[%s2392 + $0x52] sm:$0xff]
      %v2449 = vld [vmem:[%s2392 + $0x62] sm:$0xff]
      %v2450 = vld [vmem:[%s2392 + $0x6a] sm:$0xff]
      %v2451 = vld [vmem:[%s2392 + $0x7a] sm:$0xff]
      %v2452 = vld [vmem:[%s2392 + $0x82] sm:$0xff]
      %v2453 = vld [vmem:[%s2392 + $0x92] sm:$0xff]
      %v2454 = vld [vmem:[%s2392 + $0x9a] sm:$0xff]
      %v2455 = vld [vmem:[%s2392 + $0xaa] sm:$0xff]
      %v2456 = vld [vmem:[%s2392 + $0xb2] sm:$0xff]
      %v2457 = vpack.c.bf16 %v2442, %v2441
      %v2458 = vpack.c.bf16 %v2444, %v2443
      %v2459 = vpack.c.bf16 %v2446, %v2445
      %v2460 = vpack.c.bf16 %v2448, %v2447
      %v2461 = vpack.c.bf16 %v2450, %v2449
      %v2462 = vpack.c.bf16 %v2452, %v2451
      %v2463 = vpack.c.bf16 %v2454, %v2453
      %v2464 = vpack.c.bf16 %v2456, %v2455
      %2473 = vrot.lane.b32.xlu0 %v2288, 64
      %v2474 = vpop.permute.xlu0 %2473
      %2475 = vrot.lane.b32.xlu0 %v2289, 64
      %v2476 = vpop.permute.xlu0 %2475
      %2477 = vrot.lane.b32.xlu0 %v2290, 64
      %v2478 = vpop.permute.xlu0 %2477
      %2479 = vrot.lane.b32.xlu0 %v2291, 64
      %v2480 = vpop.permute.xlu0 %2479
      %2481 = vrot.lane.b32.xlu0 %v2292, 64
      %v2482 = vpop.permute.xlu0 %2481
      %2483 = vrot.lane.b32.xlu0 %v2293, 64
      %v2484 = vpop.permute.xlu0 %2483
      %2485 = vrot.lane.b32.xlu0 %v2294, 64
      %v2486 = vpop.permute.xlu0 %2485
      %2487 = vrot.lane.b32.xlu0 %v2295, 64
      %v2488 = vpop.permute.xlu0 %2487
      %2497 = vrot.lane.b32.xlu0 %v2336, 64
      %v2498 = vpop.permute.xlu0 %2497
      %2499 = vrot.lane.b32.xlu0 %v2337, 64
      %v2500 = vpop.permute.xlu0 %2499
      %2501 = vrot.lane.b32.xlu0 %v2338, 64
      %v2502 = vpop.permute.xlu0 %2501
      %2503 = vrot.lane.b32.xlu0 %v2339, 64
      %v2504 = vpop.permute.xlu0 %2503
      %2505 = vrot.lane.b32.xlu0 %v2340, 64
      %v2506 = vpop.permute.xlu0 %2505
      %2507 = vrot.lane.b32.xlu0 %v2341, 64
      %v2508 = vpop.permute.xlu0 %2507
      %2509 = vrot.lane.b32.xlu0 %v2342, 64
      %v2510 = vpop.permute.xlu0 %2509
      %2511 = vrot.lane.b32.xlu0 %v2343, 64
      %v2512 = vpop.permute.xlu0 %2511
      %2521 = vrot.lane.b32.xlu0 %v2384, 64
      %v2522 = vpop.permute.xlu0 %2521
      %2523 = vrot.lane.b32.xlu0 %v2385, 64
      %v2524 = vpop.permute.xlu0 %2523
      %2525 = vrot.lane.b32.xlu0 %v2386, 64
      %v2526 = vpop.permute.xlu0 %2525
      %2527 = vrot.lane.b32.xlu0 %v2387, 64
      %v2528 = vpop.permute.xlu0 %2527
      %2529 = vrot.lane.b32.xlu0 %v2388, 64
      %v2530 = vpop.permute.xlu0 %2529
      %2531 = vrot.lane.b32.xlu0 %v2389, 64
      %v2532 = vpop.permute.xlu0 %2531
      %2533 = vrot.lane.b32.xlu0 %v2390, 64
      %v2534 = vpop.permute.xlu0 %2533
      %2535 = vrot.lane.b32.xlu0 %v2391, 64
      %v2536 = vpop.permute.xlu0 %2535
      %2545 = vrot.lane.b32.xlu0 %v2433, 64
      %v2546 = vpop.permute.xlu0 %2545
      %2547 = vrot.lane.b32.xlu0 %v2434, 64
      %v2548 = vpop.permute.xlu0 %2547
      %2549 = vrot.lane.b32.xlu0 %v2435, 64
      %v2550 = vpop.permute.xlu0 %2549
      %2551 = vrot.lane.b32.xlu0 %v2436, 64
      %v2552 = vpop.permute.xlu0 %2551
      %2553 = vrot.lane.b32.xlu0 %v2437, 64
      %v2554 = vpop.permute.xlu0 %2553
      %2555 = vrot.lane.b32.xlu0 %v2438, 64
      %v2556 = vpop.permute.xlu0 %2555
      %2557 = vrot.lane.b32.xlu0 %v2439, 64
      %v2558 = vpop.permute.xlu0 %2557
      %2559 = vrot.lane.b32.xlu0 %v2440, 64
      %v2560 = vpop.permute.xlu0 %2559
      %v2563 = vsel %vm340, %v2264, %v2474
      %v2567 = vsel %vm340, %v2265, %v2476
      %v2571 = vsel %vm340, %v2266, %v2478
      %v2575 = vsel %vm340, %v2267, %v2480
      %v2579 = vsel %vm340, %v2268, %v2482
      %v2583 = vsel %vm340, %v2269, %v2484
      %v2587 = vsel %vm340, %v2270, %v2486
      %v2591 = vsel %vm340, %v2271, %v2488
      %v2595 = vsel %vm340, %v2312, %v2498
      %v2599 = vsel %vm340, %v2313, %v2500
      %v2603 = vsel %vm340, %v2314, %v2502
      %v2607 = vsel %vm340, %v2315, %v2504
      %v2611 = vsel %vm340, %v2316, %v2506
      %v2615 = vsel %vm340, %v2317, %v2508
      %v2619 = vsel %vm340, %v2318, %v2510
      %v2623 = vsel %vm340, %v2319, %v2512
      %v2627 = vsel %vm340, %v2360, %v2522
      %v2631 = vsel %vm340, %v2361, %v2524
      %v2635 = vsel %vm340, %v2362, %v2526
      %v2639 = vsel %vm340, %v2363, %v2528
      %v2643 = vsel %vm340, %v2364, %v2530
      %v2647 = vsel %vm340, %v2365, %v2532
      %v2651 = vsel %vm340, %v2366, %v2534
      %v2655 = vsel %vm340, %v2367, %v2536
      %v2659 = vsel %vm340, %v2409, %v2546
      %v2663 = vsel %vm340, %v2410, %v2548
      %v2667 = vsel %vm340, %v2411, %v2550
      %v2671 = vsel %vm340, %v2412, %v2552
      %v2675 = vsel %vm340, %v2413, %v2554
      %v2679 = vsel %vm340, %v2414, %v2556
      %v2683 = vsel %vm340, %v2415, %v2558
      %v2687 = vsel %vm340, %v2416, %v2560
      %v2689 = vlaneseq
      %v2690 = vshrl.u32 %v2689, 7
      %v2691 = vsub.s32 0, %v2690
      %v2692 = vrot.slane %v2247, %v2691
      %v2765 = vunpack.c.l.b16 %v2175
      %v2766 = vunpack.c.l.b16 %v2176
      %v2767 = vunpack.c.l.b16 %v2177
      %v2768 = vunpack.c.l.b16 %v2178
      %v2769 = vunpack.c.l.b16 %v2179
      %v2770 = vunpack.c.l.b16 %v2180
      %v2771 = vunpack.c.l.b16 %v2181
      %v2772 = vunpack.c.l.b16 %v2182
      %v2773 = vunpack.c.l.b16 %v2183
      %v2774 = vunpack.c.l.b16 %v2184
      %v2775 = vunpack.c.l.b16 %v2185
      %v2776 = vunpack.c.l.b16 %v2186
      %v2777 = vunpack.c.l.b16 %v2187
      %v2778 = vunpack.c.l.b16 %v2188
      %v2779 = vunpack.c.l.b16 %v2189
      %v2780 = vunpack.c.l.b16 %v2190
      %v2781 = vunpack.c.l.b16 %v2191
      %v2782 = vunpack.c.l.b16 %v2192
      %v2783 = vunpack.c.l.b16 %v2193
      %v2784 = vunpack.c.l.b16 %v2194
      %v2785 = vunpack.c.l.b16 %v2195
      %v2786 = vunpack.c.l.b16 %v2196
      %v2787 = vunpack.c.l.b16 %v2197
      %v2788 = vunpack.c.l.b16 %v2198
      %v2789 = vunpack.c.l.b16 %v2199
      %v2790 = vunpack.c.l.b16 %v2200
      %v2791 = vunpack.c.l.b16 %v2201
      %v2792 = vunpack.c.l.b16 %v2202
      %v2793 = vunpack.c.l.b16 %v2203
      %v2794 = vunpack.c.l.b16 %v2204
      %v2795 = vunpack.c.l.b16 %v2205
      %v2796 = vunpack.c.l.b16 %v2206
      %v2797 = vunpack.c.l.b16 %v2207
      %v2798 = vunpack.c.l.b16 %v2208
      %v2799 = vunpack.c.l.b16 %v2209
      %v2800 = vunpack.c.l.b16 %v2210
      %v2801 = vunpack.c.l.b16 %v2211
      %v2802 = vunpack.c.l.b16 %v2212
      %v2803 = vunpack.c.l.b16 %v2213
      %v2804 = vunpack.c.l.b16 %v2214
      %v2805 = vunpack.c.l.b16 %v2215
      %v2806 = vunpack.c.l.b16 %v2216
      %v2807 = vunpack.c.l.b16 %v2217
      %v2808 = vunpack.c.l.b16 %v2218
      %v2809 = vunpack.c.l.b16 %v2219
      %v2810 = vunpack.c.l.b16 %v2220
      %v2811 = vunpack.c.l.b16 %v2221
      %v2812 = vunpack.c.l.b16 %v2222
      %v2813 = vunpack.c.l.b16 %v2223
      %v2814 = vunpack.c.l.b16 %v2224
      %v2815 = vunpack.c.l.b16 %v2225
      %v2816 = vunpack.c.l.b16 %v2226
      %v2817 = vunpack.c.l.b16 %v2227
      %v2818 = vunpack.c.l.b16 %v2228
      %v2819 = vunpack.c.l.b16 %v2229
      %v2820 = vunpack.c.l.b16 %v2230
      %v2821 = vunpack.c.l.b16 %v2231
      %v2822 = vunpack.c.l.b16 %v2232
      %v2823 = vunpack.c.l.b16 %v2233
      %v2824 = vunpack.c.l.b16 %v2234
      %v2825 = vunpack.c.l.b16 %v2235
      %v2826 = vunpack.c.l.b16 %v2236
      %v2827 = vunpack.c.l.b16 %v2237
      %v2828 = vunpack.c.l.b16 %v2238
      %v2829 = vunpack.c.l.b16 %v2239
      %v2830 = vunpack.c.l.b16 %v2240
      %v2831 = vunpack.c.l.b16 %v2241
      %v2832 = vunpack.c.l.b16 %v2242
      %v2833 = vunpack.c.l.b16 %v2243
      %v2834 = vunpack.c.l.b16 %v2244
      %v2835 = vunpack.c.l.b16 %v2245
      %v2836 = vunpack.c.l.b16 %v2246
      %v2837 = vpack.c.b16 %v2766, %v2765
      %v2838 = vpack.c.b16 %v2768, %v2767
      %v2839 = vpack.c.b16 %v2770, %v2769
      %v2840 = vpack.c.b16 %v2772, %v2771
      %v2841 = vpack.c.b16 %v2774, %v2773
      %v2842 = vpack.c.b16 %v2776, %v2775
      %v2843 = vpack.c.b16 %v2778, %v2777
      %v2844 = vpack.c.b16 %v2780, %v2779
      %v2845 = vpack.c.b16 %v2782, %v2781
      %v2846 = vpack.c.b16 %v2784, %v2783
      %v2847 = vpack.c.b16 %v2786, %v2785
      %v2848 = vpack.c.b16 %v2788, %v2787
      %v2849 = vpack.c.b16 %v2790, %v2789
      %v2850 = vpack.c.b16 %v2792, %v2791
      %v2851 = vpack.c.b16 %v2794, %v2793
      %v2852 = vpack.c.b16 %v2796, %v2795
      %v2853 = vpack.c.b16 %v2798, %v2797
      %v2854 = vpack.c.b16 %v2800, %v2799
      %v2855 = vpack.c.b16 %v2802, %v2801
      %v2856 = vpack.c.b16 %v2804, %v2803
      %v2857 = vpack.c.b16 %v2806, %v2805
      %v2858 = vpack.c.b16 %v2808, %v2807
      %v2859 = vpack.c.b16 %v2810, %v2809
      %v2860 = vpack.c.b16 %v2812, %v2811
      %v2861 = vpack.c.b16 %v2814, %v2813
      %v2862 = vpack.c.b16 %v2816, %v2815
      %v2863 = vpack.c.b16 %v2818, %v2817
      %v2864 = vpack.c.b16 %v2820, %v2819
      %v2865 = vpack.c.b16 %v2822, %v2821
      %v2866 = vpack.c.b16 %v2824, %v2823
      %v2867 = vpack.c.b16 %v2826, %v2825
      %v2868 = vpack.c.b16 %v2828, %v2827
      %v2869 = vpack.c.b16 %v2830, %v2829
      %v2870 = vpack.c.b16 %v2832, %v2831
      %v2871 = vpack.c.b16 %v2834, %v2833
      %v2872 = vpack.c.b16 %v2836, %v2835
      %v2910 = vsel %vm340, %v2457, 0
      %v2913 = vsel %vm340, %v2458, 0
      %v2916 = vsel %vm340, %v2459, 0
      %v2919 = vsel %vm340, %v2460, 0
      %v2922 = vsel %vm340, %v2461, 0
      %v2925 = vsel %vm340, %v2462, 0
      %v2928 = vsel %vm340, %v2463, 0
      %v2931 = vsel %vm340, %v2464, 0
      %2933 = vmatprep.subr.bf16.mxu0 0
      %2934 = vmatpush1.bf16.msra.mxu0 %v2837
      %2935 = vmatprep.subr.bf16.mxu0 0
      %2936 = vmatpush1.bf16.msra.mxu0 %v2838
      %2937 = vmatprep.subr.bf16.mxu0 0
      %2938 = vmatpush1.bf16.msra.mxu0 %v2839
      %2939 = vmatprep.subr.bf16.mxu0 0
      %2940 = vmatpush1.bf16.msra.mxu0 %v2840
      %2941 = vmatprep.subr.bf16.mxu0 0
      %2942 = vmatpush1.bf16.msra.mxu0 %v2841
      %2943 = vmatprep.subr.bf16.mxu0 0
      %2944 = vmatpush1.bf16.msra.mxu0 %v2842
      %2945 = vmatprep.subr.bf16.mxu0 0
      %2946 = vmatpush1.bf16.msra.mxu0 %v2843
      %2947 = vmatprep.subr.bf16.mxu0 0
      %2948 = vmatpush1.bf16.msra.mxu0 %v2844
      %2949 = vmatprep.subr.bf16.mxu0 0
      %2950 = vmatpush1.bf16.msra.mxu0 %v2845
      %2951 = vmatprep.subr.bf16.mxu0 0
      %2952 = vmatpush1.bf16.msra.mxu0 %v2846
      %2953 = vmatprep.subr.bf16.mxu0 0
      %2954 = vmatpush1.bf16.msra.mxu0 %v2847
      %2955 = vmatprep.subr.bf16.mxu0 0
      %2956 = vmatpush1.bf16.msra.mxu0 %v2848
      %2957 = vmatprep.subr.bf16.mxu0 0
      %2958 = vmatpush1.bf16.msra.mxu0 %v2849
      %2959 = vmatprep.subr.bf16.mxu0 0
      %2960 = vmatpush1.bf16.msra.mxu0 %v2850
      %2961 = vmatprep.subr.bf16.mxu0 0
      %2962 = vmatpush1.bf16.msra.mxu0 %v2851
      %2963 = vmatprep.subr.bf16.mxu0 0
      %2964 = vmatpush1.bf16.msra.mxu0 %v2852
      %2965 = vmatprep.mubr.bf16.mxu0 %v2595
      %2966 = vmatmul.mubr.bf16.gmra.mrb[0].mxu0 %v2563
      %v2967 = vpop.f32.mrb[0].mxu0
      %v2968 = vadd.f32 %v2692, %v2967
      %v2969 = vpop.f32.mrb[0].mxu0
      %v2970 = vpop.f32.mrb[0].mxu0
      %v2971 = vadd.f32 %v2692, %v2970
      %v2972 = vpop.f32.mrb[0].mxu0
      %2973 = vmatprep.mubr.bf16.mxu0 %v2599
      %2974 = vmatmul.mubr.bf16.gmra.mrb[0].mxu0 %v2567
      %v2975 = vpop.f32.mrb[0].mxu0
      %v2976 = vadd.f32 %v2692, %v2975
      %v2977 = vpop.f32.mrb[0].mxu0
      %v2978 = vpop.f32.mrb[0].mxu0
      %v2979 = vadd.f32 %v2692, %v2978
      %v2980 = vpop.f32.mrb[0].mxu0
      %2981 = vmatprep.mubr.bf16.mxu0 %v2603
      %2982 = vmatmul.mubr.bf16.gmra.mrb[0].mxu0 %v2571
      %v2983 = vpop.f32.mrb[0].mxu0
      %v2984 = vadd.f32 %v2692, %v2983
      %v2985 = vpop.f32.mrb[0].mxu0
      %v2986 = vpop.f32.mrb[0].mxu0
      %v2987 = vadd.f32 %v2692, %v2986
      %v2988 = vpop.f32.mrb[0].mxu0
      %2989 = vmatprep.mubr.bf16.mxu0 %v2607
      %2990 = vmatmul.mubr.bf16.gmra.mrb[0].mxu0 %v2575
      %v2991 = vpop.f32.mrb[0].mxu0
      %v2992 = vadd.f32 %v2692, %v2991
      %v2993 = vpop.f32.mrb[0].mxu0
      %v2994 = vpop.f32.mrb[0].mxu0
      %v2995 = vadd.f32 %v2692, %v2994
      %v2996 = vpop.f32.mrb[0].mxu0
      %2997 = vmatprep.mubr.bf16.mxu0 %v2611
      %2998 = vmatmul.mubr.bf16.gmra.mrb[0].mxu0 %v2579
      %v2999 = vpop.f32.mrb[0].mxu0
      %v3000 = vadd.f32 %v2692, %v2999
      %v3001 = vpop.f32.mrb[0].mxu0
      %v3002 = vpop.f32.mrb[0].mxu0
      %v3003 = vadd.f32 %v2692, %v3002
      %v3004 = vpop.f32.mrb[0].mxu0
      %3005 = vmatprep.mubr.bf16.mxu0 %v2615
      %3006 = vmatmul.mubr.bf16.gmra.mrb[0].mxu0 %v2583
      %v3007 = vpop.f32.mrb[0].mxu0
      %v3008 = vadd.f32 %v2692, %v3007
      %v3009 = vpop.f32.mrb[0].mxu0
      %v3010 = vpop.f32.mrb[0].mxu0
      %v3011 = vadd.f32 %v2692, %v3010
      %v3012 = vpop.f32.mrb[0].mxu0
      %3013 = vmatprep.mubr.bf16.mxu0 %v2619
      %3014 = vmatmul.mubr.bf16.gmra.mrb[0].mxu0 %v2587
      %v3015 = vpop.f32.mrb[0].mxu0
      %v3016 = vadd.f32 %v2692, %v3015
      %v3017 = vpop.f32.mrb[0].mxu0
      %v3018 = vpop.f32.mrb[0].mxu0
      %v3019 = vadd.f32 %v2692, %v3018
      %v3020 = vpop.f32.mrb[0].mxu0
      %3021 = vmatprep.mubr.bf16.mxu0 %v2623
      %3022 = vmatmul.mubr.bf16.gmra.mrb[0].mxu0 %v2591
      %v3023 = vpop.f32.mrb[0].mxu0
      %v3024 = vadd.f32 %v2692, %v3023
      %v3025 = vpop.f32.mrb[0].mxu0
      %v3026 = vpop.f32.mrb[0].mxu0
      %v3027 = vadd.f32 %v2692, %v3026
      %v3028 = vpop.f32.mrb[0].mxu0
      %3029 = vdwg.mxu0
      %3030 = vmatprep.subr.bf16.mxu0 0
      %3031 = vmatpush1.bf16.msra.mxu0 %v2853
      %3032 = vmatprep.subr.bf16.mxu0 0
      %3033 = vmatpush1.bf16.msra.mxu0 %v2854
      %3034 = vmatprep.subr.bf16.mxu0 0
      %3035 = vmatpush1.bf16.msra.mxu0 %v2855
      %3036 = vmatprep.subr.bf16.mxu0 0
      %3037 = vmatpush1.bf16.msra.mxu0 %v2856
      %3038 = vmatprep.subr.bf16.mxu0 0
      %3039 = vmatpush1.bf16.msra.mxu0 %v2857
      %3040 = vmatprep.subr.bf16.mxu0 0
      %3041 = vmatpush1.bf16.msra.mxu0 %v2858
      %3042 = vmatprep.subr.bf16.mxu0 0
      %3043 = vmatpush1.bf16.msra.mxu0 %v2859
      %3044 = vmatprep.subr.bf16.mxu0 0
      %3045 = vmatpush1.bf16.msra.mxu0 %v2860
      %3046 = vmatprep.subr.bf16.mxu0 0
      %3047 = vmatpush1.bf16.msra.mxu0 %v2861
      %3048 = vmatprep.subr.bf16.mxu0 0
      %3049 = vmatpush1.bf16.msra.mxu0 %v2862
      %3050 = vmatprep.subr.bf16.mxu0 0
      %3051 = vmatpush1.bf16.msra.mxu0 %v2863
      %3052 = vmatprep.subr.bf16.mxu0 0
      %3053 = vmatpush1.bf16.msra.mxu0 %v2864
      %3054 = vmatprep.subr.bf16.mxu0 0
      %3055 = vmatpush1.bf16.msra.mxu0 %v2865
      %3056 = vmatprep.subr.bf16.mxu0 0
      %3057 = vmatpush1.bf16.msra.mxu0 %v2866
      %3058 = vmatprep.subr.bf16.mxu0 0
      %3059 = vmatpush1.bf16.msra.mxu0 %v2867
      %3060 = vmatprep.subr.bf16.mxu0 0
      %3061 = vmatpush1.bf16.msra.mxu0 %v2868
      %3062 = vmatprep.mubr.bf16.mxu0 %v2659
      %3063 = vmatmul.mubr.bf16.gmra.mrb[0].mxu0 %v2627
      %v3064 = vpop.f32.mrb[0].mxu0
      %v3065 = vadd.f32 %v2968, %v3064
      %v3066 = vpop.f32.mrb[0].mxu0
      %v3067 = vpop.f32.mrb[0].mxu0
      %v3068 = vadd.f32 %v2971, %v3067
      %v3069 = vpop.f32.mrb[0].mxu0
      %3070 = vmatprep.mubr.bf16.mxu0 %v2663
      %3071 = vmatmul.mubr.bf16.gmra.mrb[0].mxu0 %v2631
      %v3072 = vpop.f32.mrb[0].mxu0
      %v3073 = vadd.f32 %v2976, %v3072
      %v3074 = vpop.f32.mrb[0].mxu0
      %v3075 = vpop.f32.mrb[0].mxu0
      %v3076 = vadd.f32 %v2979, %v3075
      %v3077 = vpop.f32.mrb[0].mxu0
      %3078 = vmatprep.mubr.bf16.mxu0 %v2667
      %3079 = vmatmul.mubr.bf16.gmra.mrb[0].mxu0 %v2635
      %v3080 = vpop.f32.mrb[0].mxu0
      %v3081 = vadd.f32 %v2984, %v3080
      %v3082 = vpop.f32.mrb[0].mxu0
      %v3083 = vpop.f32.mrb[0].mxu0
      %v3084 = vadd.f32 %v2987, %v3083
      %v3085 = vpop.f32.mrb[0].mxu0
      %3086 = vmatprep.mubr.bf16.mxu0 %v2671
      %3087 = vmatmul.mubr.bf16.gmra.mrb[0].mxu0 %v2639
      %v3088 = vpop.f32.mrb[0].mxu0
      %v3089 = vadd.f32 %v2992, %v3088
      %v3090 = vpop.f32.mrb[0].mxu0
      %v3091 = vpop.f32.mrb[0].mxu0
      %v3092 = vadd.f32 %v2995, %v3091
      %v3093 = vpop.f32.mrb[0].mxu0
      %3094 = vmatprep.mubr.bf16.mxu0 %v2675
      %3095 = vmatmul.mubr.bf16.gmra.mrb[0].mxu0 %v2643
      %v3096 = vpop.f32.mrb[0].mxu0
      %v3097 = vadd.f32 %v3000, %v3096
      %v3098 = vpop.f32.mrb[0].mxu0
      %v3099 = vpop.f32.mrb[0].mxu0
      %v3100 = vadd.f32 %v3003, %v3099
      %v3101 = vpop.f32.mrb[0].mxu0
      %3102 = vmatprep.mubr.bf16.mxu0 %v2679
      %3103 = vmatmul.mubr.bf16.gmra.mrb[0].mxu0 %v2647
      %v3104 = vpop.f32.mrb[0].mxu0
      %v3105 = vadd.f32 %v3008, %v3104
      %v3106 = vpop.f32.mrb[0].mxu0
      %v3107 = vpop.f32.mrb[0].mxu0
      %v3108 = vadd.f32 %v3011, %v3107
      %v3109 = vpop.f32.mrb[0].mxu0
      %3110 = vmatprep.mubr.bf16.mxu0 %v2683
      %3111 = vmatmul.mubr.bf16.gmra.mrb[0].mxu0 %v2651
      %v3112 = vpop.f32.mrb[0].mxu0
      %v3113 = vadd.f32 %v3016, %v3112
      %v3114 = vpop.f32.mrb[0].mxu0
      %v3115 = vpop.f32.mrb[0].mxu0
      %v3116 = vadd.f32 %v3019, %v3115
      %v3117 = vpop.f32.mrb[0].mxu0
      %3118 = vmatprep.mubr.bf16.mxu0 %v2687
      %3119 = vmatmul.mubr.bf16.gmra.mrb[0].mxu0 %v2655
      %v3120 = vpop.f32.mrb[0].mxu0
      %v3121 = vadd.f32 %v3024, %v3120
      %v3122 = vpop.f32.mrb[0].mxu0
      %v3123 = vpop.f32.mrb[0].mxu0
      %v3124 = vadd.f32 %v3027, %v3123
      %v3125 = vpop.f32.mrb[0].mxu0
      %3126 = vdwg.mxu0
      %3127 = vmatprep.subr.bf16.mxu0 0
      %3128 = vmatpush1.bf16.msra.mxu0 %v2869
      %3129 = vmatprep.subr.bf16.mxu0 0
      %3130 = vmatpush1.bf16.msra.mxu0 %v2870
      %3131 = vmatprep.subr.bf16.mxu0 0
      %3132 = vmatpush1.bf16.msra.mxu0 %v2871
      %3133 = vmatprep.subr.bf16.mxu0 0
      %3134 = vmatpush1.bf16.msra.mxu0 %v2872
      %3135 = vmatprep.subr.bf16.mxu0 0
      %3136 = vmatpush1.bf16.msra.mxu0 0
      %3137 = vmatprep.subr.bf16.mxu0 0
      %3138 = vmatpush1.bf16.msra.mxu0 0
      %3139 = vmatprep.subr.bf16.mxu0 0
      %3140 = vmatpush1.bf16.msra.mxu0 0
      %3141 = vmatprep.subr.bf16.mxu0 0
      %3142 = vmatpush1.bf16.msra.mxu0 0
      %3143 = vmatprep.subr.bf16.mxu0 0
      %3144 = vmatpush1.bf16.msra.mxu0 0
      %3145 = vmatprep.subr.bf16.mxu0 0
      %3146 = vmatpush1.bf16.msra.mxu0 0
      %3147 = vmatprep.subr.bf16.mxu0 0
      %3148 = vmatpush1.bf16.msra.mxu0 0
      %3149 = vmatprep.subr.bf16.mxu0 0
      %3150 = vmatpush1.bf16.msra.mxu0 0
      %3151 = vmatprep.subr.bf16.mxu0 0
      %3152 = vmatpush1.bf16.msra.mxu0 0
      %3153 = vmatprep.subr.bf16.mxu0 0
      %3154 = vmatpush1.bf16.msra.mxu0 0
      %3155 = vmatprep.subr.bf16.mxu0 0
      %3156 = vmatpush1.bf16.msra.mxu0 0
      %3157 = vmatprep.subr.bf16.mxu0 0
      %3158 = vmatpush1.bf16.msra.mxu0 0
      %3159 = vmatprep.mubr.bf16.mxu0 0
      %3160 = vmatmul.mubr.bf16.gmra.mrb[0].mxu0 %v2910
      %v3161 = vpop.f32.mrb[0].mxu0
      %v3162 = vadd.f32 %v3065, %v3161
      %v3163 = vpop.f32.mrb[0].mxu0
      %v3164 = vpop.f32.mrb[0].mxu0
      %v3165 = vadd.f32 %v3068, %v3164
      %v3166 = vpop.f32.mrb[0].mxu0
      %3167 = vmatprep.mubr.bf16.mxu0 0
      %3168 = vmatmul.mubr.bf16.gmra.mrb[0].mxu0 %v2913
      %v3169 = vpop.f32.mrb[0].mxu0
      %v3170 = vadd.f32 %v3073, %v3169
      %v3171 = vpop.f32.mrb[0].mxu0
      %v3172 = vpop.f32.mrb[0].mxu0
      %v3173 = vadd.f32 %v3076, %v3172
      %v3174 = vpop.f32.mrb[0].mxu0
      %3175 = vmatprep.mubr.bf16.mxu0 0
      %3176 = vmatmul.mubr.bf16.gmra.mrb[0].mxu0 %v2916
      %v3177 = vpop.f32.mrb[0].mxu0
      %v3178 = vadd.f32 %v3081, %v3177
      %v3179 = vpop.f32.mrb[0].mxu0
      %v3180 = vpop.f32.mrb[0].mxu0
      %v3181 = vadd.f32 %v3084, %v3180
      %v3182 = vpop.f32.mrb[0].mxu0
      %3183 = vmatprep.mubr.bf16.mxu0 0
      %3184 = vmatmul.mubr.bf16.gmra.mrb[0].mxu0 %v2919
      %v3185 = vpop.f32.mrb[0].mxu0
      %v3186 = vadd.f32 %v3089, %v3185
      %v3187 = vpop.f32.mrb[0].mxu0
      %v3188 = vpop.f32.mrb[0].mxu0
      %v3189 = vadd.f32 %v3092, %v3188
      %v3190 = vpop.f32.mrb[0].mxu0
      %3191 = vmatprep.mubr.bf16.mxu0 0
      %3192 = vmatmul.mubr.bf16.gmra.mrb[0].mxu0 %v2922
      %v3193 = vpop.f32.mrb[0].mxu0
      %v3194 = vadd.f32 %v3097, %v3193
      %v3195 = vpop.f32.mrb[0].mxu0
      %v3196 = vpop.f32.mrb[0].mxu0
      %v3197 = vadd.f32 %v3100, %v3196
      %v3198 = vpop.f32.mrb[0].mxu0
      %3199 = vmatprep.mubr.bf16.mxu0 0
      %3200 = vmatmul.mubr.bf16.gmra.mrb[0].mxu0 %v2925
      %v3201 = vpop.f32.mrb[0].mxu0
      %v3202 = vadd.f32 %v3105, %v3201
      %v3203 = vpop.f32.mrb[0].mxu0
      %v3204 = vpop.f32.mrb[0].mxu0
      %v3205 = vadd.f32 %v3108, %v3204
      %v3206 = vpop.f32.mrb[0].mxu0
      %3207 = vmatprep.mubr.bf16.mxu0 0
      %3208 = vmatmul.mubr.bf16.gmra.mrb[0].mxu0 %v2928
      %v3209 = vpop.f32.mrb[0].mxu0
      %v3210 = vadd.f32 %v3113, %v3209
      %v3211 = vpop.f32.mrb[0].mxu0
      %v3212 = vpop.f32.mrb[0].mxu0
      %v3213 = vadd.f32 %v3116, %v3212
      %v3214 = vpop.f32.mrb[0].mxu0
      %3215 = vmatprep.mubr.bf16.mxu0 0
      %3216 = vmatmul.mubr.bf16.gmra.mrb[0].mxu0 %v2931
      %v3217 = vpop.f32.mrb[0].mxu0
      %v3218 = vadd.f32 %v3121, %v3217
      %v3219 = vpop.f32.mrb[0].mxu0
      %v3220 = vpop.f32.mrb[0].mxu0
      %v3221 = vadd.f32 %v3124, %v3220
      %v3222 = vpop.f32.mrb[0].mxu0
      %3223 = vdwg.mxu0
      %v3224 = vadd.f32 %v3162, %v1059
      %v3225 = vadd.f32 %v3165, %v1060
      %v3226 = vadd.f32 %v3170, %v1061
      %v3227 = vadd.f32 %v3173, %v1062
      %v3228 = vadd.f32 %v3178, %v1063
      %v3229 = vadd.f32 %v3181, %v1064
      %v3230 = vadd.f32 %v3186, %v1065
      %v3231 = vadd.f32 %v3189, %v1066
      %v3232 = vadd.f32 %v3194, %v1067
      %v3233 = vadd.f32 %v3197, %v1068
      %v3234 = vadd.f32 %v3202, %v1069
      %v3235 = vadd.f32 %v3205, %v1070
      %v3236 = vadd.f32 %v3210, %v1071
      %v3237 = vadd.f32 %v3213, %v1072
      %v3238 = vadd.f32 %v3218, %v1073
      %v3239 = vadd.f32 %v3221, %v1074
      %v3240 = vmax.f32 %v3224, 0.0
      %v3241 = vmax.f32 %v3225, 0.0
      %v3242 = vmax.f32 %v3226, 0.0
      %v3243 = vmax.f32 %v3227, 0.0
      %v3244 = vmax.f32 %v3228, 0.0
      %v3245 = vmax.f32 %v3229, 0.0
      %v3246 = vmax.f32 %v3230, 0.0
      %v3247 = vmax.f32 %v3231, 0.0
      %v3248 = vmax.f32 %v3232, 0.0
      %v3249 = vmax.f32 %v3233, 0.0
      %v3250 = vmax.f32 %v3234, 0.0
      %v3251 = vmax.f32 %v3235, 0.0
      %v3252 = vmax.f32 %v3236, 0.0
      %v3253 = vmax.f32 %v3237, 0.0
      %v3254 = vmax.f32 %v3238, 0.0
      %v3255 = vmax.f32 %v3239, 0.0
      %3256 = vst.msk [vmem:[%s1075 + $0x1] sm:$0xff] %vm340, %v3240
      %3257 = vst.msk [vmem:[%s1075 + $0x9] sm:$0xff] %vm340, %v3241
      %3258 = vst.msk [vmem:[%s1075 + $0x19] sm:$0xff] %vm340, %v3242
      %3259 = vst.msk [vmem:[%s1075 + $0x21] sm:$0xff] %vm340, %v3243
      %3260 = vst.msk [vmem:[%s1075 + $0x31] sm:$0xff] %vm340, %v3244
      %3261 = vst.msk [vmem:[%s1075 + $0x39] sm:$0xff] %vm340, %v3245
      %3262 = vst.msk [vmem:[%s1075 + $0x49] sm:$0xff] %vm340, %v3246
      %3263 = vst.msk [vmem:[%s1075 + $0x51] sm:$0xff] %vm340, %v3247
      %3264 = vst.msk [vmem:[%s1075 + $0x61] sm:$0xff] %vm340, %v3248
      %3265 = vst.msk [vmem:[%s1075 + $0x69] sm:$0xff] %vm340, %v3249
      %3266 = vst.msk [vmem:[%s1075 + $0x79] sm:$0xff] %vm340, %v3250
      %3267 = vst.msk [vmem:[%s1075 + $0x81] sm:$0xff] %vm340, %v3251
      %3268 = vst.msk [vmem:[%s1075 + $0x91] sm:$0xff] %vm340, %v3252
      %3269 = vst.msk [vmem:[%s1075 + $0x99] sm:$0xff] %vm340, %v3253
      %3270 = vst.msk [vmem:[%s1075 + $0xa9] sm:$0xff] %vm340, %v3254
      %3271 = vst.msk [vmem:[%s1075 + $0xb1] sm:$0xff] %vm340, %v3255
      %s3272 = scalar_lea.vmem %s3, 576
      %v3273 = vld [vmem:[%s3272] sm:$0xf]
      %v3274 = vld [vmem:[%s3272 + $0x4] sm:$0xf]
      %v3275 = vld [vmem:[%s3272 + $0x8] sm:$0xf]
      %v3276 = vld [vmem:[%s3272 + $0xc] sm:$0xf]
      %v3277 = vld [vmem:[%s3272 + $0x10] sm:$0xf]
      %v3278 = vld [vmem:[%s3272 + $0x14] sm:$0xf]
      %v3279 = vld [vmem:[%s3272 + $0x18] sm:$0xf]
      %v3280 = vld [vmem:[%s3272 + $0x1c] sm:$0xf]
      %v3281 = vld [vmem:[%s3272 + $0x20] sm:$0xf]
      %v3282 = vld [vmem:[%s3272 + $0x24] sm:$0xf]
      %v3283 = vld [vmem:[%s3272 + $0x28] sm:$0xf]
      %v3284 = vld [vmem:[%s3272 + $0x2c] sm:$0xf]
      %v3285 = vld [vmem:[%s3272 + $0x30] sm:$0xf]
      %v3286 = vld [vmem:[%s3272 + $0x34] sm:$0xf]
      %v3287 = vld [vmem:[%s3272 + $0x38] sm:$0xf]
      %v3288 = vld [vmem:[%s3272 + $0x3c] sm:$0xf]
      %v3289 = vld [vmem:[%s3272 + $0x40] sm:$0xf]
      %v3290 = vld [vmem:[%s3272 + $0x44] sm:$0xf]
      %v3291 = vld [vmem:[%s3272 + $0x48] sm:$0xf]
      %v3292 = vld [vmem:[%s3272 + $0x4c] sm:$0xf]
      %v3293 = vld [vmem:[%s3272 + $0x50] sm:$0xf]
      %v3294 = vld [vmem:[%s3272 + $0x54] sm:$0xf]
      %v3295 = vld [vmem:[%s3272 + $0x58] sm:$0xf]
      %v3296 = vld [vmem:[%s3272 + $0x5c] sm:$0xf]
      %v3297 = vld [vmem:[%s3272 + $0x60] sm:$0xf]
      %v3298 = vld [vmem:[%s3272 + $0x64] sm:$0xf]
      %v3299 = vld [vmem:[%s3272 + $0x68] sm:$0xf]
      %v3300 = vld [vmem:[%s3272 + $0x6c] sm:$0xf]
      %v3301 = vld [vmem:[%s3272 + $0x70] sm:$0xf]
      %v3302 = vld [vmem:[%s3272 + $0x74] sm:$0xf]
      %v3303 = vld [vmem:[%s3272 + $0x78] sm:$0xf]
      %v3304 = vld [vmem:[%s3272 + $0x7c] sm:$0xf]
      %v3305 = vld [vmem:[%s3272 + $0x80] sm:$0xf]
      %v3306 = vld [vmem:[%s3272 + $0x84] sm:$0xf]
      %v3307 = vld [vmem:[%s3272 + $0x88] sm:$0xf]
      %v3308 = vld [vmem:[%s3272 + $0x8c] sm:$0xf]
      %v3309 = vld [vmem:[%s3272 + $0x90] sm:$0xf]
      %v3310 = vld [vmem:[%s3272 + $0x94] sm:$0xf]
      %v3311 = vld [vmem:[%s3272 + $0x98] sm:$0xf]
      %v3312 = vld [vmem:[%s3272 + $0x9c] sm:$0xf]
      %v3313 = vld [vmem:[%s3272 + $0xa0] sm:$0xf]
      %v3314 = vld [vmem:[%s3272 + $0xa4] sm:$0xf]
      %v3315 = vld [vmem:[%s3272 + $0xa8] sm:$0xf]
      %v3316 = vld [vmem:[%s3272 + $0xac] sm:$0xf]
      %v3317 = vld [vmem:[%s3272 + $0xb0] sm:$0xf]
      %v3318 = vld [vmem:[%s3272 + $0xb4] sm:$0xf]
      %v3319 = vld [vmem:[%s3272 + $0xb8] sm:$0xf]
      %v3320 = vld [vmem:[%s3272 + $0xbc] sm:$0xf]
      %v3321 = vld [vmem:[%s3272 + $0xc0] sm:$0xf]
      %v3322 = vld [vmem:[%s3272 + $0xc4] sm:$0xf]
      %v3323 = vld [vmem:[%s3272 + $0xc8] sm:$0xf]
      %v3324 = vld [vmem:[%s3272 + $0xcc] sm:$0xf]
      %v3325 = vld [vmem:[%s3272 + $0xd0] sm:$0xf]
      %v3326 = vld [vmem:[%s3272 + $0xd4] sm:$0xf]
      %v3327 = vld [vmem:[%s3272 + $0xd8] sm:$0xf]
      %v3328 = vld [vmem:[%s3272 + $0xdc] sm:$0xf]
      %v3329 = vld [vmem:[%s3272 + $0xe0] sm:$0xf]
      %v3330 = vld [vmem:[%s3272 + $0xe4] sm:$0xf]
      %v3331 = vld [vmem:[%s3272 + $0xe8] sm:$0xf]
      %v3332 = vld [vmem:[%s3272 + $0xec] sm:$0xf]
      %v3333 = vld [vmem:[%s3272 + $0xf0] sm:$0xf]
      %v3334 = vld [vmem:[%s3272 + $0xf4] sm:$0xf]
      %v3335 = vld [vmem:[%s3272 + $0xf8] sm:$0xf]
      %v3336 = vld [vmem:[%s3272 + $0xfc] sm:$0xf]
      %v3337 = vld [vmem:[%s3272 + $0x100] sm:$0xf]
      %v3338 = vld [vmem:[%s3272 + $0x104] sm:$0xf]
      %v3339 = vld [vmem:[%s3272 + $0x108] sm:$0xf]
      %v3340 = vld [vmem:[%s3272 + $0x10c] sm:$0xf]
      %v3341 = vld [vmem:[%s3272 + $0x110] sm:$0xf]
      %v3342 = vld [vmem:[%s3272 + $0x114] sm:$0xf]
      %v3343 = vld [vmem:[%s3272 + $0x118] sm:$0xf]
      %v3344 = vld [vmem:[%s3272 + $0x11c] sm:$0xf]
      %v3345 = vld [vmem:[%s5 + $0x5] sm:$0x1]
      %v3346 = vld [vmem:[#allocation2] sm:$0xff]
      %v3347 = vld [vmem:[#allocation2 + $0x8] sm:$0xff]
      %v3348 = vld [vmem:[#allocation2 + $0x18] sm:$0xff]
      %v3349 = vld [vmem:[#allocation2 + $0x20] sm:$0xff]
      %v3350 = vld [vmem:[#allocation2 + $0x30] sm:$0xff]
      %v3351 = vld [vmem:[#allocation2 + $0x38] sm:$0xff]
      %v3352 = vld [vmem:[#allocation2 + $0x48] sm:$0xff]
      %v3353 = vld [vmem:[#allocation2 + $0x50] sm:$0xff]
      %v3354 = vld [vmem:[#allocation2 + $0x60] sm:$0xff]
      %v3355 = vld [vmem:[#allocation2 + $0x68] sm:$0xff]
      %v3356 = vld [vmem:[#allocation2 + $0x78] sm:$0xff]
      %v3357 = vld [vmem:[#allocation2 + $0x80] sm:$0xff]
      %v3358 = vld [vmem:[#allocation2 + $0x90] sm:$0xff]
      %v3359 = vld [vmem:[#allocation2 + $0x98] sm:$0xff]
      %v3360 = vld [vmem:[#allocation2 + $0xa8] sm:$0xff]
      %v3361 = vld [vmem:[#allocation2 + $0xb0] sm:$0xff]
      %v3362 = vpack.c.bf16 %v3347, %v3346
      %v3363 = vpack.c.bf16 %v3349, %v3348
      %v3364 = vpack.c.bf16 %v3351, %v3350
      %v3365 = vpack.c.bf16 %v3353, %v3352
      %v3366 = vpack.c.bf16 %v3355, %v3354
      %v3367 = vpack.c.bf16 %v3357, %v3356
      %v3368 = vpack.c.bf16 %v3359, %v3358
      %v3369 = vpack.c.bf16 %v3361, %v3360
      %v3370 = vld [vmem:[#allocation2 + $0x1] sm:$0xff]
      %v3371 = vld [vmem:[#allocation2 + $0x9] sm:$0xff]
      %v3372 = vld [vmem:[#allocation2 + $0x19] sm:$0xff]
      %v3373 = vld [vmem:[#allocation2 + $0x21] sm:$0xff]
      %v3374 = vld [vmem:[#allocation2 + $0x31] sm:$0xff]
      %v3375 = vld [vmem:[#allocation2 + $0x39] sm:$0xff]
      %v3376 = vld [vmem:[#allocation2 + $0x49] sm:$0xff]
      %v3377 = vld [vmem:[#allocation2 + $0x51] sm:$0xff]
      %v3378 = vld [vmem:[#allocation2 + $0x61] sm:$0xff]
      %v3379 = vld [vmem:[#allocation2 + $0x69] sm:$0xff]
      %v3380 = vld [vmem:[#allocation2 + $0x79] sm:$0xff]
      %v3381 = vld [vmem:[#allocation2 + $0x81] sm:$0xff]
      %v3382 = vld [vmem:[#allocation2 + $0x91] sm:$0xff]
      %v3383 = vld [vmem:[#allocation2 + $0x99] sm:$0xff]
      %v3384 = vld [vmem:[#allocation2 + $0xa9] sm:$0xff]
      %v3385 = vld [vmem:[#allocation2 + $0xb1] sm:$0xff]
      %v3386 = vpack.c.bf16 %v3371, %v3370
      %v3387 = vpack.c.bf16 %v3373, %v3372
      %v3388 = vpack.c.bf16 %v3375, %v3374
      %v3389 = vpack.c.bf16 %v3377, %v3376
      %v3390 = vpack.c.bf16 %v3379, %v3378
      %v3391 = vpack.c.bf16 %v3381, %v3380
      %v3392 = vpack.c.bf16 %v3383, %v3382
      %v3393 = vpack.c.bf16 %v3385, %v3384
      %v3394 = vld [vmem:[#allocation2 + $0x2] sm:$0xff]
      %v3395 = vld [vmem:[#allocation2 + $0xa] sm:$0xff]
      %v3396 = vld [vmem:[#allocation2 + $0x1a] sm:$0xff]
      %v3397 = vld [vmem:[#allocation2 + $0x22] sm:$0xff]
      %v3398 = vld [vmem:[#allocation2 + $0x32] sm:$0xff]
      %v3399 = vld [vmem:[#allocation2 + $0x3a] sm:$0xff]
      %v3400 = vld [vmem:[#allocation2 + $0x4a] sm:$0xff]
      %v3401 = vld [vmem:[#allocation2 + $0x52] sm:$0xff]
      %v3402 = vld [vmem:[#allocation2 + $0x62] sm:$0xff]
      %v3403 = vld [vmem:[#allocation2 + $0x6a] sm:$0xff]
      %v3404 = vld [vmem:[#allocation2 + $0x7a] sm:$0xff]
      %v3405 = vld [vmem:[#allocation2 + $0x82] sm:$0xff]
      %v3406 = vld [vmem:[#allocation2 + $0x92] sm:$0xff]
      %v3407 = vld [vmem:[#allocation2 + $0x9a] sm:$0xff]
      %v3408 = vld [vmem:[#allocation2 + $0xaa] sm:$0xff]
      %v3409 = vld [vmem:[#allocation2 + $0xb2] sm:$0xff]
      %v3410 = vpack.c.bf16 %v3395, %v3394
      %v3411 = vpack.c.bf16 %v3397, %v3396
      %v3412 = vpack.c.bf16 %v3399, %v3398
      %v3413 = vpack.c.bf16 %v3401, %v3400
      %v3414 = vpack.c.bf16 %v3403, %v3402
      %v3415 = vpack.c.bf16 %v3405, %v3404
      %v3416 = vpack.c.bf16 %v3407, %v3406
      %v3417 = vpack.c.bf16 %v3409, %v3408
      %v3418 = vld [vmem:[%s1075] sm:$0xff]
      %v3419 = vld [vmem:[%s1075 + $0x8] sm:$0xff]
      %v3420 = vld [vmem:[%s1075 + $0x18] sm:$0xff]
      %v3421 = vld [vmem:[%s1075 + $0x20] sm:$0xff]
      %v3422 = vld [vmem:[%s1075 + $0x30] sm:$0xff]
      %v3423 = vld [vmem:[%s1075 + $0x38] sm:$0xff]
      %v3424 = vld [vmem:[%s1075 + $0x48] sm:$0xff]
      %v3425 = vld [vmem:[%s1075 + $0x50] sm:$0xff]
      %v3426 = vld [vmem:[%s1075 + $0x60] sm:$0xff]
      %v3427 = vld [vmem:[%s1075 + $0x68] sm:$0xff]
      %v3428 = vld [vmem:[%s1075 + $0x78] sm:$0xff]
      %v3429 = vld [vmem:[%s1075 + $0x80] sm:$0xff]
      %v3430 = vld [vmem:[%s1075 + $0x90] sm:$0xff]
      %v3431 = vld [vmem:[%s1075 + $0x98] sm:$0xff]
      %v3432 = vld [vmem:[%s1075 + $0xa8] sm:$0xff]
      %v3433 = vld [vmem:[%s1075 + $0xb0] sm:$0xff]
      %v3434 = vpack.c.bf16 %v3419, %v3418
      %v3435 = vpack.c.bf16 %v3421, %v3420
      %v3436 = vpack.c.bf16 %v3423, %v3422
      %v3437 = vpack.c.bf16 %v3425, %v3424
      %v3438 = vpack.c.bf16 %v3427, %v3426
      %v3439 = vpack.c.bf16 %v3429, %v3428
      %v3440 = vpack.c.bf16 %v3431, %v3430
      %v3441 = vpack.c.bf16 %v3433, %v3432
      %v3442 = vld [vmem:[%s1075 + $0x1] sm:$0xff]
      %v3443 = vld [vmem:[%s1075 + $0x9] sm:$0xff]
      %v3444 = vld [vmem:[%s1075 + $0x19] sm:$0xff]
      %v3445 = vld [vmem:[%s1075 + $0x21] sm:$0xff]
      %v3446 = vld [vmem:[%s1075 + $0x31] sm:$0xff]
      %v3447 = vld [vmem:[%s1075 + $0x39] sm:$0xff]
      %v3448 = vld [vmem:[%s1075 + $0x49] sm:$0xff]
      %v3449 = vld [vmem:[%s1075 + $0x51] sm:$0xff]
      %v3450 = vld [vmem:[%s1075 + $0x61] sm:$0xff]
      %v3451 = vld [vmem:[%s1075 + $0x69] sm:$0xff]
      %v3452 = vld [vmem:[%s1075 + $0x79] sm:$0xff]
      %v3453 = vld [vmem:[%s1075 + $0x81] sm:$0xff]
      %v3454 = vld [vmem:[%s1075 + $0x91] sm:$0xff]
      %v3455 = vld [vmem:[%s1075 + $0x99] sm:$0xff]
      %v3456 = vld [vmem:[%s1075 + $0xa9] sm:$0xff]
      %v3457 = vld [vmem:[%s1075 + $0xb1] sm:$0xff]
      %v3458 = vpack.c.bf16 %v3443, %v3442
      %v3459 = vpack.c.bf16 %v3445, %v3444
      %v3460 = vpack.c.bf16 %v3447, %v3446
      %v3461 = vpack.c.bf16 %v3449, %v3448
      %v3462 = vpack.c.bf16 %v3451, %v3450
      %v3463 = vpack.c.bf16 %v3453, %v3452
      %v3464 = vpack.c.bf16 %v3455, %v3454
      %v3465 = vpack.c.bf16 %v3457, %v3456
      %v3466 = vld [vmem:[%s1075 + $0x2] sm:$0xff]
      %v3467 = vld [vmem:[%s1075 + $0xa] sm:$0xff]
      %v3468 = vld [vmem:[%s1075 + $0x1a] sm:$0xff]
      %v3469 = vld [vmem:[%s1075 + $0x22] sm:$0xff]
      %v3470 = vld [vmem:[%s1075 + $0x32] sm:$0xff]
      %v3471 = vld [vmem:[%s1075 + $0x3a] sm:$0xff]
      %v3472 = vld [vmem:[%s1075 + $0x4a] sm:$0xff]
      %v3473 = vld [vmem:[%s1075 + $0x52] sm:$0xff]
      %v3474 = vld [vmem:[%s1075 + $0x62] sm:$0xff]
      %v3475 = vld [vmem:[%s1075 + $0x6a] sm:$0xff]
      %v3476 = vld [vmem:[%s1075 + $0x7a] sm:$0xff]
      %v3477 = vld [vmem:[%s1075 + $0x82] sm:$0xff]
      %v3478 = vld [vmem:[%s1075 + $0x92] sm:$0xff]
      %v3479 = vld [vmem:[%s1075 + $0x9a] sm:$0xff]
      %v3480 = vld [vmem:[%s1075 + $0xaa] sm:$0xff]
      %v3481 = vld [vmem:[%s1075 + $0xb2] sm:$0xff]
      %v3482 = vpack.c.bf16 %v3467, %v3466
      %v3483 = vpack.c.bf16 %v3469, %v3468
      %v3484 = vpack.c.bf16 %v3471, %v3470
      %v3485 = vpack.c.bf16 %v3473, %v3472
      %v3486 = vpack.c.bf16 %v3475, %v3474
      %v3487 = vpack.c.bf16 %v3477, %v3476
      %v3488 = vpack.c.bf16 %v3479, %v3478
      %v3489 = vpack.c.bf16 %v3481, %v3480
      %v3490 = vld [vmem:[%s1309] sm:$0xff]
      %v3491 = vld [vmem:[%s1309 + $0x8] sm:$0xff]
      %v3492 = vld [vmem:[%s1309 + $0x18] sm:$0xff]
      %v3493 = vld [vmem:[%s1309 + $0x20] sm:$0xff]
      %v3494 = vld [vmem:[%s1309 + $0x30] sm:$0xff]
      %v3495 = vld [vmem:[%s1309 + $0x38] sm:$0xff]
      %v3496 = vld [vmem:[%s1309 + $0x48] sm:$0xff]
      %v3497 = vld [vmem:[%s1309 + $0x50] sm:$0xff]
      %v3498 = vld [vmem:[%s1309 + $0x60] sm:$0xff]
      %v3499 = vld [vmem:[%s1309 + $0x68] sm:$0xff]
      %v3500 = vld [vmem:[%s1309 + $0x78] sm:$0xff]
      %v3501 = vld [vmem:[%s1309 + $0x80] sm:$0xff]
      %v3502 = vld [vmem:[%s1309 + $0x90] sm:$0xff]
      %v3503 = vld [vmem:[%s1309 + $0x98] sm:$0xff]
      %v3504 = vld [vmem:[%s1309 + $0xa8] sm:$0xff]
      %v3505 = vld [vmem:[%s1309 + $0xb0] sm:$0xff]
      %v3506 = vpack.c.bf16 %v3491, %v3490
      %v3507 = vpack.c.bf16 %v3493, %v3492
      %v3508 = vpack.c.bf16 %v3495, %v3494
      %v3509 = vpack.c.bf16 %v3497, %v3496
      %v3510 = vpack.c.bf16 %v3499, %v3498
      %v3511 = vpack.c.bf16 %v3501, %v3500
      %v3512 = vpack.c.bf16 %v3503, %v3502
      %v3513 = vpack.c.bf16 %v3505, %v3504
      %v3514 = vld [vmem:[%s1309 + $0x1] sm:$0xff]
      %v3515 = vld [vmem:[%s1309 + $0x9] sm:$0xff]
      %v3516 = vld [vmem:[%s1309 + $0x19] sm:$0xff]
      %v3517 = vld [vmem:[%s1309 + $0x21] sm:$0xff]
      %v3518 = vld [vmem:[%s1309 + $0x31] sm:$0xff]
      %v3519 = vld [vmem:[%s1309 + $0x39] sm:$0xff]
      %v3520 = vld [vmem:[%s1309 + $0x49] sm:$0xff]
      %v3521 = vld [vmem:[%s1309 + $0x51] sm:$0xff]
      %v3522 = vld [vmem:[%s1309 + $0x61] sm:$0xff]
      %v3523 = vld [vmem:[%s1309 + $0x69] sm:$0xff]
      %v3524 = vld [vmem:[%s1309 + $0x79] sm:$0xff]
      %v3525 = vld [vmem:[%s1309 + $0x81] sm:$0xff]
      %v3526 = vld [vmem:[%s1309 + $0x91] sm:$0xff]
      %v3527 = vld [vmem:[%s1309 + $0x99] sm:$0xff]
      %v3528 = vld [vmem:[%s1309 + $0xa9] sm:$0xff]
      %v3529 = vld [vmem:[%s1309 + $0xb1] sm:$0xff]
      %v3530 = vpack.c.bf16 %v3515, %v3514
      %v3531 = vpack.c.bf16 %v3517, %v3516
      %v3532 = vpack.c.bf16 %v3519, %v3518
      %v3533 = vpack.c.bf16 %v3521, %v3520
      %v3534 = vpack.c.bf16 %v3523, %v3522
      %v3535 = vpack.c.bf16 %v3525, %v3524
      %v3536 = vpack.c.bf16 %v3527, %v3526
      %v3537 = vpack.c.bf16 %v3529, %v3528
      %v3538 = vld [vmem:[%s1309 + $0x2] sm:$0xff]
      %v3539 = vld [vmem:[%s1309 + $0xa] sm:$0xff]
      %v3540 = vld [vmem:[%s1309 + $0x1a] sm:$0xff]
      %v3541 = vld [vmem:[%s1309 + $0x22] sm:$0xff]
      %v3542 = vld [vmem:[%s1309 + $0x32] sm:$0xff]
      %v3543 = vld [vmem:[%s1309 + $0x3a] sm:$0xff]
      %v3544 = vld [vmem:[%s1309 + $0x4a] sm:$0xff]
      %v3545 = vld [vmem:[%s1309 + $0x52] sm:$0xff]
      %v3546 = vld [vmem:[%s1309 + $0x62] sm:$0xff]
      %v3547 = vld [vmem:[%s1309 + $0x6a] sm:$0xff]
      %v3548 = vld [vmem:[%s1309 + $0x7a] sm:$0xff]
      %v3549 = vld [vmem:[%s1309 + $0x82] sm:$0xff]
      %v3550 = vld [vmem:[%s1309 + $0x92] sm:$0xff]
      %v3551 = vld [vmem:[%s1309 + $0x9a] sm:$0xff]
      %v3552 = vld [vmem:[%s1309 + $0xaa] sm:$0xff]
      %v3553 = vld [vmem:[%s1309 + $0xb2] sm:$0xff]
      %v3554 = vpack.c.bf16 %v3539, %v3538
      %v3555 = vpack.c.bf16 %v3541, %v3540
      %v3556 = vpack.c.bf16 %v3543, %v3542
      %v3557 = vpack.c.bf16 %v3545, %v3544
      %v3558 = vpack.c.bf16 %v3547, %v3546
      %v3559 = vpack.c.bf16 %v3549, %v3548
      %v3560 = vpack.c.bf16 %v3551, %v3550
      %v3561 = vpack.c.bf16 %v3553, %v3552
      %3570 = vrot.lane.b32.xlu0 %v3386, 64
      %v3571 = vpop.permute.xlu0 %3570
      %3572 = vrot.lane.b32.xlu0 %v3387, 64
      %v3573 = vpop.permute.xlu0 %3572
      %3574 = vrot.lane.b32.xlu0 %v3388, 64
      %v3575 = vpop.permute.xlu0 %3574
      %3576 = vrot.lane.b32.xlu0 %v3389, 64
      %v3577 = vpop.permute.xlu0 %3576
      %3578 = vrot.lane.b32.xlu0 %v3390, 64
      %v3579 = vpop.permute.xlu0 %3578
      %3580 = vrot.lane.b32.xlu0 %v3391, 64
      %v3581 = vpop.permute.xlu0 %3580
      %3582 = vrot.lane.b32.xlu0 %v3392, 64
      %v3583 = vpop.permute.xlu0 %3582
      %3584 = vrot.lane.b32.xlu0 %v3393, 64
      %v3585 = vpop.permute.xlu0 %3584
      %3594 = vrot.lane.b32.xlu0 %v3434, 64
      %v3595 = vpop.permute.xlu0 %3594
      %3596 = vrot.lane.b32.xlu0 %v3435, 64
      %v3597 = vpop.permute.xlu0 %3596
      %3598 = vrot.lane.b32.xlu0 %v3436, 64
      %v3599 = vpop.permute.xlu0 %3598
      %3600 = vrot.lane.b32.xlu0 %v3437, 64
      %v3601 = vpop.permute.xlu0 %3600
      %3602 = vrot.lane.b32.xlu0 %v3438, 64
      %v3603 = vpop.permute.xlu0 %3602
      %3604 = vrot.lane.b32.xlu0 %v3439, 64
      %v3605 = vpop.permute.xlu0 %3604
      %3606 = vrot.lane.b32.xlu0 %v3440, 64
      %v3607 = vpop.permute.xlu0 %3606
      %3608 = vrot.lane.b32.xlu0 %v3441, 64
      %v3609 = vpop.permute.xlu0 %3608
      %3618 = vrot.lane.b32.xlu0 %v3482, 64
      %v3619 = vpop.permute.xlu0 %3618
      %3620 = vrot.lane.b32.xlu0 %v3483, 64
      %v3621 = vpop.permute.xlu0 %3620
      %3622 = vrot.lane.b32.xlu0 %v3484, 64
      %v3623 = vpop.permute.xlu0 %3622
      %3624 = vrot.lane.b32.xlu0 %v3485, 64
      %v3625 = vpop.permute.xlu0 %3624
      %3626 = vrot.lane.b32.xlu0 %v3486, 64
      %v3627 = vpop.permute.xlu0 %3626
      %3628 = vrot.lane.b32.xlu0 %v3487, 64
      %v3629 = vpop.permute.xlu0 %3628
      %3630 = vrot.lane.b32.xlu0 %v3488, 64
      %v3631 = vpop.permute.xlu0 %3630
      %3632 = vrot.lane.b32.xlu0 %v3489, 64
      %v3633 = vpop.permute.xlu0 %3632
      %3642 = vrot.lane.b32.xlu0 %v3530, 64
      %v3643 = vpop.permute.xlu0 %3642
      %3644 = vrot.lane.b32.xlu0 %v3531, 64
      %v3645 = vpop.permute.xlu0 %3644
      %3646 = vrot.lane.b32.xlu0 %v3532, 64
      %v3647 = vpop.permute.xlu0 %3646
      %3648 = vrot.lane.b32.xlu0 %v3533, 64
      %v3649 = vpop.permute.xlu0 %3648
      %3650 = vrot.lane.b32.xlu0 %v3534, 64
      %v3651 = vpop.permute.xlu0 %3650
      %3652 = vrot.lane.b32.xlu0 %v3535, 64
      %v3653 = vpop.permute.xlu0 %3652
      %3654 = vrot.lane.b32.xlu0 %v3536, 64
      %v3655 = vpop.permute.xlu0 %3654
      %3656 = vrot.lane.b32.xlu0 %v3537, 64
      %v3657 = vpop.permute.xlu0 %3656
      %v3660 = vsel %vm340, %v3362, %v3571
      %v3664 = vsel %vm340, %v3363, %v3573
      %v3668 = vsel %vm340, %v3364, %v3575
      %v3672 = vsel %vm340, %v3365, %v3577
      %v3676 = vsel %vm340, %v3366, %v3579
      %v3680 = vsel %vm340, %v3367, %v3581
      %v3684 = vsel %vm340, %v3368, %v3583
      %v3688 = vsel %vm340, %v3369, %v3585
      %v3692 = vsel %vm340, %v3410, %v3595
      %v3696 = vsel %vm340, %v3411, %v3597
      %v3700 = vsel %vm340, %v3412, %v3599
      %v3704 = vsel %vm340, %v3413, %v3601
      %v3708 = vsel %vm340, %v3414, %v3603
      %v3712 = vsel %vm340, %v3415, %v3605
      %v3716 = vsel %vm340, %v3416, %v3607
      %v3720 = vsel %vm340, %v3417, %v3609
      %v3724 = vsel %vm340, %v3458, %v3619
      %v3728 = vsel %vm340, %v3459, %v3621
      %v3732 = vsel %vm340, %v3460, %v3623
      %v3736 = vsel %vm340, %v3461, %v3625
      %v3740 = vsel %vm340, %v3462, %v3627
      %v3744 = vsel %vm340, %v3463, %v3629
      %v3748 = vsel %vm340, %v3464, %v3631
      %v3752 = vsel %vm340, %v3465, %v3633
      %v3756 = vsel %vm340, %v3506, %v3643
      %v3760 = vsel %vm340, %v3507, %v3645
      %v3764 = vsel %vm340, %v3508, %v3647
      %v3768 = vsel %vm340, %v3509, %v3649
      %v3772 = vsel %vm340, %v3510, %v3651
      %v3776 = vsel %vm340, %v3511, %v3653
      %v3780 = vsel %vm340, %v3512, %v3655
      %v3784 = vsel %vm340, %v3513, %v3657
      %v3786 = vlaneseq
      %v3787 = vshrl.u32 %v3786, 7
      %v3788 = vsub.s32 0, %v3787
      %v3789 = vrot.slane %v3345, %v3788
      %v3862 = vunpack.c.l.b16 %v3273
      %v3863 = vunpack.c.l.b16 %v3274
      %v3864 = vunpack.c.l.b16 %v3275
      %v3865 = vunpack.c.l.b16 %v3276
      %v3866 = vunpack.c.l.b16 %v3277
      %v3867 = vunpack.c.l.b16 %v3278
      %v3868 = vunpack.c.l.b16 %v3279
      %v3869 = vunpack.c.l.b16 %v3280
      %v3870 = vunpack.c.l.b16 %v3281
      %v3871 = vunpack.c.l.b16 %v3282
      %v3872 = vunpack.c.l.b16 %v3283
      %v3873 = vunpack.c.l.b16 %v3284
      %v3874 = vunpack.c.l.b16 %v3285
      %v3875 = vunpack.c.l.b16 %v3286
      %v3876 = vunpack.c.l.b16 %v3287
      %v3877 = vunpack.c.l.b16 %v3288
      %v3878 = vunpack.c.l.b16 %v3289
      %v3879 = vunpack.c.l.b16 %v3290
      %v3880 = vunpack.c.l.b16 %v3291
      %v3881 = vunpack.c.l.b16 %v3292
      %v3882 = vunpack.c.l.b16 %v3293
      %v3883 = vunpack.c.l.b16 %v3294
      %v3884 = vunpack.c.l.b16 %v3295
      %v3885 = vunpack.c.l.b16 %v3296
      %v3886 = vunpack.c.l.b16 %v3297
      %v3887 = vunpack.c.l.b16 %v3298
      %v3888 = vunpack.c.l.b16 %v3299
      %v3889 = vunpack.c.l.b16 %v3300
      %v3890 = vunpack.c.l.b16 %v3301
      %v3891 = vunpack.c.l.b16 %v3302
      %v3892 = vunpack.c.l.b16 %v3303
      %v3893 = vunpack.c.l.b16 %v3304
      %v3894 = vunpack.c.l.b16 %v3305
      %v3895 = vunpack.c.l.b16 %v3306
      %v3896 = vunpack.c.l.b16 %v3307
      %v3897 = vunpack.c.l.b16 %v3308
      %v3898 = vunpack.c.l.b16 %v3309
      %v3899 = vunpack.c.l.b16 %v3310
      %v3900 = vunpack.c.l.b16 %v3311
      %v3901 = vunpack.c.l.b16 %v3312
      %v3902 = vunpack.c.l.b16 %v3313
      %v3903 = vunpack.c.l.b16 %v3314
      %v3904 = vunpack.c.l.b16 %v3315
      %v3905 = vunpack.c.l.b16 %v3316
      %v3906 = vunpack.c.l.b16 %v3317
      %v3907 = vunpack.c.l.b16 %v3318
      %v3908 = vunpack.c.l.b16 %v3319
      %v3909 = vunpack.c.l.b16 %v3320
      %v3910 = vunpack.c.l.b16 %v3321
      %v3911 = vunpack.c.l.b16 %v3322
      %v3912 = vunpack.c.l.b16 %v3323
      %v3913 = vunpack.c.l.b16 %v3324
      %v3914 = vunpack.c.l.b16 %v3325
      %v3915 = vunpack.c.l.b16 %v3326
      %v3916 = vunpack.c.l.b16 %v3327
      %v3917 = vunpack.c.l.b16 %v3328
      %v3918 = vunpack.c.l.b16 %v3329
      %v3919 = vunpack.c.l.b16 %v3330
      %v3920 = vunpack.c.l.b16 %v3331
      %v3921 = vunpack.c.l.b16 %v3332
      %v3922 = vunpack.c.l.b16 %v3333
      %v3923 = vunpack.c.l.b16 %v3334
      %v3924 = vunpack.c.l.b16 %v3335
      %v3925 = vunpack.c.l.b16 %v3336
      %v3926 = vunpack.c.l.b16 %v3337
      %v3927 = vunpack.c.l.b16 %v3338
      %v3928 = vunpack.c.l.b16 %v3339
      %v3929 = vunpack.c.l.b16 %v3340
      %v3930 = vunpack.c.l.b16 %v3341
      %v3931 = vunpack.c.l.b16 %v3342
      %v3932 = vunpack.c.l.b16 %v3343
      %v3933 = vunpack.c.l.b16 %v3344
      %v3934 = vpack.c.b16 %v3863, %v3862
      %v3935 = vpack.c.b16 %v3865, %v3864
      %v3936 = vpack.c.b16 %v3867, %v3866
      %v3937 = vpack.c.b16 %v3869, %v3868
      %v3938 = vpack.c.b16 %v3871, %v3870
      %v3939 = vpack.c.b16 %v3873, %v3872
      %v3940 = vpack.c.b16 %v3875, %v3874
      %v3941 = vpack.c.b16 %v3877, %v3876
      %v3942 = vpack.c.b16 %v3879, %v3878
      %v3943 = vpack.c.b16 %v3881, %v3880
      %v3944 = vpack.c.b16 %v3883, %v3882
      %v3945 = vpack.c.b16 %v3885, %v3884
      %v3946 = vpack.c.b16 %v3887, %v3886
      %v3947 = vpack.c.b16 %v3889, %v3888
      %v3948 = vpack.c.b16 %v3891, %v3890
      %v3949 = vpack.c.b16 %v3893, %v3892
      %v3950 = vpack.c.b16 %v3895, %v3894
      %v3951 = vpack.c.b16 %v3897, %v3896
      %v3952 = vpack.c.b16 %v3899, %v3898
      %v3953 = vpack.c.b16 %v3901, %v3900
      %v3954 = vpack.c.b16 %v3903, %v3902
      %v3955 = vpack.c.b16 %v3905, %v3904
      %v3956 = vpack.c.b16 %v3907, %v3906
      %v3957 = vpack.c.b16 %v3909, %v3908
      %v3958 = vpack.c.b16 %v3911, %v3910
      %v3959 = vpack.c.b16 %v3913, %v3912
      %v3960 = vpack.c.b16 %v3915, %v3914
      %v3961 = vpack.c.b16 %v3917, %v3916
      %v3962 = vpack.c.b16 %v3919, %v3918
      %v3963 = vpack.c.b16 %v3921, %v3920
      %v3964 = vpack.c.b16 %v3923, %v3922
      %v3965 = vpack.c.b16 %v3925, %v3924
      %v3966 = vpack.c.b16 %v3927, %v3926
      %v3967 = vpack.c.b16 %v3929, %v3928
      %v3968 = vpack.c.b16 %v3931, %v3930
      %v3969 = vpack.c.b16 %v3933, %v3932
      %v4007 = vsel %vm340, %v3554, 0
      %v4010 = vsel %vm340, %v3555, 0
      %v4013 = vsel %vm340, %v3556, 0
      %v4016 = vsel %vm340, %v3557, 0
      %v4019 = vsel %vm340, %v3558, 0
      %v4022 = vsel %vm340, %v3559, 0
      %v4025 = vsel %vm340, %v3560, 0
      %v4028 = vsel %vm340, %v3561, 0
      %4030 = vmatprep.subr.bf16.mxu0 0
      %4031 = vmatpush1.bf16.msra.mxu0 %v3934
      %4032 = vmatprep.subr.bf16.mxu0 0
      %4033 = vmatpush1.bf16.msra.mxu0 %v3935
      %4034 = vmatprep.subr.bf16.mxu0 0
      %4035 = vmatpush1.bf16.msra.mxu0 %v3936
      %4036 = vmatprep.subr.bf16.mxu0 0
      %4037 = vmatpush1.bf16.msra.mxu0 %v3937
      %4038 = vmatprep.subr.bf16.mxu0 0
      %4039 = vmatpush1.bf16.msra.mxu0 %v3938
      %4040 = vmatprep.subr.bf16.mxu0 0
      %4041 = vmatpush1.bf16.msra.mxu0 %v3939
      %4042 = vmatprep.subr.bf16.mxu0 0
      %4043 = vmatpush1.bf16.msra.mxu0 %v3940
      %4044 = vmatprep.subr.bf16.mxu0 0
      %4045 = vmatpush1.bf16.msra.mxu0 %v3941
      %4046 = vmatprep.subr.bf16.mxu0 0
      %4047 = vmatpush1.bf16.msra.mxu0 %v3942
      %4048 = vmatprep.subr.bf16.mxu0 0
      %4049 = vmatpush1.bf16.msra.mxu0 %v3943
      %4050 = vmatprep.subr.bf16.mxu0 0
      %4051 = vmatpush1.bf16.msra.mxu0 %v3944
      %4052 = vmatprep.subr.bf16.mxu0 0
      %4053 = vmatpush1.bf16.msra.mxu0 %v3945
      %4054 = vmatprep.subr.bf16.mxu0 0
      %4055 = vmatpush1.bf16.msra.mxu0 %v3946
      %4056 = vmatprep.subr.bf16.mxu0 0
      %4057 = vmatpush1.bf16.msra.mxu0 %v3947
      %4058 = vmatprep.subr.bf16.mxu0 0
      %4059 = vmatpush1.bf16.msra.mxu0 %v3948
      %4060 = vmatprep.subr.bf16.mxu0 0
      %4061 = vmatpush1.bf16.msra.mxu0 %v3949
      %4062 = vmatprep.mubr.bf16.mxu0 %v3692
      %4063 = vmatmul.mubr.bf16.gmra.mrb[0].mxu0 %v3660
      %v4064 = vpop.f32.mrb[0].mxu0
      %v4065 = vadd.f32 %v3789, %v4064
      %v4066 = vpop.f32.mrb[0].mxu0
      %v4067 = vpop.f32.mrb[0].mxu0
      %v4068 = vadd.f32 %v3789, %v4067
      %v4069 = vpop.f32.mrb[0].mxu0
      %4070 = vmatprep.mubr.bf16.mxu0 %v3696
      %4071 = vmatmul.mubr.bf16.gmra.mrb[0].mxu0 %v3664
      %v4072 = vpop.f32.mrb[0].mxu0
      %v4073 = vadd.f32 %v3789, %v4072
      %v4074 = vpop.f32.mrb[0].mxu0
      %v4075 = vpop.f32.mrb[0].mxu0
      %v4076 = vadd.f32 %v3789, %v4075
      %v4077 = vpop.f32.mrb[0].mxu0
      %4078 = vmatprep.mubr.bf16.mxu0 %v3700
      %4079 = vmatmul.mubr.bf16.gmra.mrb[0].mxu0 %v3668
      %v4080 = vpop.f32.mrb[0].mxu0
      %v4081 = vadd.f32 %v3789, %v4080
      %v4082 = vpop.f32.mrb[0].mxu0
      %v4083 = vpop.f32.mrb[0].mxu0
      %v4084 = vadd.f32 %v3789, %v4083
      %v4085 = vpop.f32.mrb[0].mxu0
      %4086 = vmatprep.mubr.bf16.mxu0 %v3704
      %4087 = vmatmul.mubr.bf16.gmra.mrb[0].mxu0 %v3672
      %v4088 = vpop.f32.mrb[0].mxu0
      %v4089 = vadd.f32 %v3789, %v4088
      %v4090 = vpop.f32.mrb[0].mxu0
      %v4091 = vpop.f32.mrb[0].mxu0
      %v4092 = vadd.f32 %v3789, %v4091
      %v4093 = vpop.f32.mrb[0].mxu0
      %4094 = vmatprep.mubr.bf16.mxu0 %v3708
      %4095 = vmatmul.mubr.bf16.gmra.mrb[0].mxu0 %v3676
      %v4096 = vpop.f32.mrb[0].mxu0
      %v4097 = vadd.f32 %v3789, %v4096
      %v4098 = vpop.f32.mrb[0].mxu0
      %v4099 = vpop.f32.mrb[0].mxu0
      %v4100 = vadd.f32 %v3789, %v4099
      %v4101 = vpop.f32.mrb[0].mxu0
      %4102 = vmatprep.mubr.bf16.mxu0 %v3712
      %4103 = vmatmul.mubr.bf16.gmra.mrb[0].mxu0 %v3680
      %v4104 = vpop.f32.mrb[0].mxu0
      %v4105 = vadd.f32 %v3789, %v4104
      %v4106 = vpop.f32.mrb[0].mxu0
      %v4107 = vpop.f32.mrb[0].mxu0
      %v4108 = vadd.f32 %v3789, %v4107
      %v4109 = vpop.f32.mrb[0].mxu0
      %4110 = vmatprep.mubr.bf16.mxu0 %v3716
      %4111 = vmatmul.mubr.bf16.gmra.mrb[0].mxu0 %v3684
      %v4112 = vpop.f32.mrb[0].mxu0
      %v4113 = vadd.f32 %v3789, %v4112
      %v4114 = vpop.f32.mrb[0].mxu0
      %v4115 = vpop.f32.mrb[0].mxu0
      %v4116 = vadd.f32 %v3789, %v4115
      %v4117 = vpop.f32.mrb[0].mxu0
      %4118 = vmatprep.mubr.bf16.mxu0 %v3720
      %4119 = vmatmul.mubr.bf16.gmra.mrb[0].mxu0 %v3688
      %v4120 = vpop.f32.mrb[0].mxu0
      %v4121 = vadd.f32 %v3789, %v4120
      %v4122 = vpop.f32.mrb[0].mxu0
      %v4123 = vpop.f32.mrb[0].mxu0
      %v4124 = vadd.f32 %v3789, %v4123
      %v4125 = vpop.f32.mrb[0].mxu0
      %4126 = vdwg.mxu0
      %4127 = vmatprep.subr.bf16.mxu0 0
      %4128 = vmatpush1.bf16.msra.mxu0 %v3950
      %4129 = vmatprep.subr.bf16.mxu0 0
      %4130 = vmatpush1.bf16.msra.mxu0 %v3951
      %4131 = vmatprep.subr.bf16.mxu0 0
      %4132 = vmatpush1.bf16.msra.mxu0 %v3952
      %4133 = vmatprep.subr.bf16.mxu0 0
      %4134 = vmatpush1.bf16.msra.mxu0 %v3953
      %4135 = vmatprep.subr.bf16.mxu0 0
      %4136 = vmatpush1.bf16.msra.mxu0 %v3954
      %4137 = vmatprep.subr.bf16.mxu0 0
      %4138 = vmatpush1.bf16.msra.mxu0 %v3955
      %4139 = vmatprep.subr.bf16.mxu0 0
      %4140 = vmatpush1.bf16.msra.mxu0 %v3956
      %4141 = vmatprep.subr.bf16.mxu0 0
      %4142 = vmatpush1.bf16.msra.mxu0 %v3957
      %4143 = vmatprep.subr.bf16.mxu0 0
      %4144 = vmatpush1.bf16.msra.mxu0 %v3958
      %4145 = vmatprep.subr.bf16.mxu0 0
      %4146 = vmatpush1.bf16.msra.mxu0 %v3959
      %4147 = vmatprep.subr.bf16.mxu0 0
      %4148 = vmatpush1.bf16.msra.mxu0 %v3960
      %4149 = vmatprep.subr.bf16.mxu0 0
      %4150 = vmatpush1.bf16.msra.mxu0 %v3961
      %4151 = vmatprep.subr.bf16.mxu0 0
      %4152 = vmatpush1.bf16.msra.mxu0 %v3962
      %4153 = vmatprep.subr.bf16.mxu0 0
      %4154 = vmatpush1.bf16.msra.mxu0 %v3963
      %4155 = vmatprep.subr.bf16.mxu0 0
      %4156 = vmatpush1.bf16.msra.mxu0 %v3964
      %4157 = vmatprep.subr.bf16.mxu0 0
      %4158 = vmatpush1.bf16.msra.mxu0 %v3965
      %4159 = vmatprep.mubr.bf16.mxu0 %v3756
      %4160 = vmatmul.mubr.bf16.gmra.mrb[0].mxu0 %v3724
      %v4161 = vpop.f32.mrb[0].mxu0
      %v4162 = vadd.f32 %v4065, %v4161
      %v4163 = vpop.f32.mrb[0].mxu0
      %v4164 = vpop.f32.mrb[0].mxu0
      %v4165 = vadd.f32 %v4068, %v4164
      %v4166 = vpop.f32.mrb[0].mxu0
      %4167 = vmatprep.mubr.bf16.mxu0 %v3760
      %4168 = vmatmul.mubr.bf16.gmra.mrb[0].mxu0 %v3728
      %v4169 = vpop.f32.mrb[0].mxu0
      %v4170 = vadd.f32 %v4073, %v4169
      %v4171 = vpop.f32.mrb[0].mxu0
      %v4172 = vpop.f32.mrb[0].mxu0
      %v4173 = vadd.f32 %v4076, %v4172
      %v4174 = vpop.f32.mrb[0].mxu0
      %4175 = vmatprep.mubr.bf16.mxu0 %v3764
      %4176 = vmatmul.mubr.bf16.gmra.mrb[0].mxu0 %v3732
      %v4177 = vpop.f32.mrb[0].mxu0
      %v4178 = vadd.f32 %v4081, %v4177
      %v4179 = vpop.f32.mrb[0].mxu0
      %v4180 = vpop.f32.mrb[0].mxu0
      %v4181 = vadd.f32 %v4084, %v4180
      %v4182 = vpop.f32.mrb[0].mxu0
      %4183 = vmatprep.mubr.bf16.mxu0 %v3768
      %4184 = vmatmul.mubr.bf16.gmra.mrb[0].mxu0 %v3736
      %v4185 = vpop.f32.mrb[0].mxu0
      %v4186 = vadd.f32 %v4089, %v4185
      %v4187 = vpop.f32.mrb[0].mxu0
      %v4188 = vpop.f32.mrb[0].mxu0
      %v4189 = vadd.f32 %v4092, %v4188
      %v4190 = vpop.f32.mrb[0].mxu0
      %4191 = vmatprep.mubr.bf16.mxu0 %v3772
      %4192 = vmatmul.mubr.bf16.gmra.mrb[0].mxu0 %v3740
      %v4193 = vpop.f32.mrb[0].mxu0
      %v4194 = vadd.f32 %v4097, %v4193
      %v4195 = vpop.f32.mrb[0].mxu0
      %v4196 = vpop.f32.mrb[0].mxu0
      %v4197 = vadd.f32 %v4100, %v4196
      %v4198 = vpop.f32.mrb[0].mxu0
      %4199 = vmatprep.mubr.bf16.mxu0 %v3776
      %4200 = vmatmul.mubr.bf16.gmra.mrb[0].mxu0 %v3744
      %v4201 = vpop.f32.mrb[0].mxu0
      %v4202 = vadd.f32 %v4105, %v4201
      %v4203 = vpop.f32.mrb[0].mxu0
      %v4204 = vpop.f32.mrb[0].mxu0
      %v4205 = vadd.f32 %v4108, %v4204
      %v4206 = vpop.f32.mrb[0].mxu0
      %4207 = vmatprep.mubr.bf16.mxu0 %v3780
      %4208 = vmatmul.mubr.bf16.gmra.mrb[0].mxu0 %v3748
      %v4209 = vpop.f32.mrb[0].mxu0
      %v4210 = vadd.f32 %v4113, %v4209
      %v4211 = vpop.f32.mrb[0].mxu0
      %v4212 = vpop.f32.mrb[0].mxu0
      %v4213 = vadd.f32 %v4116, %v4212
      %v4214 = vpop.f32.mrb[0].mxu0
      %4215 = vmatprep.mubr.bf16.mxu0 %v3784
      %4216 = vmatmul.mubr.bf16.gmra.mrb[0].mxu0 %v3752
      %v4217 = vpop.f32.mrb[0].mxu0
      %v4218 = vadd.f32 %v4121, %v4217
      %v4219 = vpop.f32.mrb[0].mxu0
      %v4220 = vpop.f32.mrb[0].mxu0
      %v4221 = vadd.f32 %v4124, %v4220
      %v4222 = vpop.f32.mrb[0].mxu0
      %4223 = vdwg.mxu0
      %4224 = vmatprep.subr.bf16.mxu0 0
      %4225 = vmatpush1.bf16.msra.mxu0 %v3966
      %4226 = vmatprep.subr.bf16.mxu0 0
      %4227 = vmatpush1.bf16.msra.mxu0 %v3967
      %4228 = vmatprep.subr.bf16.mxu0 0
      %4229 = vmatpush1.bf16.msra.mxu0 %v3968
      %4230 = vmatprep.subr.bf16.mxu0 0
      %4231 = vmatpush1.bf16.msra.mxu0 %v3969
      %4232 = vmatprep.subr.bf16.mxu0 0
      %4233 = vmatpush1.bf16.msra.mxu0 0
      %4234 = vmatprep.subr.bf16.mxu0 0
      %4235 = vmatpush1.bf16.msra.mxu0 0
      %4236 = vmatprep.subr.bf16.mxu0 0
      %4237 = vmatpush1.bf16.msra.mxu0 0
      %4238 = vmatprep.subr.bf16.mxu0 0
      %4239 = vmatpush1.bf16.msra.mxu0 0
      %4240 = vmatprep.subr.bf16.mxu0 0
      %4241 = vmatpush1.bf16.msra.mxu0 0
      %4242 = vmatprep.subr.bf16.mxu0 0
      %4243 = vmatpush1.bf16.msra.mxu0 0
      %4244 = vmatprep.subr.bf16.mxu0 0
      %4245 = vmatpush1.bf16.msra.mxu0 0
      %4246 = vmatprep.subr.bf16.mxu0 0
      %4247 = vmatpush1.bf16.msra.mxu0 0
      %4248 = vmatprep.subr.bf16.mxu0 0
      %4249 = vmatpush1.bf16.msra.mxu0 0
      %4250 = vmatprep.subr.bf16.mxu0 0
      %4251 = vmatpush1.bf16.msra.mxu0 0
      %4252 = vmatprep.subr.bf16.mxu0 0
      %4253 = vmatpush1.bf16.msra.mxu0 0
      %4254 = vmatprep.subr.bf16.mxu0 0
      %4255 = vmatpush1.bf16.msra.mxu0 0
      %4256 = vmatprep.mubr.bf16.mxu0 0
      %4257 = vmatmul.mubr.bf16.gmra.mrb[0].mxu0 %v4007
      %v4258 = vpop.f32.mrb[0].mxu0
      %v4259 = vadd.f32 %v4162, %v4258
      %v4260 = vpop.f32.mrb[0].mxu0
      %v4261 = vpop.f32.mrb[0].mxu0
      %v4262 = vadd.f32 %v4165, %v4261
      %v4263 = vpop.f32.mrb[0].mxu0
      %4264 = vmatprep.mubr.bf16.mxu0 0
      %4265 = vmatmul.mubr.bf16.gmra.mrb[0].mxu0 %v4010
      %v4266 = vpop.f32.mrb[0].mxu0
      %v4267 = vadd.f32 %v4170, %v4266
      %v4268 = vpop.f32.mrb[0].mxu0
      %v4269 = vpop.f32.mrb[0].mxu0
      %v4270 = vadd.f32 %v4173, %v4269
      %v4271 = vpop.f32.mrb[0].mxu0
      %4272 = vmatprep.mubr.bf16.mxu0 0
      %4273 = vmatmul.mubr.bf16.gmra.mrb[0].mxu0 %v4013
      %v4274 = vpop.f32.mrb[0].mxu0
      %v4275 = vadd.f32 %v4178, %v4274
      %v4276 = vpop.f32.mrb[0].mxu0
      %v4277 = vpop.f32.mrb[0].mxu0
      %v4278 = vadd.f32 %v4181, %v4277
      %v4279 = vpop.f32.mrb[0].mxu0
      %4280 = vmatprep.mubr.bf16.mxu0 0
      %4281 = vmatmul.mubr.bf16.gmra.mrb[0].mxu0 %v4016
      %v4282 = vpop.f32.mrb[0].mxu0
      %v4283 = vadd.f32 %v4186, %v4282
      %v4284 = vpop.f32.mrb[0].mxu0
      %v4285 = vpop.f32.mrb[0].mxu0
      %v4286 = vadd.f32 %v4189, %v4285
      %v4287 = vpop.f32.mrb[0].mxu0
      %4288 = vmatprep.mubr.bf16.mxu0 0
      %4289 = vmatmul.mubr.bf16.gmra.mrb[0].mxu0 %v4019
      %v4290 = vpop.f32.mrb[0].mxu0
      %v4291 = vadd.f32 %v4194, %v4290
      %v4292 = vpop.f32.mrb[0].mxu0
      %v4293 = vpop.f32.mrb[0].mxu0
      %v4294 = vadd.f32 %v4197, %v4293
      %v4295 = vpop.f32.mrb[0].mxu0
      %4296 = vmatprep.mubr.bf16.mxu0 0
      %4297 = vmatmul.mubr.bf16.gmra.mrb[0].mxu0 %v4022
      %v4298 = vpop.f32.mrb[0].mxu0
      %v4299 = vadd.f32 %v4202, %v4298
      %v4300 = vpop.f32.mrb[0].mxu0
      %v4301 = vpop.f32.mrb[0].mxu0
      %v4302 = vadd.f32 %v4205, %v4301
      %v4303 = vpop.f32.mrb[0].mxu0
      %4304 = vmatprep.mubr.bf16.mxu0 0
      %4305 = vmatmul.mubr.bf16.gmra.mrb[0].mxu0 %v4025
      %v4306 = vpop.f32.mrb[0].mxu0
      %v4307 = vadd.f32 %v4210, %v4306
      %v4308 = vpop.f32.mrb[0].mxu0
      %v4309 = vpop.f32.mrb[0].mxu0
      %v4310 = vadd.f32 %v4213, %v4309
      %v4311 = vpop.f32.mrb[0].mxu0
      %4312 = vmatprep.mubr.bf16.mxu0 0
      %4313 = vmatmul.mubr.bf16.gmra.mrb[0].mxu0 %v4028
      %v4314 = vpop.f32.mrb[0].mxu0
      %v4315 = vadd.f32 %v4218, %v4314
      %v4316 = vpop.f32.mrb[0].mxu0
      %v4317 = vpop.f32.mrb[0].mxu0
      %v4318 = vadd.f32 %v4221, %v4317
      %v4319 = vpop.f32.mrb[0].mxu0
      %4320 = vdwg.mxu0
      %v4321 = vmax.f32 %v4259, 0.0
      %v4322 = vmax.f32 %v4262, 0.0
      %v4323 = vmax.f32 %v4267, 0.0
      %v4324 = vmax.f32 %v4270, 0.0
      %v4325 = vmax.f32 %v4275, 0.0
      %v4326 = vmax.f32 %v4278, 0.0
      %v4327 = vmax.f32 %v4283, 0.0
      %v4328 = vmax.f32 %v4286, 0.0
      %v4329 = vmax.f32 %v4291, 0.0
      %v4330 = vmax.f32 %v4294, 0.0
      %v4331 = vmax.f32 %v4299, 0.0
      %v4332 = vmax.f32 %v4302, 0.0
      %v4333 = vmax.f32 %v4307, 0.0
      %v4334 = vmax.f32 %v4310, 0.0
      %v4335 = vmax.f32 %v4315, 0.0
      %v4336 = vmax.f32 %v4318, 0.0
      %4337 = vst.msk [vmem:[%s2157 + $0x1] sm:$0xff] %vm340, %v4321
      %4338 = vst.msk [vmem:[%s2157 + $0x9] sm:$0xff] %vm340, %v4322
      %4339 = vst.msk [vmem:[%s2157 + $0x19] sm:$0xff] %vm340, %v4323
      %4340 = vst.msk [vmem:[%s2157 + $0x21] sm:$0xff] %vm340, %v4324
      %4341 = vst.msk [vmem:[%s2157 + $0x31] sm:$0xff] %vm340, %v4325
      %4342 = vst.msk [vmem:[%s2157 + $0x39] sm:$0xff] %vm340, %v4326
      %4343 = vst.msk [vmem:[%s2157 + $0x49] sm:$0xff] %vm340, %v4327
      %4344 = vst.msk [vmem:[%s2157 + $0x51] sm:$0xff] %vm340, %v4328
      %4345 = vst.msk [vmem:[%s2157 + $0x61] sm:$0xff] %vm340, %v4329
      %4346 = vst.msk [vmem:[%s2157 + $0x69] sm:$0xff] %vm340, %v4330
      %4347 = vst.msk [vmem:[%s2157 + $0x79] sm:$0xff] %vm340, %v4331
      %4348 = vst.msk [vmem:[%s2157 + $0x81] sm:$0xff] %vm340, %v4332
      %4349 = vst.msk [vmem:[%s2157 + $0x91] sm:$0xff] %vm340, %v4333
      %4350 = vst.msk [vmem:[%s2157 + $0x99] sm:$0xff] %vm340, %v4334
      %4351 = vst.msk [vmem:[%s2157 + $0xa9] sm:$0xff] %vm340, %v4335
      %4352 = vst.msk [vmem:[%s2157 + $0xb1] sm:$0xff] %vm340, %v4336
      %s4353 = scalar_lea.vmem %s3, 864
      %v4354 = vld [vmem:[%s4353] sm:$0xf]
      %v4355 = vld [vmem:[%s4353 + $0x4] sm:$0xf]
      %v4356 = vld [vmem:[%s4353 + $0x8] sm:$0xf]
      %v4357 = vld [vmem:[%s4353 + $0xc] sm:$0xf]
      %v4358 = vld [vmem:[%s4353 + $0x10] sm:$0xf]
      %v4359 = vld [vmem:[%s4353 + $0x14] sm:$0xf]
      %v4360 = vld [vmem:[%s4353 + $0x18] sm:$0xf]
      %v4361 = vld [vmem:[%s4353 + $0x1c] sm:$0xf]
      %v4362 = vld [vmem:[%s4353 + $0x20] sm:$0xf]
      %v4363 = vld [vmem:[%s4353 + $0x24] sm:$0xf]
      %v4364 = vld [vmem:[%s4353 + $0x28] sm:$0xf]
      %v4365 = vld [vmem:[%s4353 + $0x2c] sm:$0xf]
      %v4366 = vld [vmem:[%s4353 + $0x30] sm:$0xf]
      %v4367 = vld [vmem:[%s4353 + $0x34] sm:$0xf]
      %v4368 = vld [vmem:[%s4353 + $0x38] sm:$0xf]
      %v4369 = vld [vmem:[%s4353 + $0x3c] sm:$0xf]
      %v4370 = vld [vmem:[%s4353 + $0x40] sm:$0xf]
      %v4371 = vld [vmem:[%s4353 + $0x44] sm:$0xf]
      %v4372 = vld [vmem:[%s4353 + $0x48] sm:$0xf]
      %v4373 = vld [vmem:[%s4353 + $0x4c] sm:$0xf]
      %v4374 = vld [vmem:[%s4353 + $0x50] sm:$0xf]
      %v4375 = vld [vmem:[%s4353 + $0x54] sm:$0xf]
      %v4376 = vld [vmem:[%s4353 + $0x58] sm:$0xf]
      %v4377 = vld [vmem:[%s4353 + $0x5c] sm:$0xf]
      %v4378 = vld [vmem:[%s4353 + $0x60] sm:$0xf]
      %v4379 = vld [vmem:[%s4353 + $0x64] sm:$0xf]
      %v4380 = vld [vmem:[%s4353 + $0x68] sm:$0xf]
      %v4381 = vld [vmem:[%s4353 + $0x6c] sm:$0xf]
      %v4382 = vld [vmem:[%s4353 + $0x70] sm:$0xf]
      %v4383 = vld [vmem:[%s4353 + $0x74] sm:$0xf]
      %v4384 = vld [vmem:[%s4353 + $0x78] sm:$0xf]
      %v4385 = vld [vmem:[%s4353 + $0x7c] sm:$0xf]
      %v4386 = vld [vmem:[%s4353 + $0x80] sm:$0xf]
      %v4387 = vld [vmem:[%s4353 + $0x84] sm:$0xf]
      %v4388 = vld [vmem:[%s4353 + $0x88] sm:$0xf]
      %v4389 = vld [vmem:[%s4353 + $0x8c] sm:$0xf]
      %v4390 = vld [vmem:[%s4353 + $0x90] sm:$0xf]
      %v4391 = vld [vmem:[%s4353 + $0x94] sm:$0xf]
      %v4392 = vld [vmem:[%s4353 + $0x98] sm:$0xf]
      %v4393 = vld [vmem:[%s4353 + $0x9c] sm:$0xf]
      %v4394 = vld [vmem:[%s4353 + $0xa0] sm:$0xf]
      %v4395 = vld [vmem:[%s4353 + $0xa4] sm:$0xf]
      %v4396 = vld [vmem:[%s4353 + $0xa8] sm:$0xf]
      %v4397 = vld [vmem:[%s4353 + $0xac] sm:$0xf]
      %v4398 = vld [vmem:[%s4353 + $0xb0] sm:$0xf]
      %v4399 = vld [vmem:[%s4353 + $0xb4] sm:$0xf]
      %v4400 = vld [vmem:[%s4353 + $0xb8] sm:$0xf]
      %v4401 = vld [vmem:[%s4353 + $0xbc] sm:$0xf]
      %v4402 = vld [vmem:[%s4353 + $0xc0] sm:$0xf]
      %v4403 = vld [vmem:[%s4353 + $0xc4] sm:$0xf]
      %v4404 = vld [vmem:[%s4353 + $0xc8] sm:$0xf]
      %v4405 = vld [vmem:[%s4353 + $0xcc] sm:$0xf]
      %v4406 = vld [vmem:[%s4353 + $0xd0] sm:$0xf]
      %v4407 = vld [vmem:[%s4353 + $0xd4] sm:$0xf]
      %v4408 = vld [vmem:[%s4353 + $0xd8] sm:$0xf]
      %v4409 = vld [vmem:[%s4353 + $0xdc] sm:$0xf]
      %v4410 = vld [vmem:[%s4353 + $0xe0] sm:$0xf]
      %v4411 = vld [vmem:[%s4353 + $0xe4] sm:$0xf]
      %v4412 = vld [vmem:[%s4353 + $0xe8] sm:$0xf]
      %v4413 = vld [vmem:[%s4353 + $0xec] sm:$0xf]
      %v4414 = vld [vmem:[%s4353 + $0xf0] sm:$0xf]
      %v4415 = vld [vmem:[%s4353 + $0xf4] sm:$0xf]
      %v4416 = vld [vmem:[%s4353 + $0xf8] sm:$0xf]
      %v4417 = vld [vmem:[%s4353 + $0xfc] sm:$0xf]
      %v4418 = vld [vmem:[%s4353 + $0x100] sm:$0xf]
      %v4419 = vld [vmem:[%s4353 + $0x104] sm:$0xf]
      %v4420 = vld [vmem:[%s4353 + $0x108] sm:$0xf]
      %v4421 = vld [vmem:[%s4353 + $0x10c] sm:$0xf]
      %v4422 = vld [vmem:[%s4353 + $0x110] sm:$0xf]
      %v4423 = vld [vmem:[%s4353 + $0x114] sm:$0xf]
      %v4424 = vld [vmem:[%s4353 + $0x118] sm:$0xf]
      %v4425 = vld [vmem:[%s4353 + $0x11c] sm:$0xf]
      %v4426 = vld [vmem:[%s5 + $0x6] sm:$0x1]
      %v4427 = vld [vmem:[#allocation3] sm:$0xff]
      %v4428 = vld [vmem:[#allocation3 + $0x8] sm:$0xff]
      %v4429 = vld [vmem:[#allocation3 + $0x18] sm:$0xff]
      %v4430 = vld [vmem:[#allocation3 + $0x20] sm:$0xff]
      %v4431 = vld [vmem:[#allocation3 + $0x30] sm:$0xff]
      %v4432 = vld [vmem:[#allocation3 + $0x38] sm:$0xff]
      %v4433 = vld [vmem:[#allocation3 + $0x48] sm:$0xff]
      %v4434 = vld [vmem:[#allocation3 + $0x50] sm:$0xff]
      %v4435 = vld [vmem:[#allocation3 + $0x60] sm:$0xff]
      %v4436 = vld [vmem:[#allocation3 + $0x68] sm:$0xff]
      %v4437 = vld [vmem:[#allocation3 + $0x78] sm:$0xff]
      %v4438 = vld [vmem:[#allocation3 + $0x80] sm:$0xff]
      %v4439 = vld [vmem:[#allocation3 + $0x90] sm:$0xff]
      %v4440 = vld [vmem:[#allocation3 + $0x98] sm:$0xff]
      %v4441 = vld [vmem:[#allocation3 + $0xa8] sm:$0xff]
      %v4442 = vld [vmem:[#allocation3 + $0xb0] sm:$0xff]
      %v4443 = vpack.c.bf16 %v4428, %v4427
      %v4444 = vpack.c.bf16 %v4430, %v4429
      %v4445 = vpack.c.bf16 %v4432, %v4431
      %v4446 = vpack.c.bf16 %v4434, %v4433
      %v4447 = vpack.c.bf16 %v4436, %v4435
      %v4448 = vpack.c.bf16 %v4438, %v4437
      %v4449 = vpack.c.bf16 %v4440, %v4439
      %v4450 = vpack.c.bf16 %v4442, %v4441
      %v4451 = vld [vmem:[#allocation3 + $0x1] sm:$0xff]
      %v4452 = vld [vmem:[#allocation3 + $0x9] sm:$0xff]
      %v4453 = vld [vmem:[#allocation3 + $0x19] sm:$0xff]
      %v4454 = vld [vmem:[#allocation3 + $0x21] sm:$0xff]
      %v4455 = vld [vmem:[#allocation3 + $0x31] sm:$0xff]
      %v4456 = vld [vmem:[#allocation3 + $0x39] sm:$0xff]
      %v4457 = vld [vmem:[#allocation3 + $0x49] sm:$0xff]
      %v4458 = vld [vmem:[#allocation3 + $0x51] sm:$0xff]
      %v4459 = vld [vmem:[#allocation3 + $0x61] sm:$0xff]
      %v4460 = vld [vmem:[#allocation3 + $0x69] sm:$0xff]
      %v4461 = vld [vmem:[#allocation3 + $0x79] sm:$0xff]
      %v4462 = vld [vmem:[#allocation3 + $0x81] sm:$0xff]
      %v4463 = vld [vmem:[#allocation3 + $0x91] sm:$0xff]
      %v4464 = vld [vmem:[#allocation3 + $0x99] sm:$0xff]
      %v4465 = vld [vmem:[#allocation3 + $0xa9] sm:$0xff]
      %v4466 = vld [vmem:[#allocation3 + $0xb1] sm:$0xff]
      %v4467 = vpack.c.bf16 %v4452, %v4451
      %v4468 = vpack.c.bf16 %v4454, %v4453
      %v4469 = vpack.c.bf16 %v4456, %v4455
      %v4470 = vpack.c.bf16 %v4458, %v4457
      %v4471 = vpack.c.bf16 %v4460, %v4459
      %v4472 = vpack.c.bf16 %v4462, %v4461
      %v4473 = vpack.c.bf16 %v4464, %v4463
      %v4474 = vpack.c.bf16 %v4466, %v4465
      %v4475 = vld [vmem:[#allocation3 + $0x2] sm:$0xff]
      %v4476 = vld [vmem:[#allocation3 + $0xa] sm:$0xff]
      %v4477 = vld [vmem:[#allocation3 + $0x1a] sm:$0xff]
      %v4478 = vld [vmem:[#allocation3 + $0x22] sm:$0xff]
      %v4479 = vld [vmem:[#allocation3 + $0x32] sm:$0xff]
      %v4480 = vld [vmem:[#allocation3 + $0x3a] sm:$0xff]
      %v4481 = vld [vmem:[#allocation3 + $0x4a] sm:$0xff]
      %v4482 = vld [vmem:[#allocation3 + $0x52] sm:$0xff]
      %v4483 = vld [vmem:[#allocation3 + $0x62] sm:$0xff]
      %v4484 = vld [vmem:[#allocation3 + $0x6a] sm:$0xff]
      %v4485 = vld [vmem:[#allocation3 + $0x7a] sm:$0xff]
      %v4486 = vld [vmem:[#allocation3 + $0x82] sm:$0xff]
      %v4487 = vld [vmem:[#allocation3 + $0x92] sm:$0xff]
      %v4488 = vld [vmem:[#allocation3 + $0x9a] sm:$0xff]
      %v4489 = vld [vmem:[#allocation3 + $0xaa] sm:$0xff]
      %v4490 = vld [vmem:[#allocation3 + $0xb2] sm:$0xff]
      %v4491 = vpack.c.bf16 %v4476, %v4475
      %v4492 = vpack.c.bf16 %v4478, %v4477
      %v4493 = vpack.c.bf16 %v4480, %v4479
      %v4494 = vpack.c.bf16 %v4482, %v4481
      %v4495 = vpack.c.bf16 %v4484, %v4483
      %v4496 = vpack.c.bf16 %v4486, %v4485
      %v4497 = vpack.c.bf16 %v4488, %v4487
      %v4498 = vpack.c.bf16 %v4490, %v4489
      %v4499 = vld [vmem:[%s2157] sm:$0xff]
      %v4500 = vld [vmem:[%s2157 + $0x8] sm:$0xff]
      %v4501 = vld [vmem:[%s2157 + $0x18] sm:$0xff]
      %v4502 = vld [vmem:[%s2157 + $0x20] sm:$0xff]
      %v4503 = vld [vmem:[%s2157 + $0x30] sm:$0xff]
      %v4504 = vld [vmem:[%s2157 + $0x38] sm:$0xff]
      %v4505 = vld [vmem:[%s2157 + $0x48] sm:$0xff]
      %v4506 = vld [vmem:[%s2157 + $0x50] sm:$0xff]
      %v4507 = vld [vmem:[%s2157 + $0x60] sm:$0xff]
      %v4508 = vld [vmem:[%s2157 + $0x68] sm:$0xff]
      %v4509 = vld [vmem:[%s2157 + $0x78] sm:$0xff]
      %v4510 = vld [vmem:[%s2157 + $0x80] sm:$0xff]
      %v4511 = vld [vmem:[%s2157 + $0x90] sm:$0xff]
      %v4512 = vld [vmem:[%s2157 + $0x98] sm:$0xff]
      %v4513 = vld [vmem:[%s2157 + $0xa8] sm:$0xff]
      %v4514 = vld [vmem:[%s2157 + $0xb0] sm:$0xff]
      %v4515 = vpack.c.bf16 %v4500, %v4499
      %v4516 = vpack.c.bf16 %v4502, %v4501
      %v4517 = vpack.c.bf16 %v4504, %v4503
      %v4518 = vpack.c.bf16 %v4506, %v4505
      %v4519 = vpack.c.bf16 %v4508, %v4507
      %v4520 = vpack.c.bf16 %v4510, %v4509
      %v4521 = vpack.c.bf16 %v4512, %v4511
      %v4522 = vpack.c.bf16 %v4514, %v4513
      %v4523 = vld [vmem:[%s2157 + $0x1] sm:$0xff]
      %v4524 = vld [vmem:[%s2157 + $0x9] sm:$0xff]
      %v4525 = vld [vmem:[%s2157 + $0x19] sm:$0xff]
      %v4526 = vld [vmem:[%s2157 + $0x21] sm:$0xff]
      %v4527 = vld [vmem:[%s2157 + $0x31] sm:$0xff]
      %v4528 = vld [vmem:[%s2157 + $0x39] sm:$0xff]
      %v4529 = vld [vmem:[%s2157 + $0x49] sm:$0xff]
      %v4530 = vld [vmem:[%s2157 + $0x51] sm:$0xff]
      %v4531 = vld [vmem:[%s2157 + $0x61] sm:$0xff]
      %v4532 = vld [vmem:[%s2157 + $0x69] sm:$0xff]
      %v4533 = vld [vmem:[%s2157 + $0x79] sm:$0xff]
      %v4534 = vld [vmem:[%s2157 + $0x81] sm:$0xff]
      %v4535 = vld [vmem:[%s2157 + $0x91] sm:$0xff]
      %v4536 = vld [vmem:[%s2157 + $0x99] sm:$0xff]
      %v4537 = vld [vmem:[%s2157 + $0xa9] sm:$0xff]
      %v4538 = vld [vmem:[%s2157 + $0xb1] sm:$0xff]
      %v4539 = vpack.c.bf16 %v4524, %v4523
      %v4540 = vpack.c.bf16 %v4526, %v4525
      %v4541 = vpack.c.bf16 %v4528, %v4527
      %v4542 = vpack.c.bf16 %v4530, %v4529
      %v4543 = vpack.c.bf16 %v4532, %v4531
      %v4544 = vpack.c.bf16 %v4534, %v4533
      %v4545 = vpack.c.bf16 %v4536, %v4535
      %v4546 = vpack.c.bf16 %v4538, %v4537
      %v4547 = vld [vmem:[%s2157 + $0x2] sm:$0xff]
      %v4548 = vld [vmem:[%s2157 + $0xa] sm:$0xff]
      %v4549 = vld [vmem:[%s2157 + $0x1a] sm:$0xff]
      %v4550 = vld [vmem:[%s2157 + $0x22] sm:$0xff]
      %v4551 = vld [vmem:[%s2157 + $0x32] sm:$0xff]
      %v4552 = vld [vmem:[%s2157 + $0x3a] sm:$0xff]
      %v4553 = vld [vmem:[%s2157 + $0x4a] sm:$0xff]
      %v4554 = vld [vmem:[%s2157 + $0x52] sm:$0xff]
      %v4555 = vld [vmem:[%s2157 + $0x62] sm:$0xff]
      %v4556 = vld [vmem:[%s2157 + $0x6a] sm:$0xff]
      %v4557 = vld [vmem:[%s2157 + $0x7a] sm:$0xff]
      %v4558 = vld [vmem:[%s2157 + $0x82] sm:$0xff]
      %v4559 = vld [vmem:[%s2157 + $0x92] sm:$0xff]
      %v4560 = vld [vmem:[%s2157 + $0x9a] sm:$0xff]
      %v4561 = vld [vmem:[%s2157 + $0xaa] sm:$0xff]
      %v4562 = vld [vmem:[%s2157 + $0xb2] sm:$0xff]
      %v4563 = vpack.c.bf16 %v4548, %v4547
      %v4564 = vpack.c.bf16 %v4550, %v4549
      %v4565 = vpack.c.bf16 %v4552, %v4551
      %v4566 = vpack.c.bf16 %v4554, %v4553
      %v4567 = vpack.c.bf16 %v4556, %v4555
      %v4568 = vpack.c.bf16 %v4558, %v4557
      %v4569 = vpack.c.bf16 %v4560, %v4559
      %v4570 = vpack.c.bf16 %v4562, %v4561
      %v4571 = vld [vmem:[%s2392] sm:$0xff]
      %v4572 = vld [vmem:[%s2392 + $0x8] sm:$0xff]
      %v4573 = vld [vmem:[%s2392 + $0x18] sm:$0xff]
      %v4574 = vld [vmem:[%s2392 + $0x20] sm:$0xff]
      %v4575 = vld [vmem:[%s2392 + $0x30] sm:$0xff]
      %v4576 = vld [vmem:[%s2392 + $0x38] sm:$0xff]
      %v4577 = vld [vmem:[%s2392 + $0x48] sm:$0xff]
      %v4578 = vld [vmem:[%s2392 + $0x50] sm:$0xff]
      %v4579 = vld [vmem:[%s2392 + $0x60] sm:$0xff]
      %v4580 = vld [vmem:[%s2392 + $0x68] sm:$0xff]
      %v4581 = vld [vmem:[%s2392 + $0x78] sm:$0xff]
      %v4582 = vld [vmem:[%s2392 + $0x80] sm:$0xff]
      %v4583 = vld [vmem:[%s2392 + $0x90] sm:$0xff]
      %v4584 = vld [vmem:[%s2392 + $0x98] sm:$0xff]
      %v4585 = vld [vmem:[%s2392 + $0xa8] sm:$0xff]
      %v4586 = vld [vmem:[%s2392 + $0xb0] sm:$0xff]
      %v4587 = vpack.c.bf16 %v4572, %v4571
      %v4588 = vpack.c.bf16 %v4574, %v4573
      %v4589 = vpack.c.bf16 %v4576, %v4575
      %v4590 = vpack.c.bf16 %v4578, %v4577
      %v4591 = vpack.c.bf16 %v4580, %v4579
      %v4592 = vpack.c.bf16 %v4582, %v4581
      %v4593 = vpack.c.bf16 %v4584, %v4583
      %v4594 = vpack.c.bf16 %v4586, %v4585
      %v4595 = vld [vmem:[%s2392 + $0x1] sm:$0xff]
      %v4596 = vld [vmem:[%s2392 + $0x9] sm:$0xff]
      %v4597 = vld [vmem:[%s2392 + $0x19] sm:$0xff]
      %v4598 = vld [vmem:[%s2392 + $0x21] sm:$0xff]
      %v4599 = vld [vmem:[%s2392 + $0x31] sm:$0xff]
      %v4600 = vld [vmem:[%s2392 + $0x39] sm:$0xff]
      %v4601 = vld [vmem:[%s2392 + $0x49] sm:$0xff]
      %v4602 = vld [vmem:[%s2392 + $0x51] sm:$0xff]
      %v4603 = vld [vmem:[%s2392 + $0x61] sm:$0xff]
      %v4604 = vld [vmem:[%s2392 + $0x69] sm:$0xff]
      %v4605 = vld [vmem:[%s2392 + $0x79] sm:$0xff]
      %v4606 = vld [vmem:[%s2392 + $0x81] sm:$0xff]
      %v4607 = vld [vmem:[%s2392 + $0x91] sm:$0xff]
      %v4608 = vld [vmem:[%s2392 + $0x99] sm:$0xff]
      %v4609 = vld [vmem:[%s2392 + $0xa9] sm:$0xff]
      %v4610 = vld [vmem:[%s2392 + $0xb1] sm:$0xff]
      %v4611 = vpack.c.bf16 %v4596, %v4595
      %v4612 = vpack.c.bf16 %v4598, %v4597
      %v4613 = vpack.c.bf16 %v4600, %v4599
      %v4614 = vpack.c.bf16 %v4602, %v4601
      %v4615 = vpack.c.bf16 %v4604, %v4603
      %v4616 = vpack.c.bf16 %v4606, %v4605
      %v4617 = vpack.c.bf16 %v4608, %v4607
      %v4618 = vpack.c.bf16 %v4610, %v4609
      %v4619 = vld [vmem:[%s2392 + $0x2] sm:$0xff]
      %v4620 = vld [vmem:[%s2392 + $0xa] sm:$0xff]
      %v4621 = vld [vmem:[%s2392 + $0x1a] sm:$0xff]
      %v4622 = vld [vmem:[%s2392 + $0x22] sm:$0xff]
      %v4623 = vld [vmem:[%s2392 + $0x32] sm:$0xff]
      %v4624 = vld [vmem:[%s2392 + $0x3a] sm:$0xff]
      %v4625 = vld [vmem:[%s2392 + $0x4a] sm:$0xff]
      %v4626 = vld [vmem:[%s2392 + $0x52] sm:$0xff]
      %v4627 = vld [vmem:[%s2392 + $0x62] sm:$0xff]
      %v4628 = vld [vmem:[%s2392 + $0x6a] sm:$0xff]
      %v4629 = vld [vmem:[%s2392 + $0x7a] sm:$0xff]
      %v4630 = vld [vmem:[%s2392 + $0x82] sm:$0xff]
      %v4631 = vld [vmem:[%s2392 + $0x92] sm:$0xff]
      %v4632 = vld [vmem:[%s2392 + $0x9a] sm:$0xff]
      %v4633 = vld [vmem:[%s2392 + $0xaa] sm:$0xff]
      %v4634 = vld [vmem:[%s2392 + $0xb2] sm:$0xff]
      %v4635 = vpack.c.bf16 %v4620, %v4619
      %v4636 = vpack.c.bf16 %v4622, %v4621
      %v4637 = vpack.c.bf16 %v4624, %v4623
      %v4638 = vpack.c.bf16 %v4626, %v4625
      %v4639 = vpack.c.bf16 %v4628, %v4627
      %v4640 = vpack.c.bf16 %v4630, %v4629
      %v4641 = vpack.c.bf16 %v4632, %v4631
      %v4642 = vpack.c.bf16 %v4634, %v4633
      %4651 = vrot.lane.b32.xlu0 %v4467, 64
      %v4652 = vpop.permute.xlu0 %4651
      %4653 = vrot.lane.b32.xlu0 %v4468, 64
      %v4654 = vpop.permute.xlu0 %4653
      %4655 = vrot.lane.b32.xlu0 %v4469, 64
      %v4656 = vpop.permute.xlu0 %4655
      %4657 = vrot.lane.b32.xlu0 %v4470, 64
      %v4658 = vpop.permute.xlu0 %4657
      %4659 = vrot.lane.b32.xlu0 %v4471, 64
      %v4660 = vpop.permute.xlu0 %4659
      %4661 = vrot.lane.b32.xlu0 %v4472, 64
      %v4662 = vpop.permute.xlu0 %4661
      %4663 = vrot.lane.b32.xlu0 %v4473, 64
      %v4664 = vpop.permute.xlu0 %4663
      %4665 = vrot.lane.b32.xlu0 %v4474, 64
      %v4666 = vpop.permute.xlu0 %4665
      %4675 = vrot.lane.b32.xlu0 %v4515, 64
      %v4676 = vpop.permute.xlu0 %4675
      %4677 = vrot.lane.b32.xlu0 %v4516, 64
      %v4678 = vpop.permute.xlu0 %4677
      %4679 = vrot.lane.b32.xlu0 %v4517, 64
      %v4680 = vpop.permute.xlu0 %4679
      %4681 = vrot.lane.b32.xlu0 %v4518, 64
      %v4682 = vpop.permute.xlu0 %4681
      %4683 = vrot.lane.b32.xlu0 %v4519, 64
      %v4684 = vpop.permute.xlu0 %4683
      %4685 = vrot.lane.b32.xlu0 %v4520, 64
      %v4686 = vpop.permute.xlu0 %4685
      %4687 = vrot.lane.b32.xlu0 %v4521, 64
      %v4688 = vpop.permute.xlu0 %4687
      %4689 = vrot.lane.b32.xlu0 %v4522, 64
      %v4690 = vpop.permute.xlu0 %4689
      %4699 = vrot.lane.b32.xlu0 %v4563, 64
      %v4700 = vpop.permute.xlu0 %4699
      %4701 = vrot.lane.b32.xlu0 %v4564, 64
      %v4702 = vpop.permute.xlu0 %4701
      %4703 = vrot.lane.b32.xlu0 %v4565, 64
      %v4704 = vpop.permute.xlu0 %4703
      %4705 = vrot.lane.b32.xlu0 %v4566, 64
      %v4706 = vpop.permute.xlu0 %4705
      %4707 = vrot.lane.b32.xlu0 %v4567, 64
      %v4708 = vpop.permute.xlu0 %4707
      %4709 = vrot.lane.b32.xlu0 %v4568, 64
      %v4710 = vpop.permute.xlu0 %4709
      %4711 = vrot.lane.b32.xlu0 %v4569, 64
      %v4712 = vpop.permute.xlu0 %4711
      %4713 = vrot.lane.b32.xlu0 %v4570, 64
      %v4714 = vpop.permute.xlu0 %4713
      %4723 = vrot.lane.b32.xlu0 %v4611, 64
      %v4724 = vpop.permute.xlu0 %4723
      %4725 = vrot.lane.b32.xlu0 %v4612, 64
      %v4726 = vpop.permute.xlu0 %4725
      %4727 = vrot.lane.b32.xlu0 %v4613, 64
      %v4728 = vpop.permute.xlu0 %4727
      %4729 = vrot.lane.b32.xlu0 %v4614, 64
      %v4730 = vpop.permute.xlu0 %4729
      %4731 = vrot.lane.b32.xlu0 %v4615, 64
      %v4732 = vpop.permute.xlu0 %4731
      %4733 = vrot.lane.b32.xlu0 %v4616, 64
      %v4734 = vpop.permute.xlu0 %4733
      %4735 = vrot.lane.b32.xlu0 %v4617, 64
      %v4736 = vpop.permute.xlu0 %4735
      %4737 = vrot.lane.b32.xlu0 %v4618, 64
      %v4738 = vpop.permute.xlu0 %4737
      %v4741 = vsel %vm340, %v4443, %v4652
      %v4745 = vsel %vm340, %v4444, %v4654
      %v4749 = vsel %vm340, %v4445, %v4656
      %v4753 = vsel %vm340, %v4446, %v4658
      %v4757 = vsel %vm340, %v4447, %v4660
      %v4761 = vsel %vm340, %v4448, %v4662
      %v4765 = vsel %vm340, %v4449, %v4664
      %v4769 = vsel %vm340, %v4450, %v4666
      %v4773 = vsel %vm340, %v4491, %v4676
      %v4777 = vsel %vm340, %v4492, %v4678
      %v4781 = vsel %vm340, %v4493, %v4680
      %v4785 = vsel %vm340, %v4494, %v4682
      %v4789 = vsel %vm340, %v4495, %v4684
      %v4793 = vsel %vm340, %v4496, %v4686
      %v4797 = vsel %vm340, %v4497, %v4688
      %v4801 = vsel %vm340, %v4498, %v4690
      %v4805 = vsel %vm340, %v4539, %v4700
      %v4809 = vsel %vm340, %v4540, %v4702
      %v4813 = vsel %vm340, %v4541, %v4704
      %v4817 = vsel %vm340, %v4542, %v4706
      %v4821 = vsel %vm340, %v4543, %v4708
      %v4825 = vsel %vm340, %v4544, %v4710
      %v4829 = vsel %vm340, %v4545, %v4712
      %v4833 = vsel %vm340, %v4546, %v4714
      %v4837 = vsel %vm340, %v4587, %v4724
      %v4841 = vsel %vm340, %v4588, %v4726
      %v4845 = vsel %vm340, %v4589, %v4728
      %v4849 = vsel %vm340, %v4590, %v4730
      %v4853 = vsel %vm340, %v4591, %v4732
      %v4857 = vsel %vm340, %v4592, %v4734
      %v4861 = vsel %vm340, %v4593, %v4736
      %v4865 = vsel %vm340, %v4594, %v4738
      %v4867 = vlaneseq
      %v4868 = vshrl.u32 %v4867, 7
      %v4869 = vsub.s32 0, %v4868
      %v4870 = vrot.slane %v4426, %v4869
      %v4943 = vunpack.c.l.b16 %v4354
      %v4944 = vunpack.c.l.b16 %v4355
      %v4945 = vunpack.c.l.b16 %v4356
      %v4946 = vunpack.c.l.b16 %v4357
      %v4947 = vunpack.c.l.b16 %v4358
      %v4948 = vunpack.c.l.b16 %v4359
      %v4949 = vunpack.c.l.b16 %v4360
      %v4950 = vunpack.c.l.b16 %v4361
      %v4951 = vunpack.c.l.b16 %v4362
      %v4952 = vunpack.c.l.b16 %v4363
      %v4953 = vunpack.c.l.b16 %v4364
      %v4954 = vunpack.c.l.b16 %v4365
      %v4955 = vunpack.c.l.b16 %v4366
      %v4956 = vunpack.c.l.b16 %v4367
      %v4957 = vunpack.c.l.b16 %v4368
      %v4958 = vunpack.c.l.b16 %v4369
      %v4959 = vunpack.c.l.b16 %v4370
      %v4960 = vunpack.c.l.b16 %v4371
      %v4961 = vunpack.c.l.b16 %v4372
      %v4962 = vunpack.c.l.b16 %v4373
      %v4963 = vunpack.c.l.b16 %v4374
      %v4964 = vunpack.c.l.b16 %v4375
      %v4965 = vunpack.c.l.b16 %v4376
      %v4966 = vunpack.c.l.b16 %v4377
      %v4967 = vunpack.c.l.b16 %v4378
      %v4968 = vunpack.c.l.b16 %v4379
      %v4969 = vunpack.c.l.b16 %v4380
      %v4970 = vunpack.c.l.b16 %v4381
      %v4971 = vunpack.c.l.b16 %v4382
      %v4972 = vunpack.c.l.b16 %v4383
      %v4973 = vunpack.c.l.b16 %v4384
      %v4974 = vunpack.c.l.b16 %v4385
      %v4975 = vunpack.c.l.b16 %v4386
      %v4976 = vunpack.c.l.b16 %v4387
      %v4977 = vunpack.c.l.b16 %v4388
      %v4978 = vunpack.c.l.b16 %v4389
      %v4979 = vunpack.c.l.b16 %v4390
      %v4980 = vunpack.c.l.b16 %v4391
      %v4981 = vunpack.c.l.b16 %v4392
      %v4982 = vunpack.c.l.b16 %v4393
      %v4983 = vunpack.c.l.b16 %v4394
      %v4984 = vunpack.c.l.b16 %v4395
      %v4985 = vunpack.c.l.b16 %v4396
      %v4986 = vunpack.c.l.b16 %v4397
      %v4987 = vunpack.c.l.b16 %v4398
      %v4988 = vunpack.c.l.b16 %v4399
      %v4989 = vunpack.c.l.b16 %v4400
      %v4990 = vunpack.c.l.b16 %v4401
      %v4991 = vunpack.c.l.b16 %v4402
      %v4992 = vunpack.c.l.b16 %v4403
      %v4993 = vunpack.c.l.b16 %v4404
      %v4994 = vunpack.c.l.b16 %v4405
      %v4995 = vunpack.c.l.b16 %v4406
      %v4996 = vunpack.c.l.b16 %v4407
      %v4997 = vunpack.c.l.b16 %v4408
      %v4998 = vunpack.c.l.b16 %v4409
      %v4999 = vunpack.c.l.b16 %v4410
      %v5000 = vunpack.c.l.b16 %v4411
      %v5001 = vunpack.c.l.b16 %v4412
      %v5002 = vunpack.c.l.b16 %v4413
      %v5003 = vunpack.c.l.b16 %v4414
      %v5004 = vunpack.c.l.b16 %v4415
      %v5005 = vunpack.c.l.b16 %v4416
      %v5006 = vunpack.c.l.b16 %v4417
      %v5007 = vunpack.c.l.b16 %v4418
      %v5008 = vunpack.c.l.b16 %v4419
      %v5009 = vunpack.c.l.b16 %v4420
      %v5010 = vunpack.c.l.b16 %v4421
      %v5011 = vunpack.c.l.b16 %v4422
      %v5012 = vunpack.c.l.b16 %v4423
      %v5013 = vunpack.c.l.b16 %v4424
      %v5014 = vunpack.c.l.b16 %v4425
      %v5015 = vpack.c.b16 %v4944, %v4943
      %v5016 = vpack.c.b16 %v4946, %v4945
      %v5017 = vpack.c.b16 %v4948, %v4947
      %v5018 = vpack.c.b16 %v4950, %v4949
      %v5019 = vpack.c.b16 %v4952, %v4951
      %v5020 = vpack.c.b16 %v4954, %v4953
      %v5021 = vpack.c.b16 %v4956, %v4955
      %v5022 = vpack.c.b16 %v4958, %v4957
      %v5023 = vpack.c.b16 %v4960, %v4959
      %v5024 = vpack.c.b16 %v4962, %v4961
      %v5025 = vpack.c.b16 %v4964, %v4963
      %v5026 = vpack.c.b16 %v4966, %v4965
      %v5027 = vpack.c.b16 %v4968, %v4967
      %v5028 = vpack.c.b16 %v4970, %v4969
      %v5029 = vpack.c.b16 %v4972, %v4971
      %v5030 = vpack.c.b16 %v4974, %v4973
      %v5031 = vpack.c.b16 %v4976, %v4975
      %v5032 = vpack.c.b16 %v4978, %v4977
      %v5033 = vpack.c.b16 %v4980, %v4979
      %v5034 = vpack.c.b16 %v4982, %v4981
      %v5035 = vpack.c.b16 %v4984, %v4983
      %v5036 = vpack.c.b16 %v4986, %v4985
      %v5037 = vpack.c.b16 %v4988, %v4987
      %v5038 = vpack.c.b16 %v4990, %v4989
      %v5039 = vpack.c.b16 %v4992, %v4991
      %v5040 = vpack.c.b16 %v4994, %v4993
      %v5041 = vpack.c.b16 %v4996, %v4995
      %v5042 = vpack.c.b16 %v4998, %v4997
      %v5043 = vpack.c.b16 %v5000, %v4999
      %v5044 = vpack.c.b16 %v5002, %v5001
      %v5045 = vpack.c.b16 %v5004, %v5003
      %v5046 = vpack.c.b16 %v5006, %v5005
      %v5047 = vpack.c.b16 %v5008, %v5007
      %v5048 = vpack.c.b16 %v5010, %v5009
      %v5049 = vpack.c.b16 %v5012, %v5011
      %v5050 = vpack.c.b16 %v5014, %v5013
      %v5088 = vsel %vm340, %v4635, 0
      %v5091 = vsel %vm340, %v4636, 0
      %v5094 = vsel %vm340, %v4637, 0
      %v5097 = vsel %vm340, %v4638, 0
      %v5100 = vsel %vm340, %v4639, 0
      %v5103 = vsel %vm340, %v4640, 0
      %v5106 = vsel %vm340, %v4641, 0
      %v5109 = vsel %vm340, %v4642, 0
      %5111 = vmatprep.subr.bf16.mxu0 0
      %5112 = vmatpush1.bf16.msra.mxu0 %v5015
      %5113 = vmatprep.subr.bf16.mxu0 0
      %5114 = vmatpush1.bf16.msra.mxu0 %v5016
      %5115 = vmatprep.subr.bf16.mxu0 0
      %5116 = vmatpush1.bf16.msra.mxu0 %v5017
      %5117 = vmatprep.subr.bf16.mxu0 0
      %5118 = vmatpush1.bf16.msra.mxu0 %v5018
      %5119 = vmatprep.subr.bf16.mxu0 0
      %5120 = vmatpush1.bf16.msra.mxu0 %v5019
      %5121 = vmatprep.subr.bf16.mxu0 0
      %5122 = vmatpush1.bf16.msra.mxu0 %v5020
      %5123 = vmatprep.subr.bf16.mxu0 0
      %5124 = vmatpush1.bf16.msra.mxu0 %v5021
      %5125 = vmatprep.subr.bf16.mxu0 0
      %5126 = vmatpush1.bf16.msra.mxu0 %v5022
      %5127 = vmatprep.subr.bf16.mxu0 0
      %5128 = vmatpush1.bf16.msra.mxu0 %v5023
      %5129 = vmatprep.subr.bf16.mxu0 0
      %5130 = vmatpush1.bf16.msra.mxu0 %v5024
      %5131 = vmatprep.subr.bf16.mxu0 0
      %5132 = vmatpush1.bf16.msra.mxu0 %v5025
      %5133 = vmatprep.subr.bf16.mxu0 0
      %5134 = vmatpush1.bf16.msra.mxu0 %v5026
      %5135 = vmatprep.subr.bf16.mxu0 0
      %5136 = vmatpush1.bf16.msra.mxu0 %v5027
      %5137 = vmatprep.subr.bf16.mxu0 0
      %5138 = vmatpush1.bf16.msra.mxu0 %v5028
      %5139 = vmatprep.subr.bf16.mxu0 0
      %5140 = vmatpush1.bf16.msra.mxu0 %v5029
      %5141 = vmatprep.subr.bf16.mxu0 0
      %5142 = vmatpush1.bf16.msra.mxu0 %v5030
      %5143 = vmatprep.mubr.bf16.mxu0 %v4773
      %5144 = vmatmul.mubr.bf16.gmra.mrb[0].mxu0 %v4741
      %v5145 = vpop.f32.mrb[0].mxu0
      %v5146 = vadd.f32 %v4870, %v5145
      %v5147 = vpop.f32.mrb[0].mxu0
      %v5148 = vpop.f32.mrb[0].mxu0
      %v5149 = vadd.f32 %v4870, %v5148
      %v5150 = vpop.f32.mrb[0].mxu0
      %5151 = vmatprep.mubr.bf16.mxu0 %v4777
      %5152 = vmatmul.mubr.bf16.gmra.mrb[0].mxu0 %v4745
      %v5153 = vpop.f32.mrb[0].mxu0
      %v5154 = vadd.f32 %v4870, %v5153
      %v5155 = vpop.f32.mrb[0].mxu0
      %v5156 = vpop.f32.mrb[0].mxu0
      %v5157 = vadd.f32 %v4870, %v5156
      %v5158 = vpop.f32.mrb[0].mxu0
      %5159 = vmatprep.mubr.bf16.mxu0 %v4781
      %5160 = vmatmul.mubr.bf16.gmra.mrb[0].mxu0 %v4749
      %v5161 = vpop.f32.mrb[0].mxu0
      %v5162 = vadd.f32 %v4870, %v5161
      %v5163 = vpop.f32.mrb[0].mxu0
      %v5164 = vpop.f32.mrb[0].mxu0
      %v5165 = vadd.f32 %v4870, %v5164
      %v5166 = vpop.f32.mrb[0].mxu0
      %5167 = vmatprep.mubr.bf16.mxu0 %v4785
      %5168 = vmatmul.mubr.bf16.gmra.mrb[0].mxu0 %v4753
      %v5169 = vpop.f32.mrb[0].mxu0
      %v5170 = vadd.f32 %v4870, %v5169
      %v5171 = vpop.f32.mrb[0].mxu0
      %v5172 = vpop.f32.mrb[0].mxu0
      %v5173 = vadd.f32 %v4870, %v5172
      %v5174 = vpop.f32.mrb[0].mxu0
      %5175 = vmatprep.mubr.bf16.mxu0 %v4789
      %5176 = vmatmul.mubr.bf16.gmra.mrb[0].mxu0 %v4757
      %v5177 = vpop.f32.mrb[0].mxu0
      %v5178 = vadd.f32 %v4870, %v5177
      %v5179 = vpop.f32.mrb[0].mxu0
      %v5180 = vpop.f32.mrb[0].mxu0
      %v5181 = vadd.f32 %v4870, %v5180
      %v5182 = vpop.f32.mrb[0].mxu0
      %5183 = vmatprep.mubr.bf16.mxu0 %v4793
      %5184 = vmatmul.mubr.bf16.gmra.mrb[0].mxu0 %v4761
      %v5185 = vpop.f32.mrb[0].mxu0
      %v5186 = vadd.f32 %v4870, %v5185
      %v5187 = vpop.f32.mrb[0].mxu0
      %v5188 = vpop.f32.mrb[0].mxu0
      %v5189 = vadd.f32 %v4870, %v5188
      %v5190 = vpop.f32.mrb[0].mxu0
      %5191 = vmatprep.mubr.bf16.mxu0 %v4797
      %5192 = vmatmul.mubr.bf16.gmra.mrb[0].mxu0 %v4765
      %v5193 = vpop.f32.mrb[0].mxu0
      %v5194 = vadd.f32 %v4870, %v5193
      %v5195 = vpop.f32.mrb[0].mxu0
      %v5196 = vpop.f32.mrb[0].mxu0
      %v5197 = vadd.f32 %v4870, %v5196
      %v5198 = vpop.f32.mrb[0].mxu0
      %5199 = vmatprep.mubr.bf16.mxu0 %v4801
      %5200 = vmatmul.mubr.bf16.gmra.mrb[0].mxu0 %v4769
      %v5201 = vpop.f32.mrb[0].mxu0
      %v5202 = vadd.f32 %v4870, %v5201
      %v5203 = vpop.f32.mrb[0].mxu0
      %v5204 = vpop.f32.mrb[0].mxu0
      %v5205 = vadd.f32 %v4870, %v5204
      %v5206 = vpop.f32.mrb[0].mxu0
      %5207 = vdwg.mxu0
      %5208 = vmatprep.subr.bf16.mxu0 0
      %5209 = vmatpush1.bf16.msra.mxu0 %v5031
      %5210 = vmatprep.subr.bf16.mxu0 0
      %5211 = vmatpush1.bf16.msra.mxu0 %v5032
      %5212 = vmatprep.subr.bf16.mxu0 0
      %5213 = vmatpush1.bf16.msra.mxu0 %v5033
      %5214 = vmatprep.subr.bf16.mxu0 0
      %5215 = vmatpush1.bf16.msra.mxu0 %v5034
      %5216 = vmatprep.subr.bf16.mxu0 0
      %5217 = vmatpush1.bf16.msra.mxu0 %v5035
      %5218 = vmatprep.subr.bf16.mxu0 0
      %5219 = vmatpush1.bf16.msra.mxu0 %v5036
      %5220 = vmatprep.subr.bf16.mxu0 0
      %5221 = vmatpush1.bf16.msra.mxu0 %v5037
      %5222 = vmatprep.subr.bf16.mxu0 0
      %5223 = vmatpush1.bf16.msra.mxu0 %v5038
      %5224 = vmatprep.subr.bf16.mxu0 0
      %5225 = vmatpush1.bf16.msra.mxu0 %v5039
      %5226 = vmatprep.subr.bf16.mxu0 0
      %5227 = vmatpush1.bf16.msra.mxu0 %v5040
      %5228 = vmatprep.subr.bf16.mxu0 0
      %5229 = vmatpush1.bf16.msra.mxu0 %v5041
      %5230 = vmatprep.subr.bf16.mxu0 0
      %5231 = vmatpush1.bf16.msra.mxu0 %v5042
      %5232 = vmatprep.subr.bf16.mxu0 0
      %5233 = vmatpush1.bf16.msra.mxu0 %v5043
      %5234 = vmatprep.subr.bf16.mxu0 0
      %5235 = vmatpush1.bf16.msra.mxu0 %v5044
      %5236 = vmatprep.subr.bf16.mxu0 0
      %5237 = vmatpush1.bf16.msra.mxu0 %v5045
      %5238 = vmatprep.subr.bf16.mxu0 0
      %5239 = vmatpush1.bf16.msra.mxu0 %v5046
      %5240 = vmatprep.mubr.bf16.mxu0 %v4837
      %5241 = vmatmul.mubr.bf16.gmra.mrb[0].mxu0 %v4805
      %v5242 = vpop.f32.mrb[0].mxu0
      %v5243 = vadd.f32 %v5146, %v5242
      %v5244 = vpop.f32.mrb[0].mxu0
      %v5245 = vpop.f32.mrb[0].mxu0
      %v5246 = vadd.f32 %v5149, %v5245
      %v5247 = vpop.f32.mrb[0].mxu0
      %5248 = vmatprep.mubr.bf16.mxu0 %v4841
      %5249 = vmatmul.mubr.bf16.gmra.mrb[0].mxu0 %v4809
      %v5250 = vpop.f32.mrb[0].mxu0
      %v5251 = vadd.f32 %v5154, %v5250
      %v5252 = vpop.f32.mrb[0].mxu0
      %v5253 = vpop.f32.mrb[0].mxu0
      %v5254 = vadd.f32 %v5157, %v5253
      %v5255 = vpop.f32.mrb[0].mxu0
      %5256 = vmatprep.mubr.bf16.mxu0 %v4845
      %5257 = vmatmul.mubr.bf16.gmra.mrb[0].mxu0 %v4813
      %v5258 = vpop.f32.mrb[0].mxu0
      %v5259 = vadd.f32 %v5162, %v5258
      %v5260 = vpop.f32.mrb[0].mxu0
      %v5261 = vpop.f32.mrb[0].mxu0
      %v5262 = vadd.f32 %v5165, %v5261
      %v5263 = vpop.f32.mrb[0].mxu0
      %5264 = vmatprep.mubr.bf16.mxu0 %v4849
      %5265 = vmatmul.mubr.bf16.gmra.mrb[0].mxu0 %v4817
      %v5266 = vpop.f32.mrb[0].mxu0
      %v5267 = vadd.f32 %v5170, %v5266
      %v5268 = vpop.f32.mrb[0].mxu0
      %v5269 = vpop.f32.mrb[0].mxu0
      %v5270 = vadd.f32 %v5173, %v5269
      %v5271 = vpop.f32.mrb[0].mxu0
      %5272 = vmatprep.mubr.bf16.mxu0 %v4853
      %5273 = vmatmul.mubr.bf16.gmra.mrb[0].mxu0 %v4821
      %v5274 = vpop.f32.mrb[0].mxu0
      %v5275 = vadd.f32 %v5178, %v5274
      %v5276 = vpop.f32.mrb[0].mxu0
      %v5277 = vpop.f32.mrb[0].mxu0
      %v5278 = vadd.f32 %v5181, %v5277
      %v5279 = vpop.f32.mrb[0].mxu0
      %5280 = vmatprep.mubr.bf16.mxu0 %v4857
      %5281 = vmatmul.mubr.bf16.gmra.mrb[0].mxu0 %v4825
      %v5282 = vpop.f32.mrb[0].mxu0
      %v5283 = vadd.f32 %v5186, %v5282
      %v5284 = vpop.f32.mrb[0].mxu0
      %v5285 = vpop.f32.mrb[0].mxu0
      %v5286 = vadd.f32 %v5189, %v5285
      %v5287 = vpop.f32.mrb[0].mxu0
      %5288 = vmatprep.mubr.bf16.mxu0 %v4861
      %5289 = vmatmul.mubr.bf16.gmra.mrb[0].mxu0 %v4829
      %v5290 = vpop.f32.mrb[0].mxu0
      %v5291 = vadd.f32 %v5194, %v5290
      %v5292 = vpop.f32.mrb[0].mxu0
      %v5293 = vpop.f32.mrb[0].mxu0
      %v5294 = vadd.f32 %v5197, %v5293
      %v5295 = vpop.f32.mrb[0].mxu0
      %5296 = vmatprep.mubr.bf16.mxu0 %v4865
      %5297 = vmatmul.mubr.bf16.gmra.mrb[0].mxu0 %v4833
      %v5298 = vpop.f32.mrb[0].mxu0
      %v5299 = vadd.f32 %v5202, %v5298
      %v5300 = vpop.f32.mrb[0].mxu0
      %v5301 = vpop.f32.mrb[0].mxu0
      %v5302 = vadd.f32 %v5205, %v5301
      %v5303 = vpop.f32.mrb[0].mxu0
      %5304 = vdwg.mxu0
      %5305 = vmatprep.subr.bf16.mxu0 0
      %5306 = vmatpush1.bf16.msra.mxu0 %v5047
      %5307 = vmatprep.subr.bf16.mxu0 0
      %5308 = vmatpush1.bf16.msra.mxu0 %v5048
      %5309 = vmatprep.subr.bf16.mxu0 0
      %5310 = vmatpush1.bf16.msra.mxu0 %v5049
      %5311 = vmatprep.subr.bf16.mxu0 0
      %5312 = vmatpush1.bf16.msra.mxu0 %v5050
      %5313 = vmatprep.subr.bf16.mxu0 0
      %5314 = vmatpush1.bf16.msra.mxu0 0
      %5315 = vmatprep.subr.bf16.mxu0 0
      %5316 = vmatpush1.bf16.msra.mxu0 0
      %5317 = vmatprep.subr.bf16.mxu0 0
      %5318 = vmatpush1.bf16.msra.mxu0 0
      %5319 = vmatprep.subr.bf16.mxu0 0
      %5320 = vmatpush1.bf16.msra.mxu0 0
      %5321 = vmatprep.subr.bf16.mxu0 0
      %5322 = vmatpush1.bf16.msra.mxu0 0
      %5323 = vmatprep.subr.bf16.mxu0 0
      %5324 = vmatpush1.bf16.msra.mxu0 0
      %5325 = vmatprep.subr.bf16.mxu0 0
      %5326 = vmatpush1.bf16.msra.mxu0 0
      %5327 = vmatprep.subr.bf16.mxu0 0
      %5328 = vmatpush1.bf16.msra.mxu0 0
      %5329 = vmatprep.subr.bf16.mxu0 0
      %5330 = vmatpush1.bf16.msra.mxu0 0
      %5331 = vmatprep.subr.bf16.mxu0 0
      %5332 = vmatpush1.bf16.msra.mxu0 0
      %5333 = vmatprep.subr.bf16.mxu0 0
      %5334 = vmatpush1.bf16.msra.mxu0 0
      %5335 = vmatprep.subr.bf16.mxu0 0
      %5336 = vmatpush1.bf16.msra.mxu0 0
      %5337 = vmatprep.mubr.bf16.mxu0 0
      %5338 = vmatmul.mubr.bf16.gmra.mrb[0].mxu0 %v5088
      %v5339 = vpop.f32.mrb[0].mxu0
      %v5340 = vadd.f32 %v5243, %v5339
      %v5341 = vpop.f32.mrb[0].mxu0
      %v5342 = vpop.f32.mrb[0].mxu0
      %v5343 = vadd.f32 %v5246, %v5342
      %v5344 = vpop.f32.mrb[0].mxu0
      %5345 = vmatprep.mubr.bf16.mxu0 0
      %5346 = vmatmul.mubr.bf16.gmra.mrb[0].mxu0 %v5091
      %v5347 = vpop.f32.mrb[0].mxu0
      %v5348 = vadd.f32 %v5251, %v5347
      %v5349 = vpop.f32.mrb[0].mxu0
      %v5350 = vpop.f32.mrb[0].mxu0
      %v5351 = vadd.f32 %v5254, %v5350
      %v5352 = vpop.f32.mrb[0].mxu0
      %5353 = vmatprep.mubr.bf16.mxu0 0
      %5354 = vmatmul.mubr.bf16.gmra.mrb[0].mxu0 %v5094
      %v5355 = vpop.f32.mrb[0].mxu0
      %v5356 = vadd.f32 %v5259, %v5355
      %v5357 = vpop.f32.mrb[0].mxu0
      %v5358 = vpop.f32.mrb[0].mxu0
      %v5359 = vadd.f32 %v5262, %v5358
      %v5360 = vpop.f32.mrb[0].mxu0
      %5361 = vmatprep.mubr.bf16.mxu0 0
      %5362 = vmatmul.mubr.bf16.gmra.mrb[0].mxu0 %v5097
      %v5363 = vpop.f32.mrb[0].mxu0
      %v5364 = vadd.f32 %v5267, %v5363
      %v5365 = vpop.f32.mrb[0].mxu0
      %v5366 = vpop.f32.mrb[0].mxu0
      %v5367 = vadd.f32 %v5270, %v5366
      %v5368 = vpop.f32.mrb[0].mxu0
      %5369 = vmatprep.mubr.bf16.mxu0 0
      %5370 = vmatmul.mubr.bf16.gmra.mrb[0].mxu0 %v5100
      %v5371 = vpop.f32.mrb[0].mxu0
      %v5372 = vadd.f32 %v5275, %v5371
      %v5373 = vpop.f32.mrb[0].mxu0
      %v5374 = vpop.f32.mrb[0].mxu0
      %v5375 = vadd.f32 %v5278, %v5374
      %v5376 = vpop.f32.mrb[0].mxu0
      %5377 = vmatprep.mubr.bf16.mxu0 0
      %5378 = vmatmul.mubr.bf16.gmra.mrb[0].mxu0 %v5103
      %v5379 = vpop.f32.mrb[0].mxu0
      %v5380 = vadd.f32 %v5283, %v5379
      %v5381 = vpop.f32.mrb[0].mxu0
      %v5382 = vpop.f32.mrb[0].mxu0
      %v5383 = vadd.f32 %v5286, %v5382
      %v5384 = vpop.f32.mrb[0].mxu0
      %5385 = vmatprep.mubr.bf16.mxu0 0
      %5386 = vmatmul.mubr.bf16.gmra.mrb[0].mxu0 %v5106
      %v5387 = vpop.f32.mrb[0].mxu0
      %v5388 = vadd.f32 %v5291, %v5387
      %v5389 = vpop.f32.mrb[0].mxu0
      %v5390 = vpop.f32.mrb[0].mxu0
      %v5391 = vadd.f32 %v5294, %v5390
      %v5392 = vpop.f32.mrb[0].mxu0
      %5393 = vmatprep.mubr.bf16.mxu0 0
      %5394 = vmatmul.mubr.bf16.gmra.mrb[0].mxu0 %v5109
      %v5395 = vpop.f32.mrb[0].mxu0
      %v5396 = vadd.f32 %v5299, %v5395
      %v5397 = vpop.f32.mrb[0].mxu0
      %v5398 = vpop.f32.mrb[0].mxu0
      %v5399 = vadd.f32 %v5302, %v5398
      %v5400 = vpop.f32.mrb[0].mxu0
      %5401 = vdwg.mxu0
      %v5402 = vadd.f32 %v5340, %v3240
      %v5403 = vadd.f32 %v5343, %v3241
      %v5404 = vadd.f32 %v5348, %v3242
      %v5405 = vadd.f32 %v5351, %v3243
      %v5406 = vadd.f32 %v5356, %v3244
      %v5407 = vadd.f32 %v5359, %v3245
      %v5408 = vadd.f32 %v5364, %v3246
      %v5409 = vadd.f32 %v5367, %v3247
      %v5410 = vadd.f32 %v5372, %v3248
      %v5411 = vadd.f32 %v5375, %v3249
      %v5412 = vadd.f32 %v5380, %v3250
      %v5413 = vadd.f32 %v5383, %v3251
      %v5414 = vadd.f32 %v5388, %v3252
      %v5415 = vadd.f32 %v5391, %v3253
      %v5416 = vadd.f32 %v5396, %v3254
      %v5417 = vadd.f32 %v5399, %v3255
      %v5418 = vmax.f32 %v5402, 0.0
      %v5419 = vmax.f32 %v5403, 0.0
      %v5420 = vmax.f32 %v5404, 0.0
      %v5421 = vmax.f32 %v5405, 0.0
      %v5422 = vmax.f32 %v5406, 0.0
      %v5423 = vmax.f32 %v5407, 0.0
      %v5424 = vmax.f32 %v5408, 0.0
      %v5425 = vmax.f32 %v5409, 0.0
      %v5426 = vmax.f32 %v5410, 0.0
      %v5427 = vmax.f32 %v5411, 0.0
      %v5428 = vmax.f32 %v5412, 0.0
      %v5429 = vmax.f32 %v5413, 0.0
      %v5430 = vmax.f32 %v5414, 0.0
      %v5431 = vmax.f32 %v5415, 0.0
      %v5432 = vmax.f32 %v5416, 0.0
      %v5433 = vmax.f32 %v5417, 0.0
      %5434 = vst.msk [vmem:[%s1075 + $0x1] sm:$0xff] %vm340, %v5418
      %5435 = vst.msk [vmem:[%s1075 + $0x9] sm:$0xff] %vm340, %v5419
      %5436 = vst.msk [vmem:[%s1075 + $0x19] sm:$0xff] %vm340, %v5420
      %5437 = vst.msk [vmem:[%s1075 + $0x21] sm:$0xff] %vm340, %v5421
      %5438 = vst.msk [vmem:[%s1075 + $0x31] sm:$0xff] %vm340, %v5422
      %5439 = vst.msk [vmem:[%s1075 + $0x39] sm:$0xff] %vm340, %v5423
      %5440 = vst.msk [vmem:[%s1075 + $0x49] sm:$0xff] %vm340, %v5424
      %5441 = vst.msk [vmem:[%s1075 + $0x51] sm:$0xff] %vm340, %v5425
      %5442 = vst.msk [vmem:[%s1075 + $0x61] sm:$0xff] %vm340, %v5426
      %5443 = vst.msk [vmem:[%s1075 + $0x69] sm:$0xff] %vm340, %v5427
      %5444 = vst.msk [vmem:[%s1075 + $0x79] sm:$0xff] %vm340, %v5428
      %5445 = vst.msk [vmem:[%s1075 + $0x81] sm:$0xff] %vm340, %v5429
      %5446 = vst.msk [vmem:[%s1075 + $0x91] sm:$0xff] %vm340, %v5430
      %5447 = vst.msk [vmem:[%s1075 + $0x99] sm:$0xff] %vm340, %v5431
      %5448 = vst.msk [vmem:[%s1075 + $0xa9] sm:$0xff] %vm340, %v5432
      %5449 = vst.msk [vmem:[%s1075 + $0xb1] sm:$0xff] %vm340, %v5433
      %s5450 = scalar_lea.vmem %s3, 1152
      %v5451 = vld [vmem:[%s5450] sm:$0xf]
      %v5452 = vld [vmem:[%s5450 + $0x4] sm:$0xf]
      %v5453 = vld [vmem:[%s5450 + $0x8] sm:$0xf]
      %v5454 = vld [vmem:[%s5450 + $0xc] sm:$0xf]
      %v5455 = vld [vmem:[%s5450 + $0x10] sm:$0xf]
      %v5456 = vld [vmem:[%s5450 + $0x14] sm:$0xf]
      %v5457 = vld [vmem:[%s5450 + $0x18] sm:$0xf]
      %v5458 = vld [vmem:[%s5450 + $0x1c] sm:$0xf]
      %v5459 = vld [vmem:[%s5450 + $0x20] sm:$0xf]
      %v5460 = vld [vmem:[%s5450 + $0x24] sm:$0xf]
      %v5461 = vld [vmem:[%s5450 + $0x28] sm:$0xf]
      %v5462 = vld [vmem:[%s5450 + $0x2c] sm:$0xf]
      %v5463 = vld [vmem:[%s5450 + $0x30] sm:$0xf]
      %v5464 = vld [vmem:[%s5450 + $0x34] sm:$0xf]
      %v5465 = vld [vmem:[%s5450 + $0x38] sm:$0xf]
      %v5466 = vld [vmem:[%s5450 + $0x3c] sm:$0xf]
      %v5467 = vld [vmem:[%s5450 + $0x40] sm:$0xf]
      %v5468 = vld [vmem:[%s5450 + $0x44] sm:$0xf]
      %v5469 = vld [vmem:[%s5450 + $0x48] sm:$0xf]
      %v5470 = vld [vmem:[%s5450 + $0x4c] sm:$0xf]
      %v5471 = vld [vmem:[%s5450 + $0x50] sm:$0xf]
      %v5472 = vld [vmem:[%s5450 + $0x54] sm:$0xf]
      %v5473 = vld [vmem:[%s5450 + $0x58] sm:$0xf]
      %v5474 = vld [vmem:[%s5450 + $0x5c] sm:$0xf]
      %v5475 = vld [vmem:[%s5450 + $0x60] sm:$0xf]
      %v5476 = vld [vmem:[%s5450 + $0x64] sm:$0xf]
      %v5477 = vld [vmem:[%s5450 + $0x68] sm:$0xf]
      %v5478 = vld [vmem:[%s5450 + $0x6c] sm:$0xf]
      %v5479 = vld [vmem:[%s5450 + $0x70] sm:$0xf]
      %v5480 = vld [vmem:[%s5450 + $0x74] sm:$0xf]
      %v5481 = vld [vmem:[%s5450 + $0x78] sm:$0xf]
      %v5482 = vld [vmem:[%s5450 + $0x7c] sm:$0xf]
      %v5483 = vld [vmem:[%s5450 + $0x80] sm:$0xf]
      %v5484 = vld [vmem:[%s5450 + $0x84] sm:$0xf]
      %v5485 = vld [vmem:[%s5450 + $0x88] sm:$0xf]
      %v5486 = vld [vmem:[%s5450 + $0x8c] sm:$0xf]
      %v5487 = vld [vmem:[%s5450 + $0x90] sm:$0xf]
      %v5488 = vld [vmem:[%s5450 + $0x94] sm:$0xf]
      %v5489 = vld [vmem:[%s5450 + $0x98] sm:$0xf]
      %v5490 = vld [vmem:[%s5450 + $0x9c] sm:$0xf]
      %v5491 = vld [vmem:[%s5450 + $0xa0] sm:$0xf]
      %v5492 = vld [vmem:[%s5450 + $0xa4] sm:$0xf]
      %v5493 = vld [vmem:[%s5450 + $0xa8] sm:$0xf]
      %v5494 = vld [vmem:[%s5450 + $0xac] sm:$0xf]
      %v5495 = vld [vmem:[%s5450 + $0xb0] sm:$0xf]
      %v5496 = vld [vmem:[%s5450 + $0xb4] sm:$0xf]
      %v5497 = vld [vmem:[%s5450 + $0xb8] sm:$0xf]
      %v5498 = vld [vmem:[%s5450 + $0xbc] sm:$0xf]
      %v5499 = vld [vmem:[%s5450 + $0xc0] sm:$0xf]
      %v5500 = vld [vmem:[%s5450 + $0xc4] sm:$0xf]
      %v5501 = vld [vmem:[%s5450 + $0xc8] sm:$0xf]
      %v5502 = vld [vmem:[%s5450 + $0xcc] sm:$0xf]
      %v5503 = vld [vmem:[%s5450 + $0xd0] sm:$0xf]
      %v5504 = vld [vmem:[%s5450 + $0xd4] sm:$0xf]
      %v5505 = vld [vmem:[%s5450 + $0xd8] sm:$0xf]
      %v5506 = vld [vmem:[%s5450 + $0xdc] sm:$0xf]
      %v5507 = vld [vmem:[%s5450 + $0xe0] sm:$0xf]
      %v5508 = vld [vmem:[%s5450 + $0xe4] sm:$0xf]
      %v5509 = vld [vmem:[%s5450 + $0xe8] sm:$0xf]
      %v5510 = vld [vmem:[%s5450 + $0xec] sm:$0xf]
      %v5511 = vld [vmem:[%s5450 + $0xf0] sm:$0xf]
      %v5512 = vld [vmem:[%s5450 + $0xf4] sm:$0xf]
      %v5513 = vld [vmem:[%s5450 + $0xf8] sm:$0xf]
      %v5514 = vld [vmem:[%s5450 + $0xfc] sm:$0xf]
      %v5515 = vld [vmem:[%s5450 + $0x100] sm:$0xf]
      %v5516 = vld [vmem:[%s5450 + $0x104] sm:$0xf]
      %v5517 = vld [vmem:[%s5450 + $0x108] sm:$0xf]
      %v5518 = vld [vmem:[%s5450 + $0x10c] sm:$0xf]
      %v5519 = vld [vmem:[%s5450 + $0x110] sm:$0xf]
      %v5520 = vld [vmem:[%s5450 + $0x114] sm:$0xf]
      %v5521 = vld [vmem:[%s5450 + $0x118] sm:$0xf]
      %v5522 = vld [vmem:[%s5450 + $0x11c] sm:$0xf]
      %v5523 = vld [vmem:[%s5 + $0x7] sm:$0x1]
      %v5524 = vld [vmem:[#allocation2] sm:$0xff]
      %v5525 = vld [vmem:[#allocation2 + $0x8] sm:$0xff]
      %v5526 = vld [vmem:[#allocation2 + $0x18] sm:$0xff]
      %v5527 = vld [vmem:[#allocation2 + $0x20] sm:$0xff]
      %v5528 = vld [vmem:[#allocation2 + $0x30] sm:$0xff]
      %v5529 = vld [vmem:[#allocation2 + $0x38] sm:$0xff]
      %v5530 = vld [vmem:[#allocation2 + $0x48] sm:$0xff]
      %v5531 = vld [vmem:[#allocation2 + $0x50] sm:$0xff]
      %v5532 = vld [vmem:[#allocation2 + $0x60] sm:$0xff]
      %v5533 = vld [vmem:[#allocation2 + $0x68] sm:$0xff]
      %v5534 = vld [vmem:[#allocation2 + $0x78] sm:$0xff]
      %v5535 = vld [vmem:[#allocation2 + $0x80] sm:$0xff]
      %v5536 = vld [vmem:[#allocation2 + $0x90] sm:$0xff]
      %v5537 = vld [vmem:[#allocation2 + $0x98] sm:$0xff]
      %v5538 = vld [vmem:[#allocation2 + $0xa8] sm:$0xff]
      %v5539 = vld [vmem:[#allocation2 + $0xb0] sm:$0xff]
      %v5540 = vpack.c.bf16 %v5525, %v5524
      %v5541 = vpack.c.bf16 %v5527, %v5526
      %v5542 = vpack.c.bf16 %v5529, %v5528
      %v5543 = vpack.c.bf16 %v5531, %v5530
      %v5544 = vpack.c.bf16 %v5533, %v5532
      %v5545 = vpack.c.bf16 %v5535, %v5534
      %v5546 = vpack.c.bf16 %v5537, %v5536
      %v5547 = vpack.c.bf16 %v5539, %v5538
      %v5548 = vld [vmem:[#allocation2 + $0x1] sm:$0xff]
      %v5549 = vld [vmem:[#allocation2 + $0x9] sm:$0xff]
      %v5550 = vld [vmem:[#allocation2 + $0x19] sm:$0xff]
      %v5551 = vld [vmem:[#allocation2 + $0x21] sm:$0xff]
      %v5552 = vld [vmem:[#allocation2 + $0x31] sm:$0xff]
      %v5553 = vld [vmem:[#allocation2 + $0x39] sm:$0xff]
      %v5554 = vld [vmem:[#allocation2 + $0x49] sm:$0xff]
      %v5555 = vld [vmem:[#allocation2 + $0x51] sm:$0xff]
      %v5556 = vld [vmem:[#allocation2 + $0x61] sm:$0xff]
      %v5557 = vld [vmem:[#allocation2 + $0x69] sm:$0xff]
      %v5558 = vld [vmem:[#allocation2 + $0x79] sm:$0xff]
      %v5559 = vld [vmem:[#allocation2 + $0x81] sm:$0xff]
      %v5560 = vld [vmem:[#allocation2 + $0x91] sm:$0xff]
      %v5561 = vld [vmem:[#allocation2 + $0x99] sm:$0xff]
      %v5562 = vld [vmem:[#allocation2 + $0xa9] sm:$0xff]
      %v5563 = vld [vmem:[#allocation2 + $0xb1] sm:$0xff]
      %v5564 = vpack.c.bf16 %v5549, %v5548
      %v5565 = vpack.c.bf16 %v5551, %v5550
      %v5566 = vpack.c.bf16 %v5553, %v5552
      %v5567 = vpack.c.bf16 %v5555, %v5554
      %v5568 = vpack.c.bf16 %v5557, %v5556
      %v5569 = vpack.c.bf16 %v5559, %v5558
      %v5570 = vpack.c.bf16 %v5561, %v5560
      %v5571 = vpack.c.bf16 %v5563, %v5562
      %v5572 = vld [vmem:[#allocation2 + $0x2] sm:$0xff]
      %v5573 = vld [vmem:[#allocation2 + $0xa] sm:$0xff]
      %v5574 = vld [vmem:[#allocation2 + $0x1a] sm:$0xff]
      %v5575 = vld [vmem:[#allocation2 + $0x22] sm:$0xff]
      %v5576 = vld [vmem:[#allocation2 + $0x32] sm:$0xff]
      %v5577 = vld [vmem:[#allocation2 + $0x3a] sm:$0xff]
      %v5578 = vld [vmem:[#allocation2 + $0x4a] sm:$0xff]
      %v5579 = vld [vmem:[#allocation2 + $0x52] sm:$0xff]
      %v5580 = vld [vmem:[#allocation2 + $0x62] sm:$0xff]
      %v5581 = vld [vmem:[#allocation2 + $0x6a] sm:$0xff]
      %v5582 = vld [vmem:[#allocation2 + $0x7a] sm:$0xff]
      %v5583 = vld [vmem:[#allocation2 + $0x82] sm:$0xff]
      %v5584 = vld [vmem:[#allocation2 + $0x92] sm:$0xff]
      %v5585 = vld [vmem:[#allocation2 + $0x9a] sm:$0xff]
      %v5586 = vld [vmem:[#allocation2 + $0xaa] sm:$0xff]
      %v5587 = vld [vmem:[#allocation2 + $0xb2] sm:$0xff]
      %v5588 = vpack.c.bf16 %v5573, %v5572
      %v5589 = vpack.c.bf16 %v5575, %v5574
      %v5590 = vpack.c.bf16 %v5577, %v5576
      %v5591 = vpack.c.bf16 %v5579, %v5578
      %v5592 = vpack.c.bf16 %v5581, %v5580
      %v5593 = vpack.c.bf16 %v5583, %v5582
      %v5594 = vpack.c.bf16 %v5585, %v5584
      %v5595 = vpack.c.bf16 %v5587, %v5586
      %v5596 = vld [vmem:[%s1075] sm:$0xff]
      %v5597 = vld [vmem:[%s1075 + $0x8] sm:$0xff]
      %v5598 = vld [vmem:[%s1075 + $0x18] sm:$0xff]
      %v5599 = vld [vmem:[%s1075 + $0x20] sm:$0xff]
      %v5600 = vld [vmem:[%s1075 + $0x30] sm:$0xff]
      %v5601 = vld [vmem:[%s1075 + $0x38] sm:$0xff]
      %v5602 = vld [vmem:[%s1075 + $0x48] sm:$0xff]
      %v5603 = vld [vmem:[%s1075 + $0x50] sm:$0xff]
      %v5604 = vld [vmem:[%s1075 + $0x60] sm:$0xff]
      %v5605 = vld [vmem:[%s1075 + $0x68] sm:$0xff]
      %v5606 = vld [vmem:[%s1075 + $0x78] sm:$0xff]
      %v5607 = vld [vmem:[%s1075 + $0x80] sm:$0xff]
      %v5608 = vld [vmem:[%s1075 + $0x90] sm:$0xff]
      %v5609 = vld [vmem:[%s1075 + $0x98] sm:$0xff]
      %v5610 = vld [vmem:[%s1075 + $0xa8] sm:$0xff]
      %v5611 = vld [vmem:[%s1075 + $0xb0] sm:$0xff]
      %v5612 = vpack.c.bf16 %v5597, %v5596
      %v5613 = vpack.c.bf16 %v5599, %v5598
      %v5614 = vpack.c.bf16 %v5601, %v5600
      %v5615 = vpack.c.bf16 %v5603, %v5602
      %v5616 = vpack.c.bf16 %v5605, %v5604
      %v5617 = vpack.c.bf16 %v5607, %v5606
      %v5618 = vpack.c.bf16 %v5609, %v5608
      %v5619 = vpack.c.bf16 %v5611, %v5610
      %v5620 = vld [vmem:[%s1075 + $0x1] sm:$0xff]
      %v5621 = vld [vmem:[%s1075 + $0x9] sm:$0xff]
      %v5622 = vld [vmem:[%s1075 + $0x19] sm:$0xff]
      %v5623 = vld [vmem:[%s1075 + $0x21] sm:$0xff]
      %v5624 = vld [vmem:[%s1075 + $0x31] sm:$0xff]
      %v5625 = vld [vmem:[%s1075 + $0x39] sm:$0xff]
      %v5626 = vld [vmem:[%s1075 + $0x49] sm:$0xff]
      %v5627 = vld [vmem:[%s1075 + $0x51] sm:$0xff]
      %v5628 = vld [vmem:[%s1075 + $0x61] sm:$0xff]
      %v5629 = vld [vmem:[%s1075 + $0x69] sm:$0xff]
      %v5630 = vld [vmem:[%s1075 + $0x79] sm:$0xff]
      %v5631 = vld [vmem:[%s1075 + $0x81] sm:$0xff]
      %v5632 = vld [vmem:[%s1075 + $0x91] sm:$0xff]
      %v5633 = vld [vmem:[%s1075 + $0x99] sm:$0xff]
      %v5634 = vld [vmem:[%s1075 + $0xa9] sm:$0xff]
      %v5635 = vld [vmem:[%s1075 + $0xb1] sm:$0xff]
      %v5636 = vpack.c.bf16 %v5621, %v5620
      %v5637 = vpack.c.bf16 %v5623, %v5622
      %v5638 = vpack.c.bf16 %v5625, %v5624
      %v5639 = vpack.c.bf16 %v5627, %v5626
      %v5640 = vpack.c.bf16 %v5629, %v5628
      %v5641 = vpack.c.bf16 %v5631, %v5630
      %v5642 = vpack.c.bf16 %v5633, %v5632
      %v5643 = vpack.c.bf16 %v5635, %v5634
      %v5644 = vld [vmem:[%s1075 + $0x2] sm:$0xff]
      %v5645 = vld [vmem:[%s1075 + $0xa] sm:$0xff]
      %v5646 = vld [vmem:[%s1075 + $0x1a] sm:$0xff]
      %v5647 = vld [vmem:[%s1075 + $0x22] sm:$0xff]
      %v5648 = vld [vmem:[%s1075 + $0x32] sm:$0xff]
      %v5649 = vld [vmem:[%s1075 + $0x3a] sm:$0xff]
      %v5650 = vld [vmem:[%s1075 + $0x4a] sm:$0xff]
      %v5651 = vld [vmem:[%s1075 + $0x52] sm:$0xff]
      %v5652 = vld [vmem:[%s1075 + $0x62] sm:$0xff]
      %v5653 = vld [vmem:[%s1075 + $0x6a] sm:$0xff]
      %v5654 = vld [vmem:[%s1075 + $0x7a] sm:$0xff]
      %v5655 = vld [vmem:[%s1075 + $0x82] sm:$0xff]
      %v5656 = vld [vmem:[%s1075 + $0x92] sm:$0xff]
      %v5657 = vld [vmem:[%s1075 + $0x9a] sm:$0xff]
      %v5658 = vld [vmem:[%s1075 + $0xaa] sm:$0xff]
      %v5659 = vld [vmem:[%s1075 + $0xb2] sm:$0xff]
      %v5660 = vpack.c.bf16 %v5645, %v5644
      %v5661 = vpack.c.bf16 %v5647, %v5646
      %v5662 = vpack.c.bf16 %v5649, %v5648
      %v5663 = vpack.c.bf16 %v5651, %v5650
      %v5664 = vpack.c.bf16 %v5653, %v5652
      %v5665 = vpack.c.bf16 %v5655, %v5654
      %v5666 = vpack.c.bf16 %v5657, %v5656
      %v5667 = vpack.c.bf16 %v5659, %v5658
      %v5668 = vld [vmem:[%s1309] sm:$0xff]
      %v5669 = vld [vmem:[%s1309 + $0x8] sm:$0xff]
      %v5670 = vld [vmem:[%s1309 + $0x18] sm:$0xff]
      %v5671 = vld [vmem:[%s1309 + $0x20] sm:$0xff]
      %v5672 = vld [vmem:[%s1309 + $0x30] sm:$0xff]
      %v5673 = vld [vmem:[%s1309 + $0x38] sm:$0xff]
      %v5674 = vld [vmem:[%s1309 + $0x48] sm:$0xff]
      %v5675 = vld [vmem:[%s1309 + $0x50] sm:$0xff]
      %v5676 = vld [vmem:[%s1309 + $0x60] sm:$0xff]
      %v5677 = vld [vmem:[%s1309 + $0x68] sm:$0xff]
      %v5678 = vld [vmem:[%s1309 + $0x78] sm:$0xff]
      %v5679 = vld [vmem:[%s1309 + $0x80] sm:$0xff]
      %v5680 = vld [vmem:[%s1309 + $0x90] sm:$0xff]
      %v5681 = vld [vmem:[%s1309 + $0x98] sm:$0xff]
      %v5682 = vld [vmem:[%s1309 + $0xa8] sm:$0xff]
      %v5683 = vld [vmem:[%s1309 + $0xb0] sm:$0xff]
      %v5684 = vpack.c.bf16 %v5669, %v5668
      %v5685 = vpack.c.bf16 %v5671, %v5670
      %v5686 = vpack.c.bf16 %v5673, %v5672
      %v5687 = vpack.c.bf16 %v5675, %v5674
      %v5688 = vpack.c.bf16 %v5677, %v5676
      %v5689 = vpack.c.bf16 %v5679, %v5678
      %v5690 = vpack.c.bf16 %v5681, %v5680
      %v5691 = vpack.c.bf16 %v5683, %v5682
      %v5692 = vld [vmem:[%s1309 + $0x1] sm:$0xff]
      %v5693 = vld [vmem:[%s1309 + $0x9] sm:$0xff]
      %v5694 = vld [vmem:[%s1309 + $0x19] sm:$0xff]
      %v5695 = vld [vmem:[%s1309 + $0x21] sm:$0xff]
      %v5696 = vld [vmem:[%s1309 + $0x31] sm:$0xff]
      %v5697 = vld [vmem:[%s1309 + $0x39] sm:$0xff]
      %v5698 = vld [vmem:[%s1309 + $0x49] sm:$0xff]
      %v5699 = vld [vmem:[%s1309 + $0x51] sm:$0xff]
      %v5700 = vld [vmem:[%s1309 + $0x61] sm:$0xff]
      %v5701 = vld [vmem:[%s1309 + $0x69] sm:$0xff]
      %v5702 = vld [vmem:[%s1309 + $0x79] sm:$0xff]
      %v5703 = vld [vmem:[%s1309 + $0x81] sm:$0xff]
      %v5704 = vld [vmem:[%s1309 + $0x91] sm:$0xff]
      %v5705 = vld [vmem:[%s1309 + $0x99] sm:$0xff]
      %v5706 = vld [vmem:[%s1309 + $0xa9] sm:$0xff]
      %v5707 = vld [vmem:[%s1309 + $0xb1] sm:$0xff]
      %v5708 = vpack.c.bf16 %v5693, %v5692
      %v5709 = vpack.c.bf16 %v5695, %v5694
      %v5710 = vpack.c.bf16 %v5697, %v5696
      %v5711 = vpack.c.bf16 %v5699, %v5698
      %v5712 = vpack.c.bf16 %v5701, %v5700
      %v5713 = vpack.c.bf16 %v5703, %v5702
      %v5714 = vpack.c.bf16 %v5705, %v5704
      %v5715 = vpack.c.bf16 %v5707, %v5706
      %v5716 = vld [vmem:[%s1309 + $0x2] sm:$0xff]
      %v5717 = vld [vmem:[%s1309 + $0xa] sm:$0xff]
      %v5718 = vld [vmem:[%s1309 + $0x1a] sm:$0xff]
      %v5719 = vld [vmem:[%s1309 + $0x22] sm:$0xff]
      %v5720 = vld [vmem:[%s1309 + $0x32] sm:$0xff]
      %v5721 = vld [vmem:[%s1309 + $0x3a] sm:$0xff]
      %v5722 = vld [vmem:[%s1309 + $0x4a] sm:$0xff]
      %v5723 = vld [vmem:[%s1309 + $0x52] sm:$0xff]
      %v5724 = vld [vmem:[%s1309 + $0x62] sm:$0xff]
      %v5725 = vld [vmem:[%s1309 + $0x6a] sm:$0xff]
      %v5726 = vld [vmem:[%s1309 + $0x7a] sm:$0xff]
      %v5727 = vld [vmem:[%s1309 + $0x82] sm:$0xff]
      %v5728 = vld [vmem:[%s1309 + $0x92] sm:$0xff]
      %v5729 = vld [vmem:[%s1309 + $0x9a] sm:$0xff]
      %v5730 = vld [vmem:[%s1309 + $0xaa] sm:$0xff]
      %v5731 = vld [vmem:[%s1309 + $0xb2] sm:$0xff]
      %v5732 = vpack.c.bf16 %v5717, %v5716
      %v5733 = vpack.c.bf16 %v5719, %v5718
      %v5734 = vpack.c.bf16 %v5721, %v5720
      %v5735 = vpack.c.bf16 %v5723, %v5722
      %v5736 = vpack.c.bf16 %v5725, %v5724
      %v5737 = vpack.c.bf16 %v5727, %v5726
      %v5738 = vpack.c.bf16 %v5729, %v5728
      %v5739 = vpack.c.bf16 %v5731, %v5730
      %5748 = vrot.lane.b32.xlu0 %v5564, 64
      %v5749 = vpop.permute.xlu0 %5748
      %5750 = vrot.lane.b32.xlu0 %v5565, 64
      %v5751 = vpop.permute.xlu0 %5750
      %5752 = vrot.lane.b32.xlu0 %v5566, 64
      %v5753 = vpop.permute.xlu0 %5752
      %5754 = vrot.lane.b32.xlu0 %v5567, 64
      %v5755 = vpop.permute.xlu0 %5754
      %5756 = vrot.lane.b32.xlu0 %v5568, 64
      %v5757 = vpop.permute.xlu0 %5756
      %5758 = vrot.lane.b32.xlu0 %v5569, 64
      %v5759 = vpop.permute.xlu0 %5758
      %5760 = vrot.lane.b32.xlu0 %v5570, 64
      %v5761 = vpop.permute.xlu0 %5760
      %5762 = vrot.lane.b32.xlu0 %v5571, 64
      %v5763 = vpop.permute.xlu0 %5762
      %5772 = vrot.lane.b32.xlu0 %v5612, 64
      %v5773 = vpop.permute.xlu0 %5772
      %5774 = vrot.lane.b32.xlu0 %v5613, 64
      %v5775 = vpop.permute.xlu0 %5774
      %5776 = vrot.lane.b32.xlu0 %v5614, 64
      %v5777 = vpop.permute.xlu0 %5776
      %5778 = vrot.lane.b32.xlu0 %v5615, 64
      %v5779 = vpop.permute.xlu0 %5778
      %5780 = vrot.lane.b32.xlu0 %v5616, 64
      %v5781 = vpop.permute.xlu0 %5780
      %5782 = vrot.lane.b32.xlu0 %v5617, 64
      %v5783 = vpop.permute.xlu0 %5782
      %5784 = vrot.lane.b32.xlu0 %v5618, 64
      %v5785 = vpop.permute.xlu0 %5784
      %5786 = vrot.lane.b32.xlu0 %v5619, 64
      %v5787 = vpop.permute.xlu0 %5786
      %5796 = vrot.lane.b32.xlu0 %v5660, 64
      %v5797 = vpop.permute.xlu0 %5796
      %5798 = vrot.lane.b32.xlu0 %v5661, 64
      %v5799 = vpop.permute.xlu0 %5798
      %5800 = vrot.lane.b32.xlu0 %v5662, 64
      %v5801 = vpop.permute.xlu0 %5800
      %5802 = vrot.lane.b32.xlu0 %v5663, 64
      %v5803 = vpop.permute.xlu0 %5802
      %5804 = vrot.lane.b32.xlu0 %v5664, 64
      %v5805 = vpop.permute.xlu0 %5804
      %5806 = vrot.lane.b32.xlu0 %v5665, 64
      %v5807 = vpop.permute.xlu0 %5806
      %5808 = vrot.lane.b32.xlu0 %v5666, 64
      %v5809 = vpop.permute.xlu0 %5808
      %5810 = vrot.lane.b32.xlu0 %v5667, 64
      %v5811 = vpop.permute.xlu0 %5810
      %5820 = vrot.lane.b32.xlu0 %v5708, 64
      %v5821 = vpop.permute.xlu0 %5820
      %5822 = vrot.lane.b32.xlu0 %v5709, 64
      %v5823 = vpop.permute.xlu0 %5822
      %5824 = vrot.lane.b32.xlu0 %v5710, 64
      %v5825 = vpop.permute.xlu0 %5824
      %5826 = vrot.lane.b32.xlu0 %v5711, 64
      %v5827 = vpop.permute.xlu0 %5826
      %5828 = vrot.lane.b32.xlu0 %v5712, 64
      %v5829 = vpop.permute.xlu0 %5828
      %5830 = vrot.lane.b32.xlu0 %v5713, 64
      %v5831 = vpop.permute.xlu0 %5830
      %5832 = vrot.lane.b32.xlu0 %v5714, 64
      %v5833 = vpop.permute.xlu0 %5832
      %5834 = vrot.lane.b32.xlu0 %v5715, 64
      %v5835 = vpop.permute.xlu0 %5834
      %v5838 = vsel %vm340, %v5540, %v5749
      %v5842 = vsel %vm340, %v5541, %v5751
      %v5846 = vsel %vm340, %v5542, %v5753
      %v5850 = vsel %vm340, %v5543, %v5755
      %v5854 = vsel %vm340, %v5544, %v5757
      %v5858 = vsel %vm340, %v5545, %v5759
      %v5862 = vsel %vm340, %v5546, %v5761
      %v5866 = vsel %vm340, %v5547, %v5763
      %v5870 = vsel %vm340, %v5588, %v5773
      %v5874 = vsel %vm340, %v5589, %v5775
      %v5878 = vsel %vm340, %v5590, %v5777
      %v5882 = vsel %vm340, %v5591, %v5779
      %v5886 = vsel %vm340, %v5592, %v5781
      %v5890 = vsel %vm340, %v5593, %v5783
      %v5894 = vsel %vm340, %v5594, %v5785
      %v5898 = vsel %vm340, %v5595, %v5787
      %v5902 = vsel %vm340, %v5636, %v5797
      %v5906 = vsel %vm340, %v5637, %v5799
      %v5910 = vsel %vm340, %v5638, %v5801
      %v5914 = vsel %vm340, %v5639, %v5803
      %v5918 = vsel %vm340, %v5640, %v5805
      %v5922 = vsel %vm340, %v5641, %v5807
      %v5926 = vsel %vm340, %v5642, %v5809
      %v5930 = vsel %vm340, %v5643, %v5811
      %v5934 = vsel %vm340, %v5684, %v5821
      %v5938 = vsel %vm340, %v5685, %v5823
      %v5942 = vsel %vm340, %v5686, %v5825
      %v5946 = vsel %vm340, %v5687, %v5827
      %v5950 = vsel %vm340, %v5688, %v5829
      %v5954 = vsel %vm340, %v5689, %v5831
      %v5958 = vsel %vm340, %v5690, %v5833
      %v5962 = vsel %vm340, %v5691, %v5835
      %v5964 = vlaneseq
      %v5965 = vshrl.u32 %v5964, 7
      %v5966 = vsub.s32 0, %v5965
      %v5967 = vrot.slane %v5523, %v5966
      %v6040 = vunpack.c.l.b16 %v5451
      %v6041 = vunpack.c.l.b16 %v5452
      %v6042 = vunpack.c.l.b16 %v5453
      %v6043 = vunpack.c.l.b16 %v5454
      %v6044 = vunpack.c.l.b16 %v5455
      %v6045 = vunpack.c.l.b16 %v5456
      %v6046 = vunpack.c.l.b16 %v5457
      %v6047 = vunpack.c.l.b16 %v5458
      %v6048 = vunpack.c.l.b16 %v5459
      %v6049 = vunpack.c.l.b16 %v5460
      %v6050 = vunpack.c.l.b16 %v5461
      %v6051 = vunpack.c.l.b16 %v5462
      %v6052 = vunpack.c.l.b16 %v5463
      %v6053 = vunpack.c.l.b16 %v5464
      %v6054 = vunpack.c.l.b16 %v5465
      %v6055 = vunpack.c.l.b16 %v5466
      %v6056 = vunpack.c.l.b16 %v5467
      %v6057 = vunpack.c.l.b16 %v5468
      %v6058 = vunpack.c.l.b16 %v5469
      %v6059 = vunpack.c.l.b16 %v5470
      %v6060 = vunpack.c.l.b16 %v5471
      %v6061 = vunpack.c.l.b16 %v5472
      %v6062 = vunpack.c.l.b16 %v5473
      %v6063 = vunpack.c.l.b16 %v5474
      %v6064 = vunpack.c.l.b16 %v5475
      %v6065 = vunpack.c.l.b16 %v5476
      %v6066 = vunpack.c.l.b16 %v5477
      %v6067 = vunpack.c.l.b16 %v5478
      %v6068 = vunpack.c.l.b16 %v5479
      %v6069 = vunpack.c.l.b16 %v5480
      %v6070 = vunpack.c.l.b16 %v5481
      %v6071 = vunpack.c.l.b16 %v5482
      %v6072 = vunpack.c.l.b16 %v5483
      %v6073 = vunpack.c.l.b16 %v5484
      %v6074 = vunpack.c.l.b16 %v5485
      %v6075 = vunpack.c.l.b16 %v5486
      %v6076 = vunpack.c.l.b16 %v5487
      %v6077 = vunpack.c.l.b16 %v5488
      %v6078 = vunpack.c.l.b16 %v5489
      %v6079 = vunpack.c.l.b16 %v5490
      %v6080 = vunpack.c.l.b16 %v5491
      %v6081 = vunpack.c.l.b16 %v5492
      %v6082 = vunpack.c.l.b16 %v5493
      %v6083 = vunpack.c.l.b16 %v5494
      %v6084 = vunpack.c.l.b16 %v5495
      %v6085 = vunpack.c.l.b16 %v5496
      %v6086 = vunpack.c.l.b16 %v5497
      %v6087 = vunpack.c.l.b16 %v5498
      %v6088 = vunpack.c.l.b16 %v5499
      %v6089 = vunpack.c.l.b16 %v5500
      %v6090 = vunpack.c.l.b16 %v5501
      %v6091 = vunpack.c.l.b16 %v5502
      %v6092 = vunpack.c.l.b16 %v5503
      %v6093 = vunpack.c.l.b16 %v5504
      %v6094 = vunpack.c.l.b16 %v5505
      %v6095 = vunpack.c.l.b16 %v5506
      %v6096 = vunpack.c.l.b16 %v5507
      %v6097 = vunpack.c.l.b16 %v5508
      %v6098 = vunpack.c.l.b16 %v5509
      %v6099 = vunpack.c.l.b16 %v5510
      %v6100 = vunpack.c.l.b16 %v5511
      %v6101 = vunpack.c.l.b16 %v5512
      %v6102 = vunpack.c.l.b16 %v5513
      %v6103 = vunpack.c.l.b16 %v5514
      %v6104 = vunpack.c.l.b16 %v5515
      %v6105 = vunpack.c.l.b16 %v5516
      %v6106 = vunpack.c.l.b16 %v5517
      %v6107 = vunpack.c.l.b16 %v5518
      %v6108 = vunpack.c.l.b16 %v5519
      %v6109 = vunpack.c.l.b16 %v5520
      %v6110 = vunpack.c.l.b16 %v5521
      %v6111 = vunpack.c.l.b16 %v5522
      %v6112 = vpack.c.b16 %v6041, %v6040
      %v6113 = vpack.c.b16 %v6043, %v6042
      %v6114 = vpack.c.b16 %v6045, %v6044
      %v6115 = vpack.c.b16 %v6047, %v6046
      %v6116 = vpack.c.b16 %v6049, %v6048
      %v6117 = vpack.c.b16 %v6051, %v6050
      %v6118 = vpack.c.b16 %v6053, %v6052
      %v6119 = vpack.c.b16 %v6055, %v6054
      %v6120 = vpack.c.b16 %v6057, %v6056
      %v6121 = vpack.c.b16 %v6059, %v6058
      %v6122 = vpack.c.b16 %v6061, %v6060
      %v6123 = vpack.c.b16 %v6063, %v6062
      %v6124 = vpack.c.b16 %v6065, %v6064
      %v6125 = vpack.c.b16 %v6067, %v6066
      %v6126 = vpack.c.b16 %v6069, %v6068
      %v6127 = vpack.c.b16 %v6071, %v6070
      %v6128 = vpack.c.b16 %v6073, %v6072
      %v6129 = vpack.c.b16 %v6075, %v6074
      %v6130 = vpack.c.b16 %v6077, %v6076
      %v6131 = vpack.c.b16 %v6079, %v6078
      %v6132 = vpack.c.b16 %v6081, %v6080
      %v6133 = vpack.c.b16 %v6083, %v6082
      %v6134 = vpack.c.b16 %v6085, %v6084
      %v6135 = vpack.c.b16 %v6087, %v6086
      %v6136 = vpack.c.b16 %v6089, %v6088
      %v6137 = vpack.c.b16 %v6091, %v6090
      %v6138 = vpack.c.b16 %v6093, %v6092
      %v6139 = vpack.c.b16 %v6095, %v6094
      %v6140 = vpack.c.b16 %v6097, %v6096
      %v6141 = vpack.c.b16 %v6099, %v6098
      %v6142 = vpack.c.b16 %v6101, %v6100
      %v6143 = vpack.c.b16 %v6103, %v6102
      %v6144 = vpack.c.b16 %v6105, %v6104
      %v6145 = vpack.c.b16 %v6107, %v6106
      %v6146 = vpack.c.b16 %v6109, %v6108
      %v6147 = vpack.c.b16 %v6111, %v6110
      %v6185 = vsel %vm340, %v5732, 0
      %v6188 = vsel %vm340, %v5733, 0
      %v6191 = vsel %vm340, %v5734, 0
      %v6194 = vsel %vm340, %v5735, 0
      %v6197 = vsel %vm340, %v5736, 0
      %v6200 = vsel %vm340, %v5737, 0
      %v6203 = vsel %vm340, %v5738, 0
      %v6206 = vsel %vm340, %v5739, 0
      %6208 = vmatprep.subr.bf16.mxu0 0
      %6209 = vmatpush1.bf16.msra.mxu0 %v6112
      %6210 = vmatprep.subr.bf16.mxu0 0
      %6211 = vmatpush1.bf16.msra.mxu0 %v6113
      %6212 = vmatprep.subr.bf16.mxu0 0
      %6213 = vmatpush1.bf16.msra.mxu0 %v6114
      %6214 = vmatprep.subr.bf16.mxu0 0
      %6215 = vmatpush1.bf16.msra.mxu0 %v6115
      %6216 = vmatprep.subr.bf16.mxu0 0
      %6217 = vmatpush1.bf16.msra.mxu0 %v6116
      %6218 = vmatprep.subr.bf16.mxu0 0
      %6219 = vmatpush1.bf16.msra.mxu0 %v6117
      %6220 = vmatprep.subr.bf16.mxu0 0
      %6221 = vmatpush1.bf16.msra.mxu0 %v6118
      %6222 = vmatprep.subr.bf16.mxu0 0
      %6223 = vmatpush1.bf16.msra.mxu0 %v6119
      %6224 = vmatprep.subr.bf16.mxu0 0
      %6225 = vmatpush1.bf16.msra.mxu0 %v6120
      %6226 = vmatprep.subr.bf16.mxu0 0
      %6227 = vmatpush1.bf16.msra.mxu0 %v6121
      %6228 = vmatprep.subr.bf16.mxu0 0
      %6229 = vmatpush1.bf16.msra.mxu0 %v6122
      %6230 = vmatprep.subr.bf16.mxu0 0
      %6231 = vmatpush1.bf16.msra.mxu0 %v6123
      %6232 = vmatprep.subr.bf16.mxu0 0
      %6233 = vmatpush1.bf16.msra.mxu0 %v6124
      %6234 = vmatprep.subr.bf16.mxu0 0
      %6235 = vmatpush1.bf16.msra.mxu0 %v6125
      %6236 = vmatprep.subr.bf16.mxu0 0
      %6237 = vmatpush1.bf16.msra.mxu0 %v6126
      %6238 = vmatprep.subr.bf16.mxu0 0
      %6239 = vmatpush1.bf16.msra.mxu0 %v6127
      %6240 = vmatprep.mubr.bf16.mxu0 %v5870
      %6241 = vmatmul.mubr.bf16.gmra.mrb[0].mxu0 %v5838
      %v6242 = vpop.f32.mrb[0].mxu0
      %v6243 = vadd.f32 %v5967, %v6242
      %v6244 = vpop.f32.mrb[0].mxu0
      %v6245 = vpop.f32.mrb[0].mxu0
      %v6246 = vadd.f32 %v5967, %v6245
      %v6247 = vpop.f32.mrb[0].mxu0
      %6248 = vmatprep.mubr.bf16.mxu0 %v5874
      %6249 = vmatmul.mubr.bf16.gmra.mrb[0].mxu0 %v5842
      %v6250 = vpop.f32.mrb[0].mxu0
      %v6251 = vadd.f32 %v5967, %v6250
      %v6252 = vpop.f32.mrb[0].mxu0
      %v6253 = vpop.f32.mrb[0].mxu0
      %v6254 = vadd.f32 %v5967, %v6253
      %v6255 = vpop.f32.mrb[0].mxu0
      %6256 = vmatprep.mubr.bf16.mxu0 %v5878
      %6257 = vmatmul.mubr.bf16.gmra.mrb[0].mxu0 %v5846
      %v6258 = vpop.f32.mrb[0].mxu0
      %v6259 = vadd.f32 %v5967, %v6258
      %v6260 = vpop.f32.mrb[0].mxu0
      %v6261 = vpop.f32.mrb[0].mxu0
      %v6262 = vadd.f32 %v5967, %v6261
      %v6263 = vpop.f32.mrb[0].mxu0
      %6264 = vmatprep.mubr.bf16.mxu0 %v5882
      %6265 = vmatmul.mubr.bf16.gmra.mrb[0].mxu0 %v5850
      %v6266 = vpop.f32.mrb[0].mxu0
      %v6267 = vadd.f32 %v5967, %v6266
      %v6268 = vpop.f32.mrb[0].mxu0
      %v6269 = vpop.f32.mrb[0].mxu0
      %v6270 = vadd.f32 %v5967, %v6269
      %v6271 = vpop.f32.mrb[0].mxu0
      %6272 = vmatprep.mubr.bf16.mxu0 %v5886
      %6273 = vmatmul.mubr.bf16.gmra.mrb[0].mxu0 %v5854
      %v6274 = vpop.f32.mrb[0].mxu0
      %v6275 = vadd.f32 %v5967, %v6274
      %v6276 = vpop.f32.mrb[0].mxu0
      %v6277 = vpop.f32.mrb[0].mxu0
      %v6278 = vadd.f32 %v5967, %v6277
      %v6279 = vpop.f32.mrb[0].mxu0
      %6280 = vmatprep.mubr.bf16.mxu0 %v5890
      %6281 = vmatmul.mubr.bf16.gmra.mrb[0].mxu0 %v5858
      %v6282 = vpop.f32.mrb[0].mxu0
      %v6283 = vadd.f32 %v5967, %v6282
      %v6284 = vpop.f32.mrb[0].mxu0
      %v6285 = vpop.f32.mrb[0].mxu0
      %v6286 = vadd.f32 %v5967, %v6285
      %v6287 = vpop.f32.mrb[0].mxu0
      %6288 = vmatprep.mubr.bf16.mxu0 %v5894
      %6289 = vmatmul.mubr.bf16.gmra.mrb[0].mxu0 %v5862
      %v6290 = vpop.f32.mrb[0].mxu0
      %v6291 = vadd.f32 %v5967, %v6290
      %v6292 = vpop.f32.mrb[0].mxu0
      %v6293 = vpop.f32.mrb[0].mxu0
      %v6294 = vadd.f32 %v5967, %v6293
      %v6295 = vpop.f32.mrb[0].mxu0
      %6296 = vmatprep.mubr.bf16.mxu0 %v5898
      %6297 = vmatmul.mubr.bf16.gmra.mrb[0].mxu0 %v5866
      %v6298 = vpop.f32.mrb[0].mxu0
      %v6299 = vadd.f32 %v5967, %v6298
      %v6300 = vpop.f32.mrb[0].mxu0
      %v6301 = vpop.f32.mrb[0].mxu0
      %v6302 = vadd.f32 %v5967, %v6301
      %v6303 = vpop.f32.mrb[0].mxu0
      %6304 = vdwg.mxu0
      %6305 = vmatprep.subr.bf16.mxu0 0
      %6306 = vmatpush1.bf16.msra.mxu0 %v6128
      %6307 = vmatprep.subr.bf16.mxu0 0
      %6308 = vmatpush1.bf16.msra.mxu0 %v6129
      %6309 = vmatprep.subr.bf16.mxu0 0
      %6310 = vmatpush1.bf16.msra.mxu0 %v6130
      %6311 = vmatprep.subr.bf16.mxu0 0
      %6312 = vmatpush1.bf16.msra.mxu0 %v6131
      %6313 = vmatprep.subr.bf16.mxu0 0
      %6314 = vmatpush1.bf16.msra.mxu0 %v6132
      %6315 = vmatprep.subr.bf16.mxu0 0
      %6316 = vmatpush1.bf16.msra.mxu0 %v6133
      %6317 = vmatprep.subr.bf16.mxu0 0
      %6318 = vmatpush1.bf16.msra.mxu0 %v6134
      %6319 = vmatprep.subr.bf16.mxu0 0
      %6320 = vmatpush1.bf16.msra.mxu0 %v6135
      %6321 = vmatprep.subr.bf16.mxu0 0
      %6322 = vmatpush1.bf16.msra.mxu0 %v6136
      %6323 = vmatprep.subr.bf16.mxu0 0
      %6324 = vmatpush1.bf16.msra.mxu0 %v6137
      %6325 = vmatprep.subr.bf16.mxu0 0
      %6326 = vmatpush1.bf16.msra.mxu0 %v6138
      %6327 = vmatprep.subr.bf16.mxu0 0
      %6328 = vmatpush1.bf16.msra.mxu0 %v6139
      %6329 = vmatprep.subr.bf16.mxu0 0
      %6330 = vmatpush1.bf16.msra.mxu0 %v6140
      %6331 = vmatprep.subr.bf16.mxu0 0
      %6332 = vmatpush1.bf16.msra.mxu0 %v6141
      %6333 = vmatprep.subr.bf16.mxu0 0
      %6334 = vmatpush1.bf16.msra.mxu0 %v6142
      %6335 = vmatprep.subr.bf16.mxu0 0
      %6336 = vmatpush1.bf16.msra.mxu0 %v6143
      %6337 = vmatprep.mubr.bf16.mxu0 %v5934
      %6338 = vmatmul.mubr.bf16.gmra.mrb[0].mxu0 %v5902
      %v6339 = vpop.f32.mrb[0].mxu0
      %v6340 = vadd.f32 %v6243, %v6339
      %v6341 = vpop.f32.mrb[0].mxu0
      %v6342 = vpop.f32.mrb[0].mxu0
      %v6343 = vadd.f32 %v6246, %v6342
      %v6344 = vpop.f32.mrb[0].mxu0
      %6345 = vmatprep.mubr.bf16.mxu0 %v5938
      %6346 = vmatmul.mubr.bf16.gmra.mrb[0].mxu0 %v5906
      %v6347 = vpop.f32.mrb[0].mxu0
      %v6348 = vadd.f32 %v6251, %v6347
      %v6349 = vpop.f32.mrb[0].mxu0
      %v6350 = vpop.f32.mrb[0].mxu0
      %v6351 = vadd.f32 %v6254, %v6350
      %v6352 = vpop.f32.mrb[0].mxu0
      %6353 = vmatprep.mubr.bf16.mxu0 %v5942
      %6354 = vmatmul.mubr.bf16.gmra.mrb[0].mxu0 %v5910
      %v6355 = vpop.f32.mrb[0].mxu0
      %v6356 = vadd.f32 %v6259, %v6355
      %v6357 = vpop.f32.mrb[0].mxu0
      %v6358 = vpop.f32.mrb[0].mxu0
      %v6359 = vadd.f32 %v6262, %v6358
      %v6360 = vpop.f32.mrb[0].mxu0
      %6361 = vmatprep.mubr.bf16.mxu0 %v5946
      %6362 = vmatmul.mubr.bf16.gmra.mrb[0].mxu0 %v5914
      %v6363 = vpop.f32.mrb[0].mxu0
      %v6364 = vadd.f32 %v6267, %v6363
      %v6365 = vpop.f32.mrb[0].mxu0
      %v6366 = vpop.f32.mrb[0].mxu0
      %v6367 = vadd.f32 %v6270, %v6366
      %v6368 = vpop.f32.mrb[0].mxu0
      %6369 = vmatprep.mubr.bf16.mxu0 %v5950
      %6370 = vmatmul.mubr.bf16.gmra.mrb[0].mxu0 %v5918
      %v6371 = vpop.f32.mrb[0].mxu0
      %v6372 = vadd.f32 %v6275, %v6371
      %v6373 = vpop.f32.mrb[0].mxu0
      %v6374 = vpop.f32.mrb[0].mxu0
      %v6375 = vadd.f32 %v6278, %v6374
      %v6376 = vpop.f32.mrb[0].mxu0
      %6377 = vmatprep.mubr.bf16.mxu0 %v5954
      %6378 = vmatmul.mubr.bf16.gmra.mrb[0].mxu0 %v5922
      %v6379 = vpop.f32.mrb[0].mxu0
      %v6380 = vadd.f32 %v6283, %v6379
      %v6381 = vpop.f32.mrb[0].mxu0
      %v6382 = vpop.f32.mrb[0].mxu0
      %v6383 = vadd.f32 %v6286, %v6382
      %v6384 = vpop.f32.mrb[0].mxu0
      %6385 = vmatprep.mubr.bf16.mxu0 %v5958
      %6386 = vmatmul.mubr.bf16.gmra.mrb[0].mxu0 %v5926
      %v6387 = vpop.f32.mrb[0].mxu0
      %v6388 = vadd.f32 %v6291, %v6387
      %v6389 = vpop.f32.mrb[0].mxu0
      %v6390 = vpop.f32.mrb[0].mxu0
      %v6391 = vadd.f32 %v6294, %v6390
      %v6392 = vpop.f32.mrb[0].mxu0
      %6393 = vmatprep.mubr.bf16.mxu0 %v5962
      %6394 = vmatmul.mubr.bf16.gmra.mrb[0].mxu0 %v5930
      %v6395 = vpop.f32.mrb[0].mxu0
      %v6396 = vadd.f32 %v6299, %v6395
      %v6397 = vpop.f32.mrb[0].mxu0
      %v6398 = vpop.f32.mrb[0].mxu0
      %v6399 = vadd.f32 %v6302, %v6398
      %v6400 = vpop.f32.mrb[0].mxu0
      %6401 = vdwg.mxu0
      %6402 = vmatprep.subr.bf16.mxu0 0
      %6403 = vmatpush1.bf16.msra.mxu0 %v6144
      %6404 = vmatprep.subr.bf16.mxu0 0
      %6405 = vmatpush1.bf16.msra.mxu0 %v6145
      %6406 = vmatprep.subr.bf16.mxu0 0
      %6407 = vmatpush1.bf16.msra.mxu0 %v6146
      %6408 = vmatprep.subr.bf16.mxu0 0
      %6409 = vmatpush1.bf16.msra.mxu0 %v6147
      %6410 = vmatprep.subr.bf16.mxu0 0
      %6411 = vmatpush1.bf16.msra.mxu0 0
      %6412 = vmatprep.subr.bf16.mxu0 0
      %6413 = vmatpush1.bf16.msra.mxu0 0
      %6414 = vmatprep.subr.bf16.mxu0 0
      %6415 = vmatpush1.bf16.msra.mxu0 0
      %6416 = vmatprep.subr.bf16.mxu0 0
      %6417 = vmatpush1.bf16.msra.mxu0 0
      %6418 = vmatprep.subr.bf16.mxu0 0
      %6419 = vmatpush1.bf16.msra.mxu0 0
      %6420 = vmatprep.subr.bf16.mxu0 0
      %6421 = vmatpush1.bf16.msra.mxu0 0
      %6422 = vmatprep.subr.bf16.mxu0 0
      %6423 = vmatpush1.bf16.msra.mxu0 0
      %6424 = vmatprep.subr.bf16.mxu0 0
      %6425 = vmatpush1.bf16.msra.mxu0 0
      %6426 = vmatprep.subr.bf16.mxu0 0
      %6427 = vmatpush1.bf16.msra.mxu0 0
      %6428 = vmatprep.subr.bf16.mxu0 0
      %6429 = vmatpush1.bf16.msra.mxu0 0
      %6430 = vmatprep.subr.bf16.mxu0 0
      %6431 = vmatpush1.bf16.msra.mxu0 0
      %6432 = vmatprep.subr.bf16.mxu0 0
      %6433 = vmatpush1.bf16.msra.mxu0 0
      %6434 = vmatprep.mubr.bf16.mxu0 0
      %6435 = vmatmul.mubr.bf16.gmra.mrb[0].mxu0 %v6185
      %v6436 = vpop.f32.mrb[0].mxu0
      %v6437 = vadd.f32 %v6340, %v6436
      %v6438 = vpop.f32.mrb[0].mxu0
      %v6439 = vpop.f32.mrb[0].mxu0
      %v6440 = vadd.f32 %v6343, %v6439
      %v6441 = vpop.f32.mrb[0].mxu0
      %6442 = vmatprep.mubr.bf16.mxu0 0
      %6443 = vmatmul.mubr.bf16.gmra.mrb[0].mxu0 %v6188
      %v6444 = vpop.f32.mrb[0].mxu0
      %v6445 = vadd.f32 %v6348, %v6444
      %v6446 = vpop.f32.mrb[0].mxu0
      %v6447 = vpop.f32.mrb[0].mxu0
      %v6448 = vadd.f32 %v6351, %v6447
      %v6449 = vpop.f32.mrb[0].mxu0
      %6450 = vmatprep.mubr.bf16.mxu0 0
      %6451 = vmatmul.mubr.bf16.gmra.mrb[0].mxu0 %v6191
      %v6452 = vpop.f32.mrb[0].mxu0
      %v6453 = vadd.f32 %v6356, %v6452
      %v6454 = vpop.f32.mrb[0].mxu0
      %v6455 = vpop.f32.mrb[0].mxu0
      %v6456 = vadd.f32 %v6359, %v6455
      %v6457 = vpop.f32.mrb[0].mxu0
      %6458 = vmatprep.mubr.bf16.mxu0 0
      %6459 = vmatmul.mubr.bf16.gmra.mrb[0].mxu0 %v6194
      %v6460 = vpop.f32.mrb[0].mxu0
      %v6461 = vadd.f32 %v6364, %v6460
      %v6462 = vpop.f32.mrb[0].mxu0
      %v6463 = vpop.f32.mrb[0].mxu0
      %v6464 = vadd.f32 %v6367, %v6463
      %v6465 = vpop.f32.mrb[0].mxu0
      %6466 = vmatprep.mubr.bf16.mxu0 0
      %6467 = vmatmul.mubr.bf16.gmra.mrb[0].mxu0 %v6197
      %v6468 = vpop.f32.mrb[0].mxu0
      %v6469 = vadd.f32 %v6372, %v6468
      %v6470 = vpop.f32.mrb[0].mxu0
      %v6471 = vpop.f32.mrb[0].mxu0
      %v6472 = vadd.f32 %v6375, %v6471
      %v6473 = vpop.f32.mrb[0].mxu0
      %6474 = vmatprep.mubr.bf16.mxu0 0
      %6475 = vmatmul.mubr.bf16.gmra.mrb[0].mxu0 %v6200
      %v6476 = vpop.f32.mrb[0].mxu0
      %v6477 = vadd.f32 %v6380, %v6476
      %v6478 = vpop.f32.mrb[0].mxu0
      %v6479 = vpop.f32.mrb[0].mxu0
      %v6480 = vadd.f32 %v6383, %v6479
      %v6481 = vpop.f32.mrb[0].mxu0
      %6482 = vmatprep.mubr.bf16.mxu0 0
      %6483 = vmatmul.mubr.bf16.gmra.mrb[0].mxu0 %v6203
      %v6484 = vpop.f32.mrb[0].mxu0
      %v6485 = vadd.f32 %v6388, %v6484
      %v6486 = vpop.f32.mrb[0].mxu0
      %v6487 = vpop.f32.mrb[0].mxu0
      %v6488 = vadd.f32 %v6391, %v6487
      %v6489 = vpop.f32.mrb[0].mxu0
      %6490 = vmatprep.mubr.bf16.mxu0 0
      %6491 = vmatmul.mubr.bf16.gmra.mrb[0].mxu0 %v6206
      %v6492 = vpop.f32.mrb[0].mxu0
      %v6493 = vadd.f32 %v6396, %v6492
      %v6494 = vpop.f32.mrb[0].mxu0
      %v6495 = vpop.f32.mrb[0].mxu0
      %v6496 = vadd.f32 %v6399, %v6495
      %v6497 = vpop.f32.mrb[0].mxu0
      %6498 = vdwg.mxu0
      %v6499 = vmax.f32 %v6437, 0.0
      %v6500 = vmax.f32 %v6440, 0.0
      %v6501 = vmax.f32 %v6445, 0.0
      %v6502 = vmax.f32 %v6448, 0.0
      %v6503 = vmax.f32 %v6453, 0.0
      %v6504 = vmax.f32 %v6456, 0.0
      %v6505 = vmax.f32 %v6461, 0.0
      %v6506 = vmax.f32 %v6464, 0.0
      %v6507 = vmax.f32 %v6469, 0.0
      %v6508 = vmax.f32 %v6472, 0.0
      %v6509 = vmax.f32 %v6477, 0.0
      %v6510 = vmax.f32 %v6480, 0.0
      %v6511 = vmax.f32 %v6485, 0.0
      %v6512 = vmax.f32 %v6488, 0.0
      %v6513 = vmax.f32 %v6493, 0.0
      %v6514 = vmax.f32 %v6496, 0.0
      %s6515 = scalar_lea.vmem [#allocation4], 24
      %6516 = vst.msk [vmem:[%s6515 + $0x2] sm:$0xff] %vm340, %v6499
      %6517 = vst.msk [vmem:[%s6515 + $0xa] sm:$0xff] %vm340, %v6500
      %6518 = vst.msk [vmem:[%s6515 + $0x1a] sm:$0xff] %vm340, %v6501
      %6519 = vst.msk [vmem:[%s6515 + $0x22] sm:$0xff] %vm340, %v6502
      %6520 = vst.msk [vmem:[%s6515 + $0x32] sm:$0xff] %vm340, %v6503
      %6521 = vst.msk [vmem:[%s6515 + $0x3a] sm:$0xff] %vm340, %v6504
      %6522 = vst.msk [vmem:[%s6515 + $0x4a] sm:$0xff] %vm340, %v6505
      %6523 = vst.msk [vmem:[%s6515 + $0x52] sm:$0xff] %vm340, %v6506
      %6524 = vst.msk [vmem:[%s6515 + $0x62] sm:$0xff] %vm340, %v6507
      %6525 = vst.msk [vmem:[%s6515 + $0x6a] sm:$0xff] %vm340, %v6508
      %6526 = vst.msk [vmem:[%s6515 + $0x7a] sm:$0xff] %vm340, %v6509
      %6527 = vst.msk [vmem:[%s6515 + $0x82] sm:$0xff] %vm340, %v6510
      %6528 = vst.msk [vmem:[%s6515 + $0x92] sm:$0xff] %vm340, %v6511
      %6529 = vst.msk [vmem:[%s6515 + $0x9a] sm:$0xff] %vm340, %v6512
      %6530 = vst.msk [vmem:[%s6515 + $0xaa] sm:$0xff] %vm340, %v6513
      %6531 = vst.msk [vmem:[%s6515 + $0xb2] sm:$0xff] %vm340, %v6514
      %vm6532 = vcmask 516096
      %6533 = vst.msk [vmem:[%s6515] sm:$0x1] %vm6532, %v6499
      %6534 = vst.msk [vmem:[%s6515 + $0x18] sm:$0x1] %vm6532, %v6501
      %6535 = vst.msk [vmem:[%s6515 + $0x30] sm:$0x1] %vm6532, %v6503
      %6536 = vst.msk [vmem:[%s6515 + $0x48] sm:$0x1] %vm6532, %v6505
      %6537 = vst.msk [vmem:[%s6515 + $0x60] sm:$0x1] %vm6532, %v6507
      %6538 = vst.msk [vmem:[%s6515 + $0x78] sm:$0x1] %vm6532, %v6509
      %6539 = vst.msk [vmem:[%s6515 + $0x90] sm:$0x1] %vm6532, %v6511
      %6540 = vst.msk [vmem:[%s6515 + $0xa8] sm:$0x1] %vm6532, %v6513
      %6541 = vst.msk [vmem:[%s6515 + $0x1] sm:$0x1] %vm6532, %v6499
      %6542 = vst.msk [vmem:[%s6515 + $0x19] sm:$0x1] %vm6532, %v6501
      %6543 = vst.msk [vmem:[%s6515 + $0x31] sm:$0x1] %vm6532, %v6503
      %6544 = vst.msk [vmem:[%s6515 + $0x49] sm:$0x1] %vm6532, %v6505
      %6545 = vst.msk [vmem:[%s6515 + $0x61] sm:$0x1] %vm6532, %v6507
      %6546 = vst.msk [vmem:[%s6515 + $0x79] sm:$0x1] %vm6532, %v6509
      %6547 = vst.msk [vmem:[%s6515 + $0x91] sm:$0x1] %vm6532, %v6511
      %6548 = vst.msk [vmem:[%s6515 + $0xa9] sm:$0x1] %vm6532, %v6513
      %vm6549 = vcmask 523271
      %6550 = vst.msk [vmem:[%s6515 + $0xb] sm:$0x80] %vm6549, %v6500
      %6551 = vst.msk [vmem:[%s6515 + $0x23] sm:$0x80] %vm6549, %v6502
      %6552 = vst.msk [vmem:[%s6515 + $0x3b] sm:$0x80] %vm6549, %v6504
      %6553 = vst.msk [vmem:[%s6515 + $0x53] sm:$0x80] %vm6549, %v6506
      %6554 = vst.msk [vmem:[%s6515 + $0x6b] sm:$0x80] %vm6549, %v6508
      %6555 = vst.msk [vmem:[%s6515 + $0x83] sm:$0x80] %vm6549, %v6510
      %6556 = vst.msk [vmem:[%s6515 + $0x9b] sm:$0x80] %vm6549, %v6512
      %6557 = vst.msk [vmem:[%s6515 + $0xb3] sm:$0x80] %vm6549, %v6514
      %6558 = vst.msk [vmem:[%s6515 + $0xc] sm:$0x80] %vm6549, %v6500
      %6559 = vst.msk [vmem:[%s6515 + $0x24] sm:$0x80] %vm6549, %v6502
      %6560 = vst.msk [vmem:[%s6515 + $0x3c] sm:$0x80] %vm6549, %v6504
      %6561 = vst.msk [vmem:[%s6515 + $0x54] sm:$0x80] %vm6549, %v6506
      %6562 = vst.msk [vmem:[%s6515 + $0x6c] sm:$0x80] %vm6549, %v6508
      %6563 = vst.msk [vmem:[%s6515 + $0x84] sm:$0x80] %vm6549, %v6510
      %6564 = vst.msk [vmem:[%s6515 + $0x9c] sm:$0x80] %vm6549, %v6512
      %6565 = vst.msk [vmem:[%s6515 + $0xb4] sm:$0x80] %vm6549, %v6514
      %v6566 = vld [vmem:[%s6515] sm:$0xff]
      %v6567 = vld [vmem:[%s6515 + $0x8] sm:$0xff]
      %v6568 = vld [vmem:[%s6515 + $0x10] sm:$0xf]
      %6569 = vst.msk [vmem:[#allocation4] sm:$0xff] %vm340, %v6566
      %6570 = vst.msk [vmem:[#allocation4 + $0x8] sm:$0xff] %vm340, %v6567
      %vm6571 = vcmask 519168
      %6572 = vst.msk [vmem:[#allocation4 + $0x10] sm:$0xf] %vm6571, %v6568
      %s6573 = scalar_lea.vmem [#allocation4], 192
      %v6574 = vld [vmem:[%s6573] sm:$0xff]
      %v6575 = vld [vmem:[%s6573 + $0x8] sm:$0xff]
      %v6576 = vld [vmem:[%s6573 + $0x10] sm:$0xf]
      %s6577 = scalar_lea.vmem [#allocation4], 216
      %6578 = vst.msk [vmem:[%s6577] sm:$0xff] %vm340, %v6574
      %6579 = vst.msk [vmem:[%s6577 + $0x8] sm:$0xff] %vm340, %v6575
      %6580 = vst.msk [vmem:[%s6577 + $0x10] sm:$0xf] %vm6571, %v6576
      %v6581 = vld [vmem:[%s4] sm:$0xf]
      %v6582 = vld [vmem:[%s4 + $0x4] sm:$0xf]
      %v6583 = vld [vmem:[%s4 + $0x8] sm:$0xf]
      %v6584 = vld [vmem:[%s4 + $0xc] sm:$0xf]
      %v6585 = vld [vmem:[%s4 + $0x10] sm:$0xf]
      %v6586 = vld [vmem:[%s4 + $0x14] sm:$0xf]
      %v6587 = vld [vmem:[%s4 + $0x18] sm:$0xf]
      %v6588 = vld [vmem:[%s4 + $0x1c] sm:$0xf]
      %v6589 = vld [vmem:[%s4 + $0x20] sm:$0xf]
      %v6590 = vld [vmem:[%s4 + $0x24] sm:$0xf]
      %v6591 = vld [vmem:[%s4 + $0x28] sm:$0xf]
      %v6592 = vld [vmem:[%s4 + $0x2c] sm:$0xf]
      %v6593 = vld [vmem:[%s4 + $0x30] sm:$0xf]
      %v6594 = vld [vmem:[%s4 + $0x34] sm:$0xf]
      %v6595 = vld [vmem:[%s4 + $0x38] sm:$0xf]
      %v6596 = vld [vmem:[%s4 + $0x3c] sm:$0xf]
      %v6597 = vld [vmem:[%s4 + $0x40] sm:$0xf]
      %v6598 = vld [vmem:[%s4 + $0x44] sm:$0xf]
      %v6599 = vld [vmem:[%s4 + $0x48] sm:$0xf]
      %v6600 = vld [vmem:[%s4 + $0x4c] sm:$0xf]
      %v6601 = vld [vmem:[%s4 + $0x50] sm:$0xf]
      %v6602 = vld [vmem:[%s4 + $0x54] sm:$0xf]
      %v6603 = vld [vmem:[%s4 + $0x58] sm:$0xf]
      %v6604 = vld [vmem:[%s4 + $0x5c] sm:$0xf]
      %v6605 = vld [vmem:[%s4 + $0x60] sm:$0xf]
      %v6606 = vld [vmem:[%s4 + $0x64] sm:$0xf]
      %v6607 = vld [vmem:[%s4 + $0x68] sm:$0xf]
      %v6608 = vld [vmem:[%s4 + $0x6c] sm:$0xf]
      %v6609 = vld [vmem:[%s4 + $0x70] sm:$0xf]
      %v6610 = vld [vmem:[%s4 + $0x74] sm:$0xf]
      %v6611 = vld [vmem:[%s4 + $0x78] sm:$0xf]
      %v6612 = vld [vmem:[%s4 + $0x7c] sm:$0xf]
      %v6613 = vld [vmem:[%s4 + $0x80] sm:$0xf]
      %v6614 = vld [vmem:[%s4 + $0x84] sm:$0xf]
      %v6615 = vld [vmem:[%s4 + $0x88] sm:$0xf]
      %v6616 = vld [vmem:[%s4 + $0x8c] sm:$0xf]
      %v6617 = vld [vmem:[%s4 + $0x90] sm:$0xf]
      %v6618 = vld [vmem:[%s4 + $0x94] sm:$0xf]
      %v6619 = vld [vmem:[%s4 + $0x98] sm:$0xf]
      %v6620 = vld [vmem:[%s4 + $0x9c] sm:$0xf]
      %v6621 = vld [vmem:[%s4 + $0xa0] sm:$0xf]
      %v6622 = vld [vmem:[%s4 + $0xa4] sm:$0xf]
      %v6623 = vld [vmem:[%s4 + $0xa8] sm:$0xf]
      %v6624 = vld [vmem:[%s4 + $0xac] sm:$0xf]
      %v6625 = vld [vmem:[%s4 + $0xb0] sm:$0xf]
      %v6626 = vld [vmem:[%s4 + $0xb4] sm:$0xf]
      %v6627 = vld [vmem:[%s4 + $0xb8] sm:$0xf]
      %v6628 = vld [vmem:[%s4 + $0xbc] sm:$0xf]
      %v6629 = vld [vmem:[%s4 + $0xc0] sm:$0xf]
      %v6630 = vld [vmem:[%s4 + $0xc4] sm:$0xf]
      %v6631 = vld [vmem:[%s4 + $0xc8] sm:$0xf]
      %v6632 = vld [vmem:[%s4 + $0xcc] sm:$0xf]
      %v6633 = vld [vmem:[%s4 + $0xd0] sm:$0xf]
      %v6634 = vld [vmem:[%s4 + $0xd4] sm:$0xf]
      %v6635 = vld [vmem:[%s4 + $0xd8] sm:$0xf]
      %v6636 = vld [vmem:[%s4 + $0xdc] sm:$0xf]
      %v6637 = vld [vmem:[%s4 + $0xe0] sm:$0xf]
      %v6638 = vld [vmem:[%s4 + $0xe4] sm:$0xf]
      %v6639 = vld [vmem:[%s4 + $0xe8] sm:$0xf]
      %v6640 = vld [vmem:[%s4 + $0xec] sm:$0xf]
      %v6641 = vld [vmem:[%s4 + $0xf0] sm:$0xf]
      %v6642 = vld [vmem:[%s4 + $0xf4] sm:$0xf]
      %v6643 = vld [vmem:[%s4 + $0xf8] sm:$0xf]
      %v6644 = vld [vmem:[%s4 + $0xfc] sm:$0xf]
      %v6645 = vld [vmem:[%s4 + $0x100] sm:$0xf]
      %v6646 = vld [vmem:[%s4 + $0x104] sm:$0xf]
      %v6647 = vld [vmem:[%s4 + $0x108] sm:$0xf]
      %v6648 = vld [vmem:[%s4 + $0x10c] sm:$0xf]
      %v6649 = vld [vmem:[%s4 + $0x110] sm:$0xf]
      %v6650 = vld [vmem:[%s4 + $0x114] sm:$0xf]
      %v6651 = vld [vmem:[%s4 + $0x118] sm:$0xf]
      %v6652 = vld [vmem:[%s4 + $0x11c] sm:$0xf]
      %v6653 = vld [vmem:[%s4 + $0x120] sm:$0xf]
      %v6654 = vld [vmem:[%s4 + $0x124] sm:$0xf]
      %v6655 = vld [vmem:[%s4 + $0x128] sm:$0xf]
      %v6656 = vld [vmem:[%s4 + $0x12c] sm:$0xf]
      %v6657 = vld [vmem:[%s4 + $0x130] sm:$0xf]
      %v6658 = vld [vmem:[%s4 + $0x134] sm:$0xf]
      %v6659 = vld [vmem:[%s4 + $0x138] sm:$0xf]
      %v6660 = vld [vmem:[%s4 + $0x13c] sm:$0xf]
      %v6661 = vld [vmem:[%s4 + $0x140] sm:$0xf]
      %v6662 = vld [vmem:[%s4 + $0x144] sm:$0xf]
      %v6663 = vld [vmem:[%s4 + $0x148] sm:$0xf]
      %v6664 = vld [vmem:[%s4 + $0x14c] sm:$0xf]
      %v6665 = vld [vmem:[%s4 + $0x150] sm:$0xf]
      %v6666 = vld [vmem:[%s4 + $0x154] sm:$0xf]
      %v6667 = vld [vmem:[%s4 + $0x158] sm:$0xf]
      %v6668 = vld [vmem:[%s4 + $0x15c] sm:$0xf]
      %v6669 = vld [vmem:[%s4 + $0x160] sm:$0xf]
      %v6670 = vld [vmem:[%s4 + $0x164] sm:$0xf]
      %v6671 = vld [vmem:[%s4 + $0x168] sm:$0xf]
      %v6672 = vld [vmem:[%s4 + $0x16c] sm:$0xf]
      %v6673 = vld [vmem:[%s4 + $0x170] sm:$0xf]
      %v6674 = vld [vmem:[%s4 + $0x174] sm:$0xf]
      %v6675 = vld [vmem:[%s4 + $0x178] sm:$0xf]
      %v6676 = vld [vmem:[%s4 + $0x17c] sm:$0xf]
      %v6677 = vld [vmem:[%s4 + $0x180] sm:$0xf]
      %v6678 = vld [vmem:[%s4 + $0x184] sm:$0xf]
      %v6679 = vld [vmem:[%s4 + $0x188] sm:$0xf]
      %v6680 = vld [vmem:[%s4 + $0x18c] sm:$0xf]
      %v6681 = vld [vmem:[%s4 + $0x190] sm:$0xf]
      %v6682 = vld [vmem:[%s4 + $0x194] sm:$0xf]
      %v6683 = vld [vmem:[%s4 + $0x198] sm:$0xf]
      %v6684 = vld [vmem:[%s4 + $0x19c] sm:$0xf]
      %v6685 = vld [vmem:[%s4 + $0x1a0] sm:$0xf]
      %v6686 = vld [vmem:[%s4 + $0x1a4] sm:$0xf]
      %v6687 = vld [vmem:[%s4 + $0x1a8] sm:$0xf]
      %v6688 = vld [vmem:[%s4 + $0x1ac] sm:$0xf]
      %v6689 = vld [vmem:[%s4 + $0x1b0] sm:$0xf]
      %v6690 = vld [vmem:[%s4 + $0x1b4] sm:$0xf]
      %v6691 = vld [vmem:[%s4 + $0x1b8] sm:$0xf]
      %v6692 = vld [vmem:[%s4 + $0x1bc] sm:$0xf]
      %v6693 = vld [vmem:[%s4 + $0x1c0] sm:$0xf]
      %v6694 = vld [vmem:[%s4 + $0x1c4] sm:$0xf]
      %v6695 = vld [vmem:[%s4 + $0x1c8] sm:$0xf]
      %v6696 = vld [vmem:[%s4 + $0x1cc] sm:$0xf]
      %v6697 = vld [vmem:[%s4 + $0x1d0] sm:$0xf]
      %v6698 = vld [vmem:[%s4 + $0x1d4] sm:$0xf]
      %v6699 = vld [vmem:[%s4 + $0x1d8] sm:$0xf]
      %v6700 = vld [vmem:[%s4 + $0x1dc] sm:$0xf]
      %v6701 = vld [vmem:[%s5 + $0x8] sm:$0x1]
      %v6702 = vld [vmem:[#allocation4] sm:$0xff]
      %v6703 = vld [vmem:[#allocation4 + $0x8] sm:$0xff]
      %v6704 = vld [vmem:[#allocation4 + $0x18] sm:$0xff]
      %v6705 = vld [vmem:[#allocation4 + $0x20] sm:$0xff]
      %v6706 = vld [vmem:[#allocation4 + $0x30] sm:$0xff]
      %v6707 = vld [vmem:[#allocation4 + $0x38] sm:$0xff]
      %v6708 = vld [vmem:[#allocation4 + $0x48] sm:$0xff]
      %v6709 = vld [vmem:[#allocation4 + $0x50] sm:$0xff]
      %v6710 = vld [vmem:[#allocation4 + $0x60] sm:$0xff]
      %v6711 = vld [vmem:[#allocation4 + $0x68] sm:$0xff]
      %v6712 = vld [vmem:[#allocation4 + $0x78] sm:$0xff]
      %v6713 = vld [vmem:[#allocation4 + $0x80] sm:$0xff]
      %v6714 = vld [vmem:[#allocation4 + $0x90] sm:$0xff]
      %v6715 = vld [vmem:[#allocation4 + $0x98] sm:$0xff]
      %v6716 = vld [vmem:[#allocation4 + $0xa8] sm:$0xff]
      %v6717 = vld [vmem:[#allocation4 + $0xb0] sm:$0xff]
      %v6718 = vpack.c.bf16 %v6703, %v6702
      %v6719 = vpack.c.bf16 %v6705, %v6704
      %v6720 = vpack.c.bf16 %v6707, %v6706
      %v6721 = vpack.c.bf16 %v6709, %v6708
      %v6722 = vpack.c.bf16 %v6711, %v6710
      %v6723 = vpack.c.bf16 %v6713, %v6712
      %v6724 = vpack.c.bf16 %v6715, %v6714
      %v6725 = vpack.c.bf16 %v6717, %v6716
      %v6726 = vld [vmem:[#allocation4 + $0x1] sm:$0xff]
      %v6727 = vld [vmem:[#allocation4 + $0x9] sm:$0xff]
      %v6728 = vld [vmem:[#allocation4 + $0x19] sm:$0xff]
      %v6729 = vld [vmem:[#allocation4 + $0x21] sm:$0xff]
      %v6730 = vld [vmem:[#allocation4 + $0x31] sm:$0xff]
      %v6731 = vld [vmem:[#allocation4 + $0x39] sm:$0xff]
      %v6732 = vld [vmem:[#allocation4 + $0x49] sm:$0xff]
      %v6733 = vld [vmem:[#allocation4 + $0x51] sm:$0xff]
      %v6734 = vld [vmem:[#allocation4 + $0x61] sm:$0xff]
      %v6735 = vld [vmem:[#allocation4 + $0x69] sm:$0xff]
      %v6736 = vld [vmem:[#allocation4 + $0x79] sm:$0xff]
      %v6737 = vld [vmem:[#allocation4 + $0x81] sm:$0xff]
      %v6738 = vld [vmem:[#allocation4 + $0x91] sm:$0xff]
      %v6739 = vld [vmem:[#allocation4 + $0x99] sm:$0xff]
      %v6740 = vld [vmem:[#allocation4 + $0xa9] sm:$0xff]
      %v6741 = vld [vmem:[#allocation4 + $0xb1] sm:$0xff]
      %v6742 = vpack.c.bf16 %v6727, %v6726
      %v6743 = vpack.c.bf16 %v6729, %v6728
      %v6744 = vpack.c.bf16 %v6731, %v6730
      %v6745 = vpack.c.bf16 %v6733, %v6732
      %v6746 = vpack.c.bf16 %v6735, %v6734
      %v6747 = vpack.c.bf16 %v6737, %v6736
      %v6748 = vpack.c.bf16 %v6739, %v6738
      %v6749 = vpack.c.bf16 %v6741, %v6740
      %v6750 = vld [vmem:[#allocation4 + $0x2] sm:$0xff]
      %v6751 = vld [vmem:[#allocation4 + $0xa] sm:$0xff]
      %v6752 = vld [vmem:[#allocation4 + $0x1a] sm:$0xff]
      %v6753 = vld [vmem:[#allocation4 + $0x22] sm:$0xff]
      %v6754 = vld [vmem:[#allocation4 + $0x32] sm:$0xff]
      %v6755 = vld [vmem:[#allocation4 + $0x3a] sm:$0xff]
      %v6756 = vld [vmem:[#allocation4 + $0x4a] sm:$0xff]
      %v6757 = vld [vmem:[#allocation4 + $0x52] sm:$0xff]
      %v6758 = vld [vmem:[#allocation4 + $0x62] sm:$0xff]
      %v6759 = vld [vmem:[#allocation4 + $0x6a] sm:$0xff]
      %v6760 = vld [vmem:[#allocation4 + $0x7a] sm:$0xff]
      %v6761 = vld [vmem:[#allocation4 + $0x82] sm:$0xff]
      %v6762 = vld [vmem:[#allocation4 + $0x92] sm:$0xff]
      %v6763 = vld [vmem:[#allocation4 + $0x9a] sm:$0xff]
      %v6764 = vld [vmem:[#allocation4 + $0xaa] sm:$0xff]
      %v6765 = vld [vmem:[#allocation4 + $0xb2] sm:$0xff]
      %v6766 = vpack.c.bf16 %v6751, %v6750
      %v6767 = vpack.c.bf16 %v6753, %v6752
      %v6768 = vpack.c.bf16 %v6755, %v6754
      %v6769 = vpack.c.bf16 %v6757, %v6756
      %v6770 = vpack.c.bf16 %v6759, %v6758
      %v6771 = vpack.c.bf16 %v6761, %v6760
      %v6772 = vpack.c.bf16 %v6763, %v6762
      %v6773 = vpack.c.bf16 %v6765, %v6764
      %v6774 = vld [vmem:[#allocation4 + $0x3] sm:$0xff]
      %v6775 = vld [vmem:[#allocation4 + $0xb] sm:$0xff]
      %v6776 = vld [vmem:[#allocation4 + $0x1b] sm:$0xff]
      %v6777 = vld [vmem:[#allocation4 + $0x23] sm:$0xff]
      %v6778 = vld [vmem:[#allocation4 + $0x33] sm:$0xff]
      %v6779 = vld [vmem:[#allocation4 + $0x3b] sm:$0xff]
      %v6780 = vld [vmem:[#allocation4 + $0x4b] sm:$0xff]
      %v6781 = vld [vmem:[#allocation4 + $0x53] sm:$0xff]
      %v6782 = vld [vmem:[#allocation4 + $0x63] sm:$0xff]
      %v6783 = vld [vmem:[#allocation4 + $0x6b] sm:$0xff]
      %v6784 = vld [vmem:[#allocation4 + $0x7b] sm:$0xff]
      %v6785 = vld [vmem:[#allocation4 + $0x83] sm:$0xff]
      %v6786 = vld [vmem:[#allocation4 + $0x93] sm:$0xff]
      %v6787 = vld [vmem:[#allocation4 + $0x9b] sm:$0xff]
      %v6788 = vld [vmem:[#allocation4 + $0xab] sm:$0xff]
      %v6789 = vld [vmem:[#allocation4 + $0xb3] sm:$0xff]
      %v6790 = vpack.c.bf16 %v6775, %v6774
      %v6791 = vpack.c.bf16 %v6777, %v6776
      %v6792 = vpack.c.bf16 %v6779, %v6778
      %v6793 = vpack.c.bf16 %v6781, %v6780
      %v6794 = vpack.c.bf16 %v6783, %v6782
      %v6795 = vpack.c.bf16 %v6785, %v6784
      %v6796 = vpack.c.bf16 %v6787, %v6786
      %v6797 = vpack.c.bf16 %v6789, %v6788
      %v6798 = vld [vmem:[#allocation4 + $0x4] sm:$0xff]
      %v6799 = vld [vmem:[#allocation4 + $0xc] sm:$0xff]
      %v6800 = vld [vmem:[#allocation4 + $0x1c] sm:$0xff]
      %v6801 = vld [vmem:[#allocation4 + $0x24] sm:$0xff]
      %v6802 = vld [vmem:[#allocation4 + $0x34] sm:$0xff]
      %v6803 = vld [vmem:[#allocation4 + $0x3c] sm:$0xff]
      %v6804 = vld [vmem:[#allocation4 + $0x4c] sm:$0xff]
      %v6805 = vld [vmem:[#allocation4 + $0x54] sm:$0xff]
      %v6806 = vld [vmem:[#allocation4 + $0x64] sm:$0xff]
      %v6807 = vld [vmem:[#allocation4 + $0x6c] sm:$0xff]
      %v6808 = vld [vmem:[#allocation4 + $0x7c] sm:$0xff]
      %v6809 = vld [vmem:[#allocation4 + $0x84] sm:$0xff]
      %v6810 = vld [vmem:[#allocation4 + $0x94] sm:$0xff]
      %v6811 = vld [vmem:[#allocation4 + $0x9c] sm:$0xff]
      %v6812 = vld [vmem:[#allocation4 + $0xac] sm:$0xff]
      %v6813 = vld [vmem:[#allocation4 + $0xb4] sm:$0xff]
      %v6814 = vpack.c.bf16 %v6799, %v6798
      %v6815 = vpack.c.bf16 %v6801, %v6800
      %v6816 = vpack.c.bf16 %v6803, %v6802
      %v6817 = vpack.c.bf16 %v6805, %v6804
      %v6818 = vpack.c.bf16 %v6807, %v6806
      %v6819 = vpack.c.bf16 %v6809, %v6808
      %v6820 = vpack.c.bf16 %v6811, %v6810
      %v6821 = vpack.c.bf16 %v6813, %v6812
      %v6822 = vld [vmem:[%s6515] sm:$0xff]
      %v6823 = vld [vmem:[%s6515 + $0x8] sm:$0xff]
      %v6824 = vld [vmem:[%s6515 + $0x18] sm:$0xff]
      %v6825 = vld [vmem:[%s6515 + $0x20] sm:$0xff]
      %v6826 = vld [vmem:[%s6515 + $0x30] sm:$0xff]
      %v6827 = vld [vmem:[%s6515 + $0x38] sm:$0xff]
      %v6828 = vld [vmem:[%s6515 + $0x48] sm:$0xff]
      %v6829 = vld [vmem:[%s6515 + $0x50] sm:$0xff]
      %v6830 = vld [vmem:[%s6515 + $0x60] sm:$0xff]
      %v6831 = vld [vmem:[%s6515 + $0x68] sm:$0xff]
      %v6832 = vld [vmem:[%s6515 + $0x78] sm:$0xff]
      %v6833 = vld [vmem:[%s6515 + $0x80] sm:$0xff]
      %v6834 = vld [vmem:[%s6515 + $0x90] sm:$0xff]
      %v6835 = vld [vmem:[%s6515 + $0x98] sm:$0xff]
      %v6836 = vld [vmem:[%s6515 + $0xa8] sm:$0xff]
      %v6837 = vld [vmem:[%s6515 + $0xb0] sm:$0xff]
      %v6838 = vpack.c.bf16 %v6823, %v6822
      %v6839 = vpack.c.bf16 %v6825, %v6824
      %v6840 = vpack.c.bf16 %v6827, %v6826
      %v6841 = vpack.c.bf16 %v6829, %v6828
      %v6842 = vpack.c.bf16 %v6831, %v6830
      %v6843 = vpack.c.bf16 %v6833, %v6832
      %v6844 = vpack.c.bf16 %v6835, %v6834
      %v6845 = vpack.c.bf16 %v6837, %v6836
      %v6846 = vld [vmem:[%s6515 + $0x1] sm:$0xff]
      %v6847 = vld [vmem:[%s6515 + $0x9] sm:$0xff]
      %v6848 = vld [vmem:[%s6515 + $0x19] sm:$0xff]
      %v6849 = vld [vmem:[%s6515 + $0x21] sm:$0xff]
      %v6850 = vld [vmem:[%s6515 + $0x31] sm:$0xff]
      %v6851 = vld [vmem:[%s6515 + $0x39] sm:$0xff]
      %v6852 = vld [vmem:[%s6515 + $0x49] sm:$0xff]
      %v6853 = vld [vmem:[%s6515 + $0x51] sm:$0xff]
      %v6854 = vld [vmem:[%s6515 + $0x61] sm:$0xff]
      %v6855 = vld [vmem:[%s6515 + $0x69] sm:$0xff]
      %v6856 = vld [vmem:[%s6515 + $0x79] sm:$0xff]
      %v6857 = vld [vmem:[%s6515 + $0x81] sm:$0xff]
      %v6858 = vld [vmem:[%s6515 + $0x91] sm:$0xff]
      %v6859 = vld [vmem:[%s6515 + $0x99] sm:$0xff]
      %v6860 = vld [vmem:[%s6515 + $0xa9] sm:$0xff]
      %v6861 = vld [vmem:[%s6515 + $0xb1] sm:$0xff]
      %v6862 = vpack.c.bf16 %v6847, %v6846
      %v6863 = vpack.c.bf16 %v6849, %v6848
      %v6864 = vpack.c.bf16 %v6851, %v6850
      %v6865 = vpack.c.bf16 %v6853, %v6852
      %v6866 = vpack.c.bf16 %v6855, %v6854
      %v6867 = vpack.c.bf16 %v6857, %v6856
      %v6868 = vpack.c.bf16 %v6859, %v6858
      %v6869 = vpack.c.bf16 %v6861, %v6860
      %v6870 = vld [vmem:[%s6515 + $0x2] sm:$0xff]
      %v6871 = vld [vmem:[%s6515 + $0xa] sm:$0xff]
      %v6872 = vld [vmem:[%s6515 + $0x1a] sm:$0xff]
      %v6873 = vld [vmem:[%s6515 + $0x22] sm:$0xff]
      %v6874 = vld [vmem:[%s6515 + $0x32] sm:$0xff]
      %v6875 = vld [vmem:[%s6515 + $0x3a] sm:$0xff]
      %v6876 = vld [vmem:[%s6515 + $0x4a] sm:$0xff]
      %v6877 = vld [vmem:[%s6515 + $0x52] sm:$0xff]
      %v6878 = vld [vmem:[%s6515 + $0x62] sm:$0xff]
      %v6879 = vld [vmem:[%s6515 + $0x6a] sm:$0xff]
      %v6880 = vld [vmem:[%s6515 + $0x7a] sm:$0xff]
      %v6881 = vld [vmem:[%s6515 + $0x82] sm:$0xff]
      %v6882 = vld [vmem:[%s6515 + $0x92] sm:$0xff]
      %v6883 = vld [vmem:[%s6515 + $0x9a] sm:$0xff]
      %v6884 = vld [vmem:[%s6515 + $0xaa] sm:$0xff]
      %v6885 = vld [vmem:[%s6515 + $0xb2] sm:$0xff]
      %v6886 = vpack.c.bf16 %v6871, %v6870
      %v6887 = vpack.c.bf16 %v6873, %v6872
      %v6888 = vpack.c.bf16 %v6875, %v6874
      %v6889 = vpack.c.bf16 %v6877, %v6876
      %v6890 = vpack.c.bf16 %v6879, %v6878
      %v6891 = vpack.c.bf16 %v6881, %v6880
      %v6892 = vpack.c.bf16 %v6883, %v6882
      %v6893 = vpack.c.bf16 %v6885, %v6884
      %v6894 = vld [vmem:[%s6515 + $0x3] sm:$0xff]
      %v6895 = vld [vmem:[%s6515 + $0xb] sm:$0xff]
      %v6896 = vld [vmem:[%s6515 + $0x1b] sm:$0xff]
      %v6897 = vld [vmem:[%s6515 + $0x23] sm:$0xff]
      %v6898 = vld [vmem:[%s6515 + $0x33] sm:$0xff]
      %v6899 = vld [vmem:[%s6515 + $0x3b] sm:$0xff]
      %v6900 = vld [vmem:[%s6515 + $0x4b] sm:$0xff]
      %v6901 = vld [vmem:[%s6515 + $0x53] sm:$0xff]
      %v6902 = vld [vmem:[%s6515 + $0x63] sm:$0xff]
      %v6903 = vld [vmem:[%s6515 + $0x6b] sm:$0xff]
      %v6904 = vld [vmem:[%s6515 + $0x7b] sm:$0xff]
      %v6905 = vld [vmem:[%s6515 + $0x83] sm:$0xff]
      %v6906 = vld [vmem:[%s6515 + $0x93] sm:$0xff]
      %v6907 = vld [vmem:[%s6515 + $0x9b] sm:$0xff]
      %v6908 = vld [vmem:[%s6515 + $0xab] sm:$0xff]
      %v6909 = vld [vmem:[%s6515 + $0xb3] sm:$0xff]
      %v6910 = vpack.c.bf16 %v6895, %v6894
      %v6911 = vpack.c.bf16 %v6897, %v6896
      %v6912 = vpack.c.bf16 %v6899, %v6898
      %v6913 = vpack.c.bf16 %v6901, %v6900
      %v6914 = vpack.c.bf16 %v6903, %v6902
      %v6915 = vpack.c.bf16 %v6905, %v6904
      %v6916 = vpack.c.bf16 %v6907, %v6906
      %v6917 = vpack.c.bf16 %v6909, %v6908
      %v6918 = vld [vmem:[%s6515 + $0x4] sm:$0xff]
      %v6919 = vld [vmem:[%s6515 + $0xc] sm:$0xff]
      %v6920 = vld [vmem:[%s6515 + $0x1c] sm:$0xff]
      %v6921 = vld [vmem:[%s6515 + $0x24] sm:$0xff]
      %v6922 = vld [vmem:[%s6515 + $0x34] sm:$0xff]
      %v6923 = vld [vmem:[%s6515 + $0x3c] sm:$0xff]
      %v6924 = vld [vmem:[%s6515 + $0x4c] sm:$0xff]
      %v6925 = vld [vmem:[%s6515 + $0x54] sm:$0xff]
      %v6926 = vld [vmem:[%s6515 + $0x64] sm:$0xff]
      %v6927 = vld [vmem:[%s6515 + $0x6c] sm:$0xff]
      %v6928 = vld [vmem:[%s6515 + $0x7c] sm:$0xff]
      %v6929 = vld [vmem:[%s6515 + $0x84] sm:$0xff]
      %v6930 = vld [vmem:[%s6515 + $0x94] sm:$0xff]
      %v6931 = vld [vmem:[%s6515 + $0x9c] sm:$0xff]
      %v6932 = vld [vmem:[%s6515 + $0xac] sm:$0xff]
      %v6933 = vld [vmem:[%s6515 + $0xb4] sm:$0xff]
      %v6934 = vpack.c.bf16 %v6919, %v6918
      %v6935 = vpack.c.bf16 %v6921, %v6920
      %v6936 = vpack.c.bf16 %v6923, %v6922
      %v6937 = vpack.c.bf16 %v6925, %v6924
      %v6938 = vpack.c.bf16 %v6927, %v6926
      %v6939 = vpack.c.bf16 %v6929, %v6928
      %v6940 = vpack.c.bf16 %v6931, %v6930
      %v6941 = vpack.c.bf16 %v6933, %v6932
      %s6942 = scalar_lea.vmem [#allocation4], 48
      %v6943 = vld [vmem:[%s6942] sm:$0xff]
      %v6944 = vld [vmem:[%s6942 + $0x8] sm:$0xff]
      %v6945 = vld [vmem:[%s6942 + $0x18] sm:$0xff]
      %v6946 = vld [vmem:[%s6942 + $0x20] sm:$0xff]
      %v6947 = vld [vmem:[%s6942 + $0x30] sm:$0xff]
      %v6948 = vld [vmem:[%s6942 + $0x38] sm:$0xff]
      %v6949 = vld [vmem:[%s6942 + $0x48] sm:$0xff]
      %v6950 = vld [vmem:[%s6942 + $0x50] sm:$0xff]
      %v6951 = vld [vmem:[%s6942 + $0x60] sm:$0xff]
      %v6952 = vld [vmem:[%s6942 + $0x68] sm:$0xff]
      %v6953 = vld [vmem:[%s6942 + $0x78] sm:$0xff]
      %v6954 = vld [vmem:[%s6942 + $0x80] sm:$0xff]
      %v6955 = vld [vmem:[%s6942 + $0x90] sm:$0xff]
      %v6956 = vld [vmem:[%s6942 + $0x98] sm:$0xff]
      %v6957 = vld [vmem:[%s6942 + $0xa8] sm:$0xff]
      %v6958 = vld [vmem:[%s6942 + $0xb0] sm:$0xff]
      %v6959 = vpack.c.bf16 %v6944, %v6943
      %v6960 = vpack.c.bf16 %v6946, %v6945
      %v6961 = vpack.c.bf16 %v6948, %v6947
      %v6962 = vpack.c.bf16 %v6950, %v6949
      %v6963 = vpack.c.bf16 %v6952, %v6951
      %v6964 = vpack.c.bf16 %v6954, %v6953
      %v6965 = vpack.c.bf16 %v6956, %v6955
      %v6966 = vpack.c.bf16 %v6958, %v6957
      %v6967 = vld [vmem:[%s6942 + $0x1] sm:$0xff]
      %v6968 = vld [vmem:[%s6942 + $0x9] sm:$0xff]
      %v6969 = vld [vmem:[%s6942 + $0x19] sm:$0xff]
      %v6970 = vld [vmem:[%s6942 + $0x21] sm:$0xff]
      %v6971 = vld [vmem:[%s6942 + $0x31] sm:$0xff]
      %v6972 = vld [vmem:[%s6942 + $0x39] sm:$0xff]
      %v6973 = vld [vmem:[%s6942 + $0x49] sm:$0xff]
      %v6974 = vld [vmem:[%s6942 + $0x51] sm:$0xff]
      %v6975 = vld [vmem:[%s6942 + $0x61] sm:$0xff]
      %v6976 = vld [vmem:[%s6942 + $0x69] sm:$0xff]
      %v6977 = vld [vmem:[%s6942 + $0x79] sm:$0xff]
      %v6978 = vld [vmem:[%s6942 + $0x81] sm:$0xff]
      %v6979 = vld [vmem:[%s6942 + $0x91] sm:$0xff]
      %v6980 = vld [vmem:[%s6942 + $0x99] sm:$0xff]
      %v6981 = vld [vmem:[%s6942 + $0xa9] sm:$0xff]
      %v6982 = vld [vmem:[%s6942 + $0xb1] sm:$0xff]
      %v6983 = vpack.c.bf16 %v6968, %v6967
      %v6984 = vpack.c.bf16 %v6970, %v6969
      %v6985 = vpack.c.bf16 %v6972, %v6971
      %v6986 = vpack.c.bf16 %v6974, %v6973
      %v6987 = vpack.c.bf16 %v6976, %v6975
      %v6988 = vpack.c.bf16 %v6978, %v6977
      %v6989 = vpack.c.bf16 %v6980, %v6979
      %v6990 = vpack.c.bf16 %v6982, %v6981
      %v6991 = vld [vmem:[%s6942 + $0x2] sm:$0xff]
      %v6992 = vld [vmem:[%s6942 + $0xa] sm:$0xff]
      %v6993 = vld [vmem:[%s6942 + $0x1a] sm:$0xff]
      %v6994 = vld [vmem:[%s6942 + $0x22] sm:$0xff]
      %v6995 = vld [vmem:[%s6942 + $0x32] sm:$0xff]
      %v6996 = vld [vmem:[%s6942 + $0x3a] sm:$0xff]
      %v6997 = vld [vmem:[%s6942 + $0x4a] sm:$0xff]
      %v6998 = vld [vmem:[%s6942 + $0x52] sm:$0xff]
      %v6999 = vld [vmem:[%s6942 + $0x62] sm:$0xff]
      %v7000 = vld [vmem:[%s6942 + $0x6a] sm:$0xff]
      %v7001 = vld [vmem:[%s6942 + $0x7a] sm:$0xff]
      %v7002 = vld [vmem:[%s6942 + $0x82] sm:$0xff]
      %v7003 = vld [vmem:[%s6942 + $0x92] sm:$0xff]
      %v7004 = vld [vmem:[%s6942 + $0x9a] sm:$0xff]
      %v7005 = vld [vmem:[%s6942 + $0xaa] sm:$0xff]
      %v7006 = vld [vmem:[%s6942 + $0xb2] sm:$0xff]
      %v7007 = vpack.c.bf16 %v6992, %v6991
      %v7008 = vpack.c.bf16 %v6994, %v6993
      %v7009 = vpack.c.bf16 %v6996, %v6995
      %v7010 = vpack.c.bf16 %v6998, %v6997
      %v7011 = vpack.c.bf16 %v7000, %v6999
      %v7012 = vpack.c.bf16 %v7002, %v7001
      %v7013 = vpack.c.bf16 %v7004, %v7003
      %v7014 = vpack.c.bf16 %v7006, %v7005
      %v7015 = vld [vmem:[%s6942 + $0x3] sm:$0xff]
      %v7016 = vld [vmem:[%s6942 + $0xb] sm:$0xff]
      %v7017 = vld [vmem:[%s6942 + $0x1b] sm:$0xff]
      %v7018 = vld [vmem:[%s6942 + $0x23] sm:$0xff]
      %v7019 = vld [vmem:[%s6942 + $0x33] sm:$0xff]
      %v7020 = vld [vmem:[%s6942 + $0x3b] sm:$0xff]
      %v7021 = vld [vmem:[%s6942 + $0x4b] sm:$0xff]
      %v7022 = vld [vmem:[%s6942 + $0x53] sm:$0xff]
      %v7023 = vld [vmem:[%s6942 + $0x63] sm:$0xff]
      %v7024 = vld [vmem:[%s6942 + $0x6b] sm:$0xff]
      %v7025 = vld [vmem:[%s6942 + $0x7b] sm:$0xff]
      %v7026 = vld [vmem:[%s6942 + $0x83] sm:$0xff]
      %v7027 = vld [vmem:[%s6942 + $0x93] sm:$0xff]
      %v7028 = vld [vmem:[%s6942 + $0x9b] sm:$0xff]
      %v7029 = vld [vmem:[%s6942 + $0xab] sm:$0xff]
      %v7030 = vld [vmem:[%s6942 + $0xb3] sm:$0xff]
      %v7031 = vpack.c.bf16 %v7016, %v7015
      %v7032 = vpack.c.bf16 %v7018, %v7017
      %v7033 = vpack.c.bf16 %v7020, %v7019
      %v7034 = vpack.c.bf16 %v7022, %v7021
      %v7035 = vpack.c.bf16 %v7024, %v7023
      %v7036 = vpack.c.bf16 %v7026, %v7025
      %v7037 = vpack.c.bf16 %v7028, %v7027
      %v7038 = vpack.c.bf16 %v7030, %v7029
      %v7039 = vld [vmem:[%s6942 + $0x4] sm:$0xff]
      %v7040 = vld [vmem:[%s6942 + $0xc] sm:$0xff]
      %v7041 = vld [vmem:[%s6942 + $0x1c] sm:$0xff]
      %v7042 = vld [vmem:[%s6942 + $0x24] sm:$0xff]
      %v7043 = vld [vmem:[%s6942 + $0x34] sm:$0xff]
      %v7044 = vld [vmem:[%s6942 + $0x3c] sm:$0xff]
      %v7045 = vld [vmem:[%s6942 + $0x4c] sm:$0xff]
      %v7046 = vld [vmem:[%s6942 + $0x54] sm:$0xff]
      %v7047 = vld [vmem:[%s6942 + $0x64] sm:$0xff]
      %v7048 = vld [vmem:[%s6942 + $0x6c] sm:$0xff]
      %v7049 = vld [vmem:[%s6942 + $0x7c] sm:$0xff]
      %v7050 = vld [vmem:[%s6942 + $0x84] sm:$0xff]
      %v7051 = vld [vmem:[%s6942 + $0x94] sm:$0xff]
      %v7052 = vld [vmem:[%s6942 + $0x9c] sm:$0xff]
      %v7053 = vld [vmem:[%s6942 + $0xac] sm:$0xff]
      %v7054 = vld [vmem:[%s6942 + $0xb4] sm:$0xff]
      %v7055 = vpack.c.bf16 %v7040, %v7039
      %v7056 = vpack.c.bf16 %v7042, %v7041
      %v7057 = vpack.c.bf16 %v7044, %v7043
      %v7058 = vpack.c.bf16 %v7046, %v7045
      %v7059 = vpack.c.bf16 %v7048, %v7047
      %v7060 = vpack.c.bf16 %v7050, %v7049
      %v7061 = vpack.c.bf16 %v7052, %v7051
      %v7062 = vpack.c.bf16 %v7054, %v7053
      %7071 = vrot.lane.b32.xlu0 %v6742, 64
      %v7072 = vpop.permute.xlu0 %7071
      %7073 = vrot.lane.b32.xlu0 %v6743, 64
      %v7074 = vpop.permute.xlu0 %7073
      %7075 = vrot.lane.b32.xlu0 %v6744, 64
      %v7076 = vpop.permute.xlu0 %7075
      %7077 = vrot.lane.b32.xlu0 %v6745, 64
      %v7078 = vpop.permute.xlu0 %7077
      %7079 = vrot.lane.b32.xlu0 %v6746, 64
      %v7080 = vpop.permute.xlu0 %7079
      %7081 = vrot.lane.b32.xlu0 %v6747, 64
      %v7082 = vpop.permute.xlu0 %7081
      %7083 = vrot.lane.b32.xlu0 %v6748, 64
      %v7084 = vpop.permute.xlu0 %7083
      %7085 = vrot.lane.b32.xlu0 %v6749, 64
      %v7086 = vpop.permute.xlu0 %7085
      %7095 = vrot.lane.b32.xlu0 %v6790, 64
      %v7096 = vpop.permute.xlu0 %7095
      %7097 = vrot.lane.b32.xlu0 %v6791, 64
      %v7098 = vpop.permute.xlu0 %7097
      %7099 = vrot.lane.b32.xlu0 %v6792, 64
      %v7100 = vpop.permute.xlu0 %7099
      %7101 = vrot.lane.b32.xlu0 %v6793, 64
      %v7102 = vpop.permute.xlu0 %7101
      %7103 = vrot.lane.b32.xlu0 %v6794, 64
      %v7104 = vpop.permute.xlu0 %7103
      %7105 = vrot.lane.b32.xlu0 %v6795, 64
      %v7106 = vpop.permute.xlu0 %7105
      %7107 = vrot.lane.b32.xlu0 %v6796, 64
      %v7108 = vpop.permute.xlu0 %7107
      %7109 = vrot.lane.b32.xlu0 %v6797, 64
      %v7110 = vpop.permute.xlu0 %7109
      %7119 = vrot.lane.b32.xlu0 %v6838, 64
      %v7120 = vpop.permute.xlu0 %7119
      %7121 = vrot.lane.b32.xlu0 %v6839, 64
      %v7122 = vpop.permute.xlu0 %7121
      %7123 = vrot.lane.b32.xlu0 %v6840, 64
      %v7124 = vpop.permute.xlu0 %7123
      %7125 = vrot.lane.b32.xlu0 %v6841, 64
      %v7126 = vpop.permute.xlu0 %7125
      %7127 = vrot.lane.b32.xlu0 %v6842, 64
      %v7128 = vpop.permute.xlu0 %7127
      %7129 = vrot.lane.b32.xlu0 %v6843, 64
      %v7130 = vpop.permute.xlu0 %7129
      %7131 = vrot.lane.b32.xlu0 %v6844, 64
      %v7132 = vpop.permute.xlu0 %7131
      %7133 = vrot.lane.b32.xlu0 %v6845, 64
      %v7134 = vpop.permute.xlu0 %7133
      %7143 = vrot.lane.b32.xlu0 %v6886, 64
      %v7144 = vpop.permute.xlu0 %7143
      %7145 = vrot.lane.b32.xlu0 %v6887, 64
      %v7146 = vpop.permute.xlu0 %7145
      %7147 = vrot.lane.b32.xlu0 %v6888, 64
      %v7148 = vpop.permute.xlu0 %7147
      %7149 = vrot.lane.b32.xlu0 %v6889, 64
      %v7150 = vpop.permute.xlu0 %7149
      %7151 = vrot.lane.b32.xlu0 %v6890, 64
      %v7152 = vpop.permute.xlu0 %7151
      %7153 = vrot.lane.b32.xlu0 %v6891, 64
      %v7154 = vpop.permute.xlu0 %7153
      %7155 = vrot.lane.b32.xlu0 %v6892, 64
      %v7156 = vpop.permute.xlu0 %7155
      %7157 = vrot.lane.b32.xlu0 %v6893, 64
      %v7158 = vpop.permute.xlu0 %7157
      %7167 = vrot.lane.b32.xlu0 %v6934, 64
      %v7168 = vpop.permute.xlu0 %7167
      %7169 = vrot.lane.b32.xlu0 %v6935, 64
      %v7170 = vpop.permute.xlu0 %7169
      %7171 = vrot.lane.b32.xlu0 %v6936, 64
      %v7172 = vpop.permute.xlu0 %7171
      %7173 = vrot.lane.b32.xlu0 %v6937, 64
      %v7174 = vpop.permute.xlu0 %7173
      %7175 = vrot.lane.b32.xlu0 %v6938, 64
      %v7176 = vpop.permute.xlu0 %7175
      %7177 = vrot.lane.b32.xlu0 %v6939, 64
      %v7178 = vpop.permute.xlu0 %7177
      %7179 = vrot.lane.b32.xlu0 %v6940, 64
      %v7180 = vpop.permute.xlu0 %7179
      %7181 = vrot.lane.b32.xlu0 %v6941, 64
      %v7182 = vpop.permute.xlu0 %7181
      %7191 = vrot.lane.b32.xlu0 %v6983, 64
      %v7192 = vpop.permute.xlu0 %7191
      %7193 = vrot.lane.b32.xlu0 %v6984, 64
      %v7194 = vpop.permute.xlu0 %7193
      %7195 = vrot.lane.b32.xlu0 %v6985, 64
      %v7196 = vpop.permute.xlu0 %7195
      %7197 = vrot.lane.b32.xlu0 %v6986, 64
      %v7198 = vpop.permute.xlu0 %7197
      %7199 = vrot.lane.b32.xlu0 %v6987, 64
      %v7200 = vpop.permute.xlu0 %7199
      %7201 = vrot.lane.b32.xlu0 %v6988, 64
      %v7202 = vpop.permute.xlu0 %7201
      %7203 = vrot.lane.b32.xlu0 %v6989, 64
      %v7204 = vpop.permute.xlu0 %7203
      %7205 = vrot.lane.b32.xlu0 %v6990, 64
      %v7206 = vpop.permute.xlu0 %7205
      %7215 = vrot.lane.b32.xlu0 %v7031, 64
      %v7216 = vpop.permute.xlu0 %7215
      %7217 = vrot.lane.b32.xlu0 %v7032, 64
      %v7218 = vpop.permute.xlu0 %7217
      %7219 = vrot.lane.b32.xlu0 %v7033, 64
      %v7220 = vpop.permute.xlu0 %7219
      %7221 = vrot.lane.b32.xlu0 %v7034, 64
      %v7222 = vpop.permute.xlu0 %7221
      %7223 = vrot.lane.b32.xlu0 %v7035, 64
      %v7224 = vpop.permute.xlu0 %7223
      %7225 = vrot.lane.b32.xlu0 %v7036, 64
      %v7226 = vpop.permute.xlu0 %7225
      %7227 = vrot.lane.b32.xlu0 %v7037, 64
      %v7228 = vpop.permute.xlu0 %7227
      %7229 = vrot.lane.b32.xlu0 %v7038, 64
      %v7230 = vpop.permute.xlu0 %7229
      %v7233 = vsel %vm340, %v6718, %v7072
      %v7237 = vsel %vm340, %v6719, %v7074
      %v7241 = vsel %vm340, %v6720, %v7076
      %v7245 = vsel %vm340, %v6721, %v7078
      %v7249 = vsel %vm340, %v6722, %v7080
      %v7253 = vsel %vm340, %v6723, %v7082
      %v7257 = vsel %vm340, %v6724, %v7084
      %v7261 = vsel %vm340, %v6725, %v7086
      %v7265 = vsel %vm340, %v6766, %v7096
      %v7269 = vsel %vm340, %v6767, %v7098
      %v7273 = vsel %vm340, %v6768, %v7100
      %v7277 = vsel %vm340, %v6769, %v7102
      %v7281 = vsel %vm340, %v6770, %v7104
      %v7285 = vsel %vm340, %v6771, %v7106
      %v7289 = vsel %vm340, %v6772, %v7108
      %v7293 = vsel %vm340, %v6773, %v7110
      %v7297 = vsel %vm340, %v6814, %v7120
      %v7301 = vsel %vm340, %v6815, %v7122
      %v7305 = vsel %vm340, %v6816, %v7124
      %v7309 = vsel %vm340, %v6817, %v7126
      %v7313 = vsel %vm340, %v6818, %v7128
      %v7317 = vsel %vm340, %v6819, %v7130
      %v7321 = vsel %vm340, %v6820, %v7132
      %v7325 = vsel %vm340, %v6821, %v7134
      %v7329 = vsel %vm340, %v6862, %v7144
      %v7333 = vsel %vm340, %v6863, %v7146
      %v7337 = vsel %vm340, %v6864, %v7148
      %v7341 = vsel %vm340, %v6865, %v7150
      %v7345 = vsel %vm340, %v6866, %v7152
      %v7349 = vsel %vm340, %v6867, %v7154
      %v7353 = vsel %vm340, %v6868, %v7156
      %v7357 = vsel %vm340, %v6869, %v7158
      %v7361 = vsel %vm340, %v6910, %v7168
      %v7365 = vsel %vm340, %v6911, %v7170
      %v7369 = vsel %vm340, %v6912, %v7172
      %v7373 = vsel %vm340, %v6913, %v7174
      %v7377 = vsel %vm340, %v6914, %v7176
      %v7381 = vsel %vm340, %v6915, %v7178
      %v7385 = vsel %vm340, %v6916, %v7180
      %v7389 = vsel %vm340, %v6917, %v7182
      %v7393 = vsel %vm340, %v6959, %v7192
      %v7397 = vsel %vm340, %v6960, %v7194
      %v7401 = vsel %vm340, %v6961, %v7196
      %v7405 = vsel %vm340, %v6962, %v7198
      %v7409 = vsel %vm340, %v6963, %v7200
      %v7413 = vsel %vm340, %v6964, %v7202
      %v7417 = vsel %vm340, %v6965, %v7204
      %v7421 = vsel %vm340, %v6966, %v7206
      %v7425 = vsel %vm340, %v7007, %v7216
      %v7429 = vsel %vm340, %v7008, %v7218
      %v7433 = vsel %vm340, %v7009, %v7220
      %v7437 = vsel %vm340, %v7010, %v7222
      %v7441 = vsel %vm340, %v7011, %v7224
      %v7445 = vsel %vm340, %v7012, %v7226
      %v7449 = vsel %vm340, %v7013, %v7228
      %v7453 = vsel %vm340, %v7014, %v7230
      %v7455 = vlaneseq
      %v7456 = vshrl.u32 %v7455, 7
      %v7457 = vsub.s32 0, %v7456
      %v7458 = vrot.slane %v6701, %v7457
      %v7579 = vunpack.c.l.b16 %v6581
      %v7580 = vunpack.c.l.b16 %v6582
      %v7581 = vunpack.c.l.b16 %v6583
      %v7582 = vunpack.c.l.b16 %v6584
      %v7583 = vunpack.c.l.b16 %v6585
      %v7584 = vunpack.c.l.b16 %v6586
      %v7585 = vunpack.c.l.b16 %v6587
      %v7586 = vunpack.c.l.b16 %v6588
      %v7587 = vunpack.c.l.b16 %v6589
      %v7588 = vunpack.c.l.b16 %v6590
      %v7589 = vunpack.c.l.b16 %v6591
      %v7590 = vunpack.c.l.b16 %v6592
      %v7591 = vunpack.c.l.b16 %v6593
      %v7592 = vunpack.c.l.b16 %v6594
      %v7593 = vunpack.c.l.b16 %v6595
      %v7594 = vunpack.c.l.b16 %v6596
      %v7595 = vunpack.c.l.b16 %v6597
      %v7596 = vunpack.c.l.b16 %v6598
      %v7597 = vunpack.c.l.b16 %v6599
      %v7598 = vunpack.c.l.b16 %v6600
      %v7599 = vunpack.c.l.b16 %v6601
      %v7600 = vunpack.c.l.b16 %v6602
      %v7601 = vunpack.c.l.b16 %v6603
      %v7602 = vunpack.c.l.b16 %v6604
      %v7603 = vunpack.c.l.b16 %v6605
      %v7604 = vunpack.c.l.b16 %v6606
      %v7605 = vunpack.c.l.b16 %v6607
      %v7606 = vunpack.c.l.b16 %v6608
      %v7607 = vunpack.c.l.b16 %v6609
      %v7608 = vunpack.c.l.b16 %v6610
      %v7609 = vunpack.c.l.b16 %v6611
      %v7610 = vunpack.c.l.b16 %v6612
      %v7611 = vunpack.c.l.b16 %v6613
      %v7612 = vunpack.c.l.b16 %v6614
      %v7613 = vunpack.c.l.b16 %v6615
      %v7614 = vunpack.c.l.b16 %v6616
      %v7615 = vunpack.c.l.b16 %v6617
      %v7616 = vunpack.c.l.b16 %v6618
      %v7617 = vunpack.c.l.b16 %v6619
      %v7618 = vunpack.c.l.b16 %v6620
      %v7619 = vunpack.c.l.b16 %v6621
      %v7620 = vunpack.c.l.b16 %v6622
      %v7621 = vunpack.c.l.b16 %v6623
      %v7622 = vunpack.c.l.b16 %v6624
      %v7623 = vunpack.c.l.b16 %v6625
      %v7624 = vunpack.c.l.b16 %v6626
      %v7625 = vunpack.c.l.b16 %v6627
      %v7626 = vunpack.c.l.b16 %v6628
      %v7627 = vunpack.c.l.b16 %v6629
      %v7628 = vunpack.c.l.b16 %v6630
      %v7629 = vunpack.c.l.b16 %v6631
      %v7630 = vunpack.c.l.b16 %v6632
      %v7631 = vunpack.c.l.b16 %v6633
      %v7632 = vunpack.c.l.b16 %v6634
      %v7633 = vunpack.c.l.b16 %v6635
      %v7634 = vunpack.c.l.b16 %v6636
      %v7635 = vunpack.c.l.b16 %v6637
      %v7636 = vunpack.c.l.b16 %v6638
      %v7637 = vunpack.c.l.b16 %v6639
      %v7638 = vunpack.c.l.b16 %v6640
      %v7639 = vunpack.c.l.b16 %v6641
      %v7640 = vunpack.c.l.b16 %v6642
      %v7641 = vunpack.c.l.b16 %v6643
      %v7642 = vunpack.c.l.b16 %v6644
      %v7643 = vunpack.c.l.b16 %v6645
      %v7644 = vunpack.c.l.b16 %v6646
      %v7645 = vunpack.c.l.b16 %v6647
      %v7646 = vunpack.c.l.b16 %v6648
      %v7647 = vunpack.c.l.b16 %v6649
      %v7648 = vunpack.c.l.b16 %v6650
      %v7649 = vunpack.c.l.b16 %v6651
      %v7650 = vunpack.c.l.b16 %v6652
      %v7651 = vunpack.c.l.b16 %v6653
      %v7652 = vunpack.c.l.b16 %v6654
      %v7653 = vunpack.c.l.b16 %v6655
      %v7654 = vunpack.c.l.b16 %v6656
      %v7655 = vunpack.c.l.b16 %v6657
      %v7656 = vunpack.c.l.b16 %v6658
      %v7657 = vunpack.c.l.b16 %v6659
      %v7658 = vunpack.c.l.b16 %v6660
      %v7659 = vunpack.c.l.b16 %v6661
      %v7660 = vunpack.c.l.b16 %v6662
      %v7661 = vunpack.c.l.b16 %v6663
      %v7662 = vunpack.c.l.b16 %v6664
      %v7663 = vunpack.c.l.b16 %v6665
      %v7664 = vunpack.c.l.b16 %v6666
      %v7665 = vunpack.c.l.b16 %v6667
      %v7666 = vunpack.c.l.b16 %v6668
      %v7667 = vunpack.c.l.b16 %v6669
      %v7668 = vunpack.c.l.b16 %v6670
      %v7669 = vunpack.c.l.b16 %v6671
      %v7670 = vunpack.c.l.b16 %v6672
      %v7671 = vunpack.c.l.b16 %v6673
      %v7672 = vunpack.c.l.b16 %v6674
      %v7673 = vunpack.c.l.b16 %v6675
      %v7674 = vunpack.c.l.b16 %v6676
      %v7675 = vunpack.c.l.b16 %v6677
      %v7676 = vunpack.c.l.b16 %v6678
      %v7677 = vunpack.c.l.b16 %v6679
      %v7678 = vunpack.c.l.b16 %v6680
      %v7679 = vunpack.c.l.b16 %v6681
      %v7680 = vunpack.c.l.b16 %v6682
      %v7681 = vunpack.c.l.b16 %v6683
      %v7682 = vunpack.c.l.b16 %v6684
      %v7683 = vunpack.c.l.b16 %v6685
      %v7684 = vunpack.c.l.b16 %v6686
      %v7685 = vunpack.c.l.b16 %v6687
      %v7686 = vunpack.c.l.b16 %v6688
      %v7687 = vunpack.c.l.b16 %v6689
      %v7688 = vunpack.c.l.b16 %v6690
      %v7689 = vunpack.c.l.b16 %v6691
      %v7690 = vunpack.c.l.b16 %v6692
      %v7691 = vunpack.c.l.b16 %v6693
      %v7692 = vunpack.c.l.b16 %v6694
      %v7693 = vunpack.c.l.b16 %v6695
      %v7694 = vunpack.c.l.b16 %v6696
      %v7695 = vunpack.c.l.b16 %v6697
      %v7696 = vunpack.c.l.b16 %v6698
      %v7697 = vunpack.c.l.b16 %v6699
      %v7698 = vunpack.c.l.b16 %v6700
      %v7699 = vpack.c.b16 %v7580, %v7579
      %v7700 = vpack.c.b16 %v7582, %v7581
      %v7701 = vpack.c.b16 %v7584, %v7583
      %v7702 = vpack.c.b16 %v7586, %v7585
      %v7703 = vpack.c.b16 %v7588, %v7587
      %v7704 = vpack.c.b16 %v7590, %v7589
      %v7705 = vpack.c.b16 %v7592, %v7591
      %v7706 = vpack.c.b16 %v7594, %v7593
      %v7707 = vpack.c.b16 %v7596, %v7595
      %v7708 = vpack.c.b16 %v7598, %v7597
      %v7709 = vpack.c.b16 %v7600, %v7599
      %v7710 = vpack.c.b16 %v7602, %v7601
      %v7711 = vpack.c.b16 %v7604, %v7603
      %v7712 = vpack.c.b16 %v7606, %v7605
      %v7713 = vpack.c.b16 %v7608, %v7607
      %v7714 = vpack.c.b16 %v7610, %v7609
      %v7715 = vpack.c.b16 %v7612, %v7611
      %v7716 = vpack.c.b16 %v7614, %v7613
      %v7717 = vpack.c.b16 %v7616, %v7615
      %v7718 = vpack.c.b16 %v7618, %v7617
      %v7719 = vpack.c.b16 %v7620, %v7619
      %v7720 = vpack.c.b16 %v7622, %v7621
      %v7721 = vpack.c.b16 %v7624, %v7623
      %v7722 = vpack.c.b16 %v7626, %v7625
      %v7723 = vpack.c.b16 %v7628, %v7627
      %v7724 = vpack.c.b16 %v7630, %v7629
      %v7725 = vpack.c.b16 %v7632, %v7631
      %v7726 = vpack.c.b16 %v7634, %v7633
      %v7727 = vpack.c.b16 %v7636, %v7635
      %v7728 = vpack.c.b16 %v7638, %v7637
      %v7729 = vpack.c.b16 %v7640, %v7639
      %v7730 = vpack.c.b16 %v7642, %v7641
      %v7731 = vpack.c.b16 %v7644, %v7643
      %v7732 = vpack.c.b16 %v7646, %v7645
      %v7733 = vpack.c.b16 %v7648, %v7647
      %v7734 = vpack.c.b16 %v7650, %v7649
      %v7735 = vpack.c.b16 %v7652, %v7651
      %v7736 = vpack.c.b16 %v7654, %v7653
      %v7737 = vpack.c.b16 %v7656, %v7655
      %v7738 = vpack.c.b16 %v7658, %v7657
      %v7739 = vpack.c.b16 %v7660, %v7659
      %v7740 = vpack.c.b16 %v7662, %v7661
      %v7741 = vpack.c.b16 %v7664, %v7663
      %v7742 = vpack.c.b16 %v7666, %v7665
      %v7743 = vpack.c.b16 %v7668, %v7667
      %v7744 = vpack.c.b16 %v7670, %v7669
      %v7745 = vpack.c.b16 %v7672, %v7671
      %v7746 = vpack.c.b16 %v7674, %v7673
      %v7747 = vpack.c.b16 %v7676, %v7675
      %v7748 = vpack.c.b16 %v7678, %v7677
      %v7749 = vpack.c.b16 %v7680, %v7679
      %v7750 = vpack.c.b16 %v7682, %v7681
      %v7751 = vpack.c.b16 %v7684, %v7683
      %v7752 = vpack.c.b16 %v7686, %v7685
      %v7753 = vpack.c.b16 %v7688, %v7687
      %v7754 = vpack.c.b16 %v7690, %v7689
      %v7755 = vpack.c.b16 %v7692, %v7691
      %v7756 = vpack.c.b16 %v7694, %v7693
      %v7757 = vpack.c.b16 %v7696, %v7695
      %v7758 = vpack.c.b16 %v7698, %v7697
      %v7820 = vsel %vm340, %v7055, 0
      %v7823 = vsel %vm340, %v7056, 0
      %v7826 = vsel %vm340, %v7057, 0
      %v7829 = vsel %vm340, %v7058, 0
      %v7832 = vsel %vm340, %v7059, 0
      %v7835 = vsel %vm340, %v7060, 0
      %v7838 = vsel %vm340, %v7061, 0
      %v7841 = vsel %vm340, %v7062, 0
      %7843 = vmatprep.subr.bf16.mxu0 0
      %7844 = vmatpush1.bf16.msra.mxu0 %v7699
      %7845 = vmatprep.subr.bf16.mxu0 0
      %7846 = vmatpush1.bf16.msra.mxu0 %v7700
      %7847 = vmatprep.subr.bf16.mxu0 0
      %7848 = vmatpush1.bf16.msra.mxu0 %v7701
      %7849 = vmatprep.subr.bf16.mxu0 0
      %7850 = vmatpush1.bf16.msra.mxu0 %v7702
      %7851 = vmatprep.subr.bf16.mxu0 0
      %7852 = vmatpush1.bf16.msra.mxu0 %v7703
      %7853 = vmatprep.subr.bf16.mxu0 0
      %7854 = vmatpush1.bf16.msra.mxu0 %v7704
      %7855 = vmatprep.subr.bf16.mxu0 0
      %7856 = vmatpush1.bf16.msra.mxu0 %v7705
      %7857 = vmatprep.subr.bf16.mxu0 0
      %7858 = vmatpush1.bf16.msra.mxu0 %v7706
      %7859 = vmatprep.subr.bf16.mxu0 0
      %7860 = vmatpush1.bf16.msra.mxu0 %v7707
      %7861 = vmatprep.subr.bf16.mxu0 0
      %7862 = vmatpush1.bf16.msra.mxu0 %v7708
      %7863 = vmatprep.subr.bf16.mxu0 0
      %7864 = vmatpush1.bf16.msra.mxu0 %v7709
      %7865 = vmatprep.subr.bf16.mxu0 0
      %7866 = vmatpush1.bf16.msra.mxu0 %v7710
      %7867 = vmatprep.subr.bf16.mxu0 0
      %7868 = vmatpush1.bf16.msra.mxu0 %v7711
      %7869 = vmatprep.subr.bf16.mxu0 0
      %7870 = vmatpush1.bf16.msra.mxu0 %v7712
      %7871 = vmatprep.subr.bf16.mxu0 0
      %7872 = vmatpush1.bf16.msra.mxu0 %v7713
      %7873 = vmatprep.subr.bf16.mxu0 0
      %7874 = vmatpush1.bf16.msra.mxu0 %v7714
      %7875 = vmatprep.mubr.bf16.mxu0 %v7265
      %7876 = vmatmul.mubr.bf16.gmra.mrb[0].mxu0 %v7233
      %v7877 = vpop.f32.mrb[0].mxu0
      %v7878 = vadd.f32 %v7458, %v7877
      %v7879 = vpop.f32.mrb[0].mxu0
      %v7880 = vpop.f32.mrb[0].mxu0
      %v7881 = vadd.f32 %v7458, %v7880
      %v7882 = vpop.f32.mrb[0].mxu0
      %7883 = vmatprep.mubr.bf16.mxu0 %v7269
      %7884 = vmatmul.mubr.bf16.gmra.mrb[0].mxu0 %v7237
      %v7885 = vpop.f32.mrb[0].mxu0
      %v7886 = vadd.f32 %v7458, %v7885
      %v7887 = vpop.f32.mrb[0].mxu0
      %v7888 = vpop.f32.mrb[0].mxu0
      %v7889 = vadd.f32 %v7458, %v7888
      %v7890 = vpop.f32.mrb[0].mxu0
      %7891 = vmatprep.mubr.bf16.mxu0 %v7273
      %7892 = vmatmul.mubr.bf16.gmra.mrb[0].mxu0 %v7241
      %v7893 = vpop.f32.mrb[0].mxu0
      %v7894 = vadd.f32 %v7458, %v7893
      %v7895 = vpop.f32.mrb[0].mxu0
      %v7896 = vpop.f32.mrb[0].mxu0
      %v7897 = vadd.f32 %v7458, %v7896
      %v7898 = vpop.f32.mrb[0].mxu0
      %7899 = vmatprep.mubr.bf16.mxu0 %v7277
      %7900 = vmatmul.mubr.bf16.gmra.mrb[0].mxu0 %v7245
      %v7901 = vpop.f32.mrb[0].mxu0
      %v7902 = vadd.f32 %v7458, %v7901
      %v7903 = vpop.f32.mrb[0].mxu0
      %v7904 = vpop.f32.mrb[0].mxu0
      %v7905 = vadd.f32 %v7458, %v7904
      %v7906 = vpop.f32.mrb[0].mxu0
      %7907 = vmatprep.mubr.bf16.mxu0 %v7281
      %7908 = vmatmul.mubr.bf16.gmra.mrb[0].mxu0 %v7249
      %v7909 = vpop.f32.mrb[0].mxu0
      %v7910 = vadd.f32 %v7458, %v7909
      %v7911 = vpop.f32.mrb[0].mxu0
      %v7912 = vpop.f32.mrb[0].mxu0
      %v7913 = vadd.f32 %v7458, %v7912
      %v7914 = vpop.f32.mrb[0].mxu0
      %7915 = vmatprep.mubr.bf16.mxu0 %v7285
      %7916 = vmatmul.mubr.bf16.gmra.mrb[0].mxu0 %v7253
      %v7917 = vpop.f32.mrb[0].mxu0
      %v7918 = vadd.f32 %v7458, %v7917
      %v7919 = vpop.f32.mrb[0].mxu0
      %v7920 = vpop.f32.mrb[0].mxu0
      %v7921 = vadd.f32 %v7458, %v7920
      %v7922 = vpop.f32.mrb[0].mxu0
      %7923 = vmatprep.mubr.bf16.mxu0 %v7289
      %7924 = vmatmul.mubr.bf16.gmra.mrb[0].mxu0 %v7257
      %v7925 = vpop.f32.mrb[0].mxu0
      %v7926 = vadd.f32 %v7458, %v7925
      %v7927 = vpop.f32.mrb[0].mxu0
      %v7928 = vpop.f32.mrb[0].mxu0
      %v7929 = vadd.f32 %v7458, %v7928
      %v7930 = vpop.f32.mrb[0].mxu0
      %7931 = vmatprep.mubr.bf16.mxu0 %v7293
      %7932 = vmatmul.mubr.bf16.gmra.mrb[0].mxu0 %v7261
      %v7933 = vpop.f32.mrb[0].mxu0
      %v7934 = vadd.f32 %v7458, %v7933
      %v7935 = vpop.f32.mrb[0].mxu0
      %v7936 = vpop.f32.mrb[0].mxu0
      %v7937 = vadd.f32 %v7458, %v7936
      %v7938 = vpop.f32.mrb[0].mxu0
      %7939 = vdwg.mxu0
      %7940 = vmatprep.subr.bf16.mxu0 0
      %7941 = vmatpush1.bf16.msra.mxu0 %v7715
      %7942 = vmatprep.subr.bf16.mxu0 0
      %7943 = vmatpush1.bf16.msra.mxu0 %v7716
      %7944 = vmatprep.subr.bf16.mxu0 0
      %7945 = vmatpush1.bf16.msra.mxu0 %v7717
      %7946 = vmatprep.subr.bf16.mxu0 0
      %7947 = vmatpush1.bf16.msra.mxu0 %v7718
      %7948 = vmatprep.subr.bf16.mxu0 0
      %7949 = vmatpush1.bf16.msra.mxu0 %v7719
      %7950 = vmatprep.subr.bf16.mxu0 0
      %7951 = vmatpush1.bf16.msra.mxu0 %v7720
      %7952 = vmatprep.subr.bf16.mxu0 0
      %7953 = vmatpush1.bf16.msra.mxu0 %v7721
      %7954 = vmatprep.subr.bf16.mxu0 0
      %7955 = vmatpush1.bf16.msra.mxu0 %v7722
      %7956 = vmatprep.subr.bf16.mxu0 0
      %7957 = vmatpush1.bf16.msra.mxu0 %v7723
      %7958 = vmatprep.subr.bf16.mxu0 0
      %7959 = vmatpush1.bf16.msra.mxu0 %v7724
      %7960 = vmatprep.subr.bf16.mxu0 0
      %7961 = vmatpush1.bf16.msra.mxu0 %v7725
      %7962 = vmatprep.subr.bf16.mxu0 0
      %7963 = vmatpush1.bf16.msra.mxu0 %v7726
      %7964 = vmatprep.subr.bf16.mxu0 0
      %7965 = vmatpush1.bf16.msra.mxu0 %v7727
      %7966 = vmatprep.subr.bf16.mxu0 0
      %7967 = vmatpush1.bf16.msra.mxu0 %v7728
      %7968 = vmatprep.subr.bf16.mxu0 0
      %7969 = vmatpush1.bf16.msra.mxu0 %v7729
      %7970 = vmatprep.subr.bf16.mxu0 0
      %7971 = vmatpush1.bf16.msra.mxu0 %v7730
      %7972 = vmatprep.mubr.bf16.mxu0 %v7329
      %7973 = vmatmul.mubr.bf16.gmra.mrb[0].mxu0 %v7297
      %v7974 = vpop.f32.mrb[0].mxu0
      %v7975 = vadd.f32 %v7878, %v7974
      %v7976 = vpop.f32.mrb[0].mxu0
      %v7977 = vpop.f32.mrb[0].mxu0
      %v7978 = vadd.f32 %v7881, %v7977
      %v7979 = vpop.f32.mrb[0].mxu0
      %7980 = vmatprep.mubr.bf16.mxu0 %v7333
      %7981 = vmatmul.mubr.bf16.gmra.mrb[0].mxu0 %v7301
      %v7982 = vpop.f32.mrb[0].mxu0
      %v7983 = vadd.f32 %v7886, %v7982
      %v7984 = vpop.f32.mrb[0].mxu0
      %v7985 = vpop.f32.mrb[0].mxu0
      %v7986 = vadd.f32 %v7889, %v7985
      %v7987 = vpop.f32.mrb[0].mxu0
      %7988 = vmatprep.mubr.bf16.mxu0 %v7337
      %7989 = vmatmul.mubr.bf16.gmra.mrb[0].mxu0 %v7305
      %v7990 = vpop.f32.mrb[0].mxu0
      %v7991 = vadd.f32 %v7894, %v7990
      %v7992 = vpop.f32.mrb[0].mxu0
      %v7993 = vpop.f32.mrb[0].mxu0
      %v7994 = vadd.f32 %v7897, %v7993
      %v7995 = vpop.f32.mrb[0].mxu0
      %7996 = vmatprep.mubr.bf16.mxu0 %v7341
      %7997 = vmatmul.mubr.bf16.gmra.mrb[0].mxu0 %v7309
      %v7998 = vpop.f32.mrb[0].mxu0
      %v7999 = vadd.f32 %v7902, %v7998
      %v8000 = vpop.f32.mrb[0].mxu0
      %v8001 = vpop.f32.mrb[0].mxu0
      %v8002 = vadd.f32 %v7905, %v8001
      %v8003 = vpop.f32.mrb[0].mxu0
      %8004 = vmatprep.mubr.bf16.mxu0 %v7345
      %8005 = vmatmul.mubr.bf16.gmra.mrb[0].mxu0 %v7313
      %v8006 = vpop.f32.mrb[0].mxu0
      %v8007 = vadd.f32 %v7910, %v8006
      %v8008 = vpop.f32.mrb[0].mxu0
      %v8009 = vpop.f32.mrb[0].mxu0
      %v8010 = vadd.f32 %v7913, %v8009
      %v8011 = vpop.f32.mrb[0].mxu0
      %8012 = vmatprep.mubr.bf16.mxu0 %v7349
      %8013 = vmatmul.mubr.bf16.gmra.mrb[0].mxu0 %v7317
      %v8014 = vpop.f32.mrb[0].mxu0
      %v8015 = vadd.f32 %v7918, %v8014
      %v8016 = vpop.f32.mrb[0].mxu0
      %v8017 = vpop.f32.mrb[0].mxu0
      %v8018 = vadd.f32 %v7921, %v8017
      %v8019 = vpop.f32.mrb[0].mxu0
      %8020 = vmatprep.mubr.bf16.mxu0 %v7353
      %8021 = vmatmul.mubr.bf16.gmra.mrb[0].mxu0 %v7321
      %v8022 = vpop.f32.mrb[0].mxu0
      %v8023 = vadd.f32 %v7926, %v8022
      %v8024 = vpop.f32.mrb[0].mxu0
      %v8025 = vpop.f32.mrb[0].mxu0
      %v8026 = vadd.f32 %v7929, %v8025
      %v8027 = vpop.f32.mrb[0].mxu0
      %8028 = vmatprep.mubr.bf16.mxu0 %v7357
      %8029 = vmatmul.mubr.bf16.gmra.mrb[0].mxu0 %v7325
      %v8030 = vpop.f32.mrb[0].mxu0
      %v8031 = vadd.f32 %v7934, %v8030
      %v8032 = vpop.f32.mrb[0].mxu0
      %v8033 = vpop.f32.mrb[0].mxu0
      %v8034 = vadd.f32 %v7937, %v8033
      %v8035 = vpop.f32.mrb[0].mxu0
      %8036 = vdwg.mxu0
      %8037 = vmatprep.subr.bf16.mxu0 0
      %8038 = vmatpush1.bf16.msra.mxu0 %v7731
      %8039 = vmatprep.subr.bf16.mxu0 0
      %8040 = vmatpush1.bf16.msra.mxu0 %v7732
      %8041 = vmatprep.subr.bf16.mxu0 0
      %8042 = vmatpush1.bf16.msra.mxu0 %v7733
      %8043 = vmatprep.subr.bf16.mxu0 0
      %8044 = vmatpush1.bf16.msra.mxu0 %v7734
      %8045 = vmatprep.subr.bf16.mxu0 0
      %8046 = vmatpush1.bf16.msra.mxu0 %v7735
      %8047 = vmatprep.subr.bf16.mxu0 0
      %8048 = vmatpush1.bf16.msra.mxu0 %v7736
      %8049 = vmatprep.subr.bf16.mxu0 0
      %8050 = vmatpush1.bf16.msra.mxu0 %v7737
      %8051 = vmatprep.subr.bf16.mxu0 0
      %8052 = vmatpush1.bf16.msra.mxu0 %v7738
      %8053 = vmatprep.subr.bf16.mxu0 0
      %8054 = vmatpush1.bf16.msra.mxu0 %v7739
      %8055 = vmatprep.subr.bf16.mxu0 0
      %8056 = vmatpush1.bf16.msra.mxu0 %v7740
      %8057 = vmatprep.subr.bf16.mxu0 0
      %8058 = vmatpush1.bf16.msra.mxu0 %v7741
      %8059 = vmatprep.subr.bf16.mxu0 0
      %8060 = vmatpush1.bf16.msra.mxu0 %v7742
      %8061 = vmatprep.subr.bf16.mxu0 0
      %8062 = vmatpush1.bf16.msra.mxu0 %v7743
      %8063 = vmatprep.subr.bf16.mxu0 0
      %8064 = vmatpush1.bf16.msra.mxu0 %v7744
      %8065 = vmatprep.subr.bf16.mxu0 0
      %8066 = vmatpush1.bf16.msra.mxu0 %v7745
      %8067 = vmatprep.subr.bf16.mxu0 0
      %8068 = vmatpush1.bf16.msra.mxu0 %v7746
      %8069 = vmatprep.mubr.bf16.mxu0 %v7393
      %8070 = vmatmul.mubr.bf16.gmra.mrb[0].mxu0 %v7361
      %v8071 = vpop.f32.mrb[0].mxu0
      %v8072 = vadd.f32 %v7975, %v8071
      %v8073 = vpop.f32.mrb[0].mxu0
      %v8074 = vpop.f32.mrb[0].mxu0
      %v8075 = vadd.f32 %v7978, %v8074
      %v8076 = vpop.f32.mrb[0].mxu0
      %8077 = vmatprep.mubr.bf16.mxu0 %v7397
      %8078 = vmatmul.mubr.bf16.gmra.mrb[0].mxu0 %v7365
      %v8079 = vpop.f32.mrb[0].mxu0
      %v8080 = vadd.f32 %v7983, %v8079
      %v8081 = vpop.f32.mrb[0].mxu0
      %v8082 = vpop.f32.mrb[0].mxu0
      %v8083 = vadd.f32 %v7986, %v8082
      %v8084 = vpop.f32.mrb[0].mxu0
      %8085 = vmatprep.mubr.bf16.mxu0 %v7401
      %8086 = vmatmul.mubr.bf16.gmra.mrb[0].mxu0 %v7369
      %v8087 = vpop.f32.mrb[0].mxu0
      %v8088 = vadd.f32 %v7991, %v8087
      %v8089 = vpop.f32.mrb[0].mxu0
      %v8090 = vpop.f32.mrb[0].mxu0
      %v8091 = vadd.f32 %v7994, %v8090
      %v8092 = vpop.f32.mrb[0].mxu0
      %8093 = vmatprep.mubr.bf16.mxu0 %v7405
      %8094 = vmatmul.mubr.bf16.gmra.mrb[0].mxu0 %v7373
      %v8095 = vpop.f32.mrb[0].mxu0
      %v8096 = vadd.f32 %v7999, %v8095
      %v8097 = vpop.f32.mrb[0].mxu0
      %v8098 = vpop.f32.mrb[0].mxu0
      %v8099 = vadd.f32 %v8002, %v8098
      %v8100 = vpop.f32.mrb[0].mxu0
      %8101 = vmatprep.mubr.bf16.mxu0 %v7409
      %8102 = vmatmul.mubr.bf16.gmra.mrb[0].mxu0 %v7377
      %v8103 = vpop.f32.mrb[0].mxu0
      %v8104 = vadd.f32 %v8007, %v8103
      %v8105 = vpop.f32.mrb[0].mxu0
      %v8106 = vpop.f32.mrb[0].mxu0
      %v8107 = vadd.f32 %v8010, %v8106
      %v8108 = vpop.f32.mrb[0].mxu0
      %8109 = vmatprep.mubr.bf16.mxu0 %v7413
      %8110 = vmatmul.mubr.bf16.gmra.mrb[0].mxu0 %v7381
      %v8111 = vpop.f32.mrb[0].mxu0
      %v8112 = vadd.f32 %v8015, %v8111
      %v8113 = vpop.f32.mrb[0].mxu0
      %v8114 = vpop.f32.mrb[0].mxu0
      %v8115 = vadd.f32 %v8018, %v8114
      %v8116 = vpop.f32.mrb[0].mxu0
      %8117 = vmatprep.mubr.bf16.mxu0 %v7417
      %8118 = vmatmul.mubr.bf16.gmra.mrb[0].mxu0 %v7385
      %v8119 = vpop.f32.mrb[0].mxu0
      %v8120 = vadd.f32 %v8023, %v8119
      %v8121 = vpop.f32.mrb[0].mxu0
      %v8122 = vpop.f32.mrb[0].mxu0
      %v8123 = vadd.f32 %v8026, %v8122
      %v8124 = vpop.f32.mrb[0].mxu0
      %8125 = vmatprep.mubr.bf16.mxu0 %v7421
      %8126 = vmatmul.mubr.bf16.gmra.mrb[0].mxu0 %v7389
      %v8127 = vpop.f32.mrb[0].mxu0
      %v8128 = vadd.f32 %v8031, %v8127
      %v8129 = vpop.f32.mrb[0].mxu0
      %v8130 = vpop.f32.mrb[0].mxu0
      %v8131 = vadd.f32 %v8034, %v8130
      %v8132 = vpop.f32.mrb[0].mxu0
      %8133 = vdwg.mxu0
      %8134 = vmatprep.subr.bf16.mxu0 0
      %8135 = vmatpush1.bf16.msra.mxu0 %v7747
      %8136 = vmatprep.subr.bf16.mxu0 0
      %8137 = vmatpush1.bf16.msra.mxu0 %v7748
      %8138 = vmatprep.subr.bf16.mxu0 0
      %8139 = vmatpush1.bf16.msra.mxu0 %v7749
      %8140 = vmatprep.subr.bf16.mxu0 0
      %8141 = vmatpush1.bf16.msra.mxu0 %v7750
      %8142 = vmatprep.subr.bf16.mxu0 0
      %8143 = vmatpush1.bf16.msra.mxu0 %v7751
      %8144 = vmatprep.subr.bf16.mxu0 0
      %8145 = vmatpush1.bf16.msra.mxu0 %v7752
      %8146 = vmatprep.subr.bf16.mxu0 0
      %8147 = vmatpush1.bf16.msra.mxu0 %v7753
      %8148 = vmatprep.subr.bf16.mxu0 0
      %8149 = vmatpush1.bf16.msra.mxu0 %v7754
      %8150 = vmatprep.subr.bf16.mxu0 0
      %8151 = vmatpush1.bf16.msra.mxu0 %v7755
      %8152 = vmatprep.subr.bf16.mxu0 0
      %8153 = vmatpush1.bf16.msra.mxu0 %v7756
      %8154 = vmatprep.subr.bf16.mxu0 0
      %8155 = vmatpush1.bf16.msra.mxu0 %v7757
      %8156 = vmatprep.subr.bf16.mxu0 0
      %8157 = vmatpush1.bf16.msra.mxu0 %v7758
      %8158 = vmatprep.subr.bf16.mxu0 0
      %8159 = vmatpush1.bf16.msra.mxu0 0
      %8160 = vmatprep.subr.bf16.mxu0 0
      %8161 = vmatpush1.bf16.msra.mxu0 0
      %8162 = vmatprep.subr.bf16.mxu0 0
      %8163 = vmatpush1.bf16.msra.mxu0 0
      %8164 = vmatprep.subr.bf16.mxu0 0
      %8165 = vmatpush1.bf16.msra.mxu0 0
      %8166 = vmatprep.mubr.bf16.mxu0 %v7820
      %8167 = vmatmul.mubr.bf16.gmra.mrb[0].mxu0 %v7425
      %v8168 = vpop.f32.mrb[0].mxu0
      %v8169 = vadd.f32 %v8072, %v8168
      %v8170 = vpop.f32.mrb[0].mxu0
      %v8171 = vpop.f32.mrb[0].mxu0
      %v8172 = vadd.f32 %v8075, %v8171
      %v8173 = vpop.f32.mrb[0].mxu0
      %8174 = vmatprep.mubr.bf16.mxu0 %v7823
      %8175 = vmatmul.mubr.bf16.gmra.mrb[0].mxu0 %v7429
      %v8176 = vpop.f32.mrb[0].mxu0
      %v8177 = vadd.f32 %v8080, %v8176
      %v8178 = vpop.f32.mrb[0].mxu0
      %v8179 = vpop.f32.mrb[0].mxu0
      %v8180 = vadd.f32 %v8083, %v8179
      %v8181 = vpop.f32.mrb[0].mxu0
      %8182 = vmatprep.mubr.bf16.mxu0 %v7826
      %8183 = vmatmul.mubr.bf16.gmra.mrb[0].mxu0 %v7433
      %v8184 = vpop.f32.mrb[0].mxu0
      %v8185 = vadd.f32 %v8088, %v8184
      %v8186 = vpop.f32.mrb[0].mxu0
      %v8187 = vpop.f32.mrb[0].mxu0
      %v8188 = vadd.f32 %v8091, %v8187
      %v8189 = vpop.f32.mrb[0].mxu0
      %8190 = vmatprep.mubr.bf16.mxu0 %v7829
      %8191 = vmatmul.mubr.bf16.gmra.mrb[0].mxu0 %v7437
      %v8192 = vpop.f32.mrb[0].mxu0
      %v8193 = vadd.f32 %v8096, %v8192
      %v8194 = vpop.f32.mrb[0].mxu0
      %v8195 = vpop.f32.mrb[0].mxu0
      %v8196 = vadd.f32 %v8099, %v8195
      %v8197 = vpop.f32.mrb[0].mxu0
      %8198 = vmatprep.mubr.bf16.mxu0 %v7832
      %8199 = vmatmul.mubr.bf16.gmra.mrb[0].mxu0 %v7441
      %v8200 = vpop.f32.mrb[0].mxu0
      %v8201 = vadd.f32 %v8104, %v8200
      %v8202 = vpop.f32.mrb[0].mxu0
      %v8203 = vpop.f32.mrb[0].mxu0
      %v8204 = vadd.f32 %v8107, %v8203
      %v8205 = vpop.f32.mrb[0].mxu0
      %8206 = vmatprep.mubr.bf16.mxu0 %v7835
      %8207 = vmatmul.mubr.bf16.gmra.mrb[0].mxu0 %v7445
      %v8208 = vpop.f32.mrb[0].mxu0
      %v8209 = vadd.f32 %v8112, %v8208
      %v8210 = vpop.f32.mrb[0].mxu0
      %v8211 = vpop.f32.mrb[0].mxu0
      %v8212 = vadd.f32 %v8115, %v8211
      %v8213 = vpop.f32.mrb[0].mxu0
      %8214 = vmatprep.mubr.bf16.mxu0 %v7838
      %8215 = vmatmul.mubr.bf16.gmra.mrb[0].mxu0 %v7449
      %v8216 = vpop.f32.mrb[0].mxu0
      %v8217 = vadd.f32 %v8120, %v8216
      %v8218 = vpop.f32.mrb[0].mxu0
      %v8219 = vpop.f32.mrb[0].mxu0
      %v8220 = vadd.f32 %v8123, %v8219
      %v8221 = vpop.f32.mrb[0].mxu0
      %8222 = vmatprep.mubr.bf16.mxu0 %v7841
      %8223 = vmatmul.mubr.bf16.gmra.mrb[0].mxu0 %v7453
      %v8224 = vpop.f32.mrb[0].mxu0
      %v8225 = vadd.f32 %v8128, %v8224
      %v8226 = vpop.f32.mrb[0].mxu0
      %v8227 = vpop.f32.mrb[0].mxu0
      %v8228 = vadd.f32 %v8131, %v8227
      %v8229 = vpop.f32.mrb[0].mxu0
      %8230 = vdwg.mxu0
      %v8231 = vlaneseq
      %v8232 = vand.u32 %v8231, 127
      %vm8233 = vcmp.lt.s32.totalorder %v8232, 0
      %v8234 = vsub.s32 0, %v8232
      %v8235 = vsel %vm8233, %v8234, %v8232
      %v8236 = vshrl.u32 %v8235, 2
      %v8237 = vand.u32 %v8235, 3
      %v8238 = vsub.s32 0, %v8237
      %v8239 = vsel %vm8233, %v8238, %v8237
      %vm8240 = vcmp.ne.s32.totalorder %v8239, 0
      %vm8241 = vcmp.lt.s32.totalorder %v8239, 0
      %vm8242 = vmand %vm8241, %vm8240
      %v8243 = vadd.s32 %v8239, 4
      %v8244 = vsel %vm8242, %v8243, %v8239
      %vm8245 = vcmp.eq.s32.totalorder %v8244, 0
      %v8246 = vmul.f32 %v8169, 0.5
      %v8247 = vmul.f32 %v8172, 0.5
      %v8248 = vmul.f32 %v8177, 0.5
      %v8249 = vmul.f32 %v8180, 0.5
      %v8250 = vmul.f32 %v8185, 0.5
      %v8251 = vmul.f32 %v8188, 0.5
      %v8252 = vmul.f32 %v8193, 0.5
      %v8253 = vmul.f32 %v8196, 0.5
      %v8254 = vmul.f32 %v8201, 0.5
      %v8255 = vmul.f32 %v8204, 0.5
      %v8256 = vmul.f32 %v8209, 0.5
      %v8257 = vmul.f32 %v8212, 0.5
      %v8258 = vmul.f32 %v8217, 0.5
      %v8259 = vmul.f32 %v8220, 0.5
      %v8260 = vmul.f32 %v8225, 0.5
      %v8261 = vmul.f32 %v8228, 0.5
      %v8262 = vsel %vm8245, %v8246, %v8169
      %v8263 = vsel %vm8245, %v8247, %v8172
      %v8264 = vsel %vm8245, %v8248, %v8177
      %v8265 = vsel %vm8245, %v8249, %v8180
      %v8266 = vsel %vm8245, %v8250, %v8185
      %v8267 = vsel %vm8245, %v8251, %v8188
      %v8268 = vsel %vm8245, %v8252, %v8193
      %v8269 = vsel %vm8245, %v8253, %v8196
      %v8270 = vsel %vm8245, %v8254, %v8201
      %v8271 = vsel %vm8245, %v8255, %v8204
      %v8272 = vsel %vm8245, %v8256, %v8209
      %v8273 = vsel %vm8245, %v8257, %v8212
      %v8274 = vsel %vm8245, %v8258, %v8217
      %v8275 = vsel %vm8245, %v8259, %v8220
      %v8276 = vsel %vm8245, %v8260, %v8225
      %v8277 = vsel %vm8245, %v8261, %v8228
      %v8278 = vtanh.pop %v8262
      %v8279 = vtanh.pop %v8263
      %v8280 = vtanh.pop %v8264
      %v8281 = vtanh.pop %v8265
      %v8282 = vtanh.pop %v8266
      %v8283 = vtanh.pop %v8267
      %v8284 = vtanh.pop %v8268
      %v8285 = vtanh.pop %v8269
      %v8286 = vtanh.pop %v8270
      %v8287 = vtanh.pop %v8271
      %v8288 = vtanh.pop %v8272
      %v8289 = vtanh.pop %v8273
      %v8290 = vtanh.pop %v8274
      %v8291 = vtanh.pop %v8275
      %v8292 = vtanh.pop %v8276
      %v8293 = vtanh.pop %v8277
      %v8294 = vadd.f32 %v8278, 1.0
      %v8295 = vadd.f32 %v8279, 1.0
      %v8296 = vadd.f32 %v8280, 1.0
      %v8297 = vadd.f32 %v8281, 1.0
      %v8298 = vadd.f32 %v8282, 1.0
      %v8299 = vadd.f32 %v8283, 1.0
      %v8300 = vadd.f32 %v8284, 1.0
      %v8301 = vadd.f32 %v8285, 1.0
      %v8302 = vadd.f32 %v8286, 1.0
      %v8303 = vadd.f32 %v8287, 1.0
      %v8304 = vadd.f32 %v8288, 1.0
      %v8305 = vadd.f32 %v8289, 1.0
      %v8306 = vadd.f32 %v8290, 1.0
      %v8307 = vadd.f32 %v8291, 1.0
      %v8308 = vadd.f32 %v8292, 1.0
      %v8309 = vadd.f32 %v8293, 1.0
      %v8310 = vmul.f32 %v8294, 0.5
      %v8311 = vmul.f32 %v8295, 0.5
      %v8312 = vmul.f32 %v8296, 0.5
      %v8313 = vmul.f32 %v8297, 0.5
      %v8314 = vmul.f32 %v8298, 0.5
      %v8315 = vmul.f32 %v8299, 0.5
      %v8316 = vmul.f32 %v8300, 0.5
      %v8317 = vmul.f32 %v8301, 0.5
      %v8318 = vmul.f32 %v8302, 0.5
      %v8319 = vmul.f32 %v8303, 0.5
      %v8320 = vmul.f32 %v8304, 0.5
      %v8321 = vmul.f32 %v8305, 0.5
      %v8322 = vmul.f32 %v8306, 0.5
      %v8323 = vmul.f32 %v8307, 0.5
      %v8324 = vmul.f32 %v8308, 0.5
      %v8325 = vmul.f32 %v8309, 0.5
      %v8326 = vsel %vm8245, %v8310, %v8278
      %v8327 = vsel %vm8245, %v8311, %v8279
      %v8328 = vsel %vm8245, %v8312, %v8280
      %v8329 = vsel %vm8245, %v8313, %v8281
      %v8330 = vsel %vm8245, %v8314, %v8282
      %v8331 = vsel %vm8245, %v8315, %v8283
      %v8332 = vsel %vm8245, %v8316, %v8284
      %v8333 = vsel %vm8245, %v8317, %v8285
      %v8334 = vsel %vm8245, %v8318, %v8286
      %v8335 = vsel %vm8245, %v8319, %v8287
      %v8336 = vsel %vm8245, %v8320, %v8288
      %v8337 = vsel %vm8245, %v8321, %v8289
      %v8338 = vsel %vm8245, %v8322, %v8290
      %v8339 = vsel %vm8245, %v8323, %v8291
      %v8340 = vsel %vm8245, %v8324, %v8292
      %v8341 = vsel %vm8245, %v8325, %v8293
      %8342 = vst.msk [vmem:[%s333] sm:$0xff] %vm340, %v8326
      %8343 = vst.msk [vmem:[%s333 + $0x8] sm:$0xff] %vm340, %v8327
      %8344 = vst.msk [vmem:[%s333 + $0x10] sm:$0xff] %vm340, %v8328
      %8345 = vst.msk [vmem:[%s333 + $0x18] sm:$0xff] %vm340, %v8329
      %8346 = vst.msk [vmem:[%s333 + $0x20] sm:$0xff] %vm340, %v8330
      %8347 = vst.msk [vmem:[%s333 + $0x28] sm:$0xff] %vm340, %v8331
      %8348 = vst.msk [vmem:[%s333 + $0x30] sm:$0xff] %vm340, %v8332
      %8349 = vst.msk [vmem:[%s333 + $0x38] sm:$0xff] %vm340, %v8333
      %8350 = vst.msk [vmem:[%s333 + $0x40] sm:$0xff] %vm340, %v8334
      %8351 = vst.msk [vmem:[%s333 + $0x48] sm:$0xff] %vm340, %v8335
      %8352 = vst.msk [vmem:[%s333 + $0x50] sm:$0xff] %vm340, %v8336
      %8353 = vst.msk [vmem:[%s333 + $0x58] sm:$0xff] %vm340, %v8337
      %8354 = vst.msk [vmem:[%s333 + $0x60] sm:$0xff] %vm340, %v8338
      %8355 = vst.msk [vmem:[%s333 + $0x68] sm:$0xff] %vm340, %v8339
      %8356 = vst.msk [vmem:[%s333 + $0x70] sm:$0xff] %vm340, %v8340
      %8357 = vst.msk [vmem:[%s333 + $0x78] sm:$0xff] %vm340, %v8341
      %v8358 = vld [vmem:[%s6] sm:$0xff]
      %v8359 = vld [vmem:[%s6 + $0x8] sm:$0xff]
      %v8360 = vld [vmem:[%s6 + $0x10] sm:$0xff]
      %v8361 = vld [vmem:[%s6 + $0x18] sm:$0xff]
      %v8362 = vld [vmem:[%s6 + $0x20] sm:$0xff]
      %v8363 = vld [vmem:[%s6 + $0x28] sm:$0xff]
      %v8364 = vld [vmem:[%s6 + $0x30] sm:$0xff]
      %v8365 = vld [vmem:[%s6 + $0x38] sm:$0xff]
      %v8367 = vsel %vm340, %v8326, 0
      %v8370 = vsel %vm340, %v8327, 0
      %v8373 = vsel %vm340, %v8328, 0
      %v8376 = vsel %vm340, %v8329, 0
      %v8379 = vsel %vm340, %v8330, 0
      %v8382 = vsel %vm340, %v8331, 0
      %v8385 = vsel %vm340, %v8332, 0
      %v8388 = vsel %vm340, %v8333, 0
      %v8391 = vsel %vm340, %v8334, 0
      %v8394 = vsel %vm340, %v8335, 0
      %v8397 = vsel %vm340, %v8336, 0
      %v8400 = vsel %vm340, %v8337, 0
      %v8403 = vsel %vm340, %v8338, 0
      %v8406 = vsel %vm340, %v8339, 0
      %v8409 = vsel %vm340, %v8340, 0
      %v8412 = vsel %vm340, %v8341, 0
      %8414 = vmatprep.subr.mxu0 0.0
      %8415 = vmatpush1.msra.mxu0 %v8358
      %8416 = vmatprep.subr.mxu0 0.0
      %8417 = vmatpush1.msra.mxu0 %v8359
      %8418 = vmatprep.subr.mxu0 0.0
      %8419 = vmatpush1.msra.mxu0 %v8360
      %8420 = vmatprep.subr.mxu0 0.0
      %8421 = vmatpush1.msra.mxu0 %v8361
      %8422 = vmatprep.subr.mxu0 0.0
      %8423 = vmatpush1.msra.mxu0 %v8362
      %8424 = vmatprep.subr.mxu0 0.0
      %8425 = vmatpush1.msra.mxu0 %v8363
      %8426 = vmatprep.subr.mxu0 0.0
      %8427 = vmatpush1.msra.mxu0 %v8364
      %8428 = vmatprep.subr.mxu0 0.0
      %8429 = vmatpush1.msra.mxu0 %v8365
      %8430 = vmatprep.subr.mxu0 0.0
      %8431 = vmatpush1.msra.mxu0 0.0
      %8432 = vmatprep.subr.mxu0 0.0
      %8433 = vmatpush1.msra.mxu0 0.0
      %8434 = vmatprep.subr.mxu0 0.0
      %8435 = vmatpush1.msra.mxu0 0.0
      %8436 = vmatprep.subr.mxu0 0.0
      %8437 = vmatpush1.msra.mxu0 0.0
      %8438 = vmatprep.subr.mxu0 0.0
      %8439 = vmatpush1.msra.mxu0 0.0
      %8440 = vmatprep.subr.mxu0 0.0
      %8441 = vmatpush1.msra.mxu0 0.0
      %8442 = vmatprep.subr.mxu0 0.0
      %8443 = vmatpush1.msra.mxu0 0.0
      %8444 = vmatprep.subr.mxu0 0.0
      %8445 = vmatpush1.msra.mxu0 0.0
      %8446 = vmatprep.subr.mxu0 0.0
      %8447 = vmatpush1.msra.mxu0 0.0
      %8448 = vmatprep.subr.mxu0 0.0
      %8449 = vmatpush1.msra.mxu0 0.0
      %8450 = vmatprep.subr.mxu0 0.0
      %8451 = vmatpush1.msra.mxu0 0.0
      %8452 = vmatprep.subr.mxu0 0.0
      %8453 = vmatpush1.msra.mxu0 0.0
      %8454 = vmatprep.subr.mxu0 0.0
      %8455 = vmatpush1.msra.mxu0 0.0
      %8456 = vmatprep.subr.mxu0 0.0
      %8457 = vmatpush1.msra.mxu0 0.0
      %8458 = vmatprep.subr.mxu0 0.0
      %8459 = vmatpush1.msra.mxu0 0.0
      %8460 = vmatprep.subr.mxu0 0.0
      %8461 = vmatpush1.msra.mxu0 0.0
      %8462 = vmatprep.subr.mxu0 0.0
      %8463 = vmatpush1.msra.mxu0 0.0
      %8464 = vmatprep.subr.mxu0 0.0
      %8465 = vmatpush1.msra.mxu0 0.0
      %8466 = vmatprep.subr.mxu0 0.0
      %8467 = vmatpush1.msra.mxu0 0.0
      %8468 = vmatprep.subr.mxu0 0.0
      %8469 = vmatpush1.msra.mxu0 0.0
      %8470 = vmatprep.subr.mxu0 0.0
      %8471 = vmatpush1.msra.mxu0 0.0
      %8472 = vmatprep.subr.mxu0 0.0
      %8473 = vmatpush1.msra.mxu0 0.0
      %8474 = vmatprep.subr.mxu0 0.0
      %8475 = vmatpush1.msra.mxu0 0.0
      %8476 = vmatprep.subr.mxu0 0.0
      %8477 = vmatpush1.msra.mxu0 0.0
      %8478 = vmatprep.mubr.f32.mxu0 0.0
      %8479 = vmatmul.mubr.f32.gmra.mrb[0].mxu0 %v8367
      %v8480 = vpop.f32.mrb[0].mxu0
      %v8481 = vadd.f32 0.0, %v8480
      %v8482 = vpop.f32.mrb[0].mxu0
      %8483 = vmatprep.mubr.f32.mxu0 0.0
      %8484 = vmatmul.mubr.f32.gmra.mrb[0].mxu0 %v8370
      %v8485 = vpop.f32.mrb[0].mxu0
      %v8486 = vadd.f32 0.0, %v8485
      %v8487 = vpop.f32.mrb[0].mxu0
      %8488 = vmatprep.mubr.f32.mxu0 0.0
      %8489 = vmatmul.mubr.f32.gmra.mrb[0].mxu0 %v8373
      %v8490 = vpop.f32.mrb[0].mxu0
      %v8491 = vadd.f32 0.0, %v8490
      %v8492 = vpop.f32.mrb[0].mxu0
      %8493 = vmatprep.mubr.f32.mxu0 0.0
      %8494 = vmatmul.mubr.f32.gmra.mrb[0].mxu0 %v8376
      %v8495 = vpop.f32.mrb[0].mxu0
      %v8496 = vadd.f32 0.0, %v8495
      %v8497 = vpop.f32.mrb[0].mxu0
      %8498 = vmatprep.mubr.f32.mxu0 0.0
      %8499 = vmatmul.mubr.f32.gmra.mrb[0].mxu0 %v8379
      %v8500 = vpop.f32.mrb[0].mxu0
      %v8501 = vadd.f32 0.0, %v8500
      %v8502 = vpop.f32.mrb[0].mxu0
      %8503 = vmatprep.mubr.f32.mxu0 0.0
      %8504 = vmatmul.mubr.f32.gmra.mrb[0].mxu0 %v8382
      %v8505 = vpop.f32.mrb[0].mxu0
      %v8506 = vadd.f32 0.0, %v8505
      %v8507 = vpop.f32.mrb[0].mxu0
      %8508 = vmatprep.mubr.f32.mxu0 0.0
      %8509 = vmatmul.mubr.f32.gmra.mrb[0].mxu0 %v8385
      %v8510 = vpop.f32.mrb[0].mxu0
      %v8511 = vadd.f32 0.0, %v8510
      %v8512 = vpop.f32.mrb[0].mxu0
      %8513 = vmatprep.mubr.f32.mxu0 0.0
      %8514 = vmatmul.mubr.f32.gmra.mrb[0].mxu0 %v8388
      %v8515 = vpop.f32.mrb[0].mxu0
      %v8516 = vadd.f32 0.0, %v8515
      %v8517 = vpop.f32.mrb[0].mxu0
      %8518 = vmatprep.mubr.f32.mxu0 0.0
      %8519 = vmatmul.mubr.f32.gmra.mrb[0].mxu0 %v8391
      %v8520 = vpop.f32.mrb[0].mxu0
      %v8521 = vadd.f32 0.0, %v8520
      %v8522 = vpop.f32.mrb[0].mxu0
      %8523 = vmatprep.mubr.f32.mxu0 0.0
      %8524 = vmatmul.mubr.f32.gmra.mrb[0].mxu0 %v8394
      %v8525 = vpop.f32.mrb[0].mxu0
      %v8526 = vadd.f32 0.0, %v8525
      %v8527 = vpop.f32.mrb[0].mxu0
      %8528 = vmatprep.mubr.f32.mxu0 0.0
      %8529 = vmatmul.mubr.f32.gmra.mrb[0].mxu0 %v8397
      %v8530 = vpop.f32.mrb[0].mxu0
      %v8531 = vadd.f32 0.0, %v8530
      %v8532 = vpop.f32.mrb[0].mxu0
      %8533 = vmatprep.mubr.f32.mxu0 0.0
      %8534 = vmatmul.mubr.f32.gmra.mrb[0].mxu0 %v8400
      %v8535 = vpop.f32.mrb[0].mxu0
      %v8536 = vadd.f32 0.0, %v8535
      %v8537 = vpop.f32.mrb[0].mxu0
      %8538 = vmatprep.mubr.f32.mxu0 0.0
      %8539 = vmatmul.mubr.f32.gmra.mrb[0].mxu0 %v8403
      %v8540 = vpop.f32.mrb[0].mxu0
      %v8541 = vadd.f32 0.0, %v8540
      %v8542 = vpop.f32.mrb[0].mxu0
      %8543 = vmatprep.mubr.f32.mxu0 0.0
      %8544 = vmatmul.mubr.f32.gmra.mrb[0].mxu0 %v8406
      %v8545 = vpop.f32.mrb[0].mxu0
      %v8546 = vadd.f32 0.0, %v8545
      %v8547 = vpop.f32.mrb[0].mxu0
      %8548 = vmatprep.mubr.f32.mxu0 0.0
      %8549 = vmatmul.mubr.f32.gmra.mrb[0].mxu0 %v8409
      %v8550 = vpop.f32.mrb[0].mxu0
      %v8551 = vadd.f32 0.0, %v8550
      %v8552 = vpop.f32.mrb[0].mxu0
      %8553 = vmatprep.mubr.f32.mxu0 0.0
      %8554 = vmatmul.mubr.f32.gmra.mrb[0].mxu0 %v8412
      %v8555 = vpop.f32.mrb[0].mxu0
      %v8556 = vadd.f32 0.0, %v8555
      %v8557 = vpop.f32.mrb[0].mxu0
      %8558 = vdwg.mxu0
      %v8559 = vld [vmem:[%s328] sm:$0xff]
      %v8560 = vld [vmem:[%s328 + $0x8] sm:$0xff]
      %v8561 = vld [vmem:[%s328 + $0x10] sm:$0xff]
      %v8562 = vld [vmem:[%s328 + $0x18] sm:$0xff]
      %v8563 = vld [vmem:[%s328 + $0x20] sm:$0xff]
      %v8564 = vld [vmem:[%s328 + $0x28] sm:$0xff]
      %v8565 = vld [vmem:[%s328 + $0x30] sm:$0xff]
      %v8566 = vld [vmem:[%s328 + $0x38] sm:$0xff]
      %v8567 = vld [vmem:[%s328 + $0x40] sm:$0xff]
      %v8568 = vld [vmem:[%s328 + $0x48] sm:$0xff]
      %v8569 = vld [vmem:[%s328 + $0x50] sm:$0xff]
      %v8570 = vld [vmem:[%s328 + $0x58] sm:$0xff]
      %v8571 = vld [vmem:[%s328 + $0x60] sm:$0xff]
      %v8572 = vld [vmem:[%s328 + $0x68] sm:$0xff]
      %v8573 = vld [vmem:[%s328 + $0x70] sm:$0xff]
      %v8574 = vld [vmem:[%s328 + $0x78] sm:$0xff]
      %v8575 = vmul.f32 %v8481, %v8559
      %v8576 = vmul.f32 %v8486, %v8560
      %v8577 = vmul.f32 %v8491, %v8561
      %v8578 = vmul.f32 %v8496, %v8562
      %v8579 = vmul.f32 %v8501, %v8563
      %v8580 = vmul.f32 %v8506, %v8564
      %v8581 = vmul.f32 %v8511, %v8565
      %v8582 = vmul.f32 %v8516, %v8566
      %v8583 = vmul.f32 %v8521, %v8567
      %v8584 = vmul.f32 %v8526, %v8568
      %v8585 = vmul.f32 %v8531, %v8569
      %v8586 = vmul.f32 %v8536, %v8570
      %v8587 = vmul.f32 %v8541, %v8571
      %v8588 = vmul.f32 %v8546, %v8572
      %v8589 = vmul.f32 %v8551, %v8573
      %v8590 = vmul.f32 %v8556, %v8574
      %v8591 = vsub.f32 1.0, %v8481
      %v8592 = vsub.f32 1.0, %v8486
      %v8593 = vsub.f32 1.0, %v8491
      %v8594 = vsub.f32 1.0, %v8496
      %v8595 = vsub.f32 1.0, %v8501
      %v8596 = vsub.f32 1.0, %v8506
      %v8597 = vsub.f32 1.0, %v8511
      %v8598 = vsub.f32 1.0, %v8516
      %v8599 = vsub.f32 1.0, %v8521
      %v8600 = vsub.f32 1.0, %v8526
      %v8601 = vsub.f32 1.0, %v8531
      %v8602 = vsub.f32 1.0, %v8536
      %v8603 = vsub.f32 1.0, %v8541
      %v8604 = vsub.f32 1.0, %v8546
      %v8605 = vsub.f32 1.0, %v8551
      %v8606 = vsub.f32 1.0, %v8556
      %8623 = vrot.lane.b32.xlu0 %v8481, 80
      %v8624 = vpop.permute.xlu0 %8623
      %8625 = vrot.lane.b32.xlu0 %v8486, 80
      %v8626 = vpop.permute.xlu0 %8625
      %8627 = vrot.lane.b32.xlu0 %v8491, 80
      %v8628 = vpop.permute.xlu0 %8627
      %8629 = vrot.lane.b32.xlu0 %v8496, 80
      %v8630 = vpop.permute.xlu0 %8629
      %8631 = vrot.lane.b32.xlu0 %v8501, 80
      %v8632 = vpop.permute.xlu0 %8631
      %8633 = vrot.lane.b32.xlu0 %v8506, 80
      %v8634 = vpop.permute.xlu0 %8633
      %8635 = vrot.lane.b32.xlu0 %v8511, 80
      %v8636 = vpop.permute.xlu0 %8635
      %8637 = vrot.lane.b32.xlu0 %v8516, 80
      %v8638 = vpop.permute.xlu0 %8637
      %8639 = vrot.lane.b32.xlu0 %v8521, 80
      %v8640 = vpop.permute.xlu0 %8639
      %8641 = vrot.lane.b32.xlu0 %v8526, 80
      %v8642 = vpop.permute.xlu0 %8641
      %8643 = vrot.lane.b32.xlu0 %v8531, 80
      %v8644 = vpop.permute.xlu0 %8643
      %8645 = vrot.lane.b32.xlu0 %v8536, 80
      %v8646 = vpop.permute.xlu0 %8645
      %8647 = vrot.lane.b32.xlu0 %v8541, 80
      %v8648 = vpop.permute.xlu0 %8647
      %8649 = vrot.lane.b32.xlu0 %v8546, 80
      %v8650 = vpop.permute.xlu0 %8649
      %8651 = vrot.lane.b32.xlu0 %v8551, 80
      %v8652 = vpop.permute.xlu0 %8651
      %8653 = vrot.lane.b32.xlu0 %v8556, 80
      %v8654 = vpop.permute.xlu0 %8653
      %v8671 = vmul.f32 %v8591, %v8624
      %v8672 = vmul.f32 %v8592, %v8626
      %v8673 = vmul.f32 %v8593, %v8628
      %v8674 = vmul.f32 %v8594, %v8630
      %v8675 = vmul.f32 %v8595, %v8632
      %v8676 = vmul.f32 %v8596, %v8634
      %v8677 = vmul.f32 %v8597, %v8636
      %v8678 = vmul.f32 %v8598, %v8638
      %v8679 = vmul.f32 %v8599, %v8640
      %v8680 = vmul.f32 %v8600, %v8642
      %v8681 = vmul.f32 %v8601, %v8644
      %v8682 = vmul.f32 %v8602, %v8646
      %v8683 = vmul.f32 %v8603, %v8648
      %v8684 = vmul.f32 %v8604, %v8650
      %v8685 = vmul.f32 %v8605, %v8652
      %v8686 = vmul.f32 %v8606, %v8654
      %v8687 = vadd.f32 %v8575, %v8671
      %v8688 = vadd.f32 %v8576, %v8672
      %v8689 = vadd.f32 %v8577, %v8673
      %v8690 = vadd.f32 %v8578, %v8674
      %v8691 = vadd.f32 %v8579, %v8675
      %v8692 = vadd.f32 %v8580, %v8676
      %v8693 = vadd.f32 %v8581, %v8677
      %v8694 = vadd.f32 %v8582, %v8678
      %v8695 = vadd.f32 %v8583, %v8679
      %v8696 = vadd.f32 %v8584, %v8680
      %v8697 = vadd.f32 %v8585, %v8681
      %v8698 = vadd.f32 %v8586, %v8682
      %v8699 = vadd.f32 %v8587, %v8683
      %v8700 = vadd.f32 %v8588, %v8684
      %v8701 = vadd.f32 %v8589, %v8685
      %v8702 = vadd.f32 %v8590, %v8686
      %vm8703 = vcmask 392192
      %8704 = vst.msk [vmem:[%s338] sm:$0xff] %vm8703, %v8687
      %8705 = vst.msk [vmem:[%s338 + $0x8] sm:$0xff] %vm8703, %v8688
      %8706 = vst.msk [vmem:[%s338 + $0x10] sm:$0xff] %vm8703, %v8689
      %8707 = vst.msk [vmem:[%s338 + $0x18] sm:$0xff] %vm8703, %v8690
      %8708 = vst.msk [vmem:[%s338 + $0x20] sm:$0xff] %vm8703, %v8691
      %8709 = vst.msk [vmem:[%s338 + $0x28] sm:$0xff] %vm8703, %v8692
      %8710 = vst.msk [vmem:[%s338 + $0x30] sm:$0xff] %vm8703, %v8693
      %8711 = vst.msk [vmem:[%s338 + $0x38] sm:$0xff] %vm8703, %v8694
      %8712 = vst.msk [vmem:[%s338 + $0x40] sm:$0xff] %vm8703, %v8695
      %8713 = vst.msk [vmem:[%s338 + $0x48] sm:$0xff] %vm8703, %v8696
      %8714 = vst.msk [vmem:[%s338 + $0x50] sm:$0xff] %vm8703, %v8697
      %8715 = vst.msk [vmem:[%s338 + $0x58] sm:$0xff] %vm8703, %v8698
      %8716 = vst.msk [vmem:[%s338 + $0x60] sm:$0xff] %vm8703, %v8699
      %8717 = vst.msk [vmem:[%s338 + $0x68] sm:$0xff] %vm8703, %v8700
      %8718 = vst.msk [vmem:[%s338 + $0x70] sm:$0xff] %vm8703, %v8701
      %8719 = vst.msk [vmem:[%s338 + $0x78] sm:$0xff] %vm8703, %v8702
      %p8720 = scmp.lt.s32.totalorder %s20, 1
      %s8721 = scalar_select %p8720, %s20, 1
      %s8722 = smul.addr %s8721, 16
      %s8723 = smul.addr %s8722, 8
      %s8724 = scalar_lea.vmem %s7, %s8723
      %p8725 = scmp.lt.s32.totalorder %s20, 1
      %s8726 = scalar_select %p8725, %s20, 1
      %s8727 = smul.addr %s8726, 16
      %s8728 = smul.addr %s8727, 8
      %s8729 = scalar_lea.vmem %s8, %s8728
      // Predicated region
      $region49: #{rppg_att_v2_forward.1} parent=47 // pred_check
        %p8730 = pneg %p195
      $region50: #{rppg_att_v2_forward.1} parent=47 // pred_check_branch
        %8732 = sbr.rel (%p8730) target = $region52
      $region51: #{rppg_att_v2_forward.1} parent=47 // pred_region
        _
      $region52: #{rppg_att_v2_forward.1} parent=47 // pred_fallthru
        _
      // Predicated region
      $region53: #{rppg_att_v2_forward.1} parent=47 // pred_check
        %p8733 = pneg %p221
      $region54: #{rppg_att_v2_forward.1} parent=47 // pred_check_branch
        %8735 = sbr.rel (%p8733) target = $region56
      $region55: #{rppg_att_v2_forward.1} parent=47 // pred_region
        _
      $region56: #{rppg_att_v2_forward.1} parent=47 // pred_fallthru
        _
    $region48: #{rppg_att_v2_forward.1} parent=5 // pred_fallthru
      _
    %p8736 = scmp.le.s32.totalorder 2, %s15
    // Predicated region
    $region57: #{rppg_att_v2_forward.1} parent=5 // pred_check
      %p8737 = pneg %p8736
    $region58: #{rppg_att_v2_forward.1} parent=5 // pred_check_branch
      %8739 = sbr.rel (%p8737) target = $region60
    $region59: #{rppg_att_v2_forward.1} parent=5 // pred_region
      %s8740 = ssub.s32 %s15, 2
      // Predicated region
      $region61: #{rppg_att_v2_forward.1} parent=59 // pred_check
        %p8741 = pneg %p201
      $region62: #{rppg_att_v2_forward.1} parent=59 // pred_check_branch
        %8743 = sbr.rel (%p8741) target = $region64
      $region63: #{rppg_att_v2_forward.1} parent=59 // pred_region
        %p8744 = scmp.lt.s32.totalorder %s21, 1
        %s8745 = scalar_select %p8744, %s21, 1
        %s8746 = smul.addr %s8745, 16
        %s8747 = smul.addr %s8746, 8
        %s8748 = scalar_lea.vmem %s7, %s8747
      $region64: #{rppg_att_v2_forward.1} parent=59 // pred_fallthru
        _
      // Predicated region
      $region65: #{rppg_att_v2_forward.1} parent=59 // pred_check
        %p8749 = pneg %p227
      $region66: #{rppg_att_v2_forward.1} parent=59 // pred_check_branch
        %8751 = sbr.rel (%p8749) target = $region68
      $region67: #{rppg_att_v2_forward.1} parent=59 // pred_region
        %p8752 = scmp.lt.s32.totalorder %s21, 1
        %s8753 = scalar_select %p8752, %s21, 1
        %s8754 = smul.addr %s8753, 16
        %s8755 = smul.addr %s8754, 8
        %s8756 = scalar_lea.vmem %s8, %s8755
      $region68: #{rppg_att_v2_forward.1} parent=59 // pred_fallthru
        _
    $region60: #{rppg_att_v2_forward.1} parent=5 // pred_fallthru
      _
  $region6: #{rppg_att_v2_forward.1} parent=0 // loop_footer
    %s19 = sadd.s32 1, %s15
  $region7: #{rppg_att_v2_forward.1} parent=0 // loop_footer_branch
    %14 = sbr.rel target = $region3
  $region8: #{rppg_att_v2_forward.1} parent=0 // loop_exit
    _

</llo_original>
